<compile_context>
chip_gen: v7x
topology: tpu7x:2x2x1
jax: 0.10.0
libtpu: 0.0.40
codegen_flags: <defaults>
</compile_context>

<pallas_src>
import functools

import jax
import jax.numpy as jnp
from jax.experimental import pallas as pl
from jax.experimental.pallas import tpu as pltpu

# Geometry implied by the PyTorch module:
#   (B,2,14,14) -conv3-> 12 -pool-> 6 -conv3-> 4 -pool-> 2 -conv2-> 1 => view(-1,120)
H0 = W0 = 14
C_IN = 2
G = H0 * W0            # 196 anchor-grid rows per image
_MAX_SHIFT = 64        # pad rows on activation scratches; >= largest in-kernel shift


def _lenet5_fused_kernel(B, x_ref, w1_ref, b1_ref, w2_ref, b2_ref, w3_ref,
                         b3_ref, w4_ref, b4_ref, gamma_ref, beta_ref,
                         w5_ref, b5_ref, o_ref, c1_ref, p1_ref, c2_ref,
                         p2_ref):
    f32 = jnp.float32
    NR = B * G                      # valid anchor-grid rows

    # Deterministic pad tails only (valid rows are always fully overwritten
    # below; invalid/pad rows never feed a valid output row).  p2's pad tail
    # is never read, so it is not touched.
    for r in (c1_ref, p1_ref, c2_ref):
        r[pl.ds(NR, _MAX_SHIFT), :] = jnp.zeros((_MAX_SHIFT, r.shape[1]), f32)

    def maxpool2x2(src_ref, stride):
        # 2x2 / stride-2 max-pool == elementwise max of four row-shifted
        # slices; the pooled map then lives at row-stride 2*stride.
        m = src_ref[pl.ds(0, NR), :]
        for off in (stride, stride * W0, stride * (W0 + 1)):
            m = jnp.maximum(m, src_ref[pl.ds(off, NR), :])
        return m

    # Conv2d(2,16,3) + ReLU: the 9 taps were stacked along the contraction dim
    # in the wrapper -> one K=18 matmul instead of nine K=2 matmuls.
    c1 = jnp.dot(x_ref[...], w1_ref[...], preferred_element_type=f32)
    c1_ref[pl.ds(0, NR), :] = jnp.maximum(c1 + b1_ref[...], 0.0)

    # MaxPool2d(2,2) -> pooled map at row-stride 2.
    p1_ref[pl.ds(0, NR), :] = maxpool2x2(c1_ref, stride=1)

    # Conv2d(16,32,3) + ReLU on the stride-2 grid: per-tap row-shifted slice
    # matmul'd with that tap's (16,32) slab, accumulated over taps.
    acc = None
    for kh in range(3):
        for kw in range(3):
            tap = kh * 3 + kw
            off = 2 * (kh * W0 + kw)
            d = jnp.dot(p1_ref[pl.ds(off, NR), :], w2_ref[tap],
                        preferred_element_type=f32)
            acc = d if acc is None else acc + d
    c2_ref[pl.ds(0, NR), :] = jnp.maximum(acc + b2_ref[...], 0.0)

    # MaxPool2d(2,2) -> pooled map at row-stride 4.
    p2_ref[pl.ds(0, NR), :] = maxpool2x2(c2_ref, stride=2)

    # Conv2d(32,120,2) + ReLU: one sublane-strided read per tap gathers the B
    # per-image rows (no scratch, no per-image copy loop); taps are stacked
    # along K so this is a single (B,128)@(128,120) matmul.
    taps = [p2_ref[pl.ds(4 * (kh * W0 + kw), B, stride=G), :]
            for kh in range(2) for kw in range(2)]
    h = jnp.concatenate(taps, axis=1)                               # (B, 128)
    h = jnp.dot(h, w3_ref[...], preferred_element_type=f32) + b3_ref[...]
    h = jnp.maximum(h, 0.0)                                         # == x.view(-1, 120)

    # linear_layer: Linear(120, 84) + ReLU
    h = jnp.dot(h, w4_ref[...], preferred_element_type=f32) + b4_ref[...]
    h = jnp.maximum(h, 0.0)                                         # (B, 84)

    # BatchNorm1d(84): train-mode batch statistics, biased variance, eps=1e-5.
    # TODO(synk): eval-mode BN (running-stats buffers) is not represented here.
    mean = jnp.mean(h, axis=0, keepdims=True)
    var = jnp.mean((h - mean) ** 2, axis=0, keepdims=True)
    h = (h - mean) * jax.lax.rsqrt(var + 1e-5) * gamma_ref[...] + beta_ref[...]

    # Linear(84, 1) as a VPU multiply + lane reduction (no N=1 MXU pass), then
    # Sigmoid (exp on the EUP).
    z = jnp.sum(h * w5_ref[...], axis=1, keepdims=True) + b5_ref[...]
    o_ref[...] = 1.0 / (1.0 + jnp.exp(-z))


@jax.jit
def lenet5_forward(x, p):
    """x: (B, 2, 14, 14) float32 -> (B, 1) float32, matching LeNet5.forward."""
    B, C, H, W = x.shape
    assert (C, H, W) == (C_IN, H0, W0), "LeNet5 expects (B, 2, 14, 14) inputs"
    NR = B * G
    RPAD = NR + _MAX_SHIFT

    # Largest row shift read inside the kernel (conv2 tap (2,2) on the
    # stride-2 grid) must fit inside the scratch pad tail.
    kernel_max_shift = max(2 * (2 * W0 + 2),      # conv2
                           2 * (W0 + 1),          # pool2
                           W0 + 1)                # pool1
    assert kernel_max_shift <= _MAX_SHIFT, (kernel_max_shift, _MAX_SHIFT)

    # Anchor-grid layout: row = b*196 + h*14 + w, lanes = channels.
    x_rows = jnp.transpose(x, (0, 2, 3, 1)).reshape(NR, C_IN)
    # Stack the 9 conv1 taps along the contraction dim (K = 9*2 = 18): column
    # block `tap` = rows shifted by kh*W0 + kw.  Fuses with the transpose/pad.
    conv1_max_off = 2 * W0 + 2
    x_pad = jnp.pad(x_rows, ((0, conv1_max_off), (0, 0)))
    x_taps = jnp.concatenate(
        [x_pad[kh * W0 + kw: kh * W0 + kw + NR]
         for kh in range(3) for kw in range(3)], axis=1)            # (NR, 18)

    # Per-tap (Cin, Cout) weight slabs (PyTorch Conv2d weights are (Cout, Cin, kh, kw)).
    w1 = jnp.transpose(p["w1"], (2, 3, 1, 0)).reshape(18, 16)       # row = tap*2 + cin
    w2 = jnp.transpose(p["w2"], (2, 3, 1, 0)).reshape(9, 16, 32)    # tap = kh*3 + kw
    w3 = jnp.transpose(p["w3"], (2, 3, 1, 0)).reshape(128, 120)     # row = tap*32 + cin
    w4 = p["w4"].T                                                  # (120, 84)
    w5 = p["w5"].reshape(1, 84)

    args = (
        x_taps,
        w1, p["b1"].reshape(1, 16),
        w2, p["b2"].reshape(1, 32),
        w3, p["b3"].reshape(1, 120),
        w4, p["b4"].reshape(1, 84),
        p["gamma"].reshape(1, 84), p["beta"].reshape(1, 84),
        w5, p["b5"].reshape(1, 1),
    )

    vspec = pl.BlockSpec(memory_space=pltpu.MemorySpace.VMEM)
    # Scratch/activation footprint grows with B (everything lane-padded to
    # 128); raise the scoped VMEM limit accordingly (v5e default is only 16 MiB).
    vmem_bytes = int(min(96 * 2**20, max(32 * 2**20, 12 * RPAD * 128 * 4)))

    return pl.pallas_call(
        functools.partial(_lenet5_fused_kernel, B),
        out_shape=jax.ShapeDtypeStruct((B, 1), jnp.float32),
        # Single invocation (no grid): BatchNorm1d needs full-batch statistics
        # and everything fits comfortably in VMEM as full-array blocks.
        in_specs=[vspec] * len(args),
        out_specs=vspec,
        scratch_shapes=[
            pltpu.VMEM((RPAD, 16), jnp.float32),     # conv1 + ReLU
            pltpu.VMEM((RPAD, 16), jnp.float32),     # pool1
            pltpu.VMEM((RPAD, 32), jnp.float32),     # conv2 + ReLU
            pltpu.VMEM((RPAD, 32), jnp.float32),     # pool2
        ],
        compiler_params=pltpu.CompilerParams(vmem_limit_bytes=vmem_bytes),
    )(*args)


def lenet5_reference(x, p):
    """Pure-JAX reference mirroring the PyTorch module (train-mode BN)."""
    dn = ("NCHW", "OIHW", "NCHW")

    def conv_relu(x, w, b):
        y = jax.lax.conv_general_dilated(x, w, (1, 1), "VALID",
                                         dimension_numbers=dn)
        return jax.nn.relu(y + b.reshape(1, -1, 1, 1))

    def pool(x):
        return jax.lax.reduce_window(x, -jnp.inf, jax.lax.max,
                                     (1, 1, 2, 2), (1, 1, 2, 2), "VALID")

    x = pool(conv_relu(x, p["w1"], p["b1"]))
    x = pool(conv_relu(x, p["w2"], p["b2"]))
    x = conv_relu(x, p["w3"], p["b3"]).reshape(-1, 120)
    x = jax.nn.relu(x @ p["w4"].T + p["b4"])
    mean = x.mean(0, keepdims=True)
    var = ((x - mean) ** 2).mean(0, keepdims=True)
    x = (x - mean) * jax.lax.rsqrt(var + 1e-5) * p["gamma"] + p["beta"]
    return jax.nn.sigmoid(x @ p["w5"].T + p["b5"])


def init_params(key):
    ks = jax.random.split(key, 10)

    def lin_init(k, shape, fan_in):
        return jax.random.normal(k, shape, jnp.float32) / jnp.sqrt(fan_in)

    return {
        "w1": lin_init(ks[0], (16, 2, 3, 3), 2 * 3 * 3),
        "b1": lin_init(ks[1], (16,), 2 * 3 * 3),
        "w2": lin_init(ks[2], (32, 16, 3, 3), 16 * 3 * 3),
        "b2": lin_init(ks[3], (32,), 16 * 3 * 3),
        "w3": lin_init(ks[4], (120, 32, 2, 2), 32 * 2 * 2),
        "b3": lin_init(ks[5], (120,), 32 * 2 * 2),
        "w4": lin_init(ks[6], (84, 120), 120),
        "b4": lin_init(ks[7], (84,), 120),
        "gamma": jnp.ones((84,), jnp.float32),
        "beta": jnp.zeros((84,), jnp.float32),
        "w5": lin_init(ks[8], (1, 84), 84),
        "b5": lin_init(ks[9], (1,), 84),
    }


if __name__ == "__main__":
    key = jax.random.PRNGKey(0)
    kx, kp = jax.random.split(key)
    # Input must be (B, 2, 14, 14): 14 -conv3-> 12 -pool-> 6 -conv3-> 4 -pool-> 2 -conv2-> 1
    x = jax.random.normal(kx, (4, 2, 14, 14), jnp.float32)
    params = init_params(kp)

    out = lenet5_forward(x, params)                  # (4, 1), values in (0, 1)
    jax.block_until_ready(out)
    assert out.shape == (4, 1) and out.dtype == jnp.float32

    ref = lenet5_reference(x, params)
    assert jnp.allclose(out, ref, atol=1e-3, rtol=0.0), (out, ref)
    print("KERNEL_OK")
</pallas_src>

<mosaic_0001>
module attributes {stable_mosaic.version = 11 : i64} {
  func.func @_lenet5_fused_kernel(%arg0: memref<784x18xf32, #tpu.memory_space<vmem>>, %arg1: memref<18x16xf32, #tpu.memory_space<vmem>>, %arg2: memref<1x16xf32, #tpu.memory_space<vmem>>, %arg3: memref<9x16x32xf32, #tpu.memory_space<vmem>>, %arg4: memref<1x32xf32, #tpu.memory_space<vmem>>, %arg5: memref<128x120xf32, #tpu.memory_space<vmem>>, %arg6: memref<1x120xf32, #tpu.memory_space<vmem>>, %arg7: memref<120x84xf32, #tpu.memory_space<vmem>>, %arg8: memref<1x84xf32, #tpu.memory_space<vmem>>, %arg9: memref<1x84xf32, #tpu.memory_space<vmem>>, %arg10: memref<1x84xf32, #tpu.memory_space<vmem>>, %arg11: memref<1x84xf32, #tpu.memory_space<vmem>>, %arg12: memref<1x1xf32, #tpu.memory_space<vmem>>, %arg13: memref<4x1xf32, #tpu.memory_space<vmem>>, %arg14: memref<848x16xf32, #tpu.memory_space<vmem>>, %arg15: memref<848x16xf32, #tpu.memory_space<vmem>>, %arg16: memref<848x32xf32, #tpu.memory_space<vmem>>, %arg17: memref<848x32xf32, #tpu.memory_space<vmem>>) attributes {dimension_semantics = [], scalar_prefetch = 0 : i64, scratch_operands = 4 : i64, tpu.core_type = #tpu.core_type<tc>} {
    %cst = arith.constant 0.000000e+00 : f32
    %0 = vector.broadcast %cst : f32 to vector<64x16xf32>
    %c784 = arith.constant 784 : index
    %c0 = arith.constant 0 : index
    %1 = vector.load %arg14[%c784, %c0] : memref<848x16xf32, #tpu.memory_space<vmem>>, vector<64x16xf32>
    tpu.vector_store %arg14[%c784, %c0], %0 {strides = array<i32>} : memref<848x16xf32, #tpu.memory_space<vmem>>, vector<64x16xf32>,
    %cst_0 = arith.constant 0.000000e+00 : f32
    %2 = vector.broadcast %cst_0 : f32 to vector<64x16xf32>
    %c784_1 = arith.constant 784 : index
    %c0_2 = arith.constant 0 : index
    %3 = vector.load %arg15[%c784_1, %c0_2] : memref<848x16xf32, #tpu.memory_space<vmem>>, vector<64x16xf32>
    tpu.vector_store %arg15[%c784_1, %c0_2], %2 {strides = array<i32>} : memref<848x16xf32, #tpu.memory_space<vmem>>, vector<64x16xf32>,
    %cst_3 = arith.constant 0.000000e+00 : f32
    %4 = vector.broadcast %cst_3 : f32 to vector<64x32xf32>
    %c784_4 = arith.constant 784 : index
    %c0_5 = arith.constant 0 : index
    %5 = vector.load %arg16[%c784_4, %c0_5] : memref<848x32xf32, #tpu.memory_space<vmem>>, vector<64x32xf32>
    tpu.vector_store %arg16[%c784_4, %c0_5], %4 {strides = array<i32>} : memref<848x32xf32, #tpu.memory_space<vmem>>, vector<64x32xf32>,
    %c0_6 = arith.constant 0 : index
    %c0_7 = arith.constant 0 : index
    %6 = vector.load %arg0[%c0_6, %c0_7] : memref<784x18xf32, #tpu.memory_space<vmem>>, vector<784x18xf32>
    %c0_8 = arith.constant 0 : index
    %c0_9 = arith.constant 0 : index
    %7 = vector.load %arg1[%c0_8, %c0_9] : memref<18x16xf32, #tpu.memory_space<vmem>>, vector<18x16xf32>
    %cst_10 = arith.constant dense<0.000000e+00> : vector<784x16xf32>
    %8 = tpu.matmul %6, %7, %cst_10 {dimension_numbers = #tpu.dot_dimension_numbers<[1], [0], [0], [1], [0, 0, 1, 1], [], []>} : vector<784x18xf32>, vector<18x16xf32>, vector<784x16xf32> -> vector<784x16xf32>
    %c0_11 = arith.constant 0 : index
    %c0_12 = arith.constant 0 : index
    %9 = vector.load %arg2[%c0_11, %c0_12] : memref<1x16xf32, #tpu.memory_space<vmem>>, vector<1x16xf32>
    %10 = vector.broadcast %9 : vector<1x16xf32> to vector<784x16xf32>
    %11 = arith.addf %8, %10 : vector<784x16xf32>
    %cst_13 = arith.constant 0.000000e+00 : f32
    %12 = vector.broadcast %cst_13 : f32 to vector<784x16xf32>
    %13 = arith.maximumf %11, %12 : vector<784x16xf32>
    %c0_14 = arith.constant 0 : index
    %c0_15 = arith.constant 0 : index
    %14 = vector.load %arg14[%c0_14, %c0_15] : memref<848x16xf32, #tpu.memory_space<vmem>>, vector<784x16xf32>
    tpu.vector_store %arg14[%c0_14, %c0_15], %13 {strides = array<i32>} : memref<848x16xf32, #tpu.memory_space<vmem>>, vector<784x16xf32>,
    %c0_16 = arith.constant 0 : index
    %c0_17 = arith.constant 0 : index
    %15 = vector.load %arg14[%c0_16, %c0_17] : memref<848x16xf32, #tpu.memory_space<vmem>>, vector<784x16xf32>
    %c1 = arith.constant 1 : index
    %c0_18 = arith.constant 0 : index
    %16 = vector.load %arg14[%c1, %c0_18] : memref<848x16xf32, #tpu.memory_space<vmem>>, vector<784x16xf32>
    %17 = arith.maximumf %15, %16 : vector<784x16xf32>
    %c14 = arith.constant 14 : index
    %c0_19 = arith.constant 0 : index
    %18 = vector.load %arg14[%c14, %c0_19] : memref<848x16xf32, #tpu.memory_space<vmem>>, vector<784x16xf32>
    %19 = arith.maximumf %17, %18 : vector<784x16xf32>
    %c15 = arith.constant 15 : index
    %c0_20 = arith.constant 0 : index
    %20 = vector.load %arg14[%c15, %c0_20] : memref<848x16xf32, #tpu.memory_space<vmem>>, vector<784x16xf32>
    %21 = arith.maximumf %19, %20 : vector<784x16xf32>
    %c0_21 = arith.constant 0 : index
    %c0_22 = arith.constant 0 : index
    %22 = vector.load %arg15[%c0_21, %c0_22] : memref<848x16xf32, #tpu.memory_space<vmem>>, vector<784x16xf32>
    tpu.vector_store %arg15[%c0_21, %c0_22], %21 {strides = array<i32>} : memref<848x16xf32, #tpu.memory_space<vmem>>, vector<784x16xf32>,
    %c0_23 = arith.constant 0 : index
    %c0_24 = arith.constant 0 : index
    %23 = vector.load %arg15[%c0_23, %c0_24] : memref<848x16xf32, #tpu.memory_space<vmem>>, vector<784x16xf32>
    %c0_25 = arith.constant 0 : index
    %c0_26 = arith.constant 0 : index
    %c0_27 = arith.constant 0 : index
    %24 = vector.load %arg3[%c0_25, %c0_26, %c0_27] : memref<9x16x32xf32, #tpu.memory_space<vmem>>, vector<1x16x32xf32>
    %25 = vector.shape_cast %24 : vector<1x16x32xf32> to vector<16x32xf32>
    %cst_28 = arith.constant dense<0.000000e+00> : vector<784x32xf32>
    %26 = tpu.matmul %23, %25, %cst_28 {dimension_numbers = #tpu.dot_dimension_numbers<[1], [0], [0], [1], [0, 0, 1, 1], [], []>} : vector<784x16xf32>, vector<16x32xf32>, vector<784x32xf32> -> vector<784x32xf32>
    %c2 = arith.constant 2 : index
    %c0_29 = arith.constant 0 : index
    %27 = vector.load %arg15[%c2, %c0_29] : memref<848x16xf32, #tpu.memory_space<vmem>>, vector<784x16xf32>
    %c1_30 = arith.constant 1 : index
    %c0_31 = arith.constant 0 : index
    %c0_32 = arith.constant 0 : index
    %28 = vector.load %arg3[%c1_30, %c0_31, %c0_32] : memref<9x16x32xf32, #tpu.memory_space<vmem>>, vector<1x16x32xf32>
    %29 = vector.shape_cast %28 : vector<1x16x32xf32> to vector<16x32xf32>
    %cst_33 = arith.constant dense<0.000000e+00> : vector<784x32xf32>
    %30 = tpu.matmul %27, %29, %cst_33 {dimension_numbers = #tpu.dot_dimension_numbers<[1], [0], [0], [1], [0, 0, 1, 1], [], []>} : vector<784x16xf32>, vector<16x32xf32>, vector<784x32xf32> -> vector<784x32xf32>
    %31 = arith.addf %26, %30 : vector<784x32xf32>
    %c4 = arith.constant 4 : index
    %c0_34 = arith.constant 0 : index
    %32 = vector.load %arg15[%c4, %c0_34] : memref<848x16xf32, #tpu.memory_space<vmem>>, vector<784x16xf32>
    %c2_35 = arith.constant 2 : index
    %c0_36 = arith.constant 0 : index
    %c0_37 = arith.constant 0 : index
    %33 = vector.load %arg3[%c2_35, %c0_36, %c0_37] : memref<9x16x32xf32, #tpu.memory_space<vmem>>, vector<1x16x32xf32>
    %34 = vector.shape_cast %33 : vector<1x16x32xf32> to vector<16x32xf32>
    %cst_38 = arith.constant dense<0.000000e+00> : vector<784x32xf32>
    %35 = tpu.matmul %32, %34, %cst_38 {dimension_numbers = #tpu.dot_dimension_numbers<[1], [0], [0], [1], [0, 0, 1, 1], [], []>} : vector<784x16xf32>, vector<16x32xf32>, vector<784x32xf32> -> vector<784x32xf32>
    %36 = arith.addf %31, %35 : vector<784x32xf32>
    %c28 = arith.constant 28 : index
    %c0_39 = arith.constant 0 : index
    %37 = vector.load %arg15[%c28, %c0_39] : memref<848x16xf32, #tpu.memory_space<vmem>>, vector<784x16xf32>
    %c3 = arith.constant 3 : index
    %c0_40 = arith.constant 0 : index
    %c0_41 = arith.constant 0 : index
    %38 = vector.load %arg3[%c3, %c0_40, %c0_41] : memref<9x16x32xf32, #tpu.memory_space<vmem>>, vector<1x16x32xf32>
    %39 = vector.shape_cast %38 : vector<1x16x32xf32> to vector<16x32xf32>
    %cst_42 = arith.constant dense<0.000000e+00> : vector<784x32xf32>
    %40 = tpu.matmul %37, %39, %cst_42 {dimension_numbers = #tpu.dot_dimension_numbers<[1], [0], [0], [1], [0, 0, 1, 1], [], []>} : vector<784x16xf32>, vector<16x32xf32>, vector<784x32xf32> -> vector<784x32xf32>
    %41 = arith.addf %36, %40 : vector<784x32xf32>
    %c30 = arith.constant 30 : index
    %c0_43 = arith.constant 0 : index
    %42 = vector.load %arg15[%c30, %c0_43] : memref<848x16xf32, #tpu.memory_space<vmem>>, vector<784x16xf32>
    %c4_44 = arith.constant 4 : index
    %c0_45 = arith.constant 0 : index
    %c0_46 = arith.constant 0 : index
    %43 = vector.load %arg3[%c4_44, %c0_45, %c0_46] : memref<9x16x32xf32, #tpu.memory_space<vmem>>, vector<1x16x32xf32>
    %44 = vector.shape_cast %43 : vector<1x16x32xf32> to vector<16x32xf32>
    %cst_47 = arith.constant dense<0.000000e+00> : vector<784x32xf32>
    %45 = tpu.matmul %42, %44, %cst_47 {dimension_numbers = #tpu.dot_dimension_numbers<[1], [0], [0], [1], [0, 0, 1, 1], [], []>} : vector<784x16xf32>, vector<16x32xf32>, vector<784x32xf32> -> vector<784x32xf32>
    %46 = arith.addf %41, %45 : vector<784x32xf32>
    %c32 = arith.constant 32 : index
    %c0_48 = arith.constant 0 : index
    %47 = vector.load %arg15[%c32, %c0_48] : memref<848x16xf32, #tpu.memory_space<vmem>>, vector<784x16xf32>
    %c5 = arith.constant 5 : index
    %c0_49 = arith.constant 0 : index
    %c0_50 = arith.constant 0 : index
    %48 = vector.load %arg3[%c5, %c0_49, %c0_50] : memref<9x16x32xf32, #tpu.memory_space<vmem>>, vector<1x16x32xf32>
    %49 = vector.shape_cast %48 : vector<1x16x32xf32> to vector<16x32xf32>
    %cst_51 = arith.constant dense<0.000000e+00> : vector<784x32xf32>
    %50 = tpu.matmul %47, %49, %cst_51 {dimension_numbers = #tpu.dot_dimension_numbers<[1], [0], [0], [1], [0, 0, 1, 1], [], []>} : vector<784x16xf32>, vector<16x32xf32>, vector<784x32xf32> -> vector<784x32xf32>
    %51 = arith.addf %46, %50 : vector<784x32xf32>
    %c56 = arith.constant 56 : index
    %c0_52 = arith.constant 0 : index
    %52 = vector.load %arg15[%c56, %c0_52] : memref<848x16xf32, #tpu.memory_space<vmem>>, vector<784x16xf32>
    %c6 = arith.constant 6 : index
    %c0_53 = arith.constant 0 : index
    %c0_54 = arith.constant 0 : index
    %53 = vector.load %arg3[%c6, %c0_53, %c0_54] : memref<9x16x32xf32, #tpu.memory_space<vmem>>, vector<1x16x32xf32>
    %54 = vector.shape_cast %53 : vector<1x16x32xf32> to vector<16x32xf32>
    %cst_55 = arith.constant dense<0.000000e+00> : vector<784x32xf32>
    %55 = tpu.matmul %52, %54, %cst_55 {dimension_numbers = #tpu.dot_dimension_numbers<[1], [0], [0], [1], [0, 0, 1, 1], [], []>} : vector<784x16xf32>, vector<16x32xf32>, vector<784x32xf32> -> vector<784x32xf32>
    %56 = arith.addf %51, %55 : vector<784x32xf32>
    %c58 = arith.constant 58 : index
    %c0_56 = arith.constant 0 : index
    %57 = vector.load %arg15[%c58, %c0_56] : memref<848x16xf32, #tpu.memory_space<vmem>>, vector<784x16xf32>
    %c7 = arith.constant 7 : index
    %c0_57 = arith.constant 0 : index
    %c0_58 = arith.constant 0 : index
    %58 = vector.load %arg3[%c7, %c0_57, %c0_58] : memref<9x16x32xf32, #tpu.memory_space<vmem>>, vector<1x16x32xf32>
    %59 = vector.shape_cast %58 : vector<1x16x32xf32> to vector<16x32xf32>
    %cst_59 = arith.constant dense<0.000000e+00> : vector<784x32xf32>
    %60 = tpu.matmul %57, %59, %cst_59 {dimension_numbers = #tpu.dot_dimension_numbers<[1], [0], [0], [1], [0, 0, 1, 1], [], []>} : vector<784x16xf32>, vector<16x32xf32>, vector<784x32xf32> -> vector<784x32xf32>
    %61 = arith.addf %56, %60 : vector<784x32xf32>
    %c60 = arith.constant 60 : index
    %c0_60 = arith.constant 0 : index
    %62 = vector.load %arg15[%c60, %c0_60] : memref<848x16xf32, #tpu.memory_space<vmem>>, vector<784x16xf32>
    %c8 = arith.constant 8 : index
    %c0_61 = arith.constant 0 : index
    %c0_62 = arith.constant 0 : index
    %63 = vector.load %arg3[%c8, %c0_61, %c0_62] : memref<9x16x32xf32, #tpu.memory_space<vmem>>, vector<1x16x32xf32>
    %64 = vector.shape_cast %63 : vector<1x16x32xf32> to vector<16x32xf32>
    %cst_63 = arith.constant dense<0.000000e+00> : vector<784x32xf32>
    %65 = tpu.matmul %62, %64, %cst_63 {dimension_numbers = #tpu.dot_dimension_numbers<[1], [0], [0], [1], [0, 0, 1, 1], [], []>} : vector<784x16xf32>, vector<16x32xf32>, vector<784x32xf32> -> vector<784x32xf32>
    %66 = arith.addf %61, %65 : vector<784x32xf32>
    %c0_64 = arith.constant 0 : index
    %c0_65 = arith.constant 0 : index
    %67 = vector.load %arg4[%c0_64, %c0_65] : memref<1x32xf32, #tpu.memory_space<vmem>>, vector<1x32xf32>
    %68 = vector.broadcast %67 : vector<1x32xf32> to vector<784x32xf32>
    %69 = arith.addf %66, %68 : vector<784x32xf32>
    %cst_66 = arith.constant 0.000000e+00 : f32
    %70 = vector.broadcast %cst_66 : f32 to vector<784x32xf32>
    %71 = arith.maximumf %69, %70 : vector<784x32xf32>
    %c0_67 = arith.constant 0 : index
    %c0_68 = arith.constant 0 : index
    %72 = vector.load %arg16[%c0_67, %c0_68] : memref<848x32xf32, #tpu.memory_space<vmem>>, vector<784x32xf32>
    tpu.vector_store %arg16[%c0_67, %c0_68], %71 {strides = array<i32>} : memref<848x32xf32, #tpu.memory_space<vmem>>, vector<784x32xf32>,
    %c0_69 = arith.constant 0 : index
    %c0_70 = arith.constant 0 : index
    %73 = vector.load %arg16[%c0_69, %c0_70] : memref<848x32xf32, #tpu.memory_space<vmem>>, vector<784x32xf32>
    %c2_71 = arith.constant 2 : index
    %c0_72 = arith.constant 0 : index
    %74 = vector.load %arg16[%c2_71, %c0_72] : memref<848x32xf32, #tpu.memory_space<vmem>>, vector<784x32xf32>
    %75 = arith.maximumf %73, %74 : vector<784x32xf32>
    %c28_73 = arith.constant 28 : index
    %c0_74 = arith.constant 0 : index
    %76 = vector.load %arg16[%c28_73, %c0_74] : memref<848x32xf32, #tpu.memory_space<vmem>>, vector<784x32xf32>
    %77 = arith.maximumf %75, %76 : vector<784x32xf32>
    %c30_75 = arith.constant 30 : index
    %c0_76 = arith.constant 0 : index
    %78 = vector.load %arg16[%c30_75, %c0_76] : memref<848x32xf32, #tpu.memory_space<vmem>>, vector<784x32xf32>
    %79 = arith.maximumf %77, %78 : vector<784x32xf32>
    %c0_77 = arith.constant 0 : index
    %c0_78 = arith.constant 0 : index
    %80 = vector.load %arg17[%c0_77, %c0_78] : memref<848x32xf32, #tpu.memory_space<vmem>>, vector<784x32xf32>
    tpu.vector_store %arg17[%c0_77, %c0_78], %79 {strides = array<i32>} : memref<848x32xf32, #tpu.memory_space<vmem>>, vector<784x32xf32>,
    %c0_79 = arith.constant 0 : index
    %c0_80 = arith.constant 0 : index
    %81 = tpu.strided_load %arg17[%c0_79, %c0_80] {strides = array<i32: 196, 1>} : memref<848x32xf32, #tpu.memory_space<vmem>>, vector<4x32xf32>
    %c4_81 = arith.constant 4 : index
    %c0_82 = arith.constant 0 : index
    %82 = tpu.strided_load %arg17[%c4_81, %c0_82] {strides = array<i32: 196, 1>} : memref<848x32xf32, #tpu.memory_space<vmem>>, vector<4x32xf32>
    %c56_83 = arith.constant 56 : index
    %c0_84 = arith.constant 0 : index
    %83 = tpu.strided_load %arg17[%c56_83, %c0_84] {strides = array<i32: 196, 1>} : memref<848x32xf32, #tpu.memory_space<vmem>>, vector<4x32xf32>
    %c60_85 = arith.constant 60 : index
    %c0_86 = arith.constant 0 : index
    %84 = tpu.strided_load %arg17[%c60_85, %c0_86] {strides = array<i32: 196, 1>} : memref<848x32xf32, #tpu.memory_space<vmem>>, vector<4x32xf32>
    %85 = tpu.concatenate %81, %82, %83, %84 in 1 : vector<4x32xf32>, vector<4x32xf32>, vector<4x32xf32>, vector<4x32xf32> -> vector<4x128xf32>
    %c0_87 = arith.constant 0 : index
    %c0_88 = arith.constant 0 : index
    %86 = vector.load %arg5[%c0_87, %c0_88] : memref<128x120xf32, #tpu.memory_space<vmem>>, vector<128x120xf32>
    %cst_89 = arith.constant dense<0.000000e+00> : vector<4x120xf32>
    %87 = tpu.matmul %85, %86, %cst_89 {dimension_numbers = #tpu.dot_dimension_numbers<[1], [0], [0], [1], [0, 0, 1, 1], [], []>} : vector<4x128xf32>, vector<128x120xf32>, vector<4x120xf32> -> vector<4x120xf32>
    %c0_90 = arith.constant 0 : index
    %c0_91 = arith.constant 0 : index
    %88 = vector.load %arg6[%c0_90, %c0_91] : memref<1x120xf32, #tpu.memory_space<vmem>>, vector<1x120xf32>
    %89 = vector.broadcast %88 : vector<1x120xf32> to vector<4x120xf32>
    %90 = arith.addf %87, %89 : vector<4x120xf32>
    %cst_92 = arith.constant 0.000000e+00 : f32
    %91 = vector.broadcast %cst_92 : f32 to vector<4x120xf32>
    %92 = arith.maximumf %90, %91 : vector<4x120xf32>
    %c0_93 = arith.constant 0 : index
    %c0_94 = arith.constant 0 : index
    %93 = vector.load %arg7[%c0_93, %c0_94] : memref<120x84xf32, #tpu.memory_space<vmem>>, vector<120x84xf32>
    %cst_95 = arith.constant dense<0.000000e+00> : vector<4x84xf32>
    %94 = tpu.matmul %92, %93, %cst_95 {dimension_numbers = #tpu.dot_dimension_numbers<[1], [0], [0], [1], [0, 0, 1, 1], [], []>} : vector<4x120xf32>, vector<120x84xf32>, vector<4x84xf32> -> vector<4x84xf32>
    %c0_96 = arith.constant 0 : index
    %c0_97 = arith.constant 0 : index
    %95 = vector.load %arg8[%c0_96, %c0_97] : memref<1x84xf32, #tpu.memory_space<vmem>>, vector<1x84xf32>
    %96 = vector.broadcast %95 : vector<1x84xf32> to vector<4x84xf32>
    %97 = arith.addf %94, %96 : vector<4x84xf32>
    %cst_98 = arith.constant 0.000000e+00 : f32
    %98 = vector.broadcast %cst_98 : f32 to vector<4x84xf32>
    %99 = arith.maximumf %97, %98 : vector<4x84xf32>
    %cst_99 = arith.constant dense<0.000000e+00> : vector<84xf32>
    %100 = vector.multi_reduction <add>, %99, %cst_99 [0] : vector<4x84xf32> to vector<84xf32>
    %101 = vector.shape_cast %100 : vector<84xf32> to vector<1x84xf32>
    %cst_100 = arith.constant 4.000000e+00 : f32
    %102 = vector.broadcast %cst_100 : f32 to vector<1x84xf32>
    %103 = arith.divf %101, %102 : vector<1x84xf32>
    %104 = vector.broadcast %103 : vector<1x84xf32> to vector<4x84xf32>
    %105 = arith.subf %99, %104 : vector<4x84xf32>
    %106 = arith.mulf %105, %105 : vector<4x84xf32>
    %cst_101 = arith.constant dense<0.000000e+00> : vector<84xf32>
    %107 = vector.multi_reduction <add>, %106, %cst_101 [0] : vector<4x84xf32> to vector<84xf32>
    %108 = vector.shape_cast %107 : vector<84xf32> to vector<1x84xf32>
    %cst_102 = arith.constant 4.000000e+00 : f32
    %109 = vector.broadcast %cst_102 : f32 to vector<1x84xf32>
    %110 = arith.divf %108, %109 : vector<1x84xf32>
    %111 = vector.broadcast %103 : vector<1x84xf32> to vector<4x84xf32>
    %112 = arith.subf %99, %111 : vector<4x84xf32>
    %cst_103 = arith.constant 9.99999974E-6 : f32
    %113 = vector.broadcast %cst_103 : f32 to vector<1x84xf32>
    %114 = arith.addf %110, %113 : vector<1x84xf32>
    %115 = math.rsqrt %114 : vector<1x84xf32>
    %116 = vector.broadcast %115 : vector<1x84xf32> to vector<4x84xf32>
    %117 = arith.mulf %112, %116 : vector<4x84xf32>
    %c0_104 = arith.constant 0 : index
    %c0_105 = arith.constant 0 : index
    %118 = vector.load %arg9[%c0_104, %c0_105] : memref<1x84xf32, #tpu.memory_space<vmem>>, vector<1x84xf32>
    %119 = vector.broadcast %118 : vector<1x84xf32> to vector<4x84xf32>
    %120 = arith.mulf %117, %119 : vector<4x84xf32>
    %c0_106 = arith.constant 0 : index
    %c0_107 = arith.constant 0 : index
    %121 = vector.load %arg10[%c0_106, %c0_107] : memref<1x84xf32, #tpu.memory_space<vmem>>, vector<1x84xf32>
    %122 = vector.broadcast %121 : vector<1x84xf32> to vector<4x84xf32>
    %123 = arith.addf %120, %122 : vector<4x84xf32>
    %c0_108 = arith.constant 0 : index
    %c0_109 = arith.constant 0 : index
    %124 = vector.load %arg11[%c0_108, %c0_109] : memref<1x84xf32, #tpu.memory_space<vmem>>, vector<1x84xf32>
    %125 = vector.broadcast %124 : vector<1x84xf32> to vector<4x84xf32>
    %126 = arith.mulf %123, %125 : vector<4x84xf32>
    %cst_110 = arith.constant dense<0.000000e+00> : vector<4xf32>
    %127 = vector.multi_reduction <add>, %126, %cst_110 [1] : vector<4x84xf32> to vector<4xf32>
    %128 = vector.shape_cast %127 : vector<4xf32> to vector<4x1xf32>
    %c0_111 = arith.constant 0 : index
    %c0_112 = arith.constant 0 : index
    %129 = vector.load %arg12[%c0_111, %c0_112] : memref<1x1xf32, #tpu.memory_space<vmem>>, vector<1x1xf32>
    %130 = vector.broadcast %129 : vector<1x1xf32> to vector<4x1xf32>
    %131 = arith.addf %128, %130 : vector<4x1xf32>
    %cst_113 = arith.constant 0.000000e+00 : f32
    %132 = vector.broadcast %cst_113 : f32 to vector<4x1xf32>
    %133 = arith.subf %132, %131 : vector<4x1xf32>
    %134 = math.exp %133 : vector<4x1xf32>
    %cst_114 = arith.constant 1.000000e+00 : f32
    %135 = vector.broadcast %cst_114 : f32 to vector<4x1xf32>
    %136 = arith.addf %135, %134 : vector<4x1xf32>
    %cst_115 = arith.constant 1.000000e+00 : f32
    %137 = vector.broadcast %cst_115 : f32 to vector<4x1xf32>
    %138 = arith.divf %137, %136 : vector<4x1xf32>
    %c0_116 = arith.constant 0 : index
    %c0_117 = arith.constant 0 : index
    %139 = vector.load %arg13[%c0_116, %c0_117] : memref<4x1xf32, #tpu.memory_space<vmem>>, vector<4x1xf32>
    tpu.vector_store %arg13[%c0_116, %c0_117], %138 {strides = array<i32>} : memref<4x1xf32, #tpu.memory_space<vmem>>, vector<4x1xf32>,
    return
  }
}

</mosaic_0001>

<llo_original>
// kernel: lenet5_forward.1
$region0: #{lenet5_forward.1}
  #allocation0 [shape = 'u32[]', space=smem, size = 0x4, offset = 0x4, fixed_abs, tag = 'smem constant byte address 0x4 - core index']
  #allocation1 [shape = 'u32[144,128]{1,0:T(1,128)}', space=vmem, size = 0x12000, scoped, tag = 'internal scratch']
  #allocation2 [shape = 'f32[848,16]{1,0:T(8,128)}', space=vmem, size = 0x6a000, scoped, tag = 'scratch operand']
  #allocation3 [shape = 'f32[848,16]{1,0:T(8,128)}', space=vmem, size = 0x6a000, scoped, tag = 'scratch operand']
  #allocation4 [shape = 'f32[848,32]{1,0:T(8,128)}', space=vmem, size = 0x6a000, scoped, tag = 'scratch operand']
  #allocation5 [shape = 'f32[848,32]{1,0:T(8,128)}', space=vmem, size = 0x6a000, scoped, tag = 'scratch operand']
  #allocation6 [shape = 'f32[1,1]{1,0:T(1,128)S(1)}', space=vmem, size = 0x200, scoped, tag = 'scoped memory for lenet5_forward.1']
  %s0 = inlined_call_operand.vmem [shape: f32[784,18], index: 0, kind: input, shape index: {}]
  %s1 = inlined_call_operand.vmem [shape: f32[18,16], index: 1, kind: input, shape index: {}]
  %s2 = inlined_call_operand.vmem [shape: f32[1,16], index: 2, kind: input, shape index: {}]
  %s3 = inlined_call_operand.vmem [shape: f32[9,16,32], index: 3, kind: input, shape index: {}]
  %s4 = inlined_call_operand.vmem [shape: f32[1,32], index: 4, kind: input, shape index: {}]
  %s5 = inlined_call_operand.vmem [shape: f32[128,120], index: 5, kind: input, shape index: {}]
  %s6 = inlined_call_operand.vmem [shape: f32[1,120], index: 6, kind: input, shape index: {}]
  %s7 = inlined_call_operand.vmem [shape: f32[120,84], index: 7, kind: input, shape index: {}]
  %s8 = inlined_call_operand.vmem [shape: f32[1,84], index: 8, kind: input, shape index: {}]
  %s9 = inlined_call_operand.vmem [shape: f32[1,84], index: 9, kind: input, shape index: {}]
  %s10 = inlined_call_operand.vmem [shape: f32[1,84], index: 10, kind: input, shape index: {}]
  %s11 = inlined_call_operand.vmem [shape: f32[1,84], index: 11, kind: input, shape index: {}]
  %s12 = inlined_call_operand.<no memory space> [shape: f32[1,1], index: 12, kind: input, shape index: {}]
  %s13 = inlined_call_operand.vmem [shape: f32[4,1], index: 13, kind: output, shape index: {}]
  %s14 = sld [smem:[#allocation0]]
  $region62: #{lenet5_forward.1} parent=0
    _
  %s16 = ssub.s32 1, %s14
  %s17 = scalar_select 0, %s16, %s14
  %v18 = vstv %s12
  %19 = vst [vmem:[#allocation6] sm:$0x1] %v18
  // Predicated region
  $region2: #{lenet5_forward.1} parent=0 // pred_check
    _
  $region3: #{lenet5_forward.1} parent=0 // pred_check_branch
    %21 = sbr.rel (0) target = $region5
  $region4: #{lenet5_forward.1} parent=0 // pred_region
    _
  $region5: #{lenet5_forward.1} parent=0 // pred_fallthru
    _
  // Predicated region
  $region6: #{lenet5_forward.1} parent=0 // pred_check
    _
  $region7: #{lenet5_forward.1} parent=0 // pred_check_branch
    %23 = sbr.rel (0) target = $region9
  $region8: #{lenet5_forward.1} parent=0 // pred_region
    _
  $region9: #{lenet5_forward.1} parent=0 // pred_fallthru
    _
  // Predicated region
  $region10: #{lenet5_forward.1} parent=0 // pred_check
    _
  $region11: #{lenet5_forward.1} parent=0 // pred_check_branch
    %25 = sbr.rel (0) target = $region13
  $region12: #{lenet5_forward.1} parent=0 // pred_region
    _
  $region13: #{lenet5_forward.1} parent=0 // pred_fallthru
    _
  // Predicated region
  $region14: #{lenet5_forward.1} parent=0 // pred_check
    _
  $region15: #{lenet5_forward.1} parent=0 // pred_check_branch
    %27 = sbr.rel (0) target = $region17
  $region16: #{lenet5_forward.1} parent=0 // pred_region
    _
  $region17: #{lenet5_forward.1} parent=0 // pred_fallthru
    _
  // Predicated region
  $region18: #{lenet5_forward.1} parent=0 // pred_check
    _
  $region19: #{lenet5_forward.1} parent=0 // pred_check_branch
    %29 = sbr.rel (0) target = $region21
  $region20: #{lenet5_forward.1} parent=0 // pred_region
    _
  $region21: #{lenet5_forward.1} parent=0 // pred_fallthru
    _
  // Predicated region
  $region22: #{lenet5_forward.1} parent=0 // pred_check
    _
  $region23: #{lenet5_forward.1} parent=0 // pred_check_branch
    %31 = sbr.rel (0) target = $region25
  $region24: #{lenet5_forward.1} parent=0 // pred_region
    _
  $region25: #{lenet5_forward.1} parent=0 // pred_fallthru
    _
  // Predicated region
  $region26: #{lenet5_forward.1} parent=0 // pred_check
    _
  $region27: #{lenet5_forward.1} parent=0 // pred_check_branch
    %33 = sbr.rel (0) target = $region29
  $region28: #{lenet5_forward.1} parent=0 // pred_region
    _
  $region29: #{lenet5_forward.1} parent=0 // pred_fallthru
    _
  // Predicated region
  $region30: #{lenet5_forward.1} parent=0 // pred_check
    _
  $region31: #{lenet5_forward.1} parent=0 // pred_check_branch
    %35 = sbr.rel (0) target = $region33
  $region32: #{lenet5_forward.1} parent=0 // pred_region
    _
  $region33: #{lenet5_forward.1} parent=0 // pred_fallthru
    _
  // Predicated region
  $region34: #{lenet5_forward.1} parent=0 // pred_check
    _
  $region35: #{lenet5_forward.1} parent=0 // pred_check_branch
    %37 = sbr.rel (0) target = $region37
  $region36: #{lenet5_forward.1} parent=0 // pred_region
    _
  $region37: #{lenet5_forward.1} parent=0 // pred_fallthru
    _
  // Predicated region
  $region38: #{lenet5_forward.1} parent=0 // pred_check
    _
  $region39: #{lenet5_forward.1} parent=0 // pred_check_branch
    %39 = sbr.rel (0) target = $region41
  $region40: #{lenet5_forward.1} parent=0 // pred_region
    _
  $region41: #{lenet5_forward.1} parent=0 // pred_fallthru
    _
  // Predicated region
  $region42: #{lenet5_forward.1} parent=0 // pred_check
    _
  $region43: #{lenet5_forward.1} parent=0 // pred_check_branch
    %41 = sbr.rel (0) target = $region45
  $region44: #{lenet5_forward.1} parent=0 // pred_region
    _
  $region45: #{lenet5_forward.1} parent=0 // pred_fallthru
    _
  // Predicated region
  $region46: #{lenet5_forward.1} parent=0 // pred_check
    _
  $region47: #{lenet5_forward.1} parent=0 // pred_check_branch
    %43 = sbr.rel (0) target = $region49
  $region48: #{lenet5_forward.1} parent=0 // pred_region
    _
  $region49: #{lenet5_forward.1} parent=0 // pred_fallthru
    _
  // Predicated region
  $region50: #{lenet5_forward.1} parent=0 // pred_check
    _
  $region51: #{lenet5_forward.1} parent=0 // pred_check_branch
    %45 = sbr.rel (0) target = $region53
  $region52: #{lenet5_forward.1} parent=0 // pred_region
    _
  $region53: #{lenet5_forward.1} parent=0 // pred_fallthru
    _
  %vm46 = vcmask 130048
  %47 = vst.msk [vmem:[#allocation2 + $0x310] sm:$0xff] %vm46, 0.0
  %48 = vst.msk [vmem:[#allocation2 + $0x318] sm:$0xff] %vm46, 0.0
  %49 = vst.msk [vmem:[#allocation2 + $0x320] sm:$0xff] %vm46, 0.0
  %50 = vst.msk [vmem:[#allocation2 + $0x328] sm:$0xff] %vm46, 0.0
  %51 = vst.msk [vmem:[#allocation2 + $0x330] sm:$0xff] %vm46, 0.0
  %52 = vst.msk [vmem:[#allocation2 + $0x338] sm:$0xff] %vm46, 0.0
  %53 = vst.msk [vmem:[#allocation2 + $0x340] sm:$0xff] %vm46, 0.0
  %54 = vst.msk [vmem:[#allocation2 + $0x348] sm:$0xff] %vm46, 0.0
  %55 = vst.msk [vmem:[#allocation3 + $0x310] sm:$0xff] %vm46, 0.0
  %56 = vst.msk [vmem:[#allocation3 + $0x318] sm:$0xff] %vm46, 0.0
  %57 = vst.msk [vmem:[#allocation3 + $0x320] sm:$0xff] %vm46, 0.0
  %58 = vst.msk [vmem:[#allocation3 + $0x328] sm:$0xff] %vm46, 0.0
  %59 = vst.msk [vmem:[#allocation3 + $0x330] sm:$0xff] %vm46, 0.0
  %60 = vst.msk [vmem:[#allocation3 + $0x338] sm:$0xff] %vm46, 0.0
  %61 = vst.msk [vmem:[#allocation3 + $0x340] sm:$0xff] %vm46, 0.0
  %62 = vst.msk [vmem:[#allocation3 + $0x348] sm:$0xff] %vm46, 0.0
  %vm63 = vcmask 261120
  %64 = vst.msk [vmem:[#allocation4 + $0x310] sm:$0xff] %vm63, 0.0
  %65 = vst.msk [vmem:[#allocation4 + $0x318] sm:$0xff] %vm63, 0.0
  %66 = vst.msk [vmem:[#allocation4 + $0x320] sm:$0xff] %vm63, 0.0
  %67 = vst.msk [vmem:[#allocation4 + $0x328] sm:$0xff] %vm63, 0.0
  %68 = vst.msk [vmem:[#allocation4 + $0x330] sm:$0xff] %vm63, 0.0
  %69 = vst.msk [vmem:[#allocation4 + $0x338] sm:$0xff] %vm63, 0.0
  %70 = vst.msk [vmem:[#allocation4 + $0x340] sm:$0xff] %vm63, 0.0
  %71 = vst.msk [vmem:[#allocation4 + $0x348] sm:$0xff] %vm63, 0.0
  %v72 = vld [vmem:[%s0] sm:$0xff]
  %v73 = vld [vmem:[%s0 + $0x8] sm:$0xff]
  %v74 = vld [vmem:[%s0 + $0x10] sm:$0xff]
  %v75 = vld [vmem:[%s0 + $0x18] sm:$0xff]
  %v76 = vld [vmem:[%s0 + $0x20] sm:$0xff]
  %v77 = vld [vmem:[%s0 + $0x28] sm:$0xff]
  %v78 = vld [vmem:[%s0 + $0x30] sm:$0xff]
  %v79 = vld [vmem:[%s0 + $0x38] sm:$0xff]
  %v80 = vld [vmem:[%s0 + $0x40] sm:$0xff]
  %v81 = vld [vmem:[%s0 + $0x48] sm:$0xff]
  %v82 = vld [vmem:[%s0 + $0x50] sm:$0xff]
  %v83 = vld [vmem:[%s0 + $0x58] sm:$0xff]
  %v84 = vld [vmem:[%s0 + $0x60] sm:$0xff]
  %v85 = vld [vmem:[%s0 + $0x68] sm:$0xff]
  %v86 = vld [vmem:[%s0 + $0x70] sm:$0xff]
  %v87 = vld [vmem:[%s0 + $0x78] sm:$0xff]
  %v88 = vld [vmem:[%s0 + $0x80] sm:$0xff]
  %v89 = vld [vmem:[%s0 + $0x88] sm:$0xff]
  %v90 = vld [vmem:[%s0 + $0x90] sm:$0xff]
  %v91 = vld [vmem:[%s0 + $0x98] sm:$0xff]
  %v92 = vld [vmem:[%s0 + $0xa0] sm:$0xff]
  %v93 = vld [vmem:[%s0 + $0xa8] sm:$0xff]
  %v94 = vld [vmem:[%s0 + $0xb0] sm:$0xff]
  %v95 = vld [vmem:[%s0 + $0xb8] sm:$0xff]
  %v96 = vld [vmem:[%s0 + $0xc0] sm:$0xff]
  %v97 = vld [vmem:[%s0 + $0xc8] sm:$0xff]
  %v98 = vld [vmem:[%s0 + $0xd0] sm:$0xff]
  %v99 = vld [vmem:[%s0 + $0xd8] sm:$0xff]
  %v100 = vld [vmem:[%s0 + $0xe0] sm:$0xff]
  %v101 = vld [vmem:[%s0 + $0xe8] sm:$0xff]
  %v102 = vld [vmem:[%s0 + $0xf0] sm:$0xff]
  %v103 = vld [vmem:[%s0 + $0xf8] sm:$0xff]
  %v104 = vld [vmem:[%s0 + $0x100] sm:$0xff]
  %v105 = vld [vmem:[%s0 + $0x108] sm:$0xff]
  %v106 = vld [vmem:[%s0 + $0x110] sm:$0xff]
  %v107 = vld [vmem:[%s0 + $0x118] sm:$0xff]
  %v108 = vld [vmem:[%s0 + $0x120] sm:$0xff]
  %v109 = vld [vmem:[%s0 + $0x128] sm:$0xff]
  %v110 = vld [vmem:[%s0 + $0x130] sm:$0xff]
  %v111 = vld [vmem:[%s0 + $0x138] sm:$0xff]
  %v112 = vld [vmem:[%s0 + $0x140] sm:$0xff]
  %v113 = vld [vmem:[%s0 + $0x148] sm:$0xff]
  %v114 = vld [vmem:[%s0 + $0x150] sm:$0xff]
  %v115 = vld [vmem:[%s0 + $0x158] sm:$0xff]
  %v116 = vld [vmem:[%s0 + $0x160] sm:$0xff]
  %v117 = vld [vmem:[%s0 + $0x168] sm:$0xff]
  %v118 = vld [vmem:[%s0 + $0x170] sm:$0xff]
  %v119 = vld [vmem:[%s0 + $0x178] sm:$0xff]
  %v120 = vld [vmem:[%s0 + $0x180] sm:$0xff]
  %v121 = vld [vmem:[%s0 + $0x188] sm:$0xff]
  %v122 = vld [vmem:[%s0 + $0x190] sm:$0xff]
  %v123 = vld [vmem:[%s0 + $0x198] sm:$0xff]
  %v124 = vld [vmem:[%s0 + $0x1a0] sm:$0xff]
  %v125 = vld [vmem:[%s0 + $0x1a8] sm:$0xff]
  %v126 = vld [vmem:[%s0 + $0x1b0] sm:$0xff]
  %v127 = vld [vmem:[%s0 + $0x1b8] sm:$0xff]
  %v128 = vld [vmem:[%s0 + $0x1c0] sm:$0xff]
  %v129 = vld [vmem:[%s0 + $0x1c8] sm:$0xff]
  %v130 = vld [vmem:[%s0 + $0x1d0] sm:$0xff]
  %v131 = vld [vmem:[%s0 + $0x1d8] sm:$0xff]
  %v132 = vld [vmem:[%s0 + $0x1e0] sm:$0xff]
  %v133 = vld [vmem:[%s0 + $0x1e8] sm:$0xff]
  %v134 = vld [vmem:[%s0 + $0x1f0] sm:$0xff]
  %v135 = vld [vmem:[%s0 + $0x1f8] sm:$0xff]
  %v136 = vld [vmem:[%s0 + $0x200] sm:$0xff]
  %v137 = vld [vmem:[%s0 + $0x208] sm:$0xff]
  %v138 = vld [vmem:[%s0 + $0x210] sm:$0xff]
  %v139 = vld [vmem:[%s0 + $0x218] sm:$0xff]
  %v140 = vld [vmem:[%s0 + $0x220] sm:$0xff]
  %v141 = vld [vmem:[%s0 + $0x228] sm:$0xff]
  %v142 = vld [vmem:[%s0 + $0x230] sm:$0xff]
  %v143 = vld [vmem:[%s0 + $0x238] sm:$0xff]
  %v144 = vld [vmem:[%s0 + $0x240] sm:$0xff]
  %v145 = vld [vmem:[%s0 + $0x248] sm:$0xff]
  %v146 = vld [vmem:[%s0 + $0x250] sm:$0xff]
  %v147 = vld [vmem:[%s0 + $0x258] sm:$0xff]
  %v148 = vld [vmem:[%s0 + $0x260] sm:$0xff]
  %v149 = vld [vmem:[%s0 + $0x268] sm:$0xff]
  %v150 = vld [vmem:[%s0 + $0x270] sm:$0xff]
  %v151 = vld [vmem:[%s0 + $0x278] sm:$0xff]
  %v152 = vld [vmem:[%s0 + $0x280] sm:$0xff]
  %v153 = vld [vmem:[%s0 + $0x288] sm:$0xff]
  %v154 = vld [vmem:[%s0 + $0x290] sm:$0xff]
  %v155 = vld [vmem:[%s0 + $0x298] sm:$0xff]
  %v156 = vld [vmem:[%s0 + $0x2a0] sm:$0xff]
  %v157 = vld [vmem:[%s0 + $0x2a8] sm:$0xff]
  %v158 = vld [vmem:[%s0 + $0x2b0] sm:$0xff]
  %v159 = vld [vmem:[%s0 + $0x2b8] sm:$0xff]
  %v160 = vld [vmem:[%s0 + $0x2c0] sm:$0xff]
  %v161 = vld [vmem:[%s0 + $0x2c8] sm:$0xff]
  %v162 = vld [vmem:[%s0 + $0x2d0] sm:$0xff]
  %v163 = vld [vmem:[%s0 + $0x2d8] sm:$0xff]
  %v164 = vld [vmem:[%s0 + $0x2e0] sm:$0xff]
  %v165 = vld [vmem:[%s0 + $0x2e8] sm:$0xff]
  %v166 = vld [vmem:[%s0 + $0x2f0] sm:$0xff]
  %v167 = vld [vmem:[%s0 + $0x2f8] sm:$0xff]
  %v168 = vld [vmem:[%s0 + $0x300] sm:$0xff]
  %v169 = vld [vmem:[%s0 + $0x308] sm:$0xff]
  %v170 = vld [vmem:[%s1] sm:$0xff]
  %v171 = vld [vmem:[%s1 + $0x8] sm:$0xff]
  %v172 = vld [vmem:[%s1 + $0x10] sm:$0x3]
  %v173 = vld [vmem:[%s2] sm:$0x1]
  %v175 = vlaneseq
  %v176 = vshrl.u32 %v175, 7
  %v177 = vsub.s32 0, %v176
  %v178 = vrot.slane %v173, %v177
  %vm180 = vcmask 146432
  %v182 = vsel %vm180, %v72, 0
  %v185 = vsel %vm180, %v73, 0
  %v188 = vsel %vm180, %v74, 0
  %v191 = vsel %vm180, %v75, 0
  %v194 = vsel %vm180, %v76, 0
  %v197 = vsel %vm180, %v77, 0
  %v200 = vsel %vm180, %v78, 0
  %v203 = vsel %vm180, %v79, 0
  %v206 = vsel %vm180, %v80, 0
  %v209 = vsel %vm180, %v81, 0
  %v212 = vsel %vm180, %v82, 0
  %v215 = vsel %vm180, %v83, 0
  %v218 = vsel %vm180, %v84, 0
  %v221 = vsel %vm180, %v85, 0
  %v224 = vsel %vm180, %v86, 0
  %v227 = vsel %vm180, %v87, 0
  %v230 = vsel %vm180, %v88, 0
  %v233 = vsel %vm180, %v89, 0
  %v236 = vsel %vm180, %v90, 0
  %v239 = vsel %vm180, %v91, 0
  %v242 = vsel %vm180, %v92, 0
  %v245 = vsel %vm180, %v93, 0
  %v248 = vsel %vm180, %v94, 0
  %v251 = vsel %vm180, %v95, 0
  %v254 = vsel %vm180, %v96, 0
  %v257 = vsel %vm180, %v97, 0
  %v260 = vsel %vm180, %v98, 0
  %v263 = vsel %vm180, %v99, 0
  %v266 = vsel %vm180, %v100, 0
  %v269 = vsel %vm180, %v101, 0
  %v272 = vsel %vm180, %v102, 0
  %v275 = vsel %vm180, %v103, 0
  %v278 = vsel %vm180, %v104, 0
  %v281 = vsel %vm180, %v105, 0
  %v284 = vsel %vm180, %v106, 0
  %v287 = vsel %vm180, %v107, 0
  %v290 = vsel %vm180, %v108, 0
  %v293 = vsel %vm180, %v109, 0
  %v296 = vsel %vm180, %v110, 0
  %v299 = vsel %vm180, %v111, 0
  %v302 = vsel %vm180, %v112, 0
  %v305 = vsel %vm180, %v113, 0
  %v308 = vsel %vm180, %v114, 0
  %v311 = vsel %vm180, %v115, 0
  %v314 = vsel %vm180, %v116, 0
  %v317 = vsel %vm180, %v117, 0
  %v320 = vsel %vm180, %v118, 0
  %v323 = vsel %vm180, %v119, 0
  %v326 = vsel %vm180, %v120, 0
  %v329 = vsel %vm180, %v121, 0
  %v332 = vsel %vm180, %v122, 0
  %v335 = vsel %vm180, %v123, 0
  %v338 = vsel %vm180, %v124, 0
  %v341 = vsel %vm180, %v125, 0
  %v344 = vsel %vm180, %v126, 0
  %v347 = vsel %vm180, %v127, 0
  %v350 = vsel %vm180, %v128, 0
  %v353 = vsel %vm180, %v129, 0
  %v356 = vsel %vm180, %v130, 0
  %v359 = vsel %vm180, %v131, 0
  %v362 = vsel %vm180, %v132, 0
  %v365 = vsel %vm180, %v133, 0
  %v368 = vsel %vm180, %v134, 0
  %v371 = vsel %vm180, %v135, 0
  %v374 = vsel %vm180, %v136, 0
  %v377 = vsel %vm180, %v137, 0
  %v380 = vsel %vm180, %v138, 0
  %v383 = vsel %vm180, %v139, 0
  %v386 = vsel %vm180, %v140, 0
  %v389 = vsel %vm180, %v141, 0
  %v392 = vsel %vm180, %v142, 0
  %v395 = vsel %vm180, %v143, 0
  %v398 = vsel %vm180, %v144, 0
  %v401 = vsel %vm180, %v145, 0
  %v404 = vsel %vm180, %v146, 0
  %v407 = vsel %vm180, %v147, 0
  %v410 = vsel %vm180, %v148, 0
  %v413 = vsel %vm180, %v149, 0
  %v416 = vsel %vm180, %v150, 0
  %v419 = vsel %vm180, %v151, 0
  %v422 = vsel %vm180, %v152, 0
  %v425 = vsel %vm180, %v153, 0
  %v428 = vsel %vm180, %v154, 0
  %v431 = vsel %vm180, %v155, 0
  %v434 = vsel %vm180, %v156, 0
  %v437 = vsel %vm180, %v157, 0
  %v440 = vsel %vm180, %v158, 0
  %v443 = vsel %vm180, %v159, 0
  %v446 = vsel %vm180, %v160, 0
  %v449 = vsel %vm180, %v161, 0
  %v452 = vsel %vm180, %v162, 0
  %v455 = vsel %vm180, %v163, 0
  %v458 = vsel %vm180, %v164, 0
  %v461 = vsel %vm180, %v165, 0
  %v464 = vsel %vm180, %v166, 0
  %v467 = vsel %vm180, %v167, 0
  %v470 = vsel %vm180, %v168, 0
  %v473 = vsel %vm180, %v169, 0
  %vm475 = vcmask 1041408
  %v477 = vsel %vm475, %v172, 0
  %479 = vmatprep.subr.mxu0 0.0
  %480 = vmatpush1.msra.mxu0 %v170
  %481 = vmatprep.subr.mxu0 0.0
  %482 = vmatpush1.msra.mxu0 %v171
  %483 = vmatprep.subr.mxu0 0.0
  %484 = vmatpush1.msra.mxu0 %v477
  %485 = vmatprep.subr.mxu0 0.0
  %486 = vmatpush1.msra.mxu0 0.0
  %487 = vmatprep.subr.mxu0 0.0
  %488 = vmatpush1.msra.mxu0 0.0
  %489 = vmatprep.subr.mxu0 0.0
  %490 = vmatpush1.msra.mxu0 0.0
  %491 = vmatprep.subr.mxu0 0.0
  %492 = vmatpush1.msra.mxu0 0.0
  %493 = vmatprep.subr.mxu0 0.0
  %494 = vmatpush1.msra.mxu0 0.0
  %495 = vmatprep.subr.mxu0 0.0
  %496 = vmatpush1.msra.mxu0 0.0
  %497 = vmatprep.subr.mxu0 0.0
  %498 = vmatpush1.msra.mxu0 0.0
  %499 = vmatprep.subr.mxu0 0.0
  %500 = vmatpush1.msra.mxu0 0.0
  %501 = vmatprep.subr.mxu0 0.0
  %502 = vmatpush1.msra.mxu0 0.0
  %503 = vmatprep.subr.mxu0 0.0
  %504 = vmatpush1.msra.mxu0 0.0
  %505 = vmatprep.subr.mxu0 0.0
  %506 = vmatpush1.msra.mxu0 0.0
  %507 = vmatprep.subr.mxu0 0.0
  %508 = vmatpush1.msra.mxu0 0.0
  %509 = vmatprep.subr.mxu0 0.0
  %510 = vmatpush1.msra.mxu0 0.0
  %511 = vmatprep.subr.mxu0 0.0
  %512 = vmatpush1.msra.mxu0 0.0
  %513 = vmatprep.subr.mxu0 0.0
  %514 = vmatpush1.msra.mxu0 0.0
  %515 = vmatprep.subr.mxu0 0.0
  %516 = vmatpush1.msra.mxu0 0.0
  %517 = vmatprep.subr.mxu0 0.0
  %518 = vmatpush1.msra.mxu0 0.0
  %519 = vmatprep.subr.mxu0 0.0
  %520 = vmatpush1.msra.mxu0 0.0
  %521 = vmatprep.subr.mxu0 0.0
  %522 = vmatpush1.msra.mxu0 0.0
  %523 = vmatprep.subr.mxu0 0.0
  %524 = vmatpush1.msra.mxu0 0.0
  %525 = vmatprep.subr.mxu0 0.0
  %526 = vmatpush1.msra.mxu0 0.0
  %527 = vmatprep.subr.mxu0 0.0
  %528 = vmatpush1.msra.mxu0 0.0
  %529 = vmatprep.subr.mxu0 0.0
  %530 = vmatpush1.msra.mxu0 0.0
  %531 = vmatprep.subr.mxu0 0.0
  %532 = vmatpush1.msra.mxu0 0.0
  %533 = vmatprep.subr.mxu0 0.0
  %534 = vmatpush1.msra.mxu0 0.0
  %535 = vmatprep.subr.mxu0 0.0
  %536 = vmatpush1.msra.mxu0 0.0
  %537 = vmatprep.subr.mxu0 0.0
  %538 = vmatpush1.msra.mxu0 0.0
  %539 = vmatprep.subr.mxu0 0.0
  %540 = vmatpush1.msra.mxu0 0.0
  %541 = vmatprep.subr.mxu0 0.0
  %542 = vmatpush1.msra.mxu0 0.0
  %543 = vmatprep.mubr.f32.mxu0 0.0
  %544 = vmatmul.mubr.f32.gmra.mrb[0].mxu0 %v182
  %v545 = vpop.f32.mrb[0].mxu0
  %v546 = vadd.f32 %v178, %v545
  %v547 = vpop.f32.mrb[0].mxu0
  %548 = vmatprep.mubr.f32.mxu0 0.0
  %549 = vmatmul.mubr.f32.gmra.mrb[0].mxu0 %v185
  %v550 = vpop.f32.mrb[0].mxu0
  %v551 = vadd.f32 %v178, %v550
  %v552 = vpop.f32.mrb[0].mxu0
  %553 = vmatprep.mubr.f32.mxu0 0.0
  %554 = vmatmul.mubr.f32.gmra.mrb[0].mxu0 %v188
  %v555 = vpop.f32.mrb[0].mxu0
  %v556 = vadd.f32 %v178, %v555
  %v557 = vpop.f32.mrb[0].mxu0
  %558 = vmatprep.mubr.f32.mxu0 0.0
  %559 = vmatmul.mubr.f32.gmra.mrb[0].mxu0 %v191
  %v560 = vpop.f32.mrb[0].mxu0
  %v561 = vadd.f32 %v178, %v560
  %v562 = vpop.f32.mrb[0].mxu0
  %563 = vmatprep.mubr.f32.mxu0 0.0
  %564 = vmatmul.mubr.f32.gmra.mrb[0].mxu0 %v194
  %v565 = vpop.f32.mrb[0].mxu0
  %v566 = vadd.f32 %v178, %v565
  %v567 = vpop.f32.mrb[0].mxu0
  %568 = vmatprep.mubr.f32.mxu0 0.0
  %569 = vmatmul.mubr.f32.gmra.mrb[0].mxu0 %v197
  %v570 = vpop.f32.mrb[0].mxu0
  %v571 = vadd.f32 %v178, %v570
  %v572 = vpop.f32.mrb[0].mxu0
  %573 = vmatprep.mubr.f32.mxu0 0.0
  %574 = vmatmul.mubr.f32.gmra.mrb[0].mxu0 %v200
  %v575 = vpop.f32.mrb[0].mxu0
  %v576 = vadd.f32 %v178, %v575
  %v577 = vpop.f32.mrb[0].mxu0
  %578 = vmatprep.mubr.f32.mxu0 0.0
  %579 = vmatmul.mubr.f32.gmra.mrb[0].mxu0 %v203
  %v580 = vpop.f32.mrb[0].mxu0
  %v581 = vadd.f32 %v178, %v580
  %v582 = vpop.f32.mrb[0].mxu0
  %583 = vmatprep.mubr.f32.mxu0 0.0
  %584 = vmatmul.mubr.f32.gmra.mrb[0].mxu0 %v206
  %v585 = vpop.f32.mrb[0].mxu0
  %v586 = vadd.f32 %v178, %v585
  %v587 = vpop.f32.mrb[0].mxu0
  %588 = vmatprep.mubr.f32.mxu0 0.0
  %589 = vmatmul.mubr.f32.gmra.mrb[0].mxu0 %v209
  %v590 = vpop.f32.mrb[0].mxu0
  %v591 = vadd.f32 %v178, %v590
  %v592 = vpop.f32.mrb[0].mxu0
  %593 = vmatprep.mubr.f32.mxu0 0.0
  %594 = vmatmul.mubr.f32.gmra.mrb[0].mxu0 %v212
  %v595 = vpop.f32.mrb[0].mxu0
  %v596 = vadd.f32 %v178, %v595
  %v597 = vpop.f32.mrb[0].mxu0
  %598 = vmatprep.mubr.f32.mxu0 0.0
  %599 = vmatmul.mubr.f32.gmra.mrb[0].mxu0 %v215
  %v600 = vpop.f32.mrb[0].mxu0
  %v601 = vadd.f32 %v178, %v600
  %v602 = vpop.f32.mrb[0].mxu0
  %603 = vmatprep.mubr.f32.mxu0 0.0
  %604 = vmatmul.mubr.f32.gmra.mrb[0].mxu0 %v218
  %v605 = vpop.f32.mrb[0].mxu0
  %v606 = vadd.f32 %v178, %v605
  %v607 = vpop.f32.mrb[0].mxu0
  %608 = vmatprep.mubr.f32.mxu0 0.0
  %609 = vmatmul.mubr.f32.gmra.mrb[0].mxu0 %v221
  %v610 = vpop.f32.mrb[0].mxu0
  %v611 = vadd.f32 %v178, %v610
  %v612 = vpop.f32.mrb[0].mxu0
  %613 = vmatprep.mubr.f32.mxu0 0.0
  %614 = vmatmul.mubr.f32.gmra.mrb[0].mxu0 %v224
  %v615 = vpop.f32.mrb[0].mxu0
  %v616 = vadd.f32 %v178, %v615
  %v617 = vpop.f32.mrb[0].mxu0
  %618 = vmatprep.mubr.f32.mxu0 0.0
  %619 = vmatmul.mubr.f32.gmra.mrb[0].mxu0 %v227
  %v620 = vpop.f32.mrb[0].mxu0
  %v621 = vadd.f32 %v178, %v620
  %v622 = vpop.f32.mrb[0].mxu0
  %623 = vmatprep.mubr.f32.mxu0 0.0
  %624 = vmatmul.mubr.f32.gmra.mrb[0].mxu0 %v230
  %v625 = vpop.f32.mrb[0].mxu0
  %v626 = vadd.f32 %v178, %v625
  %v627 = vpop.f32.mrb[0].mxu0
  %628 = vmatprep.mubr.f32.mxu0 0.0
  %629 = vmatmul.mubr.f32.gmra.mrb[0].mxu0 %v233
  %v630 = vpop.f32.mrb[0].mxu0
  %v631 = vadd.f32 %v178, %v630
  %v632 = vpop.f32.mrb[0].mxu0
  %633 = vmatprep.mubr.f32.mxu0 0.0
  %634 = vmatmul.mubr.f32.gmra.mrb[0].mxu0 %v236
  %v635 = vpop.f32.mrb[0].mxu0
  %v636 = vadd.f32 %v178, %v635
  %v637 = vpop.f32.mrb[0].mxu0
  %638 = vmatprep.mubr.f32.mxu0 0.0
  %639 = vmatmul.mubr.f32.gmra.mrb[0].mxu0 %v239
  %v640 = vpop.f32.mrb[0].mxu0
  %v641 = vadd.f32 %v178, %v640
  %v642 = vpop.f32.mrb[0].mxu0
  %643 = vmatprep.mubr.f32.mxu0 0.0
  %644 = vmatmul.mubr.f32.gmra.mrb[0].mxu0 %v242
  %v645 = vpop.f32.mrb[0].mxu0
  %v646 = vadd.f32 %v178, %v645
  %v647 = vpop.f32.mrb[0].mxu0
  %648 = vmatprep.mubr.f32.mxu0 0.0
  %649 = vmatmul.mubr.f32.gmra.mrb[0].mxu0 %v245
  %v650 = vpop.f32.mrb[0].mxu0
  %v651 = vadd.f32 %v178, %v650
  %v652 = vpop.f32.mrb[0].mxu0
  %653 = vmatprep.mubr.f32.mxu0 0.0
  %654 = vmatmul.mubr.f32.gmra.mrb[0].mxu0 %v248
  %v655 = vpop.f32.mrb[0].mxu0
  %v656 = vadd.f32 %v178, %v655
  %v657 = vpop.f32.mrb[0].mxu0
  %658 = vmatprep.mubr.f32.mxu0 0.0
  %659 = vmatmul.mubr.f32.gmra.mrb[0].mxu0 %v251
  %v660 = vpop.f32.mrb[0].mxu0
  %v661 = vadd.f32 %v178, %v660
  %v662 = vpop.f32.mrb[0].mxu0
  %663 = vmatprep.mubr.f32.mxu0 0.0
  %664 = vmatmul.mubr.f32.gmra.mrb[0].mxu0 %v254
  %v665 = vpop.f32.mrb[0].mxu0
  %v666 = vadd.f32 %v178, %v665
  %v667 = vpop.f32.mrb[0].mxu0
  %668 = vmatprep.mubr.f32.mxu0 0.0
  %669 = vmatmul.mubr.f32.gmra.mrb[0].mxu0 %v257
  %v670 = vpop.f32.mrb[0].mxu0
  %v671 = vadd.f32 %v178, %v670
  %v672 = vpop.f32.mrb[0].mxu0
  %673 = vmatprep.mubr.f32.mxu0 0.0
  %674 = vmatmul.mubr.f32.gmra.mrb[0].mxu0 %v260
  %v675 = vpop.f32.mrb[0].mxu0
  %v676 = vadd.f32 %v178, %v675
  %v677 = vpop.f32.mrb[0].mxu0
  %678 = vmatprep.mubr.f32.mxu0 0.0
  %679 = vmatmul.mubr.f32.gmra.mrb[0].mxu0 %v263
  %v680 = vpop.f32.mrb[0].mxu0
  %v681 = vadd.f32 %v178, %v680
  %v682 = vpop.f32.mrb[0].mxu0
  %683 = vmatprep.mubr.f32.mxu0 0.0
  %684 = vmatmul.mubr.f32.gmra.mrb[0].mxu0 %v266
  %v685 = vpop.f32.mrb[0].mxu0
  %v686 = vadd.f32 %v178, %v685
  %v687 = vpop.f32.mrb[0].mxu0
  %688 = vmatprep.mubr.f32.mxu0 0.0
  %689 = vmatmul.mubr.f32.gmra.mrb[0].mxu0 %v269
  %v690 = vpop.f32.mrb[0].mxu0
  %v691 = vadd.f32 %v178, %v690
  %v692 = vpop.f32.mrb[0].mxu0
  %693 = vmatprep.mubr.f32.mxu0 0.0
  %694 = vmatmul.mubr.f32.gmra.mrb[0].mxu0 %v272
  %v695 = vpop.f32.mrb[0].mxu0
  %v696 = vadd.f32 %v178, %v695
  %v697 = vpop.f32.mrb[0].mxu0
  %698 = vmatprep.mubr.f32.mxu0 0.0
  %699 = vmatmul.mubr.f32.gmra.mrb[0].mxu0 %v275
  %v700 = vpop.f32.mrb[0].mxu0
  %v701 = vadd.f32 %v178, %v700
  %v702 = vpop.f32.mrb[0].mxu0
  %703 = vmatprep.mubr.f32.mxu0 0.0
  %704 = vmatmul.mubr.f32.gmra.mrb[0].mxu0 %v278
  %v705 = vpop.f32.mrb[0].mxu0
  %v706 = vadd.f32 %v178, %v705
  %v707 = vpop.f32.mrb[0].mxu0
  %708 = vmatprep.mubr.f32.mxu0 0.0
  %709 = vmatmul.mubr.f32.gmra.mrb[0].mxu0 %v281
  %v710 = vpop.f32.mrb[0].mxu0
  %v711 = vadd.f32 %v178, %v710
  %v712 = vpop.f32.mrb[0].mxu0
  %713 = vmatprep.mubr.f32.mxu0 0.0
  %714 = vmatmul.mubr.f32.gmra.mrb[0].mxu0 %v284
  %v715 = vpop.f32.mrb[0].mxu0
  %v716 = vadd.f32 %v178, %v715
  %v717 = vpop.f32.mrb[0].mxu0
  %718 = vmatprep.mubr.f32.mxu0 0.0
  %719 = vmatmul.mubr.f32.gmra.mrb[0].mxu0 %v287
  %v720 = vpop.f32.mrb[0].mxu0
  %v721 = vadd.f32 %v178, %v720
  %v722 = vpop.f32.mrb[0].mxu0
  %723 = vmatprep.mubr.f32.mxu0 0.0
  %724 = vmatmul.mubr.f32.gmra.mrb[0].mxu0 %v290
  %v725 = vpop.f32.mrb[0].mxu0
  %v726 = vadd.f32 %v178, %v725
  %v727 = vpop.f32.mrb[0].mxu0
  %728 = vmatprep.mubr.f32.mxu0 0.0
  %729 = vmatmul.mubr.f32.gmra.mrb[0].mxu0 %v293
  %v730 = vpop.f32.mrb[0].mxu0
  %v731 = vadd.f32 %v178, %v730
  %v732 = vpop.f32.mrb[0].mxu0
  %733 = vmatprep.mubr.f32.mxu0 0.0
  %734 = vmatmul.mubr.f32.gmra.mrb[0].mxu0 %v296
  %v735 = vpop.f32.mrb[0].mxu0
  %v736 = vadd.f32 %v178, %v735
  %v737 = vpop.f32.mrb[0].mxu0
  %738 = vmatprep.mubr.f32.mxu0 0.0
  %739 = vmatmul.mubr.f32.gmra.mrb[0].mxu0 %v299
  %v740 = vpop.f32.mrb[0].mxu0
  %v741 = vadd.f32 %v178, %v740
  %v742 = vpop.f32.mrb[0].mxu0
  %743 = vmatprep.mubr.f32.mxu0 0.0
  %744 = vmatmul.mubr.f32.gmra.mrb[0].mxu0 %v302
  %v745 = vpop.f32.mrb[0].mxu0
  %v746 = vadd.f32 %v178, %v745
  %v747 = vpop.f32.mrb[0].mxu0
  %748 = vmatprep.mubr.f32.mxu0 0.0
  %749 = vmatmul.mubr.f32.gmra.mrb[0].mxu0 %v305
  %v750 = vpop.f32.mrb[0].mxu0
  %v751 = vadd.f32 %v178, %v750
  %v752 = vpop.f32.mrb[0].mxu0
  %753 = vmatprep.mubr.f32.mxu0 0.0
  %754 = vmatmul.mubr.f32.gmra.mrb[0].mxu0 %v308
  %v755 = vpop.f32.mrb[0].mxu0
  %v756 = vadd.f32 %v178, %v755
  %v757 = vpop.f32.mrb[0].mxu0
  %758 = vmatprep.mubr.f32.mxu0 0.0
  %759 = vmatmul.mubr.f32.gmra.mrb[0].mxu0 %v311
  %v760 = vpop.f32.mrb[0].mxu0
  %v761 = vadd.f32 %v178, %v760
  %v762 = vpop.f32.mrb[0].mxu0
  %763 = vmatprep.mubr.f32.mxu0 0.0
  %764 = vmatmul.mubr.f32.gmra.mrb[0].mxu0 %v314
  %v765 = vpop.f32.mrb[0].mxu0
  %v766 = vadd.f32 %v178, %v765
  %v767 = vpop.f32.mrb[0].mxu0
  %768 = vmatprep.mubr.f32.mxu0 0.0
  %769 = vmatmul.mubr.f32.gmra.mrb[0].mxu0 %v317
  %v770 = vpop.f32.mrb[0].mxu0
  %v771 = vadd.f32 %v178, %v770
  %v772 = vpop.f32.mrb[0].mxu0
  %773 = vmatprep.mubr.f32.mxu0 0.0
  %774 = vmatmul.mubr.f32.gmra.mrb[0].mxu0 %v320
  %v775 = vpop.f32.mrb[0].mxu0
  %v776 = vadd.f32 %v178, %v775
  %v777 = vpop.f32.mrb[0].mxu0
  %778 = vmatprep.mubr.f32.mxu0 0.0
  %779 = vmatmul.mubr.f32.gmra.mrb[0].mxu0 %v323
  %v780 = vpop.f32.mrb[0].mxu0
  %v781 = vadd.f32 %v178, %v780
  %v782 = vpop.f32.mrb[0].mxu0
  %783 = vmatprep.mubr.f32.mxu0 0.0
  %784 = vmatmul.mubr.f32.gmra.mrb[0].mxu0 %v326
  %v785 = vpop.f32.mrb[0].mxu0
  %v786 = vadd.f32 %v178, %v785
  %v787 = vpop.f32.mrb[0].mxu0
  %788 = vmatprep.mubr.f32.mxu0 0.0
  %789 = vmatmul.mubr.f32.gmra.mrb[0].mxu0 %v329
  %v790 = vpop.f32.mrb[0].mxu0
  %v791 = vadd.f32 %v178, %v790
  %v792 = vpop.f32.mrb[0].mxu0
  %793 = vmatprep.mubr.f32.mxu0 0.0
  %794 = vmatmul.mubr.f32.gmra.mrb[0].mxu0 %v332
  %v795 = vpop.f32.mrb[0].mxu0
  %v796 = vadd.f32 %v178, %v795
  %v797 = vpop.f32.mrb[0].mxu0
  %798 = vmatprep.mubr.f32.mxu0 0.0
  %799 = vmatmul.mubr.f32.gmra.mrb[0].mxu0 %v335
  %v800 = vpop.f32.mrb[0].mxu0
  %v801 = vadd.f32 %v178, %v800
  %v802 = vpop.f32.mrb[0].mxu0
  %803 = vmatprep.mubr.f32.mxu0 0.0
  %804 = vmatmul.mubr.f32.gmra.mrb[0].mxu0 %v338
  %v805 = vpop.f32.mrb[0].mxu0
  %v806 = vadd.f32 %v178, %v805
  %v807 = vpop.f32.mrb[0].mxu0
  %808 = vmatprep.mubr.f32.mxu0 0.0
  %809 = vmatmul.mubr.f32.gmra.mrb[0].mxu0 %v341
  %v810 = vpop.f32.mrb[0].mxu0
  %v811 = vadd.f32 %v178, %v810
  %v812 = vpop.f32.mrb[0].mxu0
  %813 = vmatprep.mubr.f32.mxu0 0.0
  %814 = vmatmul.mubr.f32.gmra.mrb[0].mxu0 %v344
  %v815 = vpop.f32.mrb[0].mxu0
  %v816 = vadd.f32 %v178, %v815
  %v817 = vpop.f32.mrb[0].mxu0
  %818 = vmatprep.mubr.f32.mxu0 0.0
  %819 = vmatmul.mubr.f32.gmra.mrb[0].mxu0 %v347
  %v820 = vpop.f32.mrb[0].mxu0
  %v821 = vadd.f32 %v178, %v820
  %v822 = vpop.f32.mrb[0].mxu0
  %823 = vmatprep.mubr.f32.mxu0 0.0
  %824 = vmatmul.mubr.f32.gmra.mrb[0].mxu0 %v350
  %v825 = vpop.f32.mrb[0].mxu0
  %v826 = vadd.f32 %v178, %v825
  %v827 = vpop.f32.mrb[0].mxu0
  %828 = vmatprep.mubr.f32.mxu0 0.0
  %829 = vmatmul.mubr.f32.gmra.mrb[0].mxu0 %v353
  %v830 = vpop.f32.mrb[0].mxu0
  %v831 = vadd.f32 %v178, %v830
  %v832 = vpop.f32.mrb[0].mxu0
  %833 = vmatprep.mubr.f32.mxu0 0.0
  %834 = vmatmul.mubr.f32.gmra.mrb[0].mxu0 %v356
  %v835 = vpop.f32.mrb[0].mxu0
  %v836 = vadd.f32 %v178, %v835
  %v837 = vpop.f32.mrb[0].mxu0
  %838 = vmatprep.mubr.f32.mxu0 0.0
  %839 = vmatmul.mubr.f32.gmra.mrb[0].mxu0 %v359
  %v840 = vpop.f32.mrb[0].mxu0
  %v841 = vadd.f32 %v178, %v840
  %v842 = vpop.f32.mrb[0].mxu0
  %843 = vmatprep.mubr.f32.mxu0 0.0
  %844 = vmatmul.mubr.f32.gmra.mrb[0].mxu0 %v362
  %v845 = vpop.f32.mrb[0].mxu0
  %v846 = vadd.f32 %v178, %v845
  %v847 = vpop.f32.mrb[0].mxu0
  %848 = vmatprep.mubr.f32.mxu0 0.0
  %849 = vmatmul.mubr.f32.gmra.mrb[0].mxu0 %v365
  %v850 = vpop.f32.mrb[0].mxu0
  %v851 = vadd.f32 %v178, %v850
  %v852 = vpop.f32.mrb[0].mxu0
  %853 = vmatprep.mubr.f32.mxu0 0.0
  %854 = vmatmul.mubr.f32.gmra.mrb[0].mxu0 %v368
  %v855 = vpop.f32.mrb[0].mxu0
  %v856 = vadd.f32 %v178, %v855
  %v857 = vpop.f32.mrb[0].mxu0
  %858 = vmatprep.mubr.f32.mxu0 0.0
  %859 = vmatmul.mubr.f32.gmra.mrb[0].mxu0 %v371
  %v860 = vpop.f32.mrb[0].mxu0
  %v861 = vadd.f32 %v178, %v860
  %v862 = vpop.f32.mrb[0].mxu0
  %863 = vmatprep.mubr.f32.mxu0 0.0
  %864 = vmatmul.mubr.f32.gmra.mrb[0].mxu0 %v374
  %v865 = vpop.f32.mrb[0].mxu0
  %v866 = vadd.f32 %v178, %v865
  %v867 = vpop.f32.mrb[0].mxu0
  %868 = vmatprep.mubr.f32.mxu0 0.0
  %869 = vmatmul.mubr.f32.gmra.mrb[0].mxu0 %v377
  %v870 = vpop.f32.mrb[0].mxu0
  %v871 = vadd.f32 %v178, %v870
  %v872 = vpop.f32.mrb[0].mxu0
  %873 = vmatprep.mubr.f32.mxu0 0.0
  %874 = vmatmul.mubr.f32.gmra.mrb[0].mxu0 %v380
  %v875 = vpop.f32.mrb[0].mxu0
  %v876 = vadd.f32 %v178, %v875
  %v877 = vpop.f32.mrb[0].mxu0
  %878 = vmatprep.mubr.f32.mxu0 0.0
  %879 = vmatmul.mubr.f32.gmra.mrb[0].mxu0 %v383
  %v880 = vpop.f32.mrb[0].mxu0
  %v881 = vadd.f32 %v178, %v880
  %v882 = vpop.f32.mrb[0].mxu0
  %883 = vmatprep.mubr.f32.mxu0 0.0
  %884 = vmatmul.mubr.f32.gmra.mrb[0].mxu0 %v386
  %v885 = vpop.f32.mrb[0].mxu0
  %v886 = vadd.f32 %v178, %v885
  %v887 = vpop.f32.mrb[0].mxu0
  %888 = vmatprep.mubr.f32.mxu0 0.0
  %889 = vmatmul.mubr.f32.gmra.mrb[0].mxu0 %v389
  %v890 = vpop.f32.mrb[0].mxu0
  %v891 = vadd.f32 %v178, %v890
  %v892 = vpop.f32.mrb[0].mxu0
  %893 = vmatprep.mubr.f32.mxu0 0.0
  %894 = vmatmul.mubr.f32.gmra.mrb[0].mxu0 %v392
  %v895 = vpop.f32.mrb[0].mxu0
  %v896 = vadd.f32 %v178, %v895
  %v897 = vpop.f32.mrb[0].mxu0
  %898 = vmatprep.mubr.f32.mxu0 0.0
  %899 = vmatmul.mubr.f32.gmra.mrb[0].mxu0 %v395
  %v900 = vpop.f32.mrb[0].mxu0
  %v901 = vadd.f32 %v178, %v900
  %v902 = vpop.f32.mrb[0].mxu0
  %903 = vmatprep.mubr.f32.mxu0 0.0
  %904 = vmatmul.mubr.f32.gmra.mrb[0].mxu0 %v398
  %v905 = vpop.f32.mrb[0].mxu0
  %v906 = vadd.f32 %v178, %v905
  %v907 = vpop.f32.mrb[0].mxu0
  %908 = vmatprep.mubr.f32.mxu0 0.0
  %909 = vmatmul.mubr.f32.gmra.mrb[0].mxu0 %v401
  %v910 = vpop.f32.mrb[0].mxu0
  %v911 = vadd.f32 %v178, %v910
  %v912 = vpop.f32.mrb[0].mxu0
  %913 = vmatprep.mubr.f32.mxu0 0.0
  %914 = vmatmul.mubr.f32.gmra.mrb[0].mxu0 %v404
  %v915 = vpop.f32.mrb[0].mxu0
  %v916 = vadd.f32 %v178, %v915
  %v917 = vpop.f32.mrb[0].mxu0
  %918 = vmatprep.mubr.f32.mxu0 0.0
  %919 = vmatmul.mubr.f32.gmra.mrb[0].mxu0 %v407
  %v920 = vpop.f32.mrb[0].mxu0
  %v921 = vadd.f32 %v178, %v920
  %v922 = vpop.f32.mrb[0].mxu0
  %923 = vmatprep.mubr.f32.mxu0 0.0
  %924 = vmatmul.mubr.f32.gmra.mrb[0].mxu0 %v410
  %v925 = vpop.f32.mrb[0].mxu0
  %v926 = vadd.f32 %v178, %v925
  %v927 = vpop.f32.mrb[0].mxu0
  %928 = vmatprep.mubr.f32.mxu0 0.0
  %929 = vmatmul.mubr.f32.gmra.mrb[0].mxu0 %v413
  %v930 = vpop.f32.mrb[0].mxu0
  %v931 = vadd.f32 %v178, %v930
  %v932 = vpop.f32.mrb[0].mxu0
  %933 = vmatprep.mubr.f32.mxu0 0.0
  %934 = vmatmul.mubr.f32.gmra.mrb[0].mxu0 %v416
  %v935 = vpop.f32.mrb[0].mxu0
  %v936 = vadd.f32 %v178, %v935
  %v937 = vpop.f32.mrb[0].mxu0
  %938 = vmatprep.mubr.f32.mxu0 0.0
  %939 = vmatmul.mubr.f32.gmra.mrb[0].mxu0 %v419
  %v940 = vpop.f32.mrb[0].mxu0
  %v941 = vadd.f32 %v178, %v940
  %v942 = vpop.f32.mrb[0].mxu0
  %943 = vmatprep.mubr.f32.mxu0 0.0
  %944 = vmatmul.mubr.f32.gmra.mrb[0].mxu0 %v422
  %v945 = vpop.f32.mrb[0].mxu0
  %v946 = vadd.f32 %v178, %v945
  %v947 = vpop.f32.mrb[0].mxu0
  %948 = vmatprep.mubr.f32.mxu0 0.0
  %949 = vmatmul.mubr.f32.gmra.mrb[0].mxu0 %v425
  %v950 = vpop.f32.mrb[0].mxu0
  %v951 = vadd.f32 %v178, %v950
  %v952 = vpop.f32.mrb[0].mxu0
  %953 = vmatprep.mubr.f32.mxu0 0.0
  %954 = vmatmul.mubr.f32.gmra.mrb[0].mxu0 %v428
  %v955 = vpop.f32.mrb[0].mxu0
  %v956 = vadd.f32 %v178, %v955
  %v957 = vpop.f32.mrb[0].mxu0
  %958 = vmatprep.mubr.f32.mxu0 0.0
  %959 = vmatmul.mubr.f32.gmra.mrb[0].mxu0 %v431
  %v960 = vpop.f32.mrb[0].mxu0
  %v961 = vadd.f32 %v178, %v960
  %v962 = vpop.f32.mrb[0].mxu0
  %963 = vmatprep.mubr.f32.mxu0 0.0
  %964 = vmatmul.mubr.f32.gmra.mrb[0].mxu0 %v434
  %v965 = vpop.f32.mrb[0].mxu0
  %v966 = vadd.f32 %v178, %v965
  %v967 = vpop.f32.mrb[0].mxu0
  %968 = vmatprep.mubr.f32.mxu0 0.0
  %969 = vmatmul.mubr.f32.gmra.mrb[0].mxu0 %v437
  %v970 = vpop.f32.mrb[0].mxu0
  %v971 = vadd.f32 %v178, %v970
  %v972 = vpop.f32.mrb[0].mxu0
  %973 = vmatprep.mubr.f32.mxu0 0.0
  %974 = vmatmul.mubr.f32.gmra.mrb[0].mxu0 %v440
  %v975 = vpop.f32.mrb[0].mxu0
  %v976 = vadd.f32 %v178, %v975
  %v977 = vpop.f32.mrb[0].mxu0
  %978 = vmatprep.mubr.f32.mxu0 0.0
  %979 = vmatmul.mubr.f32.gmra.mrb[0].mxu0 %v443
  %v980 = vpop.f32.mrb[0].mxu0
  %v981 = vadd.f32 %v178, %v980
  %v982 = vpop.f32.mrb[0].mxu0
  %983 = vmatprep.mubr.f32.mxu0 0.0
  %984 = vmatmul.mubr.f32.gmra.mrb[0].mxu0 %v446
  %v985 = vpop.f32.mrb[0].mxu0
  %v986 = vadd.f32 %v178, %v985
  %v987 = vpop.f32.mrb[0].mxu0
  %988 = vmatprep.mubr.f32.mxu0 0.0
  %989 = vmatmul.mubr.f32.gmra.mrb[0].mxu0 %v449
  %v990 = vpop.f32.mrb[0].mxu0
  %v991 = vadd.f32 %v178, %v990
  %v992 = vpop.f32.mrb[0].mxu0
  %993 = vmatprep.mubr.f32.mxu0 0.0
  %994 = vmatmul.mubr.f32.gmra.mrb[0].mxu0 %v452
  %v995 = vpop.f32.mrb[0].mxu0
  %v996 = vadd.f32 %v178, %v995
  %v997 = vpop.f32.mrb[0].mxu0
  %998 = vmatprep.mubr.f32.mxu0 0.0
  %999 = vmatmul.mubr.f32.gmra.mrb[0].mxu0 %v455
  %v1000 = vpop.f32.mrb[0].mxu0
  %v1001 = vadd.f32 %v178, %v1000
  %v1002 = vpop.f32.mrb[0].mxu0
  %1003 = vmatprep.mubr.f32.mxu0 0.0
  %1004 = vmatmul.mubr.f32.gmra.mrb[0].mxu0 %v458
  %v1005 = vpop.f32.mrb[0].mxu0
  %v1006 = vadd.f32 %v178, %v1005
  %v1007 = vpop.f32.mrb[0].mxu0
  %1008 = vmatprep.mubr.f32.mxu0 0.0
  %1009 = vmatmul.mubr.f32.gmra.mrb[0].mxu0 %v461
  %v1010 = vpop.f32.mrb[0].mxu0
  %v1011 = vadd.f32 %v178, %v1010
  %v1012 = vpop.f32.mrb[0].mxu0
  %1013 = vmatprep.mubr.f32.mxu0 0.0
  %1014 = vmatmul.mubr.f32.gmra.mrb[0].mxu0 %v464
  %v1015 = vpop.f32.mrb[0].mxu0
  %v1016 = vadd.f32 %v178, %v1015
  %v1017 = vpop.f32.mrb[0].mxu0
  %1018 = vmatprep.mubr.f32.mxu0 0.0
  %1019 = vmatmul.mubr.f32.gmra.mrb[0].mxu0 %v467
  %v1020 = vpop.f32.mrb[0].mxu0
  %v1021 = vadd.f32 %v178, %v1020
  %v1022 = vpop.f32.mrb[0].mxu0
  %1023 = vmatprep.mubr.f32.mxu0 0.0
  %1024 = vmatmul.mubr.f32.gmra.mrb[0].mxu0 %v470
  %v1025 = vpop.f32.mrb[0].mxu0
  %v1026 = vadd.f32 %v178, %v1025
  %v1027 = vpop.f32.mrb[0].mxu0
  %1028 = vmatprep.mubr.f32.mxu0 0.0
  %1029 = vmatmul.mubr.f32.gmra.mrb[0].mxu0 %v473
  %v1030 = vpop.f32.mrb[0].mxu0
  %v1031 = vadd.f32 %v178, %v1030
  %v1032 = vpop.f32.mrb[0].mxu0
  %1033 = vdwg.mxu0
  %v1034 = vmax.f32 %v546, 0.0
  %v1035 = vmax.f32 %v551, 0.0
  %v1036 = vmax.f32 %v556, 0.0
  %v1037 = vmax.f32 %v561, 0.0
  %v1038 = vmax.f32 %v566, 0.0
  %v1039 = vmax.f32 %v571, 0.0
  %v1040 = vmax.f32 %v576, 0.0
  %v1041 = vmax.f32 %v581, 0.0
  %v1042 = vmax.f32 %v586, 0.0
  %v1043 = vmax.f32 %v591, 0.0
  %v1044 = vmax.f32 %v596, 0.0
  %v1045 = vmax.f32 %v601, 0.0
  %v1046 = vmax.f32 %v606, 0.0
  %v1047 = vmax.f32 %v611, 0.0
  %v1048 = vmax.f32 %v616, 0.0
  %v1049 = vmax.f32 %v621, 0.0
  %v1050 = vmax.f32 %v626, 0.0
  %v1051 = vmax.f32 %v631, 0.0
  %v1052 = vmax.f32 %v636, 0.0
  %v1053 = vmax.f32 %v641, 0.0
  %v1054 = vmax.f32 %v646, 0.0
  %v1055 = vmax.f32 %v651, 0.0
  %v1056 = vmax.f32 %v656, 0.0
  %v1057 = vmax.f32 %v661, 0.0
  %v1058 = vmax.f32 %v666, 0.0
  %v1059 = vmax.f32 %v671, 0.0
  %v1060 = vmax.f32 %v676, 0.0
  %v1061 = vmax.f32 %v681, 0.0
  %v1062 = vmax.f32 %v686, 0.0
  %v1063 = vmax.f32 %v691, 0.0
  %v1064 = vmax.f32 %v696, 0.0
  %v1065 = vmax.f32 %v701, 0.0
  %v1066 = vmax.f32 %v706, 0.0
  %v1067 = vmax.f32 %v711, 0.0
  %v1068 = vmax.f32 %v716, 0.0
  %v1069 = vmax.f32 %v721, 0.0
  %v1070 = vmax.f32 %v726, 0.0
  %v1071 = vmax.f32 %v731, 0.0
  %v1072 = vmax.f32 %v736, 0.0
  %v1073 = vmax.f32 %v741, 0.0
  %v1074 = vmax.f32 %v746, 0.0
  %v1075 = vmax.f32 %v751, 0.0
  %v1076 = vmax.f32 %v756, 0.0
  %v1077 = vmax.f32 %v761, 0.0
  %v1078 = vmax.f32 %v766, 0.0
  %v1079 = vmax.f32 %v771, 0.0
  %v1080 = vmax.f32 %v776, 0.0
  %v1081 = vmax.f32 %v781, 0.0
  %v1082 = vmax.f32 %v786, 0.0
  %v1083 = vmax.f32 %v791, 0.0
  %v1084 = vmax.f32 %v796, 0.0
  %v1085 = vmax.f32 %v801, 0.0
  %v1086 = vmax.f32 %v806, 0.0
  %v1087 = vmax.f32 %v811, 0.0
  %v1088 = vmax.f32 %v816, 0.0
  %v1089 = vmax.f32 %v821, 0.0
  %v1090 = vmax.f32 %v826, 0.0
  %v1091 = vmax.f32 %v831, 0.0
  %v1092 = vmax.f32 %v836, 0.0
  %v1093 = vmax.f32 %v841, 0.0
  %v1094 = vmax.f32 %v846, 0.0
  %v1095 = vmax.f32 %v851, 0.0
  %v1096 = vmax.f32 %v856, 0.0
  %v1097 = vmax.f32 %v861, 0.0
  %v1098 = vmax.f32 %v866, 0.0
  %v1099 = vmax.f32 %v871, 0.0
  %v1100 = vmax.f32 %v876, 0.0
  %v1101 = vmax.f32 %v881, 0.0
  %v1102 = vmax.f32 %v886, 0.0
  %v1103 = vmax.f32 %v891, 0.0
  %v1104 = vmax.f32 %v896, 0.0
  %v1105 = vmax.f32 %v901, 0.0
  %v1106 = vmax.f32 %v906, 0.0
  %v1107 = vmax.f32 %v911, 0.0
  %v1108 = vmax.f32 %v916, 0.0
  %v1109 = vmax.f32 %v921, 0.0
  %v1110 = vmax.f32 %v926, 0.0
  %v1111 = vmax.f32 %v931, 0.0
  %v1112 = vmax.f32 %v936, 0.0
  %v1113 = vmax.f32 %v941, 0.0
  %v1114 = vmax.f32 %v946, 0.0
  %v1115 = vmax.f32 %v951, 0.0
  %v1116 = vmax.f32 %v956, 0.0
  %v1117 = vmax.f32 %v961, 0.0
  %v1118 = vmax.f32 %v966, 0.0
  %v1119 = vmax.f32 %v971, 0.0
  %v1120 = vmax.f32 %v976, 0.0
  %v1121 = vmax.f32 %v981, 0.0
  %v1122 = vmax.f32 %v986, 0.0
  %v1123 = vmax.f32 %v991, 0.0
  %v1124 = vmax.f32 %v996, 0.0
  %v1125 = vmax.f32 %v1001, 0.0
  %v1126 = vmax.f32 %v1006, 0.0
  %v1127 = vmax.f32 %v1011, 0.0
  %v1128 = vmax.f32 %v1016, 0.0
  %v1129 = vmax.f32 %v1021, 0.0
  %v1130 = vmax.f32 %v1026, 0.0
  %v1131 = vmax.f32 %v1031, 0.0
  %1132 = vst.msk [vmem:[#allocation2] sm:$0xff] %vm46, %v1034
  %1133 = vst.msk [vmem:[#allocation2 + $0x8] sm:$0xff] %vm46, %v1035
  %1134 = vst.msk [vmem:[#allocation2 + $0x10] sm:$0xff] %vm46, %v1036
  %1135 = vst.msk [vmem:[#allocation2 + $0x18] sm:$0xff] %vm46, %v1037
  %1136 = vst.msk [vmem:[#allocation2 + $0x20] sm:$0xff] %vm46, %v1038
  %1137 = vst.msk [vmem:[#allocation2 + $0x28] sm:$0xff] %vm46, %v1039
  %1138 = vst.msk [vmem:[#allocation2 + $0x30] sm:$0xff] %vm46, %v1040
  %1139 = vst.msk [vmem:[#allocation2 + $0x38] sm:$0xff] %vm46, %v1041
  %1140 = vst.msk [vmem:[#allocation2 + $0x40] sm:$0xff] %vm46, %v1042
  %1141 = vst.msk [vmem:[#allocation2 + $0x48] sm:$0xff] %vm46, %v1043
  %1142 = vst.msk [vmem:[#allocation2 + $0x50] sm:$0xff] %vm46, %v1044
  %1143 = vst.msk [vmem:[#allocation2 + $0x58] sm:$0xff] %vm46, %v1045
  %1144 = vst.msk [vmem:[#allocation2 + $0x60] sm:$0xff] %vm46, %v1046
  %1145 = vst.msk [vmem:[#allocation2 + $0x68] sm:$0xff] %vm46, %v1047
  %1146 = vst.msk [vmem:[#allocation2 + $0x70] sm:$0xff] %vm46, %v1048
  %1147 = vst.msk [vmem:[#allocation2 + $0x78] sm:$0xff] %vm46, %v1049
  %1148 = vst.msk [vmem:[#allocation2 + $0x80] sm:$0xff] %vm46, %v1050
  %1149 = vst.msk [vmem:[#allocation2 + $0x88] sm:$0xff] %vm46, %v1051
  %1150 = vst.msk [vmem:[#allocation2 + $0x90] sm:$0xff] %vm46, %v1052
  %1151 = vst.msk [vmem:[#allocation2 + $0x98] sm:$0xff] %vm46, %v1053
  %1152 = vst.msk [vmem:[#allocation2 + $0xa0] sm:$0xff] %vm46, %v1054
  %1153 = vst.msk [vmem:[#allocation2 + $0xa8] sm:$0xff] %vm46, %v1055
  %1154 = vst.msk [vmem:[#allocation2 + $0xb0] sm:$0xff] %vm46, %v1056
  %1155 = vst.msk [vmem:[#allocation2 + $0xb8] sm:$0xff] %vm46, %v1057
  %1156 = vst.msk [vmem:[#allocation2 + $0xc0] sm:$0xff] %vm46, %v1058
  %1157 = vst.msk [vmem:[#allocation2 + $0xc8] sm:$0xff] %vm46, %v1059
  %1158 = vst.msk [vmem:[#allocation2 + $0xd0] sm:$0xff] %vm46, %v1060
  %1159 = vst.msk [vmem:[#allocation2 + $0xd8] sm:$0xff] %vm46, %v1061
  %1160 = vst.msk [vmem:[#allocation2 + $0xe0] sm:$0xff] %vm46, %v1062
  %1161 = vst.msk [vmem:[#allocation2 + $0xe8] sm:$0xff] %vm46, %v1063
  %1162 = vst.msk [vmem:[#allocation2 + $0xf0] sm:$0xff] %vm46, %v1064
  %1163 = vst.msk [vmem:[#allocation2 + $0xf8] sm:$0xff] %vm46, %v1065
  %1164 = vst.msk [vmem:[#allocation2 + $0x100] sm:$0xff] %vm46, %v1066
  %1165 = vst.msk [vmem:[#allocation2 + $0x108] sm:$0xff] %vm46, %v1067
  %1166 = vst.msk [vmem:[#allocation2 + $0x110] sm:$0xff] %vm46, %v1068
  %1167 = vst.msk [vmem:[#allocation2 + $0x118] sm:$0xff] %vm46, %v1069
  %1168 = vst.msk [vmem:[#allocation2 + $0x120] sm:$0xff] %vm46, %v1070
  %1169 = vst.msk [vmem:[#allocation2 + $0x128] sm:$0xff] %vm46, %v1071
  %1170 = vst.msk [vmem:[#allocation2 + $0x130] sm:$0xff] %vm46, %v1072
  %1171 = vst.msk [vmem:[#allocation2 + $0x138] sm:$0xff] %vm46, %v1073
  %1172 = vst.msk [vmem:[#allocation2 + $0x140] sm:$0xff] %vm46, %v1074
  %1173 = vst.msk [vmem:[#allocation2 + $0x148] sm:$0xff] %vm46, %v1075
  %1174 = vst.msk [vmem:[#allocation2 + $0x150] sm:$0xff] %vm46, %v1076
  %1175 = vst.msk [vmem:[#allocation2 + $0x158] sm:$0xff] %vm46, %v1077
  %1176 = vst.msk [vmem:[#allocation2 + $0x160] sm:$0xff] %vm46, %v1078
  %1177 = vst.msk [vmem:[#allocation2 + $0x168] sm:$0xff] %vm46, %v1079
  %1178 = vst.msk [vmem:[#allocation2 + $0x170] sm:$0xff] %vm46, %v1080
  %1179 = vst.msk [vmem:[#allocation2 + $0x178] sm:$0xff] %vm46, %v1081
  %1180 = vst.msk [vmem:[#allocation2 + $0x180] sm:$0xff] %vm46, %v1082
  %1181 = vst.msk [vmem:[#allocation2 + $0x188] sm:$0xff] %vm46, %v1083
  %1182 = vst.msk [vmem:[#allocation2 + $0x190] sm:$0xff] %vm46, %v1084
  %1183 = vst.msk [vmem:[#allocation2 + $0x198] sm:$0xff] %vm46, %v1085
  %1184 = vst.msk [vmem:[#allocation2 + $0x1a0] sm:$0xff] %vm46, %v1086
  %1185 = vst.msk [vmem:[#allocation2 + $0x1a8] sm:$0xff] %vm46, %v1087
  %1186 = vst.msk [vmem:[#allocation2 + $0x1b0] sm:$0xff] %vm46, %v1088
  %1187 = vst.msk [vmem:[#allocation2 + $0x1b8] sm:$0xff] %vm46, %v1089
  %1188 = vst.msk [vmem:[#allocation2 + $0x1c0] sm:$0xff] %vm46, %v1090
  %1189 = vst.msk [vmem:[#allocation2 + $0x1c8] sm:$0xff] %vm46, %v1091
  %1190 = vst.msk [vmem:[#allocation2 + $0x1d0] sm:$0xff] %vm46, %v1092
  %1191 = vst.msk [vmem:[#allocation2 + $0x1d8] sm:$0xff] %vm46, %v1093
  %1192 = vst.msk [vmem:[#allocation2 + $0x1e0] sm:$0xff] %vm46, %v1094
  %1193 = vst.msk [vmem:[#allocation2 + $0x1e8] sm:$0xff] %vm46, %v1095
  %1194 = vst.msk [vmem:[#allocation2 + $0x1f0] sm:$0xff] %vm46, %v1096
  %1195 = vst.msk [vmem:[#allocation2 + $0x1f8] sm:$0xff] %vm46, %v1097
  %1196 = vst.msk [vmem:[#allocation2 + $0x200] sm:$0xff] %vm46, %v1098
  %1197 = vst.msk [vmem:[#allocation2 + $0x208] sm:$0xff] %vm46, %v1099
  %1198 = vst.msk [vmem:[#allocation2 + $0x210] sm:$0xff] %vm46, %v1100
  %1199 = vst.msk [vmem:[#allocation2 + $0x218] sm:$0xff] %vm46, %v1101
  %1200 = vst.msk [vmem:[#allocation2 + $0x220] sm:$0xff] %vm46, %v1102
  %1201 = vst.msk [vmem:[#allocation2 + $0x228] sm:$0xff] %vm46, %v1103
  %1202 = vst.msk [vmem:[#allocation2 + $0x230] sm:$0xff] %vm46, %v1104
  %1203 = vst.msk [vmem:[#allocation2 + $0x238] sm:$0xff] %vm46, %v1105
  %1204 = vst.msk [vmem:[#allocation2 + $0x240] sm:$0xff] %vm46, %v1106
  %1205 = vst.msk [vmem:[#allocation2 + $0x248] sm:$0xff] %vm46, %v1107
  %1206 = vst.msk [vmem:[#allocation2 + $0x250] sm:$0xff] %vm46, %v1108
  %1207 = vst.msk [vmem:[#allocation2 + $0x258] sm:$0xff] %vm46, %v1109
  %1208 = vst.msk [vmem:[#allocation2 + $0x260] sm:$0xff] %vm46, %v1110
  %1209 = vst.msk [vmem:[#allocation2 + $0x268] sm:$0xff] %vm46, %v1111
  %1210 = vst.msk [vmem:[#allocation2 + $0x270] sm:$0xff] %vm46, %v1112
  %1211 = vst.msk [vmem:[#allocation2 + $0x278] sm:$0xff] %vm46, %v1113
  %1212 = vst.msk [vmem:[#allocation2 + $0x280] sm:$0xff] %vm46, %v1114
  %1213 = vst.msk [vmem:[#allocation2 + $0x288] sm:$0xff] %vm46, %v1115
  %1214 = vst.msk [vmem:[#allocation2 + $0x290] sm:$0xff] %vm46, %v1116
  %1215 = vst.msk [vmem:[#allocation2 + $0x298] sm:$0xff] %vm46, %v1117
  %1216 = vst.msk [vmem:[#allocation2 + $0x2a0] sm:$0xff] %vm46, %v1118
  %1217 = vst.msk [vmem:[#allocation2 + $0x2a8] sm:$0xff] %vm46, %v1119
  %1218 = vst.msk [vmem:[#allocation2 + $0x2b0] sm:$0xff] %vm46, %v1120
  %1219 = vst.msk [vmem:[#allocation2 + $0x2b8] sm:$0xff] %vm46, %v1121
  %1220 = vst.msk [vmem:[#allocation2 + $0x2c0] sm:$0xff] %vm46, %v1122
  %1221 = vst.msk [vmem:[#allocation2 + $0x2c8] sm:$0xff] %vm46, %v1123
  %1222 = vst.msk [vmem:[#allocation2 + $0x2d0] sm:$0xff] %vm46, %v1124
  %1223 = vst.msk [vmem:[#allocation2 + $0x2d8] sm:$0xff] %vm46, %v1125
  %1224 = vst.msk [vmem:[#allocation2 + $0x2e0] sm:$0xff] %vm46, %v1126
  %1225 = vst.msk [vmem:[#allocation2 + $0x2e8] sm:$0xff] %vm46, %v1127
  %1226 = vst.msk [vmem:[#allocation2 + $0x2f0] sm:$0xff] %vm46, %v1128
  %1227 = vst.msk [vmem:[#allocation2 + $0x2f8] sm:$0xff] %vm46, %v1129
  %1228 = vst.msk [vmem:[#allocation2 + $0x300] sm:$0xff] %vm46, %v1130
  %1229 = vst.msk [vmem:[#allocation2 + $0x308] sm:$0xff] %vm46, %v1131
  %v1230 = vld [vmem:[#allocation2] sm:$0xff]
  %v1231 = vld [vmem:[#allocation2 + $0x8] sm:$0xff]
  %v1232 = vld [vmem:[#allocation2 + $0x10] sm:$0xff]
  %v1233 = vld [vmem:[#allocation2 + $0x18] sm:$0xff]
  %v1234 = vld [vmem:[#allocation2 + $0x20] sm:$0xff]
  %v1235 = vld [vmem:[#allocation2 + $0x28] sm:$0xff]
  %v1236 = vld [vmem:[#allocation2 + $0x30] sm:$0xff]
  %v1237 = vld [vmem:[#allocation2 + $0x38] sm:$0xff]
  %v1238 = vld [vmem:[#allocation2 + $0x40] sm:$0xff]
  %v1239 = vld [vmem:[#allocation2 + $0x48] sm:$0xff]
  %v1240 = vld [vmem:[#allocation2 + $0x50] sm:$0xff]
  %v1241 = vld [vmem:[#allocation2 + $0x58] sm:$0xff]
  %v1242 = vld [vmem:[#allocation2 + $0x60] sm:$0xff]
  %v1243 = vld [vmem:[#allocation2 + $0x68] sm:$0xff]
  %v1244 = vld [vmem:[#allocation2 + $0x70] sm:$0xff]
  %v1245 = vld [vmem:[#allocation2 + $0x78] sm:$0xff]
  %v1246 = vld [vmem:[#allocation2 + $0x80] sm:$0xff]
  %v1247 = vld [vmem:[#allocation2 + $0x88] sm:$0xff]
  %v1248 = vld [vmem:[#allocation2 + $0x90] sm:$0xff]
  %v1249 = vld [vmem:[#allocation2 + $0x98] sm:$0xff]
  %v1250 = vld [vmem:[#allocation2 + $0xa0] sm:$0xff]
  %v1251 = vld [vmem:[#allocation2 + $0xa8] sm:$0xff]
  %v1252 = vld [vmem:[#allocation2 + $0xb0] sm:$0xff]
  %v1253 = vld [vmem:[#allocation2 + $0xb8] sm:$0xff]
  %v1254 = vld [vmem:[#allocation2 + $0xc0] sm:$0xff]
  %v1255 = vld [vmem:[#allocation2 + $0xc8] sm:$0xff]
  %v1256 = vld [vmem:[#allocation2 + $0xd0] sm:$0xff]
  %v1257 = vld [vmem:[#allocation2 + $0xd8] sm:$0xff]
  %v1258 = vld [vmem:[#allocation2 + $0xe0] sm:$0xff]
  %v1259 = vld [vmem:[#allocation2 + $0xe8] sm:$0xff]
  %v1260 = vld [vmem:[#allocation2 + $0xf0] sm:$0xff]
  %v1261 = vld [vmem:[#allocation2 + $0xf8] sm:$0xff]
  %v1262 = vld [vmem:[#allocation2 + $0x100] sm:$0xff]
  %v1263 = vld [vmem:[#allocation2 + $0x108] sm:$0xff]
  %v1264 = vld [vmem:[#allocation2 + $0x110] sm:$0xff]
  %v1265 = vld [vmem:[#allocation2 + $0x118] sm:$0xff]
  %v1266 = vld [vmem:[#allocation2 + $0x120] sm:$0xff]
  %v1267 = vld [vmem:[#allocation2 + $0x128] sm:$0xff]
  %v1268 = vld [vmem:[#allocation2 + $0x130] sm:$0xff]
  %v1269 = vld [vmem:[#allocation2 + $0x138] sm:$0xff]
  %v1270 = vld [vmem:[#allocation2 + $0x140] sm:$0xff]
  %v1271 = vld [vmem:[#allocation2 + $0x148] sm:$0xff]
  %v1272 = vld [vmem:[#allocation2 + $0x150] sm:$0xff]
  %v1273 = vld [vmem:[#allocation2 + $0x158] sm:$0xff]
  %v1274 = vld [vmem:[#allocation2 + $0x160] sm:$0xff]
  %v1275 = vld [vmem:[#allocation2 + $0x168] sm:$0xff]
  %v1276 = vld [vmem:[#allocation2 + $0x170] sm:$0xff]
  %v1277 = vld [vmem:[#allocation2 + $0x178] sm:$0xff]
  %v1278 = vld [vmem:[#allocation2 + $0x180] sm:$0xff]
  %v1279 = vld [vmem:[#allocation2 + $0x188] sm:$0xff]
  %v1280 = vld [vmem:[#allocation2 + $0x190] sm:$0xff]
  %v1281 = vld [vmem:[#allocation2 + $0x198] sm:$0xff]
  %v1282 = vld [vmem:[#allocation2 + $0x1a0] sm:$0xff]
  %v1283 = vld [vmem:[#allocation2 + $0x1a8] sm:$0xff]
  %v1284 = vld [vmem:[#allocation2 + $0x1b0] sm:$0xff]
  %v1285 = vld [vmem:[#allocation2 + $0x1b8] sm:$0xff]
  %v1286 = vld [vmem:[#allocation2 + $0x1c0] sm:$0xff]
  %v1287 = vld [vmem:[#allocation2 + $0x1c8] sm:$0xff]
  %v1288 = vld [vmem:[#allocation2 + $0x1d0] sm:$0xff]
  %v1289 = vld [vmem:[#allocation2 + $0x1d8] sm:$0xff]
  %v1290 = vld [vmem:[#allocation2 + $0x1e0] sm:$0xff]
  %v1291 = vld [vmem:[#allocation2 + $0x1e8] sm:$0xff]
  %v1292 = vld [vmem:[#allocation2 + $0x1f0] sm:$0xff]
  %v1293 = vld [vmem:[#allocation2 + $0x1f8] sm:$0xff]
  %v1294 = vld [vmem:[#allocation2 + $0x200] sm:$0xff]
  %v1295 = vld [vmem:[#allocation2 + $0x208] sm:$0xff]
  %v1296 = vld [vmem:[#allocation2 + $0x210] sm:$0xff]
  %v1297 = vld [vmem:[#allocation2 + $0x218] sm:$0xff]
  %v1298 = vld [vmem:[#allocation2 + $0x220] sm:$0xff]
  %v1299 = vld [vmem:[#allocation2 + $0x228] sm:$0xff]
  %v1300 = vld [vmem:[#allocation2 + $0x230] sm:$0xff]
  %v1301 = vld [vmem:[#allocation2 + $0x238] sm:$0xff]
  %v1302 = vld [vmem:[#allocation2 + $0x240] sm:$0xff]
  %v1303 = vld [vmem:[#allocation2 + $0x248] sm:$0xff]
  %v1304 = vld [vmem:[#allocation2 + $0x250] sm:$0xff]
  %v1305 = vld [vmem:[#allocation2 + $0x258] sm:$0xff]
  %v1306 = vld [vmem:[#allocation2 + $0x260] sm:$0xff]
  %v1307 = vld [vmem:[#allocation2 + $0x268] sm:$0xff]
  %v1308 = vld [vmem:[#allocation2 + $0x270] sm:$0xff]
  %v1309 = vld [vmem:[#allocation2 + $0x278] sm:$0xff]
  %v1310 = vld [vmem:[#allocation2 + $0x280] sm:$0xff]
  %v1311 = vld [vmem:[#allocation2 + $0x288] sm:$0xff]
  %v1312 = vld [vmem:[#allocation2 + $0x290] sm:$0xff]
  %v1313 = vld [vmem:[#allocation2 + $0x298] sm:$0xff]
  %v1314 = vld [vmem:[#allocation2 + $0x2a0] sm:$0xff]
  %v1315 = vld [vmem:[#allocation2 + $0x2a8] sm:$0xff]
  %v1316 = vld [vmem:[#allocation2 + $0x2b0] sm:$0xff]
  %v1317 = vld [vmem:[#allocation2 + $0x2b8] sm:$0xff]
  %v1318 = vld [vmem:[#allocation2 + $0x2c0] sm:$0xff]
  %v1319 = vld [vmem:[#allocation2 + $0x2c8] sm:$0xff]
  %v1320 = vld [vmem:[#allocation2 + $0x2d0] sm:$0xff]
  %v1321 = vld [vmem:[#allocation2 + $0x2d8] sm:$0xff]
  %v1322 = vld [vmem:[#allocation2 + $0x2e0] sm:$0xff]
  %v1323 = vld [vmem:[#allocation2 + $0x2e8] sm:$0xff]
  %v1324 = vld [vmem:[#allocation2 + $0x2f0] sm:$0xff]
  %v1325 = vld [vmem:[#allocation2 + $0x2f8] sm:$0xff]
  %v1326 = vld [vmem:[#allocation2 + $0x300] sm:$0xff]
  %v1327 = vld [vmem:[#allocation2 + $0x308] sm:$0xff]
  %v1328 = vld [vmem:[#allocation2 + $0x1] sm:$0xff]
  %v1329 = vld [vmem:[#allocation2 + $0x9] sm:$0xff]
  %v1330 = vld [vmem:[#allocation2 + $0x11] sm:$0xff]
  %v1331 = vld [vmem:[#allocation2 + $0x19] sm:$0xff]
  %v1332 = vld [vmem:[#allocation2 + $0x21] sm:$0xff]
  %v1333 = vld [vmem:[#allocation2 + $0x29] sm:$0xff]
  %v1334 = vld [vmem:[#allocation2 + $0x31] sm:$0xff]
  %v1335 = vld [vmem:[#allocation2 + $0x39] sm:$0xff]
  %v1336 = vld [vmem:[#allocation2 + $0x41] sm:$0xff]
  %v1337 = vld [vmem:[#allocation2 + $0x49] sm:$0xff]
  %v1338 = vld [vmem:[#allocation2 + $0x51] sm:$0xff]
  %v1339 = vld [vmem:[#allocation2 + $0x59] sm:$0xff]
  %v1340 = vld [vmem:[#allocation2 + $0x61] sm:$0xff]
  %v1341 = vld [vmem:[#allocation2 + $0x69] sm:$0xff]
  %v1342 = vld [vmem:[#allocation2 + $0x71] sm:$0xff]
  %v1343 = vld [vmem:[#allocation2 + $0x79] sm:$0xff]
  %v1344 = vld [vmem:[#allocation2 + $0x81] sm:$0xff]
  %v1345 = vld [vmem:[#allocation2 + $0x89] sm:$0xff]
  %v1346 = vld [vmem:[#allocation2 + $0x91] sm:$0xff]
  %v1347 = vld [vmem:[#allocation2 + $0x99] sm:$0xff]
  %v1348 = vld [vmem:[#allocation2 + $0xa1] sm:$0xff]
  %v1349 = vld [vmem:[#allocation2 + $0xa9] sm:$0xff]
  %v1350 = vld [vmem:[#allocation2 + $0xb1] sm:$0xff]
  %v1351 = vld [vmem:[#allocation2 + $0xb9] sm:$0xff]
  %v1352 = vld [vmem:[#allocation2 + $0xc1] sm:$0xff]
  %v1353 = vld [vmem:[#allocation2 + $0xc9] sm:$0xff]
  %v1354 = vld [vmem:[#allocation2 + $0xd1] sm:$0xff]
  %v1355 = vld [vmem:[#allocation2 + $0xd9] sm:$0xff]
  %v1356 = vld [vmem:[#allocation2 + $0xe1] sm:$0xff]
  %v1357 = vld [vmem:[#allocation2 + $0xe9] sm:$0xff]
  %v1358 = vld [vmem:[#allocation2 + $0xf1] sm:$0xff]
  %v1359 = vld [vmem:[#allocation2 + $0xf9] sm:$0xff]
  %v1360 = vld [vmem:[#allocation2 + $0x101] sm:$0xff]
  %v1361 = vld [vmem:[#allocation2 + $0x109] sm:$0xff]
  %v1362 = vld [vmem:[#allocation2 + $0x111] sm:$0xff]
  %v1363 = vld [vmem:[#allocation2 + $0x119] sm:$0xff]
  %v1364 = vld [vmem:[#allocation2 + $0x121] sm:$0xff]
  %v1365 = vld [vmem:[#allocation2 + $0x129] sm:$0xff]
  %v1366 = vld [vmem:[#allocation2 + $0x131] sm:$0xff]
  %v1367 = vld [vmem:[#allocation2 + $0x139] sm:$0xff]
  %v1368 = vld [vmem:[#allocation2 + $0x141] sm:$0xff]
  %v1369 = vld [vmem:[#allocation2 + $0x149] sm:$0xff]
  %v1370 = vld [vmem:[#allocation2 + $0x151] sm:$0xff]
  %v1371 = vld [vmem:[#allocation2 + $0x159] sm:$0xff]
  %v1372 = vld [vmem:[#allocation2 + $0x161] sm:$0xff]
  %v1373 = vld [vmem:[#allocation2 + $0x169] sm:$0xff]
  %v1374 = vld [vmem:[#allocation2 + $0x171] sm:$0xff]
  %v1375 = vld [vmem:[#allocation2 + $0x179] sm:$0xff]
  %v1376 = vld [vmem:[#allocation2 + $0x181] sm:$0xff]
  %v1377 = vld [vmem:[#allocation2 + $0x189] sm:$0xff]
  %v1378 = vld [vmem:[#allocation2 + $0x191] sm:$0xff]
  %v1379 = vld [vmem:[#allocation2 + $0x199] sm:$0xff]
  %v1380 = vld [vmem:[#allocation2 + $0x1a1] sm:$0xff]
  %v1381 = vld [vmem:[#allocation2 + $0x1a9] sm:$0xff]
  %v1382 = vld [vmem:[#allocation2 + $0x1b1] sm:$0xff]
  %v1383 = vld [vmem:[#allocation2 + $0x1b9] sm:$0xff]
  %v1384 = vld [vmem:[#allocation2 + $0x1c1] sm:$0xff]
  %v1385 = vld [vmem:[#allocation2 + $0x1c9] sm:$0xff]
  %v1386 = vld [vmem:[#allocation2 + $0x1d1] sm:$0xff]
  %v1387 = vld [vmem:[#allocation2 + $0x1d9] sm:$0xff]
  %v1388 = vld [vmem:[#allocation2 + $0x1e1] sm:$0xff]
  %v1389 = vld [vmem:[#allocation2 + $0x1e9] sm:$0xff]
  %v1390 = vld [vmem:[#allocation2 + $0x1f1] sm:$0xff]
  %v1391 = vld [vmem:[#allocation2 + $0x1f9] sm:$0xff]
  %v1392 = vld [vmem:[#allocation2 + $0x201] sm:$0xff]
  %v1393 = vld [vmem:[#allocation2 + $0x209] sm:$0xff]
  %v1394 = vld [vmem:[#allocation2 + $0x211] sm:$0xff]
  %v1395 = vld [vmem:[#allocation2 + $0x219] sm:$0xff]
  %v1396 = vld [vmem:[#allocation2 + $0x221] sm:$0xff]
  %v1397 = vld [vmem:[#allocation2 + $0x229] sm:$0xff]
  %v1398 = vld [vmem:[#allocation2 + $0x231] sm:$0xff]
  %v1399 = vld [vmem:[#allocation2 + $0x239] sm:$0xff]
  %v1400 = vld [vmem:[#allocation2 + $0x241] sm:$0xff]
  %v1401 = vld [vmem:[#allocation2 + $0x249] sm:$0xff]
  %v1402 = vld [vmem:[#allocation2 + $0x251] sm:$0xff]
  %v1403 = vld [vmem:[#allocation2 + $0x259] sm:$0xff]
  %v1404 = vld [vmem:[#allocation2 + $0x261] sm:$0xff]
  %v1405 = vld [vmem:[#allocation2 + $0x269] sm:$0xff]
  %v1406 = vld [vmem:[#allocation2 + $0x271] sm:$0xff]
  %v1407 = vld [vmem:[#allocation2 + $0x279] sm:$0xff]
  %v1408 = vld [vmem:[#allocation2 + $0x281] sm:$0xff]
  %v1409 = vld [vmem:[#allocation2 + $0x289] sm:$0xff]
  %v1410 = vld [vmem:[#allocation2 + $0x291] sm:$0xff]
  %v1411 = vld [vmem:[#allocation2 + $0x299] sm:$0xff]
  %v1412 = vld [vmem:[#allocation2 + $0x2a1] sm:$0xff]
  %v1413 = vld [vmem:[#allocation2 + $0x2a9] sm:$0xff]
  %v1414 = vld [vmem:[#allocation2 + $0x2b1] sm:$0xff]
  %v1415 = vld [vmem:[#allocation2 + $0x2b9] sm:$0xff]
  %v1416 = vld [vmem:[#allocation2 + $0x2c1] sm:$0xff]
  %v1417 = vld [vmem:[#allocation2 + $0x2c9] sm:$0xff]
  %v1418 = vld [vmem:[#allocation2 + $0x2d1] sm:$0xff]
  %v1419 = vld [vmem:[#allocation2 + $0x2d9] sm:$0xff]
  %v1420 = vld [vmem:[#allocation2 + $0x2e1] sm:$0xff]
  %v1421 = vld [vmem:[#allocation2 + $0x2e9] sm:$0xff]
  %v1422 = vld [vmem:[#allocation2 + $0x2f1] sm:$0xff]
  %v1423 = vld [vmem:[#allocation2 + $0x2f9] sm:$0xff]
  %v1424 = vld [vmem:[#allocation2 + $0x301] sm:$0xff]
  %v1425 = vld [vmem:[#allocation2 + $0x309] sm:$0xff]
  %v1426 = vmax.f32 %v1230, %v1328
  %v1427 = vmax.f32 %v1231, %v1329
  %v1428 = vmax.f32 %v1232, %v1330
  %v1429 = vmax.f32 %v1233, %v1331
  %v1430 = vmax.f32 %v1234, %v1332
  %v1431 = vmax.f32 %v1235, %v1333
  %v1432 = vmax.f32 %v1236, %v1334
  %v1433 = vmax.f32 %v1237, %v1335
  %v1434 = vmax.f32 %v1238, %v1336
  %v1435 = vmax.f32 %v1239, %v1337
  %v1436 = vmax.f32 %v1240, %v1338
  %v1437 = vmax.f32 %v1241, %v1339
  %v1438 = vmax.f32 %v1242, %v1340
  %v1439 = vmax.f32 %v1243, %v1341
  %v1440 = vmax.f32 %v1244, %v1342
  %v1441 = vmax.f32 %v1245, %v1343
  %v1442 = vmax.f32 %v1246, %v1344
  %v1443 = vmax.f32 %v1247, %v1345
  %v1444 = vmax.f32 %v1248, %v1346
  %v1445 = vmax.f32 %v1249, %v1347
  %v1446 = vmax.f32 %v1250, %v1348
  %v1447 = vmax.f32 %v1251, %v1349
  %v1448 = vmax.f32 %v1252, %v1350
  %v1449 = vmax.f32 %v1253, %v1351
  %v1450 = vmax.f32 %v1254, %v1352
  %v1451 = vmax.f32 %v1255, %v1353
  %v1452 = vmax.f32 %v1256, %v1354
  %v1453 = vmax.f32 %v1257, %v1355
  %v1454 = vmax.f32 %v1258, %v1356
  %v1455 = vmax.f32 %v1259, %v1357
  %v1456 = vmax.f32 %v1260, %v1358
  %v1457 = vmax.f32 %v1261, %v1359
  %v1458 = vmax.f32 %v1262, %v1360
  %v1459 = vmax.f32 %v1263, %v1361
  %v1460 = vmax.f32 %v1264, %v1362
  %v1461 = vmax.f32 %v1265, %v1363
  %v1462 = vmax.f32 %v1266, %v1364
  %v1463 = vmax.f32 %v1267, %v1365
  %v1464 = vmax.f32 %v1268, %v1366
  %v1465 = vmax.f32 %v1269, %v1367
  %v1466 = vmax.f32 %v1270, %v1368
  %v1467 = vmax.f32 %v1271, %v1369
  %v1468 = vmax.f32 %v1272, %v1370
  %v1469 = vmax.f32 %v1273, %v1371
  %v1470 = vmax.f32 %v1274, %v1372
  %v1471 = vmax.f32 %v1275, %v1373
  %v1472 = vmax.f32 %v1276, %v1374
  %v1473 = vmax.f32 %v1277, %v1375
  %v1474 = vmax.f32 %v1278, %v1376
  %v1475 = vmax.f32 %v1279, %v1377
  %v1476 = vmax.f32 %v1280, %v1378
  %v1477 = vmax.f32 %v1281, %v1379
  %v1478 = vmax.f32 %v1282, %v1380
  %v1479 = vmax.f32 %v1283, %v1381
  %v1480 = vmax.f32 %v1284, %v1382
  %v1481 = vmax.f32 %v1285, %v1383
  %v1482 = vmax.f32 %v1286, %v1384
  %v1483 = vmax.f32 %v1287, %v1385
  %v1484 = vmax.f32 %v1288, %v1386
  %v1485 = vmax.f32 %v1289, %v1387
  %v1486 = vmax.f32 %v1290, %v1388
  %v1487 = vmax.f32 %v1291, %v1389
  %v1488 = vmax.f32 %v1292, %v1390
  %v1489 = vmax.f32 %v1293, %v1391
  %v1490 = vmax.f32 %v1294, %v1392
  %v1491 = vmax.f32 %v1295, %v1393
  %v1492 = vmax.f32 %v1296, %v1394
  %v1493 = vmax.f32 %v1297, %v1395
  %v1494 = vmax.f32 %v1298, %v1396
  %v1495 = vmax.f32 %v1299, %v1397
  %v1496 = vmax.f32 %v1300, %v1398
  %v1497 = vmax.f32 %v1301, %v1399
  %v1498 = vmax.f32 %v1302, %v1400
  %v1499 = vmax.f32 %v1303, %v1401
  %v1500 = vmax.f32 %v1304, %v1402
  %v1501 = vmax.f32 %v1305, %v1403
  %v1502 = vmax.f32 %v1306, %v1404
  %v1503 = vmax.f32 %v1307, %v1405
  %v1504 = vmax.f32 %v1308, %v1406
  %v1505 = vmax.f32 %v1309, %v1407
  %v1506 = vmax.f32 %v1310, %v1408
  %v1507 = vmax.f32 %v1311, %v1409
  %v1508 = vmax.f32 %v1312, %v1410
  %v1509 = vmax.f32 %v1313, %v1411
  %v1510 = vmax.f32 %v1314, %v1412
  %v1511 = vmax.f32 %v1315, %v1413
  %v1512 = vmax.f32 %v1316, %v1414
  %v1513 = vmax.f32 %v1317, %v1415
  %v1514 = vmax.f32 %v1318, %v1416
  %v1515 = vmax.f32 %v1319, %v1417
  %v1516 = vmax.f32 %v1320, %v1418
  %v1517 = vmax.f32 %v1321, %v1419
  %v1518 = vmax.f32 %v1322, %v1420
  %v1519 = vmax.f32 %v1323, %v1421
  %v1520 = vmax.f32 %v1324, %v1422
  %v1521 = vmax.f32 %v1325, %v1423
  %v1522 = vmax.f32 %v1326, %v1424
  %v1523 = vmax.f32 %v1327, %v1425
  %v1524 = vld [vmem:[#allocation2 + $0xe] sm:$0xff]
  %v1525 = vld [vmem:[#allocation2 + $0x16] sm:$0xff]
  %v1526 = vld [vmem:[#allocation2 + $0x1e] sm:$0xff]
  %v1527 = vld [vmem:[#allocation2 + $0x26] sm:$0xff]
  %v1528 = vld [vmem:[#allocation2 + $0x2e] sm:$0xff]
  %v1529 = vld [vmem:[#allocation2 + $0x36] sm:$0xff]
  %v1530 = vld [vmem:[#allocation2 + $0x3e] sm:$0xff]
  %v1531 = vld [vmem:[#allocation2 + $0x46] sm:$0xff]
  %v1532 = vld [vmem:[#allocation2 + $0x4e] sm:$0xff]
  %v1533 = vld [vmem:[#allocation2 + $0x56] sm:$0xff]
  %v1534 = vld [vmem:[#allocation2 + $0x5e] sm:$0xff]
  %v1535 = vld [vmem:[#allocation2 + $0x66] sm:$0xff]
  %v1536 = vld [vmem:[#allocation2 + $0x6e] sm:$0xff]
  %v1537 = vld [vmem:[#allocation2 + $0x76] sm:$0xff]
  %v1538 = vld [vmem:[#allocation2 + $0x7e] sm:$0xff]
  %v1539 = vld [vmem:[#allocation2 + $0x86] sm:$0xff]
  %v1540 = vld [vmem:[#allocation2 + $0x8e] sm:$0xff]
  %v1541 = vld [vmem:[#allocation2 + $0x96] sm:$0xff]
  %v1542 = vld [vmem:[#allocation2 + $0x9e] sm:$0xff]
  %v1543 = vld [vmem:[#allocation2 + $0xa6] sm:$0xff]
  %v1544 = vld [vmem:[#allocation2 + $0xae] sm:$0xff]
  %v1545 = vld [vmem:[#allocation2 + $0xb6] sm:$0xff]
  %v1546 = vld [vmem:[#allocation2 + $0xbe] sm:$0xff]
  %v1547 = vld [vmem:[#allocation2 + $0xc6] sm:$0xff]
  %v1548 = vld [vmem:[#allocation2 + $0xce] sm:$0xff]
  %v1549 = vld [vmem:[#allocation2 + $0xd6] sm:$0xff]
  %v1550 = vld [vmem:[#allocation2 + $0xde] sm:$0xff]
  %v1551 = vld [vmem:[#allocation2 + $0xe6] sm:$0xff]
  %v1552 = vld [vmem:[#allocation2 + $0xee] sm:$0xff]
  %v1553 = vld [vmem:[#allocation2 + $0xf6] sm:$0xff]
  %v1554 = vld [vmem:[#allocation2 + $0xfe] sm:$0xff]
  %v1555 = vld [vmem:[#allocation2 + $0x106] sm:$0xff]
  %v1556 = vld [vmem:[#allocation2 + $0x10e] sm:$0xff]
  %v1557 = vld [vmem:[#allocation2 + $0x116] sm:$0xff]
  %v1558 = vld [vmem:[#allocation2 + $0x11e] sm:$0xff]
  %v1559 = vld [vmem:[#allocation2 + $0x126] sm:$0xff]
  %v1560 = vld [vmem:[#allocation2 + $0x12e] sm:$0xff]
  %v1561 = vld [vmem:[#allocation2 + $0x136] sm:$0xff]
  %v1562 = vld [vmem:[#allocation2 + $0x13e] sm:$0xff]
  %v1563 = vld [vmem:[#allocation2 + $0x146] sm:$0xff]
  %v1564 = vld [vmem:[#allocation2 + $0x14e] sm:$0xff]
  %v1565 = vld [vmem:[#allocation2 + $0x156] sm:$0xff]
  %v1566 = vld [vmem:[#allocation2 + $0x15e] sm:$0xff]
  %v1567 = vld [vmem:[#allocation2 + $0x166] sm:$0xff]
  %v1568 = vld [vmem:[#allocation2 + $0x16e] sm:$0xff]
  %v1569 = vld [vmem:[#allocation2 + $0x176] sm:$0xff]
  %v1570 = vld [vmem:[#allocation2 + $0x17e] sm:$0xff]
  %v1571 = vld [vmem:[#allocation2 + $0x186] sm:$0xff]
  %v1572 = vld [vmem:[#allocation2 + $0x18e] sm:$0xff]
  %v1573 = vld [vmem:[#allocation2 + $0x196] sm:$0xff]
  %v1574 = vld [vmem:[#allocation2 + $0x19e] sm:$0xff]
  %v1575 = vld [vmem:[#allocation2 + $0x1a6] sm:$0xff]
  %v1576 = vld [vmem:[#allocation2 + $0x1ae] sm:$0xff]
  %v1577 = vld [vmem:[#allocation2 + $0x1b6] sm:$0xff]
  %v1578 = vld [vmem:[#allocation2 + $0x1be] sm:$0xff]
  %v1579 = vld [vmem:[#allocation2 + $0x1c6] sm:$0xff]
  %v1580 = vld [vmem:[#allocation2 + $0x1ce] sm:$0xff]
  %v1581 = vld [vmem:[#allocation2 + $0x1d6] sm:$0xff]
  %v1582 = vld [vmem:[#allocation2 + $0x1de] sm:$0xff]
  %v1583 = vld [vmem:[#allocation2 + $0x1e6] sm:$0xff]
  %v1584 = vld [vmem:[#allocation2 + $0x1ee] sm:$0xff]
  %v1585 = vld [vmem:[#allocation2 + $0x1f6] sm:$0xff]
  %v1586 = vld [vmem:[#allocation2 + $0x1fe] sm:$0xff]
  %v1587 = vld [vmem:[#allocation2 + $0x206] sm:$0xff]
  %v1588 = vld [vmem:[#allocation2 + $0x20e] sm:$0xff]
  %v1589 = vld [vmem:[#allocation2 + $0x216] sm:$0xff]
  %v1590 = vld [vmem:[#allocation2 + $0x21e] sm:$0xff]
  %v1591 = vld [vmem:[#allocation2 + $0x226] sm:$0xff]
  %v1592 = vld [vmem:[#allocation2 + $0x22e] sm:$0xff]
  %v1593 = vld [vmem:[#allocation2 + $0x236] sm:$0xff]
  %v1594 = vld [vmem:[#allocation2 + $0x23e] sm:$0xff]
  %v1595 = vld [vmem:[#allocation2 + $0x246] sm:$0xff]
  %v1596 = vld [vmem:[#allocation2 + $0x24e] sm:$0xff]
  %v1597 = vld [vmem:[#allocation2 + $0x256] sm:$0xff]
  %v1598 = vld [vmem:[#allocation2 + $0x25e] sm:$0xff]
  %v1599 = vld [vmem:[#allocation2 + $0x266] sm:$0xff]
  %v1600 = vld [vmem:[#allocation2 + $0x26e] sm:$0xff]
  %v1601 = vld [vmem:[#allocation2 + $0x276] sm:$0xff]
  %v1602 = vld [vmem:[#allocation2 + $0x27e] sm:$0xff]
  %v1603 = vld [vmem:[#allocation2 + $0x286] sm:$0xff]
  %v1604 = vld [vmem:[#allocation2 + $0x28e] sm:$0xff]
  %v1605 = vld [vmem:[#allocation2 + $0x296] sm:$0xff]
  %v1606 = vld [vmem:[#allocation2 + $0x29e] sm:$0xff]
  %v1607 = vld [vmem:[#allocation2 + $0x2a6] sm:$0xff]
  %v1608 = vld [vmem:[#allocation2 + $0x2ae] sm:$0xff]
  %v1609 = vld [vmem:[#allocation2 + $0x2b6] sm:$0xff]
  %v1610 = vld [vmem:[#allocation2 + $0x2be] sm:$0xff]
  %v1611 = vld [vmem:[#allocation2 + $0x2c6] sm:$0xff]
  %v1612 = vld [vmem:[#allocation2 + $0x2ce] sm:$0xff]
  %v1613 = vld [vmem:[#allocation2 + $0x2d6] sm:$0xff]
  %v1614 = vld [vmem:[#allocation2 + $0x2de] sm:$0xff]
  %v1615 = vld [vmem:[#allocation2 + $0x2e6] sm:$0xff]
  %v1616 = vld [vmem:[#allocation2 + $0x2ee] sm:$0xff]
  %v1617 = vld [vmem:[#allocation2 + $0x2f6] sm:$0xff]
  %v1618 = vld [vmem:[#allocation2 + $0x2fe] sm:$0xff]
  %v1619 = vld [vmem:[#allocation2 + $0x306] sm:$0xff]
  %v1620 = vld [vmem:[#allocation2 + $0x30e] sm:$0xff]
  %v1621 = vld [vmem:[#allocation2 + $0x316] sm:$0xff]
  %v1622 = vmax.f32 %v1426, %v1524
  %v1623 = vmax.f32 %v1427, %v1525
  %v1624 = vmax.f32 %v1428, %v1526
  %v1625 = vmax.f32 %v1429, %v1527
  %v1626 = vmax.f32 %v1430, %v1528
  %v1627 = vmax.f32 %v1431, %v1529
  %v1628 = vmax.f32 %v1432, %v1530
  %v1629 = vmax.f32 %v1433, %v1531
  %v1630 = vmax.f32 %v1434, %v1532
  %v1631 = vmax.f32 %v1435, %v1533
  %v1632 = vmax.f32 %v1436, %v1534
  %v1633 = vmax.f32 %v1437, %v1535
  %v1634 = vmax.f32 %v1438, %v1536
  %v1635 = vmax.f32 %v1439, %v1537
  %v1636 = vmax.f32 %v1440, %v1538
  %v1637 = vmax.f32 %v1441, %v1539
  %v1638 = vmax.f32 %v1442, %v1540
  %v1639 = vmax.f32 %v1443, %v1541
  %v1640 = vmax.f32 %v1444, %v1542
  %v1641 = vmax.f32 %v1445, %v1543
  %v1642 = vmax.f32 %v1446, %v1544
  %v1643 = vmax.f32 %v1447, %v1545
  %v1644 = vmax.f32 %v1448, %v1546
  %v1645 = vmax.f32 %v1449, %v1547
  %v1646 = vmax.f32 %v1450, %v1548
  %v1647 = vmax.f32 %v1451, %v1549
  %v1648 = vmax.f32 %v1452, %v1550
  %v1649 = vmax.f32 %v1453, %v1551
  %v1650 = vmax.f32 %v1454, %v1552
  %v1651 = vmax.f32 %v1455, %v1553
  %v1652 = vmax.f32 %v1456, %v1554
  %v1653 = vmax.f32 %v1457, %v1555
  %v1654 = vmax.f32 %v1458, %v1556
  %v1655 = vmax.f32 %v1459, %v1557
  %v1656 = vmax.f32 %v1460, %v1558
  %v1657 = vmax.f32 %v1461, %v1559
  %v1658 = vmax.f32 %v1462, %v1560
  %v1659 = vmax.f32 %v1463, %v1561
  %v1660 = vmax.f32 %v1464, %v1562
  %v1661 = vmax.f32 %v1465, %v1563
  %v1662 = vmax.f32 %v1466, %v1564
  %v1663 = vmax.f32 %v1467, %v1565
  %v1664 = vmax.f32 %v1468, %v1566
  %v1665 = vmax.f32 %v1469, %v1567
  %v1666 = vmax.f32 %v1470, %v1568
  %v1667 = vmax.f32 %v1471, %v1569
  %v1668 = vmax.f32 %v1472, %v1570
  %v1669 = vmax.f32 %v1473, %v1571
  %v1670 = vmax.f32 %v1474, %v1572
  %v1671 = vmax.f32 %v1475, %v1573
  %v1672 = vmax.f32 %v1476, %v1574
  %v1673 = vmax.f32 %v1477, %v1575
  %v1674 = vmax.f32 %v1478, %v1576
  %v1675 = vmax.f32 %v1479, %v1577
  %v1676 = vmax.f32 %v1480, %v1578
  %v1677 = vmax.f32 %v1481, %v1579
  %v1678 = vmax.f32 %v1482, %v1580
  %v1679 = vmax.f32 %v1483, %v1581
  %v1680 = vmax.f32 %v1484, %v1582
  %v1681 = vmax.f32 %v1485, %v1583
  %v1682 = vmax.f32 %v1486, %v1584
  %v1683 = vmax.f32 %v1487, %v1585
  %v1684 = vmax.f32 %v1488, %v1586
  %v1685 = vmax.f32 %v1489, %v1587
  %v1686 = vmax.f32 %v1490, %v1588
  %v1687 = vmax.f32 %v1491, %v1589
  %v1688 = vmax.f32 %v1492, %v1590
  %v1689 = vmax.f32 %v1493, %v1591
  %v1690 = vmax.f32 %v1494, %v1592
  %v1691 = vmax.f32 %v1495, %v1593
  %v1692 = vmax.f32 %v1496, %v1594
  %v1693 = vmax.f32 %v1497, %v1595
  %v1694 = vmax.f32 %v1498, %v1596
  %v1695 = vmax.f32 %v1499, %v1597
  %v1696 = vmax.f32 %v1500, %v1598
  %v1697 = vmax.f32 %v1501, %v1599
  %v1698 = vmax.f32 %v1502, %v1600
  %v1699 = vmax.f32 %v1503, %v1601
  %v1700 = vmax.f32 %v1504, %v1602
  %v1701 = vmax.f32 %v1505, %v1603
  %v1702 = vmax.f32 %v1506, %v1604
  %v1703 = vmax.f32 %v1507, %v1605
  %v1704 = vmax.f32 %v1508, %v1606
  %v1705 = vmax.f32 %v1509, %v1607
  %v1706 = vmax.f32 %v1510, %v1608
  %v1707 = vmax.f32 %v1511, %v1609
  %v1708 = vmax.f32 %v1512, %v1610
  %v1709 = vmax.f32 %v1513, %v1611
  %v1710 = vmax.f32 %v1514, %v1612
  %v1711 = vmax.f32 %v1515, %v1613
  %v1712 = vmax.f32 %v1516, %v1614
  %v1713 = vmax.f32 %v1517, %v1615
  %v1714 = vmax.f32 %v1518, %v1616
  %v1715 = vmax.f32 %v1519, %v1617
  %v1716 = vmax.f32 %v1520, %v1618
  %v1717 = vmax.f32 %v1521, %v1619
  %v1718 = vmax.f32 %v1522, %v1620
  %v1719 = vmax.f32 %v1523, %v1621
  %v1720 = vld [vmem:[#allocation2 + $0xf] sm:$0xff]
  %v1721 = vld [vmem:[#allocation2 + $0x17] sm:$0xff]
  %v1722 = vld [vmem:[#allocation2 + $0x1f] sm:$0xff]
  %v1723 = vld [vmem:[#allocation2 + $0x27] sm:$0xff]
  %v1724 = vld [vmem:[#allocation2 + $0x2f] sm:$0xff]
  %v1725 = vld [vmem:[#allocation2 + $0x37] sm:$0xff]
  %v1726 = vld [vmem:[#allocation2 + $0x3f] sm:$0xff]
  %v1727 = vld [vmem:[#allocation2 + $0x47] sm:$0xff]
  %v1728 = vld [vmem:[#allocation2 + $0x4f] sm:$0xff]
  %v1729 = vld [vmem:[#allocation2 + $0x57] sm:$0xff]
  %v1730 = vld [vmem:[#allocation2 + $0x5f] sm:$0xff]
  %v1731 = vld [vmem:[#allocation2 + $0x67] sm:$0xff]
  %v1732 = vld [vmem:[#allocation2 + $0x6f] sm:$0xff]
  %v1733 = vld [vmem:[#allocation2 + $0x77] sm:$0xff]
  %v1734 = vld [vmem:[#allocation2 + $0x7f] sm:$0xff]
  %v1735 = vld [vmem:[#allocation2 + $0x87] sm:$0xff]
  %v1736 = vld [vmem:[#allocation2 + $0x8f] sm:$0xff]
  %v1737 = vld [vmem:[#allocation2 + $0x97] sm:$0xff]
  %v1738 = vld [vmem:[#allocation2 + $0x9f] sm:$0xff]
  %v1739 = vld [vmem:[#allocation2 + $0xa7] sm:$0xff]
  %v1740 = vld [vmem:[#allocation2 + $0xaf] sm:$0xff]
  %v1741 = vld [vmem:[#allocation2 + $0xb7] sm:$0xff]
  %v1742 = vld [vmem:[#allocation2 + $0xbf] sm:$0xff]
  %v1743 = vld [vmem:[#allocation2 + $0xc7] sm:$0xff]
  %v1744 = vld [vmem:[#allocation2 + $0xcf] sm:$0xff]
  %v1745 = vld [vmem:[#allocation2 + $0xd7] sm:$0xff]
  %v1746 = vld [vmem:[#allocation2 + $0xdf] sm:$0xff]
  %v1747 = vld [vmem:[#allocation2 + $0xe7] sm:$0xff]
  %v1748 = vld [vmem:[#allocation2 + $0xef] sm:$0xff]
  %v1749 = vld [vmem:[#allocation2 + $0xf7] sm:$0xff]
  %v1750 = vld [vmem:[#allocation2 + $0xff] sm:$0xff]
  %v1751 = vld [vmem:[#allocation2 + $0x107] sm:$0xff]
  %v1752 = vld [vmem:[#allocation2 + $0x10f] sm:$0xff]
  %v1753 = vld [vmem:[#allocation2 + $0x117] sm:$0xff]
  %v1754 = vld [vmem:[#allocation2 + $0x11f] sm:$0xff]
  %v1755 = vld [vmem:[#allocation2 + $0x127] sm:$0xff]
  %v1756 = vld [vmem:[#allocation2 + $0x12f] sm:$0xff]
  %v1757 = vld [vmem:[#allocation2 + $0x137] sm:$0xff]
  %v1758 = vld [vmem:[#allocation2 + $0x13f] sm:$0xff]
  %v1759 = vld [vmem:[#allocation2 + $0x147] sm:$0xff]
  %v1760 = vld [vmem:[#allocation2 + $0x14f] sm:$0xff]
  %v1761 = vld [vmem:[#allocation2 + $0x157] sm:$0xff]
  %v1762 = vld [vmem:[#allocation2 + $0x15f] sm:$0xff]
  %v1763 = vld [vmem:[#allocation2 + $0x167] sm:$0xff]
  %v1764 = vld [vmem:[#allocation2 + $0x16f] sm:$0xff]
  %v1765 = vld [vmem:[#allocation2 + $0x177] sm:$0xff]
  %v1766 = vld [vmem:[#allocation2 + $0x17f] sm:$0xff]
  %v1767 = vld [vmem:[#allocation2 + $0x187] sm:$0xff]
  %v1768 = vld [vmem:[#allocation2 + $0x18f] sm:$0xff]
  %v1769 = vld [vmem:[#allocation2 + $0x197] sm:$0xff]
  %v1770 = vld [vmem:[#allocation2 + $0x19f] sm:$0xff]
  %v1771 = vld [vmem:[#allocation2 + $0x1a7] sm:$0xff]
  %v1772 = vld [vmem:[#allocation2 + $0x1af] sm:$0xff]
  %v1773 = vld [vmem:[#allocation2 + $0x1b7] sm:$0xff]
  %v1774 = vld [vmem:[#allocation2 + $0x1bf] sm:$0xff]
  %v1775 = vld [vmem:[#allocation2 + $0x1c7] sm:$0xff]
  %v1776 = vld [vmem:[#allocation2 + $0x1cf] sm:$0xff]
  %v1777 = vld [vmem:[#allocation2 + $0x1d7] sm:$0xff]
  %v1778 = vld [vmem:[#allocation2 + $0x1df] sm:$0xff]
  %v1779 = vld [vmem:[#allocation2 + $0x1e7] sm:$0xff]
  %v1780 = vld [vmem:[#allocation2 + $0x1ef] sm:$0xff]
  %v1781 = vld [vmem:[#allocation2 + $0x1f7] sm:$0xff]
  %v1782 = vld [vmem:[#allocation2 + $0x1ff] sm:$0xff]
  %v1783 = vld [vmem:[#allocation2 + $0x207] sm:$0xff]
  %v1784 = vld [vmem:[#allocation2 + $0x20f] sm:$0xff]
  %v1785 = vld [vmem:[#allocation2 + $0x217] sm:$0xff]
  %v1786 = vld [vmem:[#allocation2 + $0x21f] sm:$0xff]
  %v1787 = vld [vmem:[#allocation2 + $0x227] sm:$0xff]
  %v1788 = vld [vmem:[#allocation2 + $0x22f] sm:$0xff]
  %v1789 = vld [vmem:[#allocation2 + $0x237] sm:$0xff]
  %v1790 = vld [vmem:[#allocation2 + $0x23f] sm:$0xff]
  %v1791 = vld [vmem:[#allocation2 + $0x247] sm:$0xff]
  %v1792 = vld [vmem:[#allocation2 + $0x24f] sm:$0xff]
  %v1793 = vld [vmem:[#allocation2 + $0x257] sm:$0xff]
  %v1794 = vld [vmem:[#allocation2 + $0x25f] sm:$0xff]
  %v1795 = vld [vmem:[#allocation2 + $0x267] sm:$0xff]
  %v1796 = vld [vmem:[#allocation2 + $0x26f] sm:$0xff]
  %v1797 = vld [vmem:[#allocation2 + $0x277] sm:$0xff]
  %v1798 = vld [vmem:[#allocation2 + $0x27f] sm:$0xff]
  %v1799 = vld [vmem:[#allocation2 + $0x287] sm:$0xff]
  %v1800 = vld [vmem:[#allocation2 + $0x28f] sm:$0xff]
  %v1801 = vld [vmem:[#allocation2 + $0x297] sm:$0xff]
  %v1802 = vld [vmem:[#allocation2 + $0x29f] sm:$0xff]
  %v1803 = vld [vmem:[#allocation2 + $0x2a7] sm:$0xff]
  %v1804 = vld [vmem:[#allocation2 + $0x2af] sm:$0xff]
  %v1805 = vld [vmem:[#allocation2 + $0x2b7] sm:$0xff]
  %v1806 = vld [vmem:[#allocation2 + $0x2bf] sm:$0xff]
  %v1807 = vld [vmem:[#allocation2 + $0x2c7] sm:$0xff]
  %v1808 = vld [vmem:[#allocation2 + $0x2cf] sm:$0xff]
  %v1809 = vld [vmem:[#allocation2 + $0x2d7] sm:$0xff]
  %v1810 = vld [vmem:[#allocation2 + $0x2df] sm:$0xff]
  %v1811 = vld [vmem:[#allocation2 + $0x2e7] sm:$0xff]
  %v1812 = vld [vmem:[#allocation2 + $0x2ef] sm:$0xff]
  %v1813 = vld [vmem:[#allocation2 + $0x2f7] sm:$0xff]
  %v1814 = vld [vmem:[#allocation2 + $0x2ff] sm:$0xff]
  %v1815 = vld [vmem:[#allocation2 + $0x307] sm:$0xff]
  %v1816 = vld [vmem:[#allocation2 + $0x30f] sm:$0xff]
  %v1817 = vld [vmem:[#allocation2 + $0x317] sm:$0xff]
  %v1818 = vmax.f32 %v1622, %v1720
  %v1819 = vmax.f32 %v1623, %v1721
  %v1820 = vmax.f32 %v1624, %v1722
  %v1821 = vmax.f32 %v1625, %v1723
  %v1822 = vmax.f32 %v1626, %v1724
  %v1823 = vmax.f32 %v1627, %v1725
  %v1824 = vmax.f32 %v1628, %v1726
  %v1825 = vmax.f32 %v1629, %v1727
  %v1826 = vmax.f32 %v1630, %v1728
  %v1827 = vmax.f32 %v1631, %v1729
  %v1828 = vmax.f32 %v1632, %v1730
  %v1829 = vmax.f32 %v1633, %v1731
  %v1830 = vmax.f32 %v1634, %v1732
  %v1831 = vmax.f32 %v1635, %v1733
  %v1832 = vmax.f32 %v1636, %v1734
  %v1833 = vmax.f32 %v1637, %v1735
  %v1834 = vmax.f32 %v1638, %v1736
  %v1835 = vmax.f32 %v1639, %v1737
  %v1836 = vmax.f32 %v1640, %v1738
  %v1837 = vmax.f32 %v1641, %v1739
  %v1838 = vmax.f32 %v1642, %v1740
  %v1839 = vmax.f32 %v1643, %v1741
  %v1840 = vmax.f32 %v1644, %v1742
  %v1841 = vmax.f32 %v1645, %v1743
  %v1842 = vmax.f32 %v1646, %v1744
  %v1843 = vmax.f32 %v1647, %v1745
  %v1844 = vmax.f32 %v1648, %v1746
  %v1845 = vmax.f32 %v1649, %v1747
  %v1846 = vmax.f32 %v1650, %v1748
  %v1847 = vmax.f32 %v1651, %v1749
  %v1848 = vmax.f32 %v1652, %v1750
  %v1849 = vmax.f32 %v1653, %v1751
  %v1850 = vmax.f32 %v1654, %v1752
  %v1851 = vmax.f32 %v1655, %v1753
  %v1852 = vmax.f32 %v1656, %v1754
  %v1853 = vmax.f32 %v1657, %v1755
  %v1854 = vmax.f32 %v1658, %v1756
  %v1855 = vmax.f32 %v1659, %v1757
  %v1856 = vmax.f32 %v1660, %v1758
  %v1857 = vmax.f32 %v1661, %v1759
  %v1858 = vmax.f32 %v1662, %v1760
  %v1859 = vmax.f32 %v1663, %v1761
  %v1860 = vmax.f32 %v1664, %v1762
  %v1861 = vmax.f32 %v1665, %v1763
  %v1862 = vmax.f32 %v1666, %v1764
  %v1863 = vmax.f32 %v1667, %v1765
  %v1864 = vmax.f32 %v1668, %v1766
  %v1865 = vmax.f32 %v1669, %v1767
  %v1866 = vmax.f32 %v1670, %v1768
  %v1867 = vmax.f32 %v1671, %v1769
  %v1868 = vmax.f32 %v1672, %v1770
  %v1869 = vmax.f32 %v1673, %v1771
  %v1870 = vmax.f32 %v1674, %v1772
  %v1871 = vmax.f32 %v1675, %v1773
  %v1872 = vmax.f32 %v1676, %v1774
  %v1873 = vmax.f32 %v1677, %v1775
  %v1874 = vmax.f32 %v1678, %v1776
  %v1875 = vmax.f32 %v1679, %v1777
  %v1876 = vmax.f32 %v1680, %v1778
  %v1877 = vmax.f32 %v1681, %v1779
  %v1878 = vmax.f32 %v1682, %v1780
  %v1879 = vmax.f32 %v1683, %v1781
  %v1880 = vmax.f32 %v1684, %v1782
  %v1881 = vmax.f32 %v1685, %v1783
  %v1882 = vmax.f32 %v1686, %v1784
  %v1883 = vmax.f32 %v1687, %v1785
  %v1884 = vmax.f32 %v1688, %v1786
  %v1885 = vmax.f32 %v1689, %v1787
  %v1886 = vmax.f32 %v1690, %v1788
  %v1887 = vmax.f32 %v1691, %v1789
  %v1888 = vmax.f32 %v1692, %v1790
  %v1889 = vmax.f32 %v1693, %v1791
  %v1890 = vmax.f32 %v1694, %v1792
  %v1891 = vmax.f32 %v1695, %v1793
  %v1892 = vmax.f32 %v1696, %v1794
  %v1893 = vmax.f32 %v1697, %v1795
  %v1894 = vmax.f32 %v1698, %v1796
  %v1895 = vmax.f32 %v1699, %v1797
  %v1896 = vmax.f32 %v1700, %v1798
  %v1897 = vmax.f32 %v1701, %v1799
  %v1898 = vmax.f32 %v1702, %v1800
  %v1899 = vmax.f32 %v1703, %v1801
  %v1900 = vmax.f32 %v1704, %v1802
  %v1901 = vmax.f32 %v1705, %v1803
  %v1902 = vmax.f32 %v1706, %v1804
  %v1903 = vmax.f32 %v1707, %v1805
  %v1904 = vmax.f32 %v1708, %v1806
  %v1905 = vmax.f32 %v1709, %v1807
  %v1906 = vmax.f32 %v1710, %v1808
  %v1907 = vmax.f32 %v1711, %v1809
  %v1908 = vmax.f32 %v1712, %v1810
  %v1909 = vmax.f32 %v1713, %v1811
  %v1910 = vmax.f32 %v1714, %v1812
  %v1911 = vmax.f32 %v1715, %v1813
  %v1912 = vmax.f32 %v1716, %v1814
  %v1913 = vmax.f32 %v1717, %v1815
  %v1914 = vmax.f32 %v1718, %v1816
  %v1915 = vmax.f32 %v1719, %v1817
  %1916 = vst.msk [vmem:[#allocation3] sm:$0xff] %vm46, %v1818
  %1917 = vst.msk [vmem:[#allocation3 + $0x8] sm:$0xff] %vm46, %v1819
  %1918 = vst.msk [vmem:[#allocation3 + $0x10] sm:$0xff] %vm46, %v1820
  %1919 = vst.msk [vmem:[#allocation3 + $0x18] sm:$0xff] %vm46, %v1821
  %1920 = vst.msk [vmem:[#allocation3 + $0x20] sm:$0xff] %vm46, %v1822
  %1921 = vst.msk [vmem:[#allocation3 + $0x28] sm:$0xff] %vm46, %v1823
  %1922 = vst.msk [vmem:[#allocation3 + $0x30] sm:$0xff] %vm46, %v1824
  %1923 = vst.msk [vmem:[#allocation3 + $0x38] sm:$0xff] %vm46, %v1825
  %1924 = vst.msk [vmem:[#allocation3 + $0x40] sm:$0xff] %vm46, %v1826
  %1925 = vst.msk [vmem:[#allocation3 + $0x48] sm:$0xff] %vm46, %v1827
  %1926 = vst.msk [vmem:[#allocation3 + $0x50] sm:$0xff] %vm46, %v1828
  %1927 = vst.msk [vmem:[#allocation3 + $0x58] sm:$0xff] %vm46, %v1829
  %1928 = vst.msk [vmem:[#allocation3 + $0x60] sm:$0xff] %vm46, %v1830
  %1929 = vst.msk [vmem:[#allocation3 + $0x68] sm:$0xff] %vm46, %v1831
  %1930 = vst.msk [vmem:[#allocation3 + $0x70] sm:$0xff] %vm46, %v1832
  %1931 = vst.msk [vmem:[#allocation3 + $0x78] sm:$0xff] %vm46, %v1833
  %1932 = vst.msk [vmem:[#allocation3 + $0x80] sm:$0xff] %vm46, %v1834
  %1933 = vst.msk [vmem:[#allocation3 + $0x88] sm:$0xff] %vm46, %v1835
  %1934 = vst.msk [vmem:[#allocation3 + $0x90] sm:$0xff] %vm46, %v1836
  %1935 = vst.msk [vmem:[#allocation3 + $0x98] sm:$0xff] %vm46, %v1837
  %1936 = vst.msk [vmem:[#allocation3 + $0xa0] sm:$0xff] %vm46, %v1838
  %1937 = vst.msk [vmem:[#allocation3 + $0xa8] sm:$0xff] %vm46, %v1839
  %1938 = vst.msk [vmem:[#allocation3 + $0xb0] sm:$0xff] %vm46, %v1840
  %1939 = vst.msk [vmem:[#allocation3 + $0xb8] sm:$0xff] %vm46, %v1841
  %1940 = vst.msk [vmem:[#allocation3 + $0xc0] sm:$0xff] %vm46, %v1842
  %1941 = vst.msk [vmem:[#allocation3 + $0xc8] sm:$0xff] %vm46, %v1843
  %1942 = vst.msk [vmem:[#allocation3 + $0xd0] sm:$0xff] %vm46, %v1844
  %1943 = vst.msk [vmem:[#allocation3 + $0xd8] sm:$0xff] %vm46, %v1845
  %1944 = vst.msk [vmem:[#allocation3 + $0xe0] sm:$0xff] %vm46, %v1846
  %1945 = vst.msk [vmem:[#allocation3 + $0xe8] sm:$0xff] %vm46, %v1847
  %1946 = vst.msk [vmem:[#allocation3 + $0xf0] sm:$0xff] %vm46, %v1848
  %1947 = vst.msk [vmem:[#allocation3 + $0xf8] sm:$0xff] %vm46, %v1849
  %1948 = vst.msk [vmem:[#allocation3 + $0x100] sm:$0xff] %vm46, %v1850
  %1949 = vst.msk [vmem:[#allocation3 + $0x108] sm:$0xff] %vm46, %v1851
  %1950 = vst.msk [vmem:[#allocation3 + $0x110] sm:$0xff] %vm46, %v1852
  %1951 = vst.msk [vmem:[#allocation3 + $0x118] sm:$0xff] %vm46, %v1853
  %1952 = vst.msk [vmem:[#allocation3 + $0x120] sm:$0xff] %vm46, %v1854
  %1953 = vst.msk [vmem:[#allocation3 + $0x128] sm:$0xff] %vm46, %v1855
  %1954 = vst.msk [vmem:[#allocation3 + $0x130] sm:$0xff] %vm46, %v1856
  %1955 = vst.msk [vmem:[#allocation3 + $0x138] sm:$0xff] %vm46, %v1857
  %1956 = vst.msk [vmem:[#allocation3 + $0x140] sm:$0xff] %vm46, %v1858
  %1957 = vst.msk [vmem:[#allocation3 + $0x148] sm:$0xff] %vm46, %v1859
  %1958 = vst.msk [vmem:[#allocation3 + $0x150] sm:$0xff] %vm46, %v1860
  %1959 = vst.msk [vmem:[#allocation3 + $0x158] sm:$0xff] %vm46, %v1861
  %1960 = vst.msk [vmem:[#allocation3 + $0x160] sm:$0xff] %vm46, %v1862
  %1961 = vst.msk [vmem:[#allocation3 + $0x168] sm:$0xff] %vm46, %v1863
  %1962 = vst.msk [vmem:[#allocation3 + $0x170] sm:$0xff] %vm46, %v1864
  %1963 = vst.msk [vmem:[#allocation3 + $0x178] sm:$0xff] %vm46, %v1865
  %1964 = vst.msk [vmem:[#allocation3 + $0x180] sm:$0xff] %vm46, %v1866
  %1965 = vst.msk [vmem:[#allocation3 + $0x188] sm:$0xff] %vm46, %v1867
  %1966 = vst.msk [vmem:[#allocation3 + $0x190] sm:$0xff] %vm46, %v1868
  %1967 = vst.msk [vmem:[#allocation3 + $0x198] sm:$0xff] %vm46, %v1869
  %1968 = vst.msk [vmem:[#allocation3 + $0x1a0] sm:$0xff] %vm46, %v1870
  %1969 = vst.msk [vmem:[#allocation3 + $0x1a8] sm:$0xff] %vm46, %v1871
  %1970 = vst.msk [vmem:[#allocation3 + $0x1b0] sm:$0xff] %vm46, %v1872
  %1971 = vst.msk [vmem:[#allocation3 + $0x1b8] sm:$0xff] %vm46, %v1873
  %1972 = vst.msk [vmem:[#allocation3 + $0x1c0] sm:$0xff] %vm46, %v1874
  %1973 = vst.msk [vmem:[#allocation3 + $0x1c8] sm:$0xff] %vm46, %v1875
  %1974 = vst.msk [vmem:[#allocation3 + $0x1d0] sm:$0xff] %vm46, %v1876
  %1975 = vst.msk [vmem:[#allocation3 + $0x1d8] sm:$0xff] %vm46, %v1877
  %1976 = vst.msk [vmem:[#allocation3 + $0x1e0] sm:$0xff] %vm46, %v1878
  %1977 = vst.msk [vmem:[#allocation3 + $0x1e8] sm:$0xff] %vm46, %v1879
  %1978 = vst.msk [vmem:[#allocation3 + $0x1f0] sm:$0xff] %vm46, %v1880
  %1979 = vst.msk [vmem:[#allocation3 + $0x1f8] sm:$0xff] %vm46, %v1881
  %1980 = vst.msk [vmem:[#allocation3 + $0x200] sm:$0xff] %vm46, %v1882
  %1981 = vst.msk [vmem:[#allocation3 + $0x208] sm:$0xff] %vm46, %v1883
  %1982 = vst.msk [vmem:[#allocation3 + $0x210] sm:$0xff] %vm46, %v1884
  %1983 = vst.msk [vmem:[#allocation3 + $0x218] sm:$0xff] %vm46, %v1885
  %1984 = vst.msk [vmem:[#allocation3 + $0x220] sm:$0xff] %vm46, %v1886
  %1985 = vst.msk [vmem:[#allocation3 + $0x228] sm:$0xff] %vm46, %v1887
  %1986 = vst.msk [vmem:[#allocation3 + $0x230] sm:$0xff] %vm46, %v1888
  %1987 = vst.msk [vmem:[#allocation3 + $0x238] sm:$0xff] %vm46, %v1889
  %1988 = vst.msk [vmem:[#allocation3 + $0x240] sm:$0xff] %vm46, %v1890
  %1989 = vst.msk [vmem:[#allocation3 + $0x248] sm:$0xff] %vm46, %v1891
  %1990 = vst.msk [vmem:[#allocation3 + $0x250] sm:$0xff] %vm46, %v1892
  %1991 = vst.msk [vmem:[#allocation3 + $0x258] sm:$0xff] %vm46, %v1893
  %1992 = vst.msk [vmem:[#allocation3 + $0x260] sm:$0xff] %vm46, %v1894
  %1993 = vst.msk [vmem:[#allocation3 + $0x268] sm:$0xff] %vm46, %v1895
  %1994 = vst.msk [vmem:[#allocation3 + $0x270] sm:$0xff] %vm46, %v1896
  %1995 = vst.msk [vmem:[#allocation3 + $0x278] sm:$0xff] %vm46, %v1897
  %1996 = vst.msk [vmem:[#allocation3 + $0x280] sm:$0xff] %vm46, %v1898
  %1997 = vst.msk [vmem:[#allocation3 + $0x288] sm:$0xff] %vm46, %v1899
  %1998 = vst.msk [vmem:[#allocation3 + $0x290] sm:$0xff] %vm46, %v1900
  %1999 = vst.msk [vmem:[#allocation3 + $0x298] sm:$0xff] %vm46, %v1901
  %2000 = vst.msk [vmem:[#allocation3 + $0x2a0] sm:$0xff] %vm46, %v1902
  %2001 = vst.msk [vmem:[#allocation3 + $0x2a8] sm:$0xff] %vm46, %v1903
  %2002 = vst.msk [vmem:[#allocation3 + $0x2b0] sm:$0xff] %vm46, %v1904
  %2003 = vst.msk [vmem:[#allocation3 + $0x2b8] sm:$0xff] %vm46, %v1905
  %2004 = vst.msk [vmem:[#allocation3 + $0x2c0] sm:$0xff] %vm46, %v1906
  %2005 = vst.msk [vmem:[#allocation3 + $0x2c8] sm:$0xff] %vm46, %v1907
  %2006 = vst.msk [vmem:[#allocation3 + $0x2d0] sm:$0xff] %vm46, %v1908
  %2007 = vst.msk [vmem:[#allocation3 + $0x2d8] sm:$0xff] %vm46, %v1909
  %2008 = vst.msk [vmem:[#allocation3 + $0x2e0] sm:$0xff] %vm46, %v1910
  %2009 = vst.msk [vmem:[#allocation3 + $0x2e8] sm:$0xff] %vm46, %v1911
  %2010 = vst.msk [vmem:[#allocation3 + $0x2f0] sm:$0xff] %vm46, %v1912
  %2011 = vst.msk [vmem:[#allocation3 + $0x2f8] sm:$0xff] %vm46, %v1913
  %2012 = vst.msk [vmem:[#allocation3 + $0x300] sm:$0xff] %vm46, %v1914
  %2013 = vst.msk [vmem:[#allocation3 + $0x308] sm:$0xff] %vm46, %v1915
  %v2014 = vld [vmem:[#allocation3] sm:$0xff]
  %v2015 = vld [vmem:[#allocation3 + $0x8] sm:$0xff]
  %v2016 = vld [vmem:[#allocation3 + $0x10] sm:$0xff]
  %v2017 = vld [vmem:[#allocation3 + $0x18] sm:$0xff]
  %v2018 = vld [vmem:[#allocation3 + $0x20] sm:$0xff]
  %v2019 = vld [vmem:[#allocation3 + $0x28] sm:$0xff]
  %v2020 = vld [vmem:[#allocation3 + $0x30] sm:$0xff]
  %v2021 = vld [vmem:[#allocation3 + $0x38] sm:$0xff]
  %v2022 = vld [vmem:[#allocation3 + $0x40] sm:$0xff]
  %v2023 = vld [vmem:[#allocation3 + $0x48] sm:$0xff]
  %v2024 = vld [vmem:[#allocation3 + $0x50] sm:$0xff]
  %v2025 = vld [vmem:[#allocation3 + $0x58] sm:$0xff]
  %v2026 = vld [vmem:[#allocation3 + $0x60] sm:$0xff]
  %v2027 = vld [vmem:[#allocation3 + $0x68] sm:$0xff]
  %v2028 = vld [vmem:[#allocation3 + $0x70] sm:$0xff]
  %v2029 = vld [vmem:[#allocation3 + $0x78] sm:$0xff]
  %v2030 = vld [vmem:[#allocation3 + $0x80] sm:$0xff]
  %v2031 = vld [vmem:[#allocation3 + $0x88] sm:$0xff]
  %v2032 = vld [vmem:[#allocation3 + $0x90] sm:$0xff]
  %v2033 = vld [vmem:[#allocation3 + $0x98] sm:$0xff]
  %v2034 = vld [vmem:[#allocation3 + $0xa0] sm:$0xff]
  %v2035 = vld [vmem:[#allocation3 + $0xa8] sm:$0xff]
  %v2036 = vld [vmem:[#allocation3 + $0xb0] sm:$0xff]
  %v2037 = vld [vmem:[#allocation3 + $0xb8] sm:$0xff]
  %v2038 = vld [vmem:[#allocation3 + $0xc0] sm:$0xff]
  %v2039 = vld [vmem:[#allocation3 + $0xc8] sm:$0xff]
  %v2040 = vld [vmem:[#allocation3 + $0xd0] sm:$0xff]
  %v2041 = vld [vmem:[#allocation3 + $0xd8] sm:$0xff]
  %v2042 = vld [vmem:[#allocation3 + $0xe0] sm:$0xff]
  %v2043 = vld [vmem:[#allocation3 + $0xe8] sm:$0xff]
  %v2044 = vld [vmem:[#allocation3 + $0xf0] sm:$0xff]
  %v2045 = vld [vmem:[#allocation3 + $0xf8] sm:$0xff]
  %v2046 = vld [vmem:[#allocation3 + $0x100] sm:$0xff]
  %v2047 = vld [vmem:[#allocation3 + $0x108] sm:$0xff]
  %v2048 = vld [vmem:[#allocation3 + $0x110] sm:$0xff]
  %v2049 = vld [vmem:[#allocation3 + $0x118] sm:$0xff]
  %v2050 = vld [vmem:[#allocation3 + $0x120] sm:$0xff]
  %v2051 = vld [vmem:[#allocation3 + $0x128] sm:$0xff]
  %v2052 = vld [vmem:[#allocation3 + $0x130] sm:$0xff]
  %v2053 = vld [vmem:[#allocation3 + $0x138] sm:$0xff]
  %v2054 = vld [vmem:[#allocation3 + $0x140] sm:$0xff]
  %v2055 = vld [vmem:[#allocation3 + $0x148] sm:$0xff]
  %v2056 = vld [vmem:[#allocation3 + $0x150] sm:$0xff]
  %v2057 = vld [vmem:[#allocation3 + $0x158] sm:$0xff]
  %v2058 = vld [vmem:[#allocation3 + $0x160] sm:$0xff]
  %v2059 = vld [vmem:[#allocation3 + $0x168] sm:$0xff]
  %v2060 = vld [vmem:[#allocation3 + $0x170] sm:$0xff]
  %v2061 = vld [vmem:[#allocation3 + $0x178] sm:$0xff]
  %v2062 = vld [vmem:[#allocation3 + $0x180] sm:$0xff]
  %v2063 = vld [vmem:[#allocation3 + $0x188] sm:$0xff]
  %v2064 = vld [vmem:[#allocation3 + $0x190] sm:$0xff]
  %v2065 = vld [vmem:[#allocation3 + $0x198] sm:$0xff]
  %v2066 = vld [vmem:[#allocation3 + $0x1a0] sm:$0xff]
  %v2067 = vld [vmem:[#allocation3 + $0x1a8] sm:$0xff]
  %v2068 = vld [vmem:[#allocation3 + $0x1b0] sm:$0xff]
  %v2069 = vld [vmem:[#allocation3 + $0x1b8] sm:$0xff]
  %v2070 = vld [vmem:[#allocation3 + $0x1c0] sm:$0xff]
  %v2071 = vld [vmem:[#allocation3 + $0x1c8] sm:$0xff]
  %v2072 = vld [vmem:[#allocation3 + $0x1d0] sm:$0xff]
  %v2073 = vld [vmem:[#allocation3 + $0x1d8] sm:$0xff]
  %v2074 = vld [vmem:[#allocation3 + $0x1e0] sm:$0xff]
  %v2075 = vld [vmem:[#allocation3 + $0x1e8] sm:$0xff]
  %v2076 = vld [vmem:[#allocation3 + $0x1f0] sm:$0xff]
  %v2077 = vld [vmem:[#allocation3 + $0x1f8] sm:$0xff]
  %v2078 = vld [vmem:[#allocation3 + $0x200] sm:$0xff]
  %v2079 = vld [vmem:[#allocation3 + $0x208] sm:$0xff]
  %v2080 = vld [vmem:[#allocation3 + $0x210] sm:$0xff]
  %v2081 = vld [vmem:[#allocation3 + $0x218] sm:$0xff]
  %v2082 = vld [vmem:[#allocation3 + $0x220] sm:$0xff]
  %v2083 = vld [vmem:[#allocation3 + $0x228] sm:$0xff]
  %v2084 = vld [vmem:[#allocation3 + $0x230] sm:$0xff]
  %v2085 = vld [vmem:[#allocation3 + $0x238] sm:$0xff]
  %v2086 = vld [vmem:[#allocation3 + $0x240] sm:$0xff]
  %v2087 = vld [vmem:[#allocation3 + $0x248] sm:$0xff]
  %v2088 = vld [vmem:[#allocation3 + $0x250] sm:$0xff]
  %v2089 = vld [vmem:[#allocation3 + $0x258] sm:$0xff]
  %v2090 = vld [vmem:[#allocation3 + $0x260] sm:$0xff]
  %v2091 = vld [vmem:[#allocation3 + $0x268] sm:$0xff]
  %v2092 = vld [vmem:[#allocation3 + $0x270] sm:$0xff]
  %v2093 = vld [vmem:[#allocation3 + $0x278] sm:$0xff]
  %v2094 = vld [vmem:[#allocation3 + $0x280] sm:$0xff]
  %v2095 = vld [vmem:[#allocation3 + $0x288] sm:$0xff]
  %v2096 = vld [vmem:[#allocation3 + $0x290] sm:$0xff]
  %v2097 = vld [vmem:[#allocation3 + $0x298] sm:$0xff]
  %v2098 = vld [vmem:[#allocation3 + $0x2a0] sm:$0xff]
  %v2099 = vld [vmem:[#allocation3 + $0x2a8] sm:$0xff]
  %v2100 = vld [vmem:[#allocation3 + $0x2b0] sm:$0xff]
  %v2101 = vld [vmem:[#allocation3 + $0x2b8] sm:$0xff]
  %v2102 = vld [vmem:[#allocation3 + $0x2c0] sm:$0xff]
  %v2103 = vld [vmem:[#allocation3 + $0x2c8] sm:$0xff]
  %v2104 = vld [vmem:[#allocation3 + $0x2d0] sm:$0xff]
  %v2105 = vld [vmem:[#allocation3 + $0x2d8] sm:$0xff]
  %v2106 = vld [vmem:[#allocation3 + $0x2e0] sm:$0xff]
  %v2107 = vld [vmem:[#allocation3 + $0x2e8] sm:$0xff]
  %v2108 = vld [vmem:[#allocation3 + $0x2f0] sm:$0xff]
  %v2109 = vld [vmem:[#allocation3 + $0x2f8] sm:$0xff]
  %v2110 = vld [vmem:[#allocation3 + $0x300] sm:$0xff]
  %v2111 = vld [vmem:[#allocation3 + $0x308] sm:$0xff]
  %v2112 = vld [vmem:[%s3] sm:$0xff]
  %v2113 = vld [vmem:[%s3 + $0x8] sm:$0xff]
  %v2114 = vld [vmem:[#allocation3 + $0x2] sm:$0xff]
  %v2115 = vld [vmem:[#allocation3 + $0xa] sm:$0xff]
  %v2116 = vld [vmem:[#allocation3 + $0x12] sm:$0xff]
  %v2117 = vld [vmem:[#allocation3 + $0x1a] sm:$0xff]
  %v2118 = vld [vmem:[#allocation3 + $0x22] sm:$0xff]
  %v2119 = vld [vmem:[#allocation3 + $0x2a] sm:$0xff]
  %v2120 = vld [vmem:[#allocation3 + $0x32] sm:$0xff]
  %v2121 = vld [vmem:[#allocation3 + $0x3a] sm:$0xff]
  %v2122 = vld [vmem:[#allocation3 + $0x42] sm:$0xff]
  %v2123 = vld [vmem:[#allocation3 + $0x4a] sm:$0xff]
  %v2124 = vld [vmem:[#allocation3 + $0x52] sm:$0xff]
  %v2125 = vld [vmem:[#allocation3 + $0x5a] sm:$0xff]
  %v2126 = vld [vmem:[#allocation3 + $0x62] sm:$0xff]
  %v2127 = vld [vmem:[#allocation3 + $0x6a] sm:$0xff]
  %v2128 = vld [vmem:[#allocation3 + $0x72] sm:$0xff]
  %v2129 = vld [vmem:[#allocation3 + $0x7a] sm:$0xff]
  %v2130 = vld [vmem:[#allocation3 + $0x82] sm:$0xff]
  %v2131 = vld [vmem:[#allocation3 + $0x8a] sm:$0xff]
  %v2132 = vld [vmem:[#allocation3 + $0x92] sm:$0xff]
  %v2133 = vld [vmem:[#allocation3 + $0x9a] sm:$0xff]
  %v2134 = vld [vmem:[#allocation3 + $0xa2] sm:$0xff]
  %v2135 = vld [vmem:[#allocation3 + $0xaa] sm:$0xff]
  %v2136 = vld [vmem:[#allocation3 + $0xb2] sm:$0xff]
  %v2137 = vld [vmem:[#allocation3 + $0xba] sm:$0xff]
  %v2138 = vld [vmem:[#allocation3 + $0xc2] sm:$0xff]
  %v2139 = vld [vmem:[#allocation3 + $0xca] sm:$0xff]
  %v2140 = vld [vmem:[#allocation3 + $0xd2] sm:$0xff]
  %v2141 = vld [vmem:[#allocation3 + $0xda] sm:$0xff]
  %v2142 = vld [vmem:[#allocation3 + $0xe2] sm:$0xff]
  %v2143 = vld [vmem:[#allocation3 + $0xea] sm:$0xff]
  %v2144 = vld [vmem:[#allocation3 + $0xf2] sm:$0xff]
  %v2145 = vld [vmem:[#allocation3 + $0xfa] sm:$0xff]
  %v2146 = vld [vmem:[#allocation3 + $0x102] sm:$0xff]
  %v2147 = vld [vmem:[#allocation3 + $0x10a] sm:$0xff]
  %v2148 = vld [vmem:[#allocation3 + $0x112] sm:$0xff]
  %v2149 = vld [vmem:[#allocation3 + $0x11a] sm:$0xff]
  %v2150 = vld [vmem:[#allocation3 + $0x122] sm:$0xff]
  %v2151 = vld [vmem:[#allocation3 + $0x12a] sm:$0xff]
  %v2152 = vld [vmem:[#allocation3 + $0x132] sm:$0xff]
  %v2153 = vld [vmem:[#allocation3 + $0x13a] sm:$0xff]
  %v2154 = vld [vmem:[#allocation3 + $0x142] sm:$0xff]
  %v2155 = vld [vmem:[#allocation3 + $0x14a] sm:$0xff]
  %v2156 = vld [vmem:[#allocation3 + $0x152] sm:$0xff]
  %v2157 = vld [vmem:[#allocation3 + $0x15a] sm:$0xff]
  %v2158 = vld [vmem:[#allocation3 + $0x162] sm:$0xff]
  %v2159 = vld [vmem:[#allocation3 + $0x16a] sm:$0xff]
  %v2160 = vld [vmem:[#allocation3 + $0x172] sm:$0xff]
  %v2161 = vld [vmem:[#allocation3 + $0x17a] sm:$0xff]
  %v2162 = vld [vmem:[#allocation3 + $0x182] sm:$0xff]
  %v2163 = vld [vmem:[#allocation3 + $0x18a] sm:$0xff]
  %v2164 = vld [vmem:[#allocation3 + $0x192] sm:$0xff]
  %v2165 = vld [vmem:[#allocation3 + $0x19a] sm:$0xff]
  %v2166 = vld [vmem:[#allocation3 + $0x1a2] sm:$0xff]
  %v2167 = vld [vmem:[#allocation3 + $0x1aa] sm:$0xff]
  %v2168 = vld [vmem:[#allocation3 + $0x1b2] sm:$0xff]
  %v2169 = vld [vmem:[#allocation3 + $0x1ba] sm:$0xff]
  %v2170 = vld [vmem:[#allocation3 + $0x1c2] sm:$0xff]
  %v2171 = vld [vmem:[#allocation3 + $0x1ca] sm:$0xff]
  %v2172 = vld [vmem:[#allocation3 + $0x1d2] sm:$0xff]
  %v2173 = vld [vmem:[#allocation3 + $0x1da] sm:$0xff]
  %v2174 = vld [vmem:[#allocation3 + $0x1e2] sm:$0xff]
  %v2175 = vld [vmem:[#allocation3 + $0x1ea] sm:$0xff]
  %v2176 = vld [vmem:[#allocation3 + $0x1f2] sm:$0xff]
  %v2177 = vld [vmem:[#allocation3 + $0x1fa] sm:$0xff]
  %v2178 = vld [vmem:[#allocation3 + $0x202] sm:$0xff]
  %v2179 = vld [vmem:[#allocation3 + $0x20a] sm:$0xff]
  %v2180 = vld [vmem:[#allocation3 + $0x212] sm:$0xff]
  %v2181 = vld [vmem:[#allocation3 + $0x21a] sm:$0xff]
  %v2182 = vld [vmem:[#allocation3 + $0x222] sm:$0xff]
  %v2183 = vld [vmem:[#allocation3 + $0x22a] sm:$0xff]
  %v2184 = vld [vmem:[#allocation3 + $0x232] sm:$0xff]
  %v2185 = vld [vmem:[#allocation3 + $0x23a] sm:$0xff]
  %v2186 = vld [vmem:[#allocation3 + $0x242] sm:$0xff]
  %v2187 = vld [vmem:[#allocation3 + $0x24a] sm:$0xff]
  %v2188 = vld [vmem:[#allocation3 + $0x252] sm:$0xff]
  %v2189 = vld [vmem:[#allocation3 + $0x25a] sm:$0xff]
  %v2190 = vld [vmem:[#allocation3 + $0x262] sm:$0xff]
  %v2191 = vld [vmem:[#allocation3 + $0x26a] sm:$0xff]
  %v2192 = vld [vmem:[#allocation3 + $0x272] sm:$0xff]
  %v2193 = vld [vmem:[#allocation3 + $0x27a] sm:$0xff]
  %v2194 = vld [vmem:[#allocation3 + $0x282] sm:$0xff]
  %v2195 = vld [vmem:[#allocation3 + $0x28a] sm:$0xff]
  %v2196 = vld [vmem:[#allocation3 + $0x292] sm:$0xff]
  %v2197 = vld [vmem:[#allocation3 + $0x29a] sm:$0xff]
  %v2198 = vld [vmem:[#allocation3 + $0x2a2] sm:$0xff]
  %v2199 = vld [vmem:[#allocation3 + $0x2aa] sm:$0xff]
  %v2200 = vld [vmem:[#allocation3 + $0x2b2] sm:$0xff]
  %v2201 = vld [vmem:[#allocation3 + $0x2ba] sm:$0xff]
  %v2202 = vld [vmem:[#allocation3 + $0x2c2] sm:$0xff]
  %v2203 = vld [vmem:[#allocation3 + $0x2ca] sm:$0xff]
  %v2204 = vld [vmem:[#allocation3 + $0x2d2] sm:$0xff]
  %v2205 = vld [vmem:[#allocation3 + $0x2da] sm:$0xff]
  %v2206 = vld [vmem:[#allocation3 + $0x2e2] sm:$0xff]
  %v2207 = vld [vmem:[#allocation3 + $0x2ea] sm:$0xff]
  %v2208 = vld [vmem:[#allocation3 + $0x2f2] sm:$0xff]
  %v2209 = vld [vmem:[#allocation3 + $0x2fa] sm:$0xff]
  %v2210 = vld [vmem:[#allocation3 + $0x302] sm:$0xff]
  %v2211 = vld [vmem:[#allocation3 + $0x30a] sm:$0xff]
  %s2212 = scalar_lea.vmem %s3, 16
  %v2213 = vld [vmem:[%s2212] sm:$0xff]
  %v2214 = vld [vmem:[%s2212 + $0x8] sm:$0xff]
  %v2216 = vsel %vm46, %v2114, 0
  %v2219 = vsel %vm46, %v2115, 0
  %v2222 = vsel %vm46, %v2116, 0
  %v2225 = vsel %vm46, %v2117, 0
  %v2228 = vsel %vm46, %v2118, 0
  %v2231 = vsel %vm46, %v2119, 0
  %v2234 = vsel %vm46, %v2120, 0
  %v2237 = vsel %vm46, %v2121, 0
  %v2240 = vsel %vm46, %v2122, 0
  %v2243 = vsel %vm46, %v2123, 0
  %v2246 = vsel %vm46, %v2124, 0
  %v2249 = vsel %vm46, %v2125, 0
  %v2252 = vsel %vm46, %v2126, 0
  %v2255 = vsel %vm46, %v2127, 0
  %v2258 = vsel %vm46, %v2128, 0
  %v2261 = vsel %vm46, %v2129, 0
  %v2264 = vsel %vm46, %v2130, 0
  %v2267 = vsel %vm46, %v2131, 0
  %v2270 = vsel %vm46, %v2132, 0
  %v2273 = vsel %vm46, %v2133, 0
  %v2276 = vsel %vm46, %v2134, 0
  %v2279 = vsel %vm46, %v2135, 0
  %v2282 = vsel %vm46, %v2136, 0
  %v2285 = vsel %vm46, %v2137, 0
  %v2288 = vsel %vm46, %v2138, 0
  %v2291 = vsel %vm46, %v2139, 0
  %v2294 = vsel %vm46, %v2140, 0
  %v2297 = vsel %vm46, %v2141, 0
  %v2300 = vsel %vm46, %v2142, 0
  %v2303 = vsel %vm46, %v2143, 0
  %v2306 = vsel %vm46, %v2144, 0
  %v2309 = vsel %vm46, %v2145, 0
  %v2312 = vsel %vm46, %v2146, 0
  %v2315 = vsel %vm46, %v2147, 0
  %v2318 = vsel %vm46, %v2148, 0
  %v2321 = vsel %vm46, %v2149, 0
  %v2324 = vsel %vm46, %v2150, 0
  %v2327 = vsel %vm46, %v2151, 0
  %v2330 = vsel %vm46, %v2152, 0
  %v2333 = vsel %vm46, %v2153, 0
  %v2336 = vsel %vm46, %v2154, 0
  %v2339 = vsel %vm46, %v2155, 0
  %v2342 = vsel %vm46, %v2156, 0
  %v2345 = vsel %vm46, %v2157, 0
  %v2348 = vsel %vm46, %v2158, 0
  %v2351 = vsel %vm46, %v2159, 0
  %v2354 = vsel %vm46, %v2160, 0
  %v2357 = vsel %vm46, %v2161, 0
  %v2360 = vsel %vm46, %v2162, 0
  %v2363 = vsel %vm46, %v2163, 0
  %v2366 = vsel %vm46, %v2164, 0
  %v2369 = vsel %vm46, %v2165, 0
  %v2372 = vsel %vm46, %v2166, 0
  %v2375 = vsel %vm46, %v2167, 0
  %v2378 = vsel %vm46, %v2168, 0
  %v2381 = vsel %vm46, %v2169, 0
  %v2384 = vsel %vm46, %v2170, 0
  %v2387 = vsel %vm46, %v2171, 0
  %v2390 = vsel %vm46, %v2172, 0
  %v2393 = vsel %vm46, %v2173, 0
  %v2396 = vsel %vm46, %v2174, 0
  %v2399 = vsel %vm46, %v2175, 0
  %v2402 = vsel %vm46, %v2176, 0
  %v2405 = vsel %vm46, %v2177, 0
  %v2408 = vsel %vm46, %v2178, 0
  %v2411 = vsel %vm46, %v2179, 0
  %v2414 = vsel %vm46, %v2180, 0
  %v2417 = vsel %vm46, %v2181, 0
  %v2420 = vsel %vm46, %v2182, 0
  %v2423 = vsel %vm46, %v2183, 0
  %v2426 = vsel %vm46, %v2184, 0
  %v2429 = vsel %vm46, %v2185, 0
  %v2432 = vsel %vm46, %v2186, 0
  %v2435 = vsel %vm46, %v2187, 0
  %v2438 = vsel %vm46, %v2188, 0
  %v2441 = vsel %vm46, %v2189, 0
  %v2444 = vsel %vm46, %v2190, 0
  %v2447 = vsel %vm46, %v2191, 0
  %v2450 = vsel %vm46, %v2192, 0
  %v2453 = vsel %vm46, %v2193, 0
  %v2456 = vsel %vm46, %v2194, 0
  %v2459 = vsel %vm46, %v2195, 0
  %v2462 = vsel %vm46, %v2196, 0
  %v2465 = vsel %vm46, %v2197, 0
  %v2468 = vsel %vm46, %v2198, 0
  %v2471 = vsel %vm46, %v2199, 0
  %v2474 = vsel %vm46, %v2200, 0
  %v2477 = vsel %vm46, %v2201, 0
  %v2480 = vsel %vm46, %v2202, 0
  %v2483 = vsel %vm46, %v2203, 0
  %v2486 = vsel %vm46, %v2204, 0
  %v2489 = vsel %vm46, %v2205, 0
  %v2492 = vsel %vm46, %v2206, 0
  %v2495 = vsel %vm46, %v2207, 0
  %v2498 = vsel %vm46, %v2208, 0
  %v2501 = vsel %vm46, %v2209, 0
  %v2504 = vsel %vm46, %v2210, 0
  %v2507 = vsel %vm46, %v2211, 0
  %2509 = vmatprep.subr.mxu0 0.0
  %2510 = vmatpush1.msra.mxu0 %v2213
  %2511 = vmatprep.subr.mxu0 0.0
  %2512 = vmatpush1.msra.mxu0 %v2214
  %2513 = vmatprep.subr.mxu0 0.0
  %2514 = vmatpush1.msra.mxu0 0.0
  %2515 = vmatprep.subr.mxu0 0.0
  %2516 = vmatpush1.msra.mxu0 0.0
  %2517 = vmatprep.subr.mxu0 0.0
  %2518 = vmatpush1.msra.mxu0 0.0
  %2519 = vmatprep.subr.mxu0 0.0
  %2520 = vmatpush1.msra.mxu0 0.0
  %2521 = vmatprep.subr.mxu0 0.0
  %2522 = vmatpush1.msra.mxu0 0.0
  %2523 = vmatprep.subr.mxu0 0.0
  %2524 = vmatpush1.msra.mxu0 0.0
  %2525 = vmatprep.subr.mxu0 0.0
  %2526 = vmatpush1.msra.mxu0 0.0
  %2527 = vmatprep.subr.mxu0 0.0
  %2528 = vmatpush1.msra.mxu0 0.0
  %2529 = vmatprep.subr.mxu0 0.0
  %2530 = vmatpush1.msra.mxu0 0.0
  %2531 = vmatprep.subr.mxu0 0.0
  %2532 = vmatpush1.msra.mxu0 0.0
  %2533 = vmatprep.subr.mxu0 0.0
  %2534 = vmatpush1.msra.mxu0 0.0
  %2535 = vmatprep.subr.mxu0 0.0
  %2536 = vmatpush1.msra.mxu0 0.0
  %2537 = vmatprep.subr.mxu0 0.0
  %2538 = vmatpush1.msra.mxu0 0.0
  %2539 = vmatprep.subr.mxu0 0.0
  %2540 = vmatpush1.msra.mxu0 0.0
  %2541 = vmatprep.subr.mxu0 0.0
  %2542 = vmatpush1.msra.mxu0 0.0
  %2543 = vmatprep.subr.mxu0 0.0
  %2544 = vmatpush1.msra.mxu0 0.0
  %2545 = vmatprep.subr.mxu0 0.0
  %2546 = vmatpush1.msra.mxu0 0.0
  %2547 = vmatprep.subr.mxu0 0.0
  %2548 = vmatpush1.msra.mxu0 0.0
  %2549 = vmatprep.subr.mxu0 0.0
  %2550 = vmatpush1.msra.mxu0 0.0
  %2551 = vmatprep.subr.mxu0 0.0
  %2552 = vmatpush1.msra.mxu0 0.0
  %2553 = vmatprep.subr.mxu0 0.0
  %2554 = vmatpush1.msra.mxu0 0.0
  %2555 = vmatprep.subr.mxu0 0.0
  %2556 = vmatpush1.msra.mxu0 0.0
  %2557 = vmatprep.subr.mxu0 0.0
  %2558 = vmatpush1.msra.mxu0 0.0
  %2559 = vmatprep.subr.mxu0 0.0
  %2560 = vmatpush1.msra.mxu0 0.0
  %2561 = vmatprep.subr.mxu0 0.0
  %2562 = vmatpush1.msra.mxu0 0.0
  %2563 = vmatprep.subr.mxu0 0.0
  %2564 = vmatpush1.msra.mxu0 0.0
  %2565 = vmatprep.subr.mxu0 0.0
  %2566 = vmatpush1.msra.mxu0 0.0
  %2567 = vmatprep.subr.mxu0 0.0
  %2568 = vmatpush1.msra.mxu0 0.0
  %2569 = vmatprep.subr.mxu0 0.0
  %2570 = vmatpush1.msra.mxu0 0.0
  %2571 = vmatprep.subr.mxu0 0.0
  %2572 = vmatpush1.msra.mxu0 0.0
  %2573 = vmatprep.mubr.f32.mxu0 0.0
  %2574 = vmatmul.mubr.f32.gmra.mrb[0].mxu0 %v2216
  %v2575 = vpop.f32.mrb[0].mxu0
  %v2576 = vadd.f32 0.0, %v2575
  %v2577 = vpop.f32.mrb[0].mxu0
  %2578 = vmatprep.mubr.f32.mxu0 0.0
  %2579 = vmatmul.mubr.f32.gmra.mrb[0].mxu0 %v2219
  %v2580 = vpop.f32.mrb[0].mxu0
  %v2581 = vadd.f32 0.0, %v2580
  %v2582 = vpop.f32.mrb[0].mxu0
  %2583 = vmatprep.mubr.f32.mxu0 0.0
  %2584 = vmatmul.mubr.f32.gmra.mrb[0].mxu0 %v2222
  %v2585 = vpop.f32.mrb[0].mxu0
  %v2586 = vadd.f32 0.0, %v2585
  %v2587 = vpop.f32.mrb[0].mxu0
  %2588 = vmatprep.mubr.f32.mxu0 0.0
  %2589 = vmatmul.mubr.f32.gmra.mrb[0].mxu0 %v2225
  %v2590 = vpop.f32.mrb[0].mxu0
  %v2591 = vadd.f32 0.0, %v2590
  %v2592 = vpop.f32.mrb[0].mxu0
  %2593 = vmatprep.mubr.f32.mxu0 0.0
  %2594 = vmatmul.mubr.f32.gmra.mrb[0].mxu0 %v2228
  %v2595 = vpop.f32.mrb[0].mxu0
  %v2596 = vadd.f32 0.0, %v2595
  %v2597 = vpop.f32.mrb[0].mxu0
  %2598 = vmatprep.mubr.f32.mxu0 0.0
  %2599 = vmatmul.mubr.f32.gmra.mrb[0].mxu0 %v2231
  %v2600 = vpop.f32.mrb[0].mxu0
  %v2601 = vadd.f32 0.0, %v2600
  %v2602 = vpop.f32.mrb[0].mxu0
  %2603 = vmatprep.mubr.f32.mxu0 0.0
  %2604 = vmatmul.mubr.f32.gmra.mrb[0].mxu0 %v2234
  %v2605 = vpop.f32.mrb[0].mxu0
  %v2606 = vadd.f32 0.0, %v2605
  %v2607 = vpop.f32.mrb[0].mxu0
  %2608 = vmatprep.mubr.f32.mxu0 0.0
  %2609 = vmatmul.mubr.f32.gmra.mrb[0].mxu0 %v2237
  %v2610 = vpop.f32.mrb[0].mxu0
  %v2611 = vadd.f32 0.0, %v2610
  %v2612 = vpop.f32.mrb[0].mxu0
  %2613 = vmatprep.mubr.f32.mxu0 0.0
  %2614 = vmatmul.mubr.f32.gmra.mrb[0].mxu0 %v2240
  %v2615 = vpop.f32.mrb[0].mxu0
  %v2616 = vadd.f32 0.0, %v2615
  %v2617 = vpop.f32.mrb[0].mxu0
  %2618 = vmatprep.mubr.f32.mxu0 0.0
  %2619 = vmatmul.mubr.f32.gmra.mrb[0].mxu0 %v2243
  %v2620 = vpop.f32.mrb[0].mxu0
  %v2621 = vadd.f32 0.0, %v2620
  %v2622 = vpop.f32.mrb[0].mxu0
  %2623 = vmatprep.mubr.f32.mxu0 0.0
  %2624 = vmatmul.mubr.f32.gmra.mrb[0].mxu0 %v2246
  %v2625 = vpop.f32.mrb[0].mxu0
  %v2626 = vadd.f32 0.0, %v2625
  %v2627 = vpop.f32.mrb[0].mxu0
  %2628 = vmatprep.mubr.f32.mxu0 0.0
  %2629 = vmatmul.mubr.f32.gmra.mrb[0].mxu0 %v2249
  %v2630 = vpop.f32.mrb[0].mxu0
  %v2631 = vadd.f32 0.0, %v2630
  %v2632 = vpop.f32.mrb[0].mxu0
  %2633 = vmatprep.mubr.f32.mxu0 0.0
  %2634 = vmatmul.mubr.f32.gmra.mrb[0].mxu0 %v2252
  %v2635 = vpop.f32.mrb[0].mxu0
  %v2636 = vadd.f32 0.0, %v2635
  %v2637 = vpop.f32.mrb[0].mxu0
  %2638 = vmatprep.mubr.f32.mxu0 0.0
  %2639 = vmatmul.mubr.f32.gmra.mrb[0].mxu0 %v2255
  %v2640 = vpop.f32.mrb[0].mxu0
  %v2641 = vadd.f32 0.0, %v2640
  %v2642 = vpop.f32.mrb[0].mxu0
  %2643 = vmatprep.mubr.f32.mxu0 0.0
  %2644 = vmatmul.mubr.f32.gmra.mrb[0].mxu0 %v2258
  %v2645 = vpop.f32.mrb[0].mxu0
  %v2646 = vadd.f32 0.0, %v2645
  %v2647 = vpop.f32.mrb[0].mxu0
  %2648 = vmatprep.mubr.f32.mxu0 0.0
  %2649 = vmatmul.mubr.f32.gmra.mrb[0].mxu0 %v2261
  %v2650 = vpop.f32.mrb[0].mxu0
  %v2651 = vadd.f32 0.0, %v2650
  %v2652 = vpop.f32.mrb[0].mxu0
  %2653 = vmatprep.mubr.f32.mxu0 0.0
  %2654 = vmatmul.mubr.f32.gmra.mrb[0].mxu0 %v2264
  %v2655 = vpop.f32.mrb[0].mxu0
  %v2656 = vadd.f32 0.0, %v2655
  %v2657 = vpop.f32.mrb[0].mxu0
  %2658 = vmatprep.mubr.f32.mxu0 0.0
  %2659 = vmatmul.mubr.f32.gmra.mrb[0].mxu0 %v2267
  %v2660 = vpop.f32.mrb[0].mxu0
  %v2661 = vadd.f32 0.0, %v2660
  %v2662 = vpop.f32.mrb[0].mxu0
  %2663 = vmatprep.mubr.f32.mxu0 0.0
  %2664 = vmatmul.mubr.f32.gmra.mrb[0].mxu0 %v2270
  %v2665 = vpop.f32.mrb[0].mxu0
  %v2666 = vadd.f32 0.0, %v2665
  %v2667 = vpop.f32.mrb[0].mxu0
  %2668 = vmatprep.mubr.f32.mxu0 0.0
  %2669 = vmatmul.mubr.f32.gmra.mrb[0].mxu0 %v2273
  %v2670 = vpop.f32.mrb[0].mxu0
  %v2671 = vadd.f32 0.0, %v2670
  %v2672 = vpop.f32.mrb[0].mxu0
  %2673 = vmatprep.mubr.f32.mxu0 0.0
  %2674 = vmatmul.mubr.f32.gmra.mrb[0].mxu0 %v2276
  %v2675 = vpop.f32.mrb[0].mxu0
  %v2676 = vadd.f32 0.0, %v2675
  %v2677 = vpop.f32.mrb[0].mxu0
  %2678 = vmatprep.mubr.f32.mxu0 0.0
  %2679 = vmatmul.mubr.f32.gmra.mrb[0].mxu0 %v2279
  %v2680 = vpop.f32.mrb[0].mxu0
  %v2681 = vadd.f32 0.0, %v2680
  %v2682 = vpop.f32.mrb[0].mxu0
  %2683 = vmatprep.mubr.f32.mxu0 0.0
  %2684 = vmatmul.mubr.f32.gmra.mrb[0].mxu0 %v2282
  %v2685 = vpop.f32.mrb[0].mxu0
  %v2686 = vadd.f32 0.0, %v2685
  %v2687 = vpop.f32.mrb[0].mxu0
  %2688 = vmatprep.mubr.f32.mxu0 0.0
  %2689 = vmatmul.mubr.f32.gmra.mrb[0].mxu0 %v2285
  %v2690 = vpop.f32.mrb[0].mxu0
  %v2691 = vadd.f32 0.0, %v2690
  %v2692 = vpop.f32.mrb[0].mxu0
  %2693 = vmatprep.mubr.f32.mxu0 0.0
  %2694 = vmatmul.mubr.f32.gmra.mrb[0].mxu0 %v2288
  %v2695 = vpop.f32.mrb[0].mxu0
  %v2696 = vadd.f32 0.0, %v2695
  %v2697 = vpop.f32.mrb[0].mxu0
  %2698 = vmatprep.mubr.f32.mxu0 0.0
  %2699 = vmatmul.mubr.f32.gmra.mrb[0].mxu0 %v2291
  %v2700 = vpop.f32.mrb[0].mxu0
  %v2701 = vadd.f32 0.0, %v2700
  %v2702 = vpop.f32.mrb[0].mxu0
  %2703 = vmatprep.mubr.f32.mxu0 0.0
  %2704 = vmatmul.mubr.f32.gmra.mrb[0].mxu0 %v2294
  %v2705 = vpop.f32.mrb[0].mxu0
  %v2706 = vadd.f32 0.0, %v2705
  %v2707 = vpop.f32.mrb[0].mxu0
  %2708 = vmatprep.mubr.f32.mxu0 0.0
  %2709 = vmatmul.mubr.f32.gmra.mrb[0].mxu0 %v2297
  %v2710 = vpop.f32.mrb[0].mxu0
  %v2711 = vadd.f32 0.0, %v2710
  %v2712 = vpop.f32.mrb[0].mxu0
  %2713 = vmatprep.mubr.f32.mxu0 0.0
  %2714 = vmatmul.mubr.f32.gmra.mrb[0].mxu0 %v2300
  %v2715 = vpop.f32.mrb[0].mxu0
  %v2716 = vadd.f32 0.0, %v2715
  %v2717 = vpop.f32.mrb[0].mxu0
  %2718 = vmatprep.mubr.f32.mxu0 0.0
  %2719 = vmatmul.mubr.f32.gmra.mrb[0].mxu0 %v2303
  %v2720 = vpop.f32.mrb[0].mxu0
  %v2721 = vadd.f32 0.0, %v2720
  %v2722 = vpop.f32.mrb[0].mxu0
  %2723 = vmatprep.mubr.f32.mxu0 0.0
  %2724 = vmatmul.mubr.f32.gmra.mrb[0].mxu0 %v2306
  %v2725 = vpop.f32.mrb[0].mxu0
  %v2726 = vadd.f32 0.0, %v2725
  %v2727 = vpop.f32.mrb[0].mxu0
  %2728 = vmatprep.mubr.f32.mxu0 0.0
  %2729 = vmatmul.mubr.f32.gmra.mrb[0].mxu0 %v2309
  %v2730 = vpop.f32.mrb[0].mxu0
  %v2731 = vadd.f32 0.0, %v2730
  %v2732 = vpop.f32.mrb[0].mxu0
  %2733 = vmatprep.mubr.f32.mxu0 0.0
  %2734 = vmatmul.mubr.f32.gmra.mrb[0].mxu0 %v2312
  %v2735 = vpop.f32.mrb[0].mxu0
  %v2736 = vadd.f32 0.0, %v2735
  %v2737 = vpop.f32.mrb[0].mxu0
  %2738 = vmatprep.mubr.f32.mxu0 0.0
  %2739 = vmatmul.mubr.f32.gmra.mrb[0].mxu0 %v2315
  %v2740 = vpop.f32.mrb[0].mxu0
  %v2741 = vadd.f32 0.0, %v2740
  %v2742 = vpop.f32.mrb[0].mxu0
  %2743 = vmatprep.mubr.f32.mxu0 0.0
  %2744 = vmatmul.mubr.f32.gmra.mrb[0].mxu0 %v2318
  %v2745 = vpop.f32.mrb[0].mxu0
  %v2746 = vadd.f32 0.0, %v2745
  %v2747 = vpop.f32.mrb[0].mxu0
  %2748 = vmatprep.mubr.f32.mxu0 0.0
  %2749 = vmatmul.mubr.f32.gmra.mrb[0].mxu0 %v2321
  %v2750 = vpop.f32.mrb[0].mxu0
  %v2751 = vadd.f32 0.0, %v2750
  %v2752 = vpop.f32.mrb[0].mxu0
  %2753 = vmatprep.mubr.f32.mxu0 0.0
  %2754 = vmatmul.mubr.f32.gmra.mrb[0].mxu0 %v2324
  %v2755 = vpop.f32.mrb[0].mxu0
  %v2756 = vadd.f32 0.0, %v2755
  %v2757 = vpop.f32.mrb[0].mxu0
  %2758 = vmatprep.mubr.f32.mxu0 0.0
  %2759 = vmatmul.mubr.f32.gmra.mrb[0].mxu0 %v2327
  %v2760 = vpop.f32.mrb[0].mxu0
  %v2761 = vadd.f32 0.0, %v2760
  %v2762 = vpop.f32.mrb[0].mxu0
  %2763 = vmatprep.mubr.f32.mxu0 0.0
  %2764 = vmatmul.mubr.f32.gmra.mrb[0].mxu0 %v2330
  %v2765 = vpop.f32.mrb[0].mxu0
  %v2766 = vadd.f32 0.0, %v2765
  %v2767 = vpop.f32.mrb[0].mxu0
  %2768 = vmatprep.mubr.f32.mxu0 0.0
  %2769 = vmatmul.mubr.f32.gmra.mrb[0].mxu0 %v2333
  %v2770 = vpop.f32.mrb[0].mxu0
  %v2771 = vadd.f32 0.0, %v2770
  %v2772 = vpop.f32.mrb[0].mxu0
  %2773 = vmatprep.mubr.f32.mxu0 0.0
  %2774 = vmatmul.mubr.f32.gmra.mrb[0].mxu0 %v2336
  %v2775 = vpop.f32.mrb[0].mxu0
  %v2776 = vadd.f32 0.0, %v2775
  %v2777 = vpop.f32.mrb[0].mxu0
  %2778 = vmatprep.mubr.f32.mxu0 0.0
  %2779 = vmatmul.mubr.f32.gmra.mrb[0].mxu0 %v2339
  %v2780 = vpop.f32.mrb[0].mxu0
  %v2781 = vadd.f32 0.0, %v2780
  %v2782 = vpop.f32.mrb[0].mxu0
  %2783 = vmatprep.mubr.f32.mxu0 0.0
  %2784 = vmatmul.mubr.f32.gmra.mrb[0].mxu0 %v2342
  %v2785 = vpop.f32.mrb[0].mxu0
  %v2786 = vadd.f32 0.0, %v2785
  %v2787 = vpop.f32.mrb[0].mxu0
  %2788 = vmatprep.mubr.f32.mxu0 0.0
  %2789 = vmatmul.mubr.f32.gmra.mrb[0].mxu0 %v2345
  %v2790 = vpop.f32.mrb[0].mxu0
  %v2791 = vadd.f32 0.0, %v2790
  %v2792 = vpop.f32.mrb[0].mxu0
  %2793 = vmatprep.mubr.f32.mxu0 0.0
  %2794 = vmatmul.mubr.f32.gmra.mrb[0].mxu0 %v2348
  %v2795 = vpop.f32.mrb[0].mxu0
  %v2796 = vadd.f32 0.0, %v2795
  %v2797 = vpop.f32.mrb[0].mxu0
  %2798 = vmatprep.mubr.f32.mxu0 0.0
  %2799 = vmatmul.mubr.f32.gmra.mrb[0].mxu0 %v2351
  %v2800 = vpop.f32.mrb[0].mxu0
  %v2801 = vadd.f32 0.0, %v2800
  %v2802 = vpop.f32.mrb[0].mxu0
  %2803 = vmatprep.mubr.f32.mxu0 0.0
  %2804 = vmatmul.mubr.f32.gmra.mrb[0].mxu0 %v2354
  %v2805 = vpop.f32.mrb[0].mxu0
  %v2806 = vadd.f32 0.0, %v2805
  %v2807 = vpop.f32.mrb[0].mxu0
  %2808 = vmatprep.mubr.f32.mxu0 0.0
  %2809 = vmatmul.mubr.f32.gmra.mrb[0].mxu0 %v2357
  %v2810 = vpop.f32.mrb[0].mxu0
  %v2811 = vadd.f32 0.0, %v2810
  %v2812 = vpop.f32.mrb[0].mxu0
  %2813 = vmatprep.mubr.f32.mxu0 0.0
  %2814 = vmatmul.mubr.f32.gmra.mrb[0].mxu0 %v2360
  %v2815 = vpop.f32.mrb[0].mxu0
  %v2816 = vadd.f32 0.0, %v2815
  %v2817 = vpop.f32.mrb[0].mxu0
  %2818 = vmatprep.mubr.f32.mxu0 0.0
  %2819 = vmatmul.mubr.f32.gmra.mrb[0].mxu0 %v2363
  %v2820 = vpop.f32.mrb[0].mxu0
  %v2821 = vadd.f32 0.0, %v2820
  %v2822 = vpop.f32.mrb[0].mxu0
  %2823 = vmatprep.mubr.f32.mxu0 0.0
  %2824 = vmatmul.mubr.f32.gmra.mrb[0].mxu0 %v2366
  %v2825 = vpop.f32.mrb[0].mxu0
  %v2826 = vadd.f32 0.0, %v2825
  %v2827 = vpop.f32.mrb[0].mxu0
  %2828 = vmatprep.mubr.f32.mxu0 0.0
  %2829 = vmatmul.mubr.f32.gmra.mrb[0].mxu0 %v2369
  %v2830 = vpop.f32.mrb[0].mxu0
  %v2831 = vadd.f32 0.0, %v2830
  %v2832 = vpop.f32.mrb[0].mxu0
  %2833 = vmatprep.mubr.f32.mxu0 0.0
  %2834 = vmatmul.mubr.f32.gmra.mrb[0].mxu0 %v2372
  %v2835 = vpop.f32.mrb[0].mxu0
  %v2836 = vadd.f32 0.0, %v2835
  %v2837 = vpop.f32.mrb[0].mxu0
  %2838 = vmatprep.mubr.f32.mxu0 0.0
  %2839 = vmatmul.mubr.f32.gmra.mrb[0].mxu0 %v2375
  %v2840 = vpop.f32.mrb[0].mxu0
  %v2841 = vadd.f32 0.0, %v2840
  %v2842 = vpop.f32.mrb[0].mxu0
  %2843 = vmatprep.mubr.f32.mxu0 0.0
  %2844 = vmatmul.mubr.f32.gmra.mrb[0].mxu0 %v2378
  %v2845 = vpop.f32.mrb[0].mxu0
  %v2846 = vadd.f32 0.0, %v2845
  %v2847 = vpop.f32.mrb[0].mxu0
  %2848 = vmatprep.mubr.f32.mxu0 0.0
  %2849 = vmatmul.mubr.f32.gmra.mrb[0].mxu0 %v2381
  %v2850 = vpop.f32.mrb[0].mxu0
  %v2851 = vadd.f32 0.0, %v2850
  %v2852 = vpop.f32.mrb[0].mxu0
  %2853 = vmatprep.mubr.f32.mxu0 0.0
  %2854 = vmatmul.mubr.f32.gmra.mrb[0].mxu0 %v2384
  %v2855 = vpop.f32.mrb[0].mxu0
  %v2856 = vadd.f32 0.0, %v2855
  %v2857 = vpop.f32.mrb[0].mxu0
  %2858 = vmatprep.mubr.f32.mxu0 0.0
  %2859 = vmatmul.mubr.f32.gmra.mrb[0].mxu0 %v2387
  %v2860 = vpop.f32.mrb[0].mxu0
  %v2861 = vadd.f32 0.0, %v2860
  %v2862 = vpop.f32.mrb[0].mxu0
  %2863 = vmatprep.mubr.f32.mxu0 0.0
  %2864 = vmatmul.mubr.f32.gmra.mrb[0].mxu0 %v2390
  %v2865 = vpop.f32.mrb[0].mxu0
  %v2866 = vadd.f32 0.0, %v2865
  %v2867 = vpop.f32.mrb[0].mxu0
  %2868 = vmatprep.mubr.f32.mxu0 0.0
  %2869 = vmatmul.mubr.f32.gmra.mrb[0].mxu0 %v2393
  %v2870 = vpop.f32.mrb[0].mxu0
  %v2871 = vadd.f32 0.0, %v2870
  %v2872 = vpop.f32.mrb[0].mxu0
  %2873 = vmatprep.mubr.f32.mxu0 0.0
  %2874 = vmatmul.mubr.f32.gmra.mrb[0].mxu0 %v2396
  %v2875 = vpop.f32.mrb[0].mxu0
  %v2876 = vadd.f32 0.0, %v2875
  %v2877 = vpop.f32.mrb[0].mxu0
  %2878 = vmatprep.mubr.f32.mxu0 0.0
  %2879 = vmatmul.mubr.f32.gmra.mrb[0].mxu0 %v2399
  %v2880 = vpop.f32.mrb[0].mxu0
  %v2881 = vadd.f32 0.0, %v2880
  %v2882 = vpop.f32.mrb[0].mxu0
  %2883 = vmatprep.mubr.f32.mxu0 0.0
  %2884 = vmatmul.mubr.f32.gmra.mrb[0].mxu0 %v2402
  %v2885 = vpop.f32.mrb[0].mxu0
  %v2886 = vadd.f32 0.0, %v2885
  %v2887 = vpop.f32.mrb[0].mxu0
  %2888 = vmatprep.mubr.f32.mxu0 0.0
  %2889 = vmatmul.mubr.f32.gmra.mrb[0].mxu0 %v2405
  %v2890 = vpop.f32.mrb[0].mxu0
  %v2891 = vadd.f32 0.0, %v2890
  %v2892 = vpop.f32.mrb[0].mxu0
  %2893 = vmatprep.mubr.f32.mxu0 0.0
  %2894 = vmatmul.mubr.f32.gmra.mrb[0].mxu0 %v2408
  %v2895 = vpop.f32.mrb[0].mxu0
  %v2896 = vadd.f32 0.0, %v2895
  %v2897 = vpop.f32.mrb[0].mxu0
  %2898 = vmatprep.mubr.f32.mxu0 0.0
  %2899 = vmatmul.mubr.f32.gmra.mrb[0].mxu0 %v2411
  %v2900 = vpop.f32.mrb[0].mxu0
  %v2901 = vadd.f32 0.0, %v2900
  %v2902 = vpop.f32.mrb[0].mxu0
  %2903 = vmatprep.mubr.f32.mxu0 0.0
  %2904 = vmatmul.mubr.f32.gmra.mrb[0].mxu0 %v2414
  %v2905 = vpop.f32.mrb[0].mxu0
  %v2906 = vadd.f32 0.0, %v2905
  %v2907 = vpop.f32.mrb[0].mxu0
  %2908 = vmatprep.mubr.f32.mxu0 0.0
  %2909 = vmatmul.mubr.f32.gmra.mrb[0].mxu0 %v2417
  %v2910 = vpop.f32.mrb[0].mxu0
  %v2911 = vadd.f32 0.0, %v2910
  %v2912 = vpop.f32.mrb[0].mxu0
  %2913 = vmatprep.mubr.f32.mxu0 0.0
  %2914 = vmatmul.mubr.f32.gmra.mrb[0].mxu0 %v2420
  %v2915 = vpop.f32.mrb[0].mxu0
  %v2916 = vadd.f32 0.0, %v2915
  %v2917 = vpop.f32.mrb[0].mxu0
  %2918 = vmatprep.mubr.f32.mxu0 0.0
  %2919 = vmatmul.mubr.f32.gmra.mrb[0].mxu0 %v2423
  %v2920 = vpop.f32.mrb[0].mxu0
  %v2921 = vadd.f32 0.0, %v2920
  %v2922 = vpop.f32.mrb[0].mxu0
  %2923 = vmatprep.mubr.f32.mxu0 0.0
  %2924 = vmatmul.mubr.f32.gmra.mrb[0].mxu0 %v2426
  %v2925 = vpop.f32.mrb[0].mxu0
  %v2926 = vadd.f32 0.0, %v2925
  %v2927 = vpop.f32.mrb[0].mxu0
  %2928 = vmatprep.mubr.f32.mxu0 0.0
  %2929 = vmatmul.mubr.f32.gmra.mrb[0].mxu0 %v2429
  %v2930 = vpop.f32.mrb[0].mxu0
  %v2931 = vadd.f32 0.0, %v2930
  %v2932 = vpop.f32.mrb[0].mxu0
  %2933 = vmatprep.mubr.f32.mxu0 0.0
  %2934 = vmatmul.mubr.f32.gmra.mrb[0].mxu0 %v2432
  %v2935 = vpop.f32.mrb[0].mxu0
  %v2936 = vadd.f32 0.0, %v2935
  %v2937 = vpop.f32.mrb[0].mxu0
  %2938 = vmatprep.mubr.f32.mxu0 0.0
  %2939 = vmatmul.mubr.f32.gmra.mrb[0].mxu0 %v2435
  %v2940 = vpop.f32.mrb[0].mxu0
  %v2941 = vadd.f32 0.0, %v2940
  %v2942 = vpop.f32.mrb[0].mxu0
  %2943 = vmatprep.mubr.f32.mxu0 0.0
  %2944 = vmatmul.mubr.f32.gmra.mrb[0].mxu0 %v2438
  %v2945 = vpop.f32.mrb[0].mxu0
  %v2946 = vadd.f32 0.0, %v2945
  %v2947 = vpop.f32.mrb[0].mxu0
  %2948 = vmatprep.mubr.f32.mxu0 0.0
  %2949 = vmatmul.mubr.f32.gmra.mrb[0].mxu0 %v2441
  %v2950 = vpop.f32.mrb[0].mxu0
  %v2951 = vadd.f32 0.0, %v2950
  %v2952 = vpop.f32.mrb[0].mxu0
  %2953 = vmatprep.mubr.f32.mxu0 0.0
  %2954 = vmatmul.mubr.f32.gmra.mrb[0].mxu0 %v2444
  %v2955 = vpop.f32.mrb[0].mxu0
  %v2956 = vadd.f32 0.0, %v2955
  %v2957 = vpop.f32.mrb[0].mxu0
  %2958 = vmatprep.mubr.f32.mxu0 0.0
  %2959 = vmatmul.mubr.f32.gmra.mrb[0].mxu0 %v2447
  %v2960 = vpop.f32.mrb[0].mxu0
  %v2961 = vadd.f32 0.0, %v2960
  %v2962 = vpop.f32.mrb[0].mxu0
  %2963 = vmatprep.mubr.f32.mxu0 0.0
  %2964 = vmatmul.mubr.f32.gmra.mrb[0].mxu0 %v2450
  %v2965 = vpop.f32.mrb[0].mxu0
  %v2966 = vadd.f32 0.0, %v2965
  %v2967 = vpop.f32.mrb[0].mxu0
  %2968 = vmatprep.mubr.f32.mxu0 0.0
  %2969 = vmatmul.mubr.f32.gmra.mrb[0].mxu0 %v2453
  %v2970 = vpop.f32.mrb[0].mxu0
  %v2971 = vadd.f32 0.0, %v2970
  %v2972 = vpop.f32.mrb[0].mxu0
  %2973 = vmatprep.mubr.f32.mxu0 0.0
  %2974 = vmatmul.mubr.f32.gmra.mrb[0].mxu0 %v2456
  %v2975 = vpop.f32.mrb[0].mxu0
  %v2976 = vadd.f32 0.0, %v2975
  %v2977 = vpop.f32.mrb[0].mxu0
  %2978 = vmatprep.mubr.f32.mxu0 0.0
  %2979 = vmatmul.mubr.f32.gmra.mrb[0].mxu0 %v2459
  %v2980 = vpop.f32.mrb[0].mxu0
  %v2981 = vadd.f32 0.0, %v2980
  %v2982 = vpop.f32.mrb[0].mxu0
  %2983 = vmatprep.mubr.f32.mxu0 0.0
  %2984 = vmatmul.mubr.f32.gmra.mrb[0].mxu0 %v2462
  %v2985 = vpop.f32.mrb[0].mxu0
  %v2986 = vadd.f32 0.0, %v2985
  %v2987 = vpop.f32.mrb[0].mxu0
  %2988 = vmatprep.mubr.f32.mxu0 0.0
  %2989 = vmatmul.mubr.f32.gmra.mrb[0].mxu0 %v2465
  %v2990 = vpop.f32.mrb[0].mxu0
  %v2991 = vadd.f32 0.0, %v2990
  %v2992 = vpop.f32.mrb[0].mxu0
  %2993 = vmatprep.mubr.f32.mxu0 0.0
  %2994 = vmatmul.mubr.f32.gmra.mrb[0].mxu0 %v2468
  %v2995 = vpop.f32.mrb[0].mxu0
  %v2996 = vadd.f32 0.0, %v2995
  %v2997 = vpop.f32.mrb[0].mxu0
  %2998 = vmatprep.mubr.f32.mxu0 0.0
  %2999 = vmatmul.mubr.f32.gmra.mrb[0].mxu0 %v2471
  %v3000 = vpop.f32.mrb[0].mxu0
  %v3001 = vadd.f32 0.0, %v3000
  %v3002 = vpop.f32.mrb[0].mxu0
  %3003 = vmatprep.mubr.f32.mxu0 0.0
  %3004 = vmatmul.mubr.f32.gmra.mrb[0].mxu0 %v2474
  %v3005 = vpop.f32.mrb[0].mxu0
  %v3006 = vadd.f32 0.0, %v3005
  %v3007 = vpop.f32.mrb[0].mxu0
  %3008 = vmatprep.mubr.f32.mxu0 0.0
  %3009 = vmatmul.mubr.f32.gmra.mrb[0].mxu0 %v2477
  %v3010 = vpop.f32.mrb[0].mxu0
  %v3011 = vadd.f32 0.0, %v3010
  %v3012 = vpop.f32.mrb[0].mxu0
  %3013 = vmatprep.mubr.f32.mxu0 0.0
  %3014 = vmatmul.mubr.f32.gmra.mrb[0].mxu0 %v2480
  %v3015 = vpop.f32.mrb[0].mxu0
  %v3016 = vadd.f32 0.0, %v3015
  %v3017 = vpop.f32.mrb[0].mxu0
  %3018 = vmatprep.mubr.f32.mxu0 0.0
  %3019 = vmatmul.mubr.f32.gmra.mrb[0].mxu0 %v2483
  %v3020 = vpop.f32.mrb[0].mxu0
  %v3021 = vadd.f32 0.0, %v3020
  %v3022 = vpop.f32.mrb[0].mxu0
  %3023 = vmatprep.mubr.f32.mxu0 0.0
  %3024 = vmatmul.mubr.f32.gmra.mrb[0].mxu0 %v2486
  %v3025 = vpop.f32.mrb[0].mxu0
  %v3026 = vadd.f32 0.0, %v3025
  %v3027 = vpop.f32.mrb[0].mxu0
  %3028 = vmatprep.mubr.f32.mxu0 0.0
  %3029 = vmatmul.mubr.f32.gmra.mrb[0].mxu0 %v2489
  %v3030 = vpop.f32.mrb[0].mxu0
  %v3031 = vadd.f32 0.0, %v3030
  %v3032 = vpop.f32.mrb[0].mxu0
  %3033 = vmatprep.mubr.f32.mxu0 0.0
  %3034 = vmatmul.mubr.f32.gmra.mrb[0].mxu0 %v2492
  %v3035 = vpop.f32.mrb[0].mxu0
  %v3036 = vadd.f32 0.0, %v3035
  %v3037 = vpop.f32.mrb[0].mxu0
  %3038 = vmatprep.mubr.f32.mxu0 0.0
  %3039 = vmatmul.mubr.f32.gmra.mrb[0].mxu0 %v2495
  %v3040 = vpop.f32.mrb[0].mxu0
  %v3041 = vadd.f32 0.0, %v3040
  %v3042 = vpop.f32.mrb[0].mxu0
  %3043 = vmatprep.mubr.f32.mxu0 0.0
  %3044 = vmatmul.mubr.f32.gmra.mrb[0].mxu0 %v2498
  %v3045 = vpop.f32.mrb[0].mxu0
  %v3046 = vadd.f32 0.0, %v3045
  %v3047 = vpop.f32.mrb[0].mxu0
  %3048 = vmatprep.mubr.f32.mxu0 0.0
  %3049 = vmatmul.mubr.f32.gmra.mrb[0].mxu0 %v2501
  %v3050 = vpop.f32.mrb[0].mxu0
  %v3051 = vadd.f32 0.0, %v3050
  %v3052 = vpop.f32.mrb[0].mxu0
  %3053 = vmatprep.mubr.f32.mxu0 0.0
  %3054 = vmatmul.mubr.f32.gmra.mrb[0].mxu0 %v2504
  %v3055 = vpop.f32.mrb[0].mxu0
  %v3056 = vadd.f32 0.0, %v3055
  %v3057 = vpop.f32.mrb[0].mxu0
  %3058 = vmatprep.mubr.f32.mxu0 0.0
  %3059 = vmatmul.mubr.f32.gmra.mrb[0].mxu0 %v2507
  %v3060 = vpop.f32.mrb[0].mxu0
  %v3061 = vadd.f32 0.0, %v3060
  %v3062 = vpop.f32.mrb[0].mxu0
  %3063 = vdwg.mxu0
  %v3065 = vsel %vm46, %v2014, 0
  %v3068 = vsel %vm46, %v2015, 0
  %v3071 = vsel %vm46, %v2016, 0
  %v3074 = vsel %vm46, %v2017, 0
  %v3077 = vsel %vm46, %v2018, 0
  %v3080 = vsel %vm46, %v2019, 0
  %v3083 = vsel %vm46, %v2020, 0
  %v3086 = vsel %vm46, %v2021, 0
  %v3089 = vsel %vm46, %v2022, 0
  %v3092 = vsel %vm46, %v2023, 0
  %v3095 = vsel %vm46, %v2024, 0
  %v3098 = vsel %vm46, %v2025, 0
  %v3101 = vsel %vm46, %v2026, 0
  %v3104 = vsel %vm46, %v2027, 0
  %v3107 = vsel %vm46, %v2028, 0
  %v3110 = vsel %vm46, %v2029, 0
  %v3113 = vsel %vm46, %v2030, 0
  %v3116 = vsel %vm46, %v2031, 0
  %v3119 = vsel %vm46, %v2032, 0
  %v3122 = vsel %vm46, %v2033, 0
  %v3125 = vsel %vm46, %v2034, 0
  %v3128 = vsel %vm46, %v2035, 0
  %v3131 = vsel %vm46, %v2036, 0
  %v3134 = vsel %vm46, %v2037, 0
  %v3137 = vsel %vm46, %v2038, 0
  %v3140 = vsel %vm46, %v2039, 0
  %v3143 = vsel %vm46, %v2040, 0
  %v3146 = vsel %vm46, %v2041, 0
  %v3149 = vsel %vm46, %v2042, 0
  %v3152 = vsel %vm46, %v2043, 0
  %v3155 = vsel %vm46, %v2044, 0
  %v3158 = vsel %vm46, %v2045, 0
  %v3161 = vsel %vm46, %v2046, 0
  %v3164 = vsel %vm46, %v2047, 0
  %v3167 = vsel %vm46, %v2048, 0
  %v3170 = vsel %vm46, %v2049, 0
  %v3173 = vsel %vm46, %v2050, 0
  %v3176 = vsel %vm46, %v2051, 0
  %v3179 = vsel %vm46, %v2052, 0
  %v3182 = vsel %vm46, %v2053, 0
  %v3185 = vsel %vm46, %v2054, 0
  %v3188 = vsel %vm46, %v2055, 0
  %v3191 = vsel %vm46, %v2056, 0
  %v3194 = vsel %vm46, %v2057, 0
  %v3197 = vsel %vm46, %v2058, 0
  %v3200 = vsel %vm46, %v2059, 0
  %v3203 = vsel %vm46, %v2060, 0
  %v3206 = vsel %vm46, %v2061, 0
  %v3209 = vsel %vm46, %v2062, 0
  %v3212 = vsel %vm46, %v2063, 0
  %v3215 = vsel %vm46, %v2064, 0
  %v3218 = vsel %vm46, %v2065, 0
  %v3221 = vsel %vm46, %v2066, 0
  %v3224 = vsel %vm46, %v2067, 0
  %v3227 = vsel %vm46, %v2068, 0
  %v3230 = vsel %vm46, %v2069, 0
  %v3233 = vsel %vm46, %v2070, 0
  %v3236 = vsel %vm46, %v2071, 0
  %v3239 = vsel %vm46, %v2072, 0
  %v3242 = vsel %vm46, %v2073, 0
  %v3245 = vsel %vm46, %v2074, 0
  %v3248 = vsel %vm46, %v2075, 0
  %v3251 = vsel %vm46, %v2076, 0
  %v3254 = vsel %vm46, %v2077, 0
  %v3257 = vsel %vm46, %v2078, 0
  %v3260 = vsel %vm46, %v2079, 0
  %v3263 = vsel %vm46, %v2080, 0
  %v3266 = vsel %vm46, %v2081, 0
  %v3269 = vsel %vm46, %v2082, 0
  %v3272 = vsel %vm46, %v2083, 0
  %v3275 = vsel %vm46, %v2084, 0
  %v3278 = vsel %vm46, %v2085, 0
  %v3281 = vsel %vm46, %v2086, 0
  %v3284 = vsel %vm46, %v2087, 0
  %v3287 = vsel %vm46, %v2088, 0
  %v3290 = vsel %vm46, %v2089, 0
  %v3293 = vsel %vm46, %v2090, 0
  %v3296 = vsel %vm46, %v2091, 0
  %v3299 = vsel %vm46, %v2092, 0
  %v3302 = vsel %vm46, %v2093, 0
  %v3305 = vsel %vm46, %v2094, 0
  %v3308 = vsel %vm46, %v2095, 0
  %v3311 = vsel %vm46, %v2096, 0
  %v3314 = vsel %vm46, %v2097, 0
  %v3317 = vsel %vm46, %v2098, 0
  %v3320 = vsel %vm46, %v2099, 0
  %v3323 = vsel %vm46, %v2100, 0
  %v3326 = vsel %vm46, %v2101, 0
  %v3329 = vsel %vm46, %v2102, 0
  %v3332 = vsel %vm46, %v2103, 0
  %v3335 = vsel %vm46, %v2104, 0
  %v3338 = vsel %vm46, %v2105, 0
  %v3341 = vsel %vm46, %v2106, 0
  %v3344 = vsel %vm46, %v2107, 0
  %v3347 = vsel %vm46, %v2108, 0
  %v3350 = vsel %vm46, %v2109, 0
  %v3353 = vsel %vm46, %v2110, 0
  %v3356 = vsel %vm46, %v2111, 0
  %3358 = vmatprep.subr.mxu0 0.0
  %3359 = vmatpush1.msra.mxu0 %v2112
  %3360 = vmatprep.subr.mxu0 0.0
  %3361 = vmatpush1.msra.mxu0 %v2113
  %3362 = vmatprep.subr.mxu0 0.0
  %3363 = vmatpush1.msra.mxu0 0.0
  %3364 = vmatprep.subr.mxu0 0.0
  %3365 = vmatpush1.msra.mxu0 0.0
  %3366 = vmatprep.subr.mxu0 0.0
  %3367 = vmatpush1.msra.mxu0 0.0
  %3368 = vmatprep.subr.mxu0 0.0
  %3369 = vmatpush1.msra.mxu0 0.0
  %3370 = vmatprep.subr.mxu0 0.0
  %3371 = vmatpush1.msra.mxu0 0.0
  %3372 = vmatprep.subr.mxu0 0.0
  %3373 = vmatpush1.msra.mxu0 0.0
  %3374 = vmatprep.subr.mxu0 0.0
  %3375 = vmatpush1.msra.mxu0 0.0
  %3376 = vmatprep.subr.mxu0 0.0
  %3377 = vmatpush1.msra.mxu0 0.0
  %3378 = vmatprep.subr.mxu0 0.0
  %3379 = vmatpush1.msra.mxu0 0.0
  %3380 = vmatprep.subr.mxu0 0.0
  %3381 = vmatpush1.msra.mxu0 0.0
  %3382 = vmatprep.subr.mxu0 0.0
  %3383 = vmatpush1.msra.mxu0 0.0
  %3384 = vmatprep.subr.mxu0 0.0
  %3385 = vmatpush1.msra.mxu0 0.0
  %3386 = vmatprep.subr.mxu0 0.0
  %3387 = vmatpush1.msra.mxu0 0.0
  %3388 = vmatprep.subr.mxu0 0.0
  %3389 = vmatpush1.msra.mxu0 0.0
  %3390 = vmatprep.subr.mxu0 0.0
  %3391 = vmatpush1.msra.mxu0 0.0
  %3392 = vmatprep.subr.mxu0 0.0
  %3393 = vmatpush1.msra.mxu0 0.0
  %3394 = vmatprep.subr.mxu0 0.0
  %3395 = vmatpush1.msra.mxu0 0.0
  %3396 = vmatprep.subr.mxu0 0.0
  %3397 = vmatpush1.msra.mxu0 0.0
  %3398 = vmatprep.subr.mxu0 0.0
  %3399 = vmatpush1.msra.mxu0 0.0
  %3400 = vmatprep.subr.mxu0 0.0
  %3401 = vmatpush1.msra.mxu0 0.0
  %3402 = vmatprep.subr.mxu0 0.0
  %3403 = vmatpush1.msra.mxu0 0.0
  %3404 = vmatprep.subr.mxu0 0.0
  %3405 = vmatpush1.msra.mxu0 0.0
  %3406 = vmatprep.subr.mxu0 0.0
  %3407 = vmatpush1.msra.mxu0 0.0
  %3408 = vmatprep.subr.mxu0 0.0
  %3409 = vmatpush1.msra.mxu0 0.0
  %3410 = vmatprep.subr.mxu0 0.0
  %3411 = vmatpush1.msra.mxu0 0.0
  %3412 = vmatprep.subr.mxu0 0.0
  %3413 = vmatpush1.msra.mxu0 0.0
  %3414 = vmatprep.subr.mxu0 0.0
  %3415 = vmatpush1.msra.mxu0 0.0
  %3416 = vmatprep.subr.mxu0 0.0
  %3417 = vmatpush1.msra.mxu0 0.0
  %3418 = vmatprep.subr.mxu0 0.0
  %3419 = vmatpush1.msra.mxu0 0.0
  %3420 = vmatprep.subr.mxu0 0.0
  %3421 = vmatpush1.msra.mxu0 0.0
  %3422 = vmatprep.mubr.f32.mxu0 0.0
  %3423 = vmatmul.mubr.f32.gmra.mrb[0].mxu0 %v3065
  %v3424 = vpop.f32.mrb[0].mxu0
  %v3425 = vadd.f32 %v2576, %v3424
  %v3426 = vpop.f32.mrb[0].mxu0
  %3427 = vmatprep.mubr.f32.mxu0 0.0
  %3428 = vmatmul.mubr.f32.gmra.mrb[0].mxu0 %v3068
  %v3429 = vpop.f32.mrb[0].mxu0
  %v3430 = vadd.f32 %v2581, %v3429
  %v3431 = vpop.f32.mrb[0].mxu0
  %3432 = vmatprep.mubr.f32.mxu0 0.0
  %3433 = vmatmul.mubr.f32.gmra.mrb[0].mxu0 %v3071
  %v3434 = vpop.f32.mrb[0].mxu0
  %v3435 = vadd.f32 %v2586, %v3434
  %v3436 = vpop.f32.mrb[0].mxu0
  %3437 = vmatprep.mubr.f32.mxu0 0.0
  %3438 = vmatmul.mubr.f32.gmra.mrb[0].mxu0 %v3074
  %v3439 = vpop.f32.mrb[0].mxu0
  %v3440 = vadd.f32 %v2591, %v3439
  %v3441 = vpop.f32.mrb[0].mxu0
  %3442 = vmatprep.mubr.f32.mxu0 0.0
  %3443 = vmatmul.mubr.f32.gmra.mrb[0].mxu0 %v3077
  %v3444 = vpop.f32.mrb[0].mxu0
  %v3445 = vadd.f32 %v2596, %v3444
  %v3446 = vpop.f32.mrb[0].mxu0
  %3447 = vmatprep.mubr.f32.mxu0 0.0
  %3448 = vmatmul.mubr.f32.gmra.mrb[0].mxu0 %v3080
  %v3449 = vpop.f32.mrb[0].mxu0
  %v3450 = vadd.f32 %v2601, %v3449
  %v3451 = vpop.f32.mrb[0].mxu0
  %3452 = vmatprep.mubr.f32.mxu0 0.0
  %3453 = vmatmul.mubr.f32.gmra.mrb[0].mxu0 %v3083
  %v3454 = vpop.f32.mrb[0].mxu0
  %v3455 = vadd.f32 %v2606, %v3454
  %v3456 = vpop.f32.mrb[0].mxu0
  %3457 = vmatprep.mubr.f32.mxu0 0.0
  %3458 = vmatmul.mubr.f32.gmra.mrb[0].mxu0 %v3086
  %v3459 = vpop.f32.mrb[0].mxu0
  %v3460 = vadd.f32 %v2611, %v3459
  %v3461 = vpop.f32.mrb[0].mxu0
  %3462 = vmatprep.mubr.f32.mxu0 0.0
  %3463 = vmatmul.mubr.f32.gmra.mrb[0].mxu0 %v3089
  %v3464 = vpop.f32.mrb[0].mxu0
  %v3465 = vadd.f32 %v2616, %v3464
  %v3466 = vpop.f32.mrb[0].mxu0
  %3467 = vmatprep.mubr.f32.mxu0 0.0
  %3468 = vmatmul.mubr.f32.gmra.mrb[0].mxu0 %v3092
  %v3469 = vpop.f32.mrb[0].mxu0
  %v3470 = vadd.f32 %v2621, %v3469
  %v3471 = vpop.f32.mrb[0].mxu0
  %3472 = vmatprep.mubr.f32.mxu0 0.0
  %3473 = vmatmul.mubr.f32.gmra.mrb[0].mxu0 %v3095
  %v3474 = vpop.f32.mrb[0].mxu0
  %v3475 = vadd.f32 %v2626, %v3474
  %v3476 = vpop.f32.mrb[0].mxu0
  %3477 = vmatprep.mubr.f32.mxu0 0.0
  %3478 = vmatmul.mubr.f32.gmra.mrb[0].mxu0 %v3098
  %v3479 = vpop.f32.mrb[0].mxu0
  %v3480 = vadd.f32 %v2631, %v3479
  %v3481 = vpop.f32.mrb[0].mxu0
  %3482 = vmatprep.mubr.f32.mxu0 0.0
  %3483 = vmatmul.mubr.f32.gmra.mrb[0].mxu0 %v3101
  %v3484 = vpop.f32.mrb[0].mxu0
  %v3485 = vadd.f32 %v2636, %v3484
  %v3486 = vpop.f32.mrb[0].mxu0
  %3487 = vmatprep.mubr.f32.mxu0 0.0
  %3488 = vmatmul.mubr.f32.gmra.mrb[0].mxu0 %v3104
  %v3489 = vpop.f32.mrb[0].mxu0
  %v3490 = vadd.f32 %v2641, %v3489
  %v3491 = vpop.f32.mrb[0].mxu0
  %3492 = vmatprep.mubr.f32.mxu0 0.0
  %3493 = vmatmul.mubr.f32.gmra.mrb[0].mxu0 %v3107
  %v3494 = vpop.f32.mrb[0].mxu0
  %v3495 = vadd.f32 %v2646, %v3494
  %v3496 = vpop.f32.mrb[0].mxu0
  %3497 = vmatprep.mubr.f32.mxu0 0.0
  %3498 = vmatmul.mubr.f32.gmra.mrb[0].mxu0 %v3110
  %v3499 = vpop.f32.mrb[0].mxu0
  %v3500 = vadd.f32 %v2651, %v3499
  %v3501 = vpop.f32.mrb[0].mxu0
  %3502 = vmatprep.mubr.f32.mxu0 0.0
  %3503 = vmatmul.mubr.f32.gmra.mrb[0].mxu0 %v3113
  %v3504 = vpop.f32.mrb[0].mxu0
  %v3505 = vadd.f32 %v2656, %v3504
  %v3506 = vpop.f32.mrb[0].mxu0
  %3507 = vmatprep.mubr.f32.mxu0 0.0
  %3508 = vmatmul.mubr.f32.gmra.mrb[0].mxu0 %v3116
  %v3509 = vpop.f32.mrb[0].mxu0
  %v3510 = vadd.f32 %v2661, %v3509
  %v3511 = vpop.f32.mrb[0].mxu0
  %3512 = vmatprep.mubr.f32.mxu0 0.0
  %3513 = vmatmul.mubr.f32.gmra.mrb[0].mxu0 %v3119
  %v3514 = vpop.f32.mrb[0].mxu0
  %v3515 = vadd.f32 %v2666, %v3514
  %v3516 = vpop.f32.mrb[0].mxu0
  %3517 = vmatprep.mubr.f32.mxu0 0.0
  %3518 = vmatmul.mubr.f32.gmra.mrb[0].mxu0 %v3122
  %v3519 = vpop.f32.mrb[0].mxu0
  %v3520 = vadd.f32 %v2671, %v3519
  %v3521 = vpop.f32.mrb[0].mxu0
  %3522 = vmatprep.mubr.f32.mxu0 0.0
  %3523 = vmatmul.mubr.f32.gmra.mrb[0].mxu0 %v3125
  %v3524 = vpop.f32.mrb[0].mxu0
  %v3525 = vadd.f32 %v2676, %v3524
  %v3526 = vpop.f32.mrb[0].mxu0
  %3527 = vmatprep.mubr.f32.mxu0 0.0
  %3528 = vmatmul.mubr.f32.gmra.mrb[0].mxu0 %v3128
  %v3529 = vpop.f32.mrb[0].mxu0
  %v3530 = vadd.f32 %v2681, %v3529
  %v3531 = vpop.f32.mrb[0].mxu0
  %3532 = vmatprep.mubr.f32.mxu0 0.0
  %3533 = vmatmul.mubr.f32.gmra.mrb[0].mxu0 %v3131
  %v3534 = vpop.f32.mrb[0].mxu0
  %v3535 = vadd.f32 %v2686, %v3534
  %v3536 = vpop.f32.mrb[0].mxu0
  %3537 = vmatprep.mubr.f32.mxu0 0.0
  %3538 = vmatmul.mubr.f32.gmra.mrb[0].mxu0 %v3134
  %v3539 = vpop.f32.mrb[0].mxu0
  %v3540 = vadd.f32 %v2691, %v3539
  %v3541 = vpop.f32.mrb[0].mxu0
  %3542 = vmatprep.mubr.f32.mxu0 0.0
  %3543 = vmatmul.mubr.f32.gmra.mrb[0].mxu0 %v3137
  %v3544 = vpop.f32.mrb[0].mxu0
  %v3545 = vadd.f32 %v2696, %v3544
  %v3546 = vpop.f32.mrb[0].mxu0
  %3547 = vmatprep.mubr.f32.mxu0 0.0
  %3548 = vmatmul.mubr.f32.gmra.mrb[0].mxu0 %v3140
  %v3549 = vpop.f32.mrb[0].mxu0
  %v3550 = vadd.f32 %v2701, %v3549
  %v3551 = vpop.f32.mrb[0].mxu0
  %3552 = vmatprep.mubr.f32.mxu0 0.0
  %3553 = vmatmul.mubr.f32.gmra.mrb[0].mxu0 %v3143
  %v3554 = vpop.f32.mrb[0].mxu0
  %v3555 = vadd.f32 %v2706, %v3554
  %v3556 = vpop.f32.mrb[0].mxu0
  %3557 = vmatprep.mubr.f32.mxu0 0.0
  %3558 = vmatmul.mubr.f32.gmra.mrb[0].mxu0 %v3146
  %v3559 = vpop.f32.mrb[0].mxu0
  %v3560 = vadd.f32 %v2711, %v3559
  %v3561 = vpop.f32.mrb[0].mxu0
  %3562 = vmatprep.mubr.f32.mxu0 0.0
  %3563 = vmatmul.mubr.f32.gmra.mrb[0].mxu0 %v3149
  %v3564 = vpop.f32.mrb[0].mxu0
  %v3565 = vadd.f32 %v2716, %v3564
  %v3566 = vpop.f32.mrb[0].mxu0
  %3567 = vmatprep.mubr.f32.mxu0 0.0
  %3568 = vmatmul.mubr.f32.gmra.mrb[0].mxu0 %v3152
  %v3569 = vpop.f32.mrb[0].mxu0
  %v3570 = vadd.f32 %v2721, %v3569
  %v3571 = vpop.f32.mrb[0].mxu0
  %3572 = vmatprep.mubr.f32.mxu0 0.0
  %3573 = vmatmul.mubr.f32.gmra.mrb[0].mxu0 %v3155
  %v3574 = vpop.f32.mrb[0].mxu0
  %v3575 = vadd.f32 %v2726, %v3574
  %v3576 = vpop.f32.mrb[0].mxu0
  %3577 = vmatprep.mubr.f32.mxu0 0.0
  %3578 = vmatmul.mubr.f32.gmra.mrb[0].mxu0 %v3158
  %v3579 = vpop.f32.mrb[0].mxu0
  %v3580 = vadd.f32 %v2731, %v3579
  %v3581 = vpop.f32.mrb[0].mxu0
  %3582 = vmatprep.mubr.f32.mxu0 0.0
  %3583 = vmatmul.mubr.f32.gmra.mrb[0].mxu0 %v3161
  %v3584 = vpop.f32.mrb[0].mxu0
  %v3585 = vadd.f32 %v2736, %v3584
  %v3586 = vpop.f32.mrb[0].mxu0
  %3587 = vmatprep.mubr.f32.mxu0 0.0
  %3588 = vmatmul.mubr.f32.gmra.mrb[0].mxu0 %v3164
  %v3589 = vpop.f32.mrb[0].mxu0
  %v3590 = vadd.f32 %v2741, %v3589
  %v3591 = vpop.f32.mrb[0].mxu0
  %3592 = vmatprep.mubr.f32.mxu0 0.0
  %3593 = vmatmul.mubr.f32.gmra.mrb[0].mxu0 %v3167
  %v3594 = vpop.f32.mrb[0].mxu0
  %v3595 = vadd.f32 %v2746, %v3594
  %v3596 = vpop.f32.mrb[0].mxu0
  %3597 = vmatprep.mubr.f32.mxu0 0.0
  %3598 = vmatmul.mubr.f32.gmra.mrb[0].mxu0 %v3170
  %v3599 = vpop.f32.mrb[0].mxu0
  %v3600 = vadd.f32 %v2751, %v3599
  %v3601 = vpop.f32.mrb[0].mxu0
  %3602 = vmatprep.mubr.f32.mxu0 0.0
  %3603 = vmatmul.mubr.f32.gmra.mrb[0].mxu0 %v3173
  %v3604 = vpop.f32.mrb[0].mxu0
  %v3605 = vadd.f32 %v2756, %v3604
  %v3606 = vpop.f32.mrb[0].mxu0
  %3607 = vmatprep.mubr.f32.mxu0 0.0
  %3608 = vmatmul.mubr.f32.gmra.mrb[0].mxu0 %v3176
  %v3609 = vpop.f32.mrb[0].mxu0
  %v3610 = vadd.f32 %v2761, %v3609
  %v3611 = vpop.f32.mrb[0].mxu0
  %3612 = vmatprep.mubr.f32.mxu0 0.0
  %3613 = vmatmul.mubr.f32.gmra.mrb[0].mxu0 %v3179
  %v3614 = vpop.f32.mrb[0].mxu0
  %v3615 = vadd.f32 %v2766, %v3614
  %v3616 = vpop.f32.mrb[0].mxu0
  %3617 = vmatprep.mubr.f32.mxu0 0.0
  %3618 = vmatmul.mubr.f32.gmra.mrb[0].mxu0 %v3182
  %v3619 = vpop.f32.mrb[0].mxu0
  %v3620 = vadd.f32 %v2771, %v3619
  %v3621 = vpop.f32.mrb[0].mxu0
  %3622 = vmatprep.mubr.f32.mxu0 0.0
  %3623 = vmatmul.mubr.f32.gmra.mrb[0].mxu0 %v3185
  %v3624 = vpop.f32.mrb[0].mxu0
  %v3625 = vadd.f32 %v2776, %v3624
  %v3626 = vpop.f32.mrb[0].mxu0
  %3627 = vmatprep.mubr.f32.mxu0 0.0
  %3628 = vmatmul.mubr.f32.gmra.mrb[0].mxu0 %v3188
  %v3629 = vpop.f32.mrb[0].mxu0
  %v3630 = vadd.f32 %v2781, %v3629
  %v3631 = vpop.f32.mrb[0].mxu0
  %3632 = vmatprep.mubr.f32.mxu0 0.0
  %3633 = vmatmul.mubr.f32.gmra.mrb[0].mxu0 %v3191
  %v3634 = vpop.f32.mrb[0].mxu0
  %v3635 = vadd.f32 %v2786, %v3634
  %v3636 = vpop.f32.mrb[0].mxu0
  %3637 = vmatprep.mubr.f32.mxu0 0.0
  %3638 = vmatmul.mubr.f32.gmra.mrb[0].mxu0 %v3194
  %v3639 = vpop.f32.mrb[0].mxu0
  %v3640 = vadd.f32 %v2791, %v3639
  %v3641 = vpop.f32.mrb[0].mxu0
  %3642 = vmatprep.mubr.f32.mxu0 0.0
  %3643 = vmatmul.mubr.f32.gmra.mrb[0].mxu0 %v3197
  %v3644 = vpop.f32.mrb[0].mxu0
  %v3645 = vadd.f32 %v2796, %v3644
  %v3646 = vpop.f32.mrb[0].mxu0
  %3647 = vmatprep.mubr.f32.mxu0 0.0
  %3648 = vmatmul.mubr.f32.gmra.mrb[0].mxu0 %v3200
  %v3649 = vpop.f32.mrb[0].mxu0
  %v3650 = vadd.f32 %v2801, %v3649
  %v3651 = vpop.f32.mrb[0].mxu0
  %3652 = vmatprep.mubr.f32.mxu0 0.0
  %3653 = vmatmul.mubr.f32.gmra.mrb[0].mxu0 %v3203
  %v3654 = vpop.f32.mrb[0].mxu0
  %v3655 = vadd.f32 %v2806, %v3654
  %v3656 = vpop.f32.mrb[0].mxu0
  %3657 = vmatprep.mubr.f32.mxu0 0.0
  %3658 = vmatmul.mubr.f32.gmra.mrb[0].mxu0 %v3206
  %v3659 = vpop.f32.mrb[0].mxu0
  %v3660 = vadd.f32 %v2811, %v3659
  %v3661 = vpop.f32.mrb[0].mxu0
  %3662 = vmatprep.mubr.f32.mxu0 0.0
  %3663 = vmatmul.mubr.f32.gmra.mrb[0].mxu0 %v3209
  %v3664 = vpop.f32.mrb[0].mxu0
  %v3665 = vadd.f32 %v2816, %v3664
  %v3666 = vpop.f32.mrb[0].mxu0
  %3667 = vmatprep.mubr.f32.mxu0 0.0
  %3668 = vmatmul.mubr.f32.gmra.mrb[0].mxu0 %v3212
  %v3669 = vpop.f32.mrb[0].mxu0
  %v3670 = vadd.f32 %v2821, %v3669
  %v3671 = vpop.f32.mrb[0].mxu0
  %3672 = vmatprep.mubr.f32.mxu0 0.0
  %3673 = vmatmul.mubr.f32.gmra.mrb[0].mxu0 %v3215
  %v3674 = vpop.f32.mrb[0].mxu0
  %v3675 = vadd.f32 %v2826, %v3674
  %v3676 = vpop.f32.mrb[0].mxu0
  %3677 = vmatprep.mubr.f32.mxu0 0.0
  %3678 = vmatmul.mubr.f32.gmra.mrb[0].mxu0 %v3218
  %v3679 = vpop.f32.mrb[0].mxu0
  %v3680 = vadd.f32 %v2831, %v3679
  %v3681 = vpop.f32.mrb[0].mxu0
  %3682 = vmatprep.mubr.f32.mxu0 0.0
  %3683 = vmatmul.mubr.f32.gmra.mrb[0].mxu0 %v3221
  %v3684 = vpop.f32.mrb[0].mxu0
  %v3685 = vadd.f32 %v2836, %v3684
  %v3686 = vpop.f32.mrb[0].mxu0
  %3687 = vmatprep.mubr.f32.mxu0 0.0
  %3688 = vmatmul.mubr.f32.gmra.mrb[0].mxu0 %v3224
  %v3689 = vpop.f32.mrb[0].mxu0
  %v3690 = vadd.f32 %v2841, %v3689
  %v3691 = vpop.f32.mrb[0].mxu0
  %3692 = vmatprep.mubr.f32.mxu0 0.0
  %3693 = vmatmul.mubr.f32.gmra.mrb[0].mxu0 %v3227
  %v3694 = vpop.f32.mrb[0].mxu0
  %v3695 = vadd.f32 %v2846, %v3694
  %v3696 = vpop.f32.mrb[0].mxu0
  %3697 = vmatprep.mubr.f32.mxu0 0.0
  %3698 = vmatmul.mubr.f32.gmra.mrb[0].mxu0 %v3230
  %v3699 = vpop.f32.mrb[0].mxu0
  %v3700 = vadd.f32 %v2851, %v3699
  %v3701 = vpop.f32.mrb[0].mxu0
  %3702 = vmatprep.mubr.f32.mxu0 0.0
  %3703 = vmatmul.mubr.f32.gmra.mrb[0].mxu0 %v3233
  %v3704 = vpop.f32.mrb[0].mxu0
  %v3705 = vadd.f32 %v2856, %v3704
  %v3706 = vpop.f32.mrb[0].mxu0
  %3707 = vmatprep.mubr.f32.mxu0 0.0
  %3708 = vmatmul.mubr.f32.gmra.mrb[0].mxu0 %v3236
  %v3709 = vpop.f32.mrb[0].mxu0
  %v3710 = vadd.f32 %v2861, %v3709
  %v3711 = vpop.f32.mrb[0].mxu0
  %3712 = vmatprep.mubr.f32.mxu0 0.0
  %3713 = vmatmul.mubr.f32.gmra.mrb[0].mxu0 %v3239
  %v3714 = vpop.f32.mrb[0].mxu0
  %v3715 = vadd.f32 %v2866, %v3714
  %v3716 = vpop.f32.mrb[0].mxu0
  %3717 = vmatprep.mubr.f32.mxu0 0.0
  %3718 = vmatmul.mubr.f32.gmra.mrb[0].mxu0 %v3242
  %v3719 = vpop.f32.mrb[0].mxu0
  %v3720 = vadd.f32 %v2871, %v3719
  %v3721 = vpop.f32.mrb[0].mxu0
  %3722 = vmatprep.mubr.f32.mxu0 0.0
  %3723 = vmatmul.mubr.f32.gmra.mrb[0].mxu0 %v3245
  %v3724 = vpop.f32.mrb[0].mxu0
  %v3725 = vadd.f32 %v2876, %v3724
  %v3726 = vpop.f32.mrb[0].mxu0
  %3727 = vmatprep.mubr.f32.mxu0 0.0
  %3728 = vmatmul.mubr.f32.gmra.mrb[0].mxu0 %v3248
  %v3729 = vpop.f32.mrb[0].mxu0
  %v3730 = vadd.f32 %v2881, %v3729
  %v3731 = vpop.f32.mrb[0].mxu0
  %3732 = vmatprep.mubr.f32.mxu0 0.0
  %3733 = vmatmul.mubr.f32.gmra.mrb[0].mxu0 %v3251
  %v3734 = vpop.f32.mrb[0].mxu0
  %v3735 = vadd.f32 %v2886, %v3734
  %v3736 = vpop.f32.mrb[0].mxu0
  %3737 = vmatprep.mubr.f32.mxu0 0.0
  %3738 = vmatmul.mubr.f32.gmra.mrb[0].mxu0 %v3254
  %v3739 = vpop.f32.mrb[0].mxu0
  %v3740 = vadd.f32 %v2891, %v3739
  %v3741 = vpop.f32.mrb[0].mxu0
  %3742 = vmatprep.mubr.f32.mxu0 0.0
  %3743 = vmatmul.mubr.f32.gmra.mrb[0].mxu0 %v3257
  %v3744 = vpop.f32.mrb[0].mxu0
  %v3745 = vadd.f32 %v2896, %v3744
  %v3746 = vpop.f32.mrb[0].mxu0
  %3747 = vmatprep.mubr.f32.mxu0 0.0
  %3748 = vmatmul.mubr.f32.gmra.mrb[0].mxu0 %v3260
  %v3749 = vpop.f32.mrb[0].mxu0
  %v3750 = vadd.f32 %v2901, %v3749
  %v3751 = vpop.f32.mrb[0].mxu0
  %3752 = vmatprep.mubr.f32.mxu0 0.0
  %3753 = vmatmul.mubr.f32.gmra.mrb[0].mxu0 %v3263
  %v3754 = vpop.f32.mrb[0].mxu0
  %v3755 = vadd.f32 %v2906, %v3754
  %v3756 = vpop.f32.mrb[0].mxu0
  %3757 = vmatprep.mubr.f32.mxu0 0.0
  %3758 = vmatmul.mubr.f32.gmra.mrb[0].mxu0 %v3266
  %v3759 = vpop.f32.mrb[0].mxu0
  %v3760 = vadd.f32 %v2911, %v3759
  %v3761 = vpop.f32.mrb[0].mxu0
  %3762 = vmatprep.mubr.f32.mxu0 0.0
  %3763 = vmatmul.mubr.f32.gmra.mrb[0].mxu0 %v3269
  %v3764 = vpop.f32.mrb[0].mxu0
  %v3765 = vadd.f32 %v2916, %v3764
  %v3766 = vpop.f32.mrb[0].mxu0
  %3767 = vmatprep.mubr.f32.mxu0 0.0
  %3768 = vmatmul.mubr.f32.gmra.mrb[0].mxu0 %v3272
  %v3769 = vpop.f32.mrb[0].mxu0
  %v3770 = vadd.f32 %v2921, %v3769
  %v3771 = vpop.f32.mrb[0].mxu0
  %3772 = vmatprep.mubr.f32.mxu0 0.0
  %3773 = vmatmul.mubr.f32.gmra.mrb[0].mxu0 %v3275
  %v3774 = vpop.f32.mrb[0].mxu0
  %v3775 = vadd.f32 %v2926, %v3774
  %v3776 = vpop.f32.mrb[0].mxu0
  %3777 = vmatprep.mubr.f32.mxu0 0.0
  %3778 = vmatmul.mubr.f32.gmra.mrb[0].mxu0 %v3278
  %v3779 = vpop.f32.mrb[0].mxu0
  %v3780 = vadd.f32 %v2931, %v3779
  %v3781 = vpop.f32.mrb[0].mxu0
  %3782 = vmatprep.mubr.f32.mxu0 0.0
  %3783 = vmatmul.mubr.f32.gmra.mrb[0].mxu0 %v3281
  %v3784 = vpop.f32.mrb[0].mxu0
  %v3785 = vadd.f32 %v2936, %v3784
  %v3786 = vpop.f32.mrb[0].mxu0
  %3787 = vmatprep.mubr.f32.mxu0 0.0
  %3788 = vmatmul.mubr.f32.gmra.mrb[0].mxu0 %v3284
  %v3789 = vpop.f32.mrb[0].mxu0
  %v3790 = vadd.f32 %v2941, %v3789
  %v3791 = vpop.f32.mrb[0].mxu0
  %3792 = vmatprep.mubr.f32.mxu0 0.0
  %3793 = vmatmul.mubr.f32.gmra.mrb[0].mxu0 %v3287
  %v3794 = vpop.f32.mrb[0].mxu0
  %v3795 = vadd.f32 %v2946, %v3794
  %v3796 = vpop.f32.mrb[0].mxu0
  %3797 = vmatprep.mubr.f32.mxu0 0.0
  %3798 = vmatmul.mubr.f32.gmra.mrb[0].mxu0 %v3290
  %v3799 = vpop.f32.mrb[0].mxu0
  %v3800 = vadd.f32 %v2951, %v3799
  %v3801 = vpop.f32.mrb[0].mxu0
  %3802 = vmatprep.mubr.f32.mxu0 0.0
  %3803 = vmatmul.mubr.f32.gmra.mrb[0].mxu0 %v3293
  %v3804 = vpop.f32.mrb[0].mxu0
  %v3805 = vadd.f32 %v2956, %v3804
  %v3806 = vpop.f32.mrb[0].mxu0
  %3807 = vmatprep.mubr.f32.mxu0 0.0
  %3808 = vmatmul.mubr.f32.gmra.mrb[0].mxu0 %v3296
  %v3809 = vpop.f32.mrb[0].mxu0
  %v3810 = vadd.f32 %v2961, %v3809
  %v3811 = vpop.f32.mrb[0].mxu0
  %3812 = vmatprep.mubr.f32.mxu0 0.0
  %3813 = vmatmul.mubr.f32.gmra.mrb[0].mxu0 %v3299
  %v3814 = vpop.f32.mrb[0].mxu0
  %v3815 = vadd.f32 %v2966, %v3814
  %v3816 = vpop.f32.mrb[0].mxu0
  %3817 = vmatprep.mubr.f32.mxu0 0.0
  %3818 = vmatmul.mubr.f32.gmra.mrb[0].mxu0 %v3302
  %v3819 = vpop.f32.mrb[0].mxu0
  %v3820 = vadd.f32 %v2971, %v3819
  %v3821 = vpop.f32.mrb[0].mxu0
  %3822 = vmatprep.mubr.f32.mxu0 0.0
  %3823 = vmatmul.mubr.f32.gmra.mrb[0].mxu0 %v3305
  %v3824 = vpop.f32.mrb[0].mxu0
  %v3825 = vadd.f32 %v2976, %v3824
  %v3826 = vpop.f32.mrb[0].mxu0
  %3827 = vmatprep.mubr.f32.mxu0 0.0
  %3828 = vmatmul.mubr.f32.gmra.mrb[0].mxu0 %v3308
  %v3829 = vpop.f32.mrb[0].mxu0
  %v3830 = vadd.f32 %v2981, %v3829
  %v3831 = vpop.f32.mrb[0].mxu0
  %3832 = vmatprep.mubr.f32.mxu0 0.0
  %3833 = vmatmul.mubr.f32.gmra.mrb[0].mxu0 %v3311
  %v3834 = vpop.f32.mrb[0].mxu0
  %v3835 = vadd.f32 %v2986, %v3834
  %v3836 = vpop.f32.mrb[0].mxu0
  %3837 = vmatprep.mubr.f32.mxu0 0.0
  %3838 = vmatmul.mubr.f32.gmra.mrb[0].mxu0 %v3314
  %v3839 = vpop.f32.mrb[0].mxu0
  %v3840 = vadd.f32 %v2991, %v3839
  %v3841 = vpop.f32.mrb[0].mxu0
  %3842 = vmatprep.mubr.f32.mxu0 0.0
  %3843 = vmatmul.mubr.f32.gmra.mrb[0].mxu0 %v3317
  %v3844 = vpop.f32.mrb[0].mxu0
  %v3845 = vadd.f32 %v2996, %v3844
  %v3846 = vpop.f32.mrb[0].mxu0
  %3847 = vmatprep.mubr.f32.mxu0 0.0
  %3848 = vmatmul.mubr.f32.gmra.mrb[0].mxu0 %v3320
  %v3849 = vpop.f32.mrb[0].mxu0
  %v3850 = vadd.f32 %v3001, %v3849
  %v3851 = vpop.f32.mrb[0].mxu0
  %3852 = vmatprep.mubr.f32.mxu0 0.0
  %3853 = vmatmul.mubr.f32.gmra.mrb[0].mxu0 %v3323
  %v3854 = vpop.f32.mrb[0].mxu0
  %v3855 = vadd.f32 %v3006, %v3854
  %v3856 = vpop.f32.mrb[0].mxu0
  %3857 = vmatprep.mubr.f32.mxu0 0.0
  %3858 = vmatmul.mubr.f32.gmra.mrb[0].mxu0 %v3326
  %v3859 = vpop.f32.mrb[0].mxu0
  %v3860 = vadd.f32 %v3011, %v3859
  %v3861 = vpop.f32.mrb[0].mxu0
  %3862 = vmatprep.mubr.f32.mxu0 0.0
  %3863 = vmatmul.mubr.f32.gmra.mrb[0].mxu0 %v3329
  %v3864 = vpop.f32.mrb[0].mxu0
  %v3865 = vadd.f32 %v3016, %v3864
  %v3866 = vpop.f32.mrb[0].mxu0
  %3867 = vmatprep.mubr.f32.mxu0 0.0
  %3868 = vmatmul.mubr.f32.gmra.mrb[0].mxu0 %v3332
  %v3869 = vpop.f32.mrb[0].mxu0
  %v3870 = vadd.f32 %v3021, %v3869
  %v3871 = vpop.f32.mrb[0].mxu0
  %3872 = vmatprep.mubr.f32.mxu0 0.0
  %3873 = vmatmul.mubr.f32.gmra.mrb[0].mxu0 %v3335
  %v3874 = vpop.f32.mrb[0].mxu0
  %v3875 = vadd.f32 %v3026, %v3874
  %v3876 = vpop.f32.mrb[0].mxu0
  %3877 = vmatprep.mubr.f32.mxu0 0.0
  %3878 = vmatmul.mubr.f32.gmra.mrb[0].mxu0 %v3338
  %v3879 = vpop.f32.mrb[0].mxu0
  %v3880 = vadd.f32 %v3031, %v3879
  %v3881 = vpop.f32.mrb[0].mxu0
  %3882 = vmatprep.mubr.f32.mxu0 0.0
  %3883 = vmatmul.mubr.f32.gmra.mrb[0].mxu0 %v3341
  %v3884 = vpop.f32.mrb[0].mxu0
  %v3885 = vadd.f32 %v3036, %v3884
  %v3886 = vpop.f32.mrb[0].mxu0
  %3887 = vmatprep.mubr.f32.mxu0 0.0
  %3888 = vmatmul.mubr.f32.gmra.mrb[0].mxu0 %v3344
  %v3889 = vpop.f32.mrb[0].mxu0
  %v3890 = vadd.f32 %v3041, %v3889
  %v3891 = vpop.f32.mrb[0].mxu0
  %3892 = vmatprep.mubr.f32.mxu0 0.0
  %3893 = vmatmul.mubr.f32.gmra.mrb[0].mxu0 %v3347
  %v3894 = vpop.f32.mrb[0].mxu0
  %v3895 = vadd.f32 %v3046, %v3894
  %v3896 = vpop.f32.mrb[0].mxu0
  %3897 = vmatprep.mubr.f32.mxu0 0.0
  %3898 = vmatmul.mubr.f32.gmra.mrb[0].mxu0 %v3350
  %v3899 = vpop.f32.mrb[0].mxu0
  %v3900 = vadd.f32 %v3051, %v3899
  %v3901 = vpop.f32.mrb[0].mxu0
  %3902 = vmatprep.mubr.f32.mxu0 0.0
  %3903 = vmatmul.mubr.f32.gmra.mrb[0].mxu0 %v3353
  %v3904 = vpop.f32.mrb[0].mxu0
  %v3905 = vadd.f32 %v3056, %v3904
  %v3906 = vpop.f32.mrb[0].mxu0
  %3907 = vmatprep.mubr.f32.mxu0 0.0
  %3908 = vmatmul.mubr.f32.gmra.mrb[0].mxu0 %v3356
  %v3909 = vpop.f32.mrb[0].mxu0
  %v3910 = vadd.f32 %v3061, %v3909
  %v3911 = vpop.f32.mrb[0].mxu0
  %3912 = vdwg.mxu0
  %v3913 = vld [vmem:[#allocation3 + $0x4] sm:$0xff]
  %v3914 = vld [vmem:[#allocation3 + $0xc] sm:$0xff]
  %v3915 = vld [vmem:[#allocation3 + $0x14] sm:$0xff]
  %v3916 = vld [vmem:[#allocation3 + $0x1c] sm:$0xff]
  %v3917 = vld [vmem:[#allocation3 + $0x24] sm:$0xff]
  %v3918 = vld [vmem:[#allocation3 + $0x2c] sm:$0xff]
  %v3919 = vld [vmem:[#allocation3 + $0x34] sm:$0xff]
  %v3920 = vld [vmem:[#allocation3 + $0x3c] sm:$0xff]
  %v3921 = vld [vmem:[#allocation3 + $0x44] sm:$0xff]
  %v3922 = vld [vmem:[#allocation3 + $0x4c] sm:$0xff]
  %v3923 = vld [vmem:[#allocation3 + $0x54] sm:$0xff]
  %v3924 = vld [vmem:[#allocation3 + $0x5c] sm:$0xff]
  %v3925 = vld [vmem:[#allocation3 + $0x64] sm:$0xff]
  %v3926 = vld [vmem:[#allocation3 + $0x6c] sm:$0xff]
  %v3927 = vld [vmem:[#allocation3 + $0x74] sm:$0xff]
  %v3928 = vld [vmem:[#allocation3 + $0x7c] sm:$0xff]
  %v3929 = vld [vmem:[#allocation3 + $0x84] sm:$0xff]
  %v3930 = vld [vmem:[#allocation3 + $0x8c] sm:$0xff]
  %v3931 = vld [vmem:[#allocation3 + $0x94] sm:$0xff]
  %v3932 = vld [vmem:[#allocation3 + $0x9c] sm:$0xff]
  %v3933 = vld [vmem:[#allocation3 + $0xa4] sm:$0xff]
  %v3934 = vld [vmem:[#allocation3 + $0xac] sm:$0xff]
  %v3935 = vld [vmem:[#allocation3 + $0xb4] sm:$0xff]
  %v3936 = vld [vmem:[#allocation3 + $0xbc] sm:$0xff]
  %v3937 = vld [vmem:[#allocation3 + $0xc4] sm:$0xff]
  %v3938 = vld [vmem:[#allocation3 + $0xcc] sm:$0xff]
  %v3939 = vld [vmem:[#allocation3 + $0xd4] sm:$0xff]
  %v3940 = vld [vmem:[#allocation3 + $0xdc] sm:$0xff]
  %v3941 = vld [vmem:[#allocation3 + $0xe4] sm:$0xff]
  %v3942 = vld [vmem:[#allocation3 + $0xec] sm:$0xff]
  %v3943 = vld [vmem:[#allocation3 + $0xf4] sm:$0xff]
  %v3944 = vld [vmem:[#allocation3 + $0xfc] sm:$0xff]
  %v3945 = vld [vmem:[#allocation3 + $0x104] sm:$0xff]
  %v3946 = vld [vmem:[#allocation3 + $0x10c] sm:$0xff]
  %v3947 = vld [vmem:[#allocation3 + $0x114] sm:$0xff]
  %v3948 = vld [vmem:[#allocation3 + $0x11c] sm:$0xff]
  %v3949 = vld [vmem:[#allocation3 + $0x124] sm:$0xff]
  %v3950 = vld [vmem:[#allocation3 + $0x12c] sm:$0xff]
  %v3951 = vld [vmem:[#allocation3 + $0x134] sm:$0xff]
  %v3952 = vld [vmem:[#allocation3 + $0x13c] sm:$0xff]
  %v3953 = vld [vmem:[#allocation3 + $0x144] sm:$0xff]
  %v3954 = vld [vmem:[#allocation3 + $0x14c] sm:$0xff]
  %v3955 = vld [vmem:[#allocation3 + $0x154] sm:$0xff]
  %v3956 = vld [vmem:[#allocation3 + $0x15c] sm:$0xff]
  %v3957 = vld [vmem:[#allocation3 + $0x164] sm:$0xff]
  %v3958 = vld [vmem:[#allocation3 + $0x16c] sm:$0xff]
  %v3959 = vld [vmem:[#allocation3 + $0x174] sm:$0xff]
  %v3960 = vld [vmem:[#allocation3 + $0x17c] sm:$0xff]
  %v3961 = vld [vmem:[#allocation3 + $0x184] sm:$0xff]
  %v3962 = vld [vmem:[#allocation3 + $0x18c] sm:$0xff]
  %v3963 = vld [vmem:[#allocation3 + $0x194] sm:$0xff]
  %v3964 = vld [vmem:[#allocation3 + $0x19c] sm:$0xff]
  %v3965 = vld [vmem:[#allocation3 + $0x1a4] sm:$0xff]
  %v3966 = vld [vmem:[#allocation3 + $0x1ac] sm:$0xff]
  %v3967 = vld [vmem:[#allocation3 + $0x1b4] sm:$0xff]
  %v3968 = vld [vmem:[#allocation3 + $0x1bc] sm:$0xff]
  %v3969 = vld [vmem:[#allocation3 + $0x1c4] sm:$0xff]
  %v3970 = vld [vmem:[#allocation3 + $0x1cc] sm:$0xff]
  %v3971 = vld [vmem:[#allocation3 + $0x1d4] sm:$0xff]
  %v3972 = vld [vmem:[#allocation3 + $0x1dc] sm:$0xff]
  %v3973 = vld [vmem:[#allocation3 + $0x1e4] sm:$0xff]
  %v3974 = vld [vmem:[#allocation3 + $0x1ec] sm:$0xff]
  %v3975 = vld [vmem:[#allocation3 + $0x1f4] sm:$0xff]
  %v3976 = vld [vmem:[#allocation3 + $0x1fc] sm:$0xff]
  %v3977 = vld [vmem:[#allocation3 + $0x204] sm:$0xff]
  %v3978 = vld [vmem:[#allocation3 + $0x20c] sm:$0xff]
  %v3979 = vld [vmem:[#allocation3 + $0x214] sm:$0xff]
  %v3980 = vld [vmem:[#allocation3 + $0x21c] sm:$0xff]
  %v3981 = vld [vmem:[#allocation3 + $0x224] sm:$0xff]
  %v3982 = vld [vmem:[#allocation3 + $0x22c] sm:$0xff]
  %v3983 = vld [vmem:[#allocation3 + $0x234] sm:$0xff]
  %v3984 = vld [vmem:[#allocation3 + $0x23c] sm:$0xff]
  %v3985 = vld [vmem:[#allocation3 + $0x244] sm:$0xff]
  %v3986 = vld [vmem:[#allocation3 + $0x24c] sm:$0xff]
  %v3987 = vld [vmem:[#allocation3 + $0x254] sm:$0xff]
  %v3988 = vld [vmem:[#allocation3 + $0x25c] sm:$0xff]
  %v3989 = vld [vmem:[#allocation3 + $0x264] sm:$0xff]
  %v3990 = vld [vmem:[#allocation3 + $0x26c] sm:$0xff]
  %v3991 = vld [vmem:[#allocation3 + $0x274] sm:$0xff]
  %v3992 = vld [vmem:[#allocation3 + $0x27c] sm:$0xff]
  %v3993 = vld [vmem:[#allocation3 + $0x284] sm:$0xff]
  %v3994 = vld [vmem:[#allocation3 + $0x28c] sm:$0xff]
  %v3995 = vld [vmem:[#allocation3 + $0x294] sm:$0xff]
  %v3996 = vld [vmem:[#allocation3 + $0x29c] sm:$0xff]
  %v3997 = vld [vmem:[#allocation3 + $0x2a4] sm:$0xff]
  %v3998 = vld [vmem:[#allocation3 + $0x2ac] sm:$0xff]
  %v3999 = vld [vmem:[#allocation3 + $0x2b4] sm:$0xff]
  %v4000 = vld [vmem:[#allocation3 + $0x2bc] sm:$0xff]
  %v4001 = vld [vmem:[#allocation3 + $0x2c4] sm:$0xff]
  %v4002 = vld [vmem:[#allocation3 + $0x2cc] sm:$0xff]
  %v4003 = vld [vmem:[#allocation3 + $0x2d4] sm:$0xff]
  %v4004 = vld [vmem:[#allocation3 + $0x2dc] sm:$0xff]
  %v4005 = vld [vmem:[#allocation3 + $0x2e4] sm:$0xff]
  %v4006 = vld [vmem:[#allocation3 + $0x2ec] sm:$0xff]
  %v4007 = vld [vmem:[#allocation3 + $0x2f4] sm:$0xff]
  %v4008 = vld [vmem:[#allocation3 + $0x2fc] sm:$0xff]
  %v4009 = vld [vmem:[#allocation3 + $0x304] sm:$0xff]
  %v4010 = vld [vmem:[#allocation3 + $0x30c] sm:$0xff]
  %s4011 = scalar_lea.vmem %s3, 32
  %v4012 = vld [vmem:[%s4011] sm:$0xff]
  %v4013 = vld [vmem:[%s4011 + $0x8] sm:$0xff]
  %v4015 = vsel %vm46, %v3913, 0
  %v4018 = vsel %vm46, %v3914, 0
  %v4021 = vsel %vm46, %v3915, 0
  %v4024 = vsel %vm46, %v3916, 0
  %v4027 = vsel %vm46, %v3917, 0
  %v4030 = vsel %vm46, %v3918, 0
  %v4033 = vsel %vm46, %v3919, 0
  %v4036 = vsel %vm46, %v3920, 0
  %v4039 = vsel %vm46, %v3921, 0
  %v4042 = vsel %vm46, %v3922, 0
  %v4045 = vsel %vm46, %v3923, 0
  %v4048 = vsel %vm46, %v3924, 0
  %v4051 = vsel %vm46, %v3925, 0
  %v4054 = vsel %vm46, %v3926, 0
  %v4057 = vsel %vm46, %v3927, 0
  %v4060 = vsel %vm46, %v3928, 0
  %v4063 = vsel %vm46, %v3929, 0
  %v4066 = vsel %vm46, %v3930, 0
  %v4069 = vsel %vm46, %v3931, 0
  %v4072 = vsel %vm46, %v3932, 0
  %v4075 = vsel %vm46, %v3933, 0
  %v4078 = vsel %vm46, %v3934, 0
  %v4081 = vsel %vm46, %v3935, 0
  %v4084 = vsel %vm46, %v3936, 0
  %v4087 = vsel %vm46, %v3937, 0
  %v4090 = vsel %vm46, %v3938, 0
  %v4093 = vsel %vm46, %v3939, 0
  %v4096 = vsel %vm46, %v3940, 0
  %v4099 = vsel %vm46, %v3941, 0
  %v4102 = vsel %vm46, %v3942, 0
  %v4105 = vsel %vm46, %v3943, 0
  %v4108 = vsel %vm46, %v3944, 0
  %v4111 = vsel %vm46, %v3945, 0
  %v4114 = vsel %vm46, %v3946, 0
  %v4117 = vsel %vm46, %v3947, 0
  %v4120 = vsel %vm46, %v3948, 0
  %v4123 = vsel %vm46, %v3949, 0
  %v4126 = vsel %vm46, %v3950, 0
  %v4129 = vsel %vm46, %v3951, 0
  %v4132 = vsel %vm46, %v3952, 0
  %v4135 = vsel %vm46, %v3953, 0
  %v4138 = vsel %vm46, %v3954, 0
  %v4141 = vsel %vm46, %v3955, 0
  %v4144 = vsel %vm46, %v3956, 0
  %v4147 = vsel %vm46, %v3957, 0
  %v4150 = vsel %vm46, %v3958, 0
  %v4153 = vsel %vm46, %v3959, 0
  %v4156 = vsel %vm46, %v3960, 0
  %v4159 = vsel %vm46, %v3961, 0
  %v4162 = vsel %vm46, %v3962, 0
  %v4165 = vsel %vm46, %v3963, 0
  %v4168 = vsel %vm46, %v3964, 0
  %v4171 = vsel %vm46, %v3965, 0
  %v4174 = vsel %vm46, %v3966, 0
  %v4177 = vsel %vm46, %v3967, 0
  %v4180 = vsel %vm46, %v3968, 0
  %v4183 = vsel %vm46, %v3969, 0
  %v4186 = vsel %vm46, %v3970, 0
  %v4189 = vsel %vm46, %v3971, 0
  %v4192 = vsel %vm46, %v3972, 0
  %v4195 = vsel %vm46, %v3973, 0
  %v4198 = vsel %vm46, %v3974, 0
  %v4201 = vsel %vm46, %v3975, 0
  %v4204 = vsel %vm46, %v3976, 0
  %v4207 = vsel %vm46, %v3977, 0
  %v4210 = vsel %vm46, %v3978, 0
  %v4213 = vsel %vm46, %v3979, 0
  %v4216 = vsel %vm46, %v3980, 0
  %v4219 = vsel %vm46, %v3981, 0
  %v4222 = vsel %vm46, %v3982, 0
  %v4225 = vsel %vm46, %v3983, 0
  %v4228 = vsel %vm46, %v3984, 0
  %v4231 = vsel %vm46, %v3985, 0
  %v4234 = vsel %vm46, %v3986, 0
  %v4237 = vsel %vm46, %v3987, 0
  %v4240 = vsel %vm46, %v3988, 0
  %v4243 = vsel %vm46, %v3989, 0
  %v4246 = vsel %vm46, %v3990, 0
  %v4249 = vsel %vm46, %v3991, 0
  %v4252 = vsel %vm46, %v3992, 0
  %v4255 = vsel %vm46, %v3993, 0
  %v4258 = vsel %vm46, %v3994, 0
  %v4261 = vsel %vm46, %v3995, 0
  %v4264 = vsel %vm46, %v3996, 0
  %v4267 = vsel %vm46, %v3997, 0
  %v4270 = vsel %vm46, %v3998, 0
  %v4273 = vsel %vm46, %v3999, 0
  %v4276 = vsel %vm46, %v4000, 0
  %v4279 = vsel %vm46, %v4001, 0
  %v4282 = vsel %vm46, %v4002, 0
  %v4285 = vsel %vm46, %v4003, 0
  %v4288 = vsel %vm46, %v4004, 0
  %v4291 = vsel %vm46, %v4005, 0
  %v4294 = vsel %vm46, %v4006, 0
  %v4297 = vsel %vm46, %v4007, 0
  %v4300 = vsel %vm46, %v4008, 0
  %v4303 = vsel %vm46, %v4009, 0
  %v4306 = vsel %vm46, %v4010, 0
  %4308 = vmatprep.subr.mxu0 0.0
  %4309 = vmatpush1.msra.mxu0 %v4012
  %4310 = vmatprep.subr.mxu0 0.0
  %4311 = vmatpush1.msra.mxu0 %v4013
  %4312 = vmatprep.subr.mxu0 0.0
  %4313 = vmatpush1.msra.mxu0 0.0
  %4314 = vmatprep.subr.mxu0 0.0
  %4315 = vmatpush1.msra.mxu0 0.0
  %4316 = vmatprep.subr.mxu0 0.0
  %4317 = vmatpush1.msra.mxu0 0.0
  %4318 = vmatprep.subr.mxu0 0.0
  %4319 = vmatpush1.msra.mxu0 0.0
  %4320 = vmatprep.subr.mxu0 0.0
  %4321 = vmatpush1.msra.mxu0 0.0
  %4322 = vmatprep.subr.mxu0 0.0
  %4323 = vmatpush1.msra.mxu0 0.0
  %4324 = vmatprep.subr.mxu0 0.0
  %4325 = vmatpush1.msra.mxu0 0.0
  %4326 = vmatprep.subr.mxu0 0.0
  %4327 = vmatpush1.msra.mxu0 0.0
  %4328 = vmatprep.subr.mxu0 0.0
  %4329 = vmatpush1.msra.mxu0 0.0
  %4330 = vmatprep.subr.mxu0 0.0
  %4331 = vmatpush1.msra.mxu0 0.0
  %4332 = vmatprep.subr.mxu0 0.0
  %4333 = vmatpush1.msra.mxu0 0.0
  %4334 = vmatprep.subr.mxu0 0.0
  %4335 = vmatpush1.msra.mxu0 0.0
  %4336 = vmatprep.subr.mxu0 0.0
  %4337 = vmatpush1.msra.mxu0 0.0
  %4338 = vmatprep.subr.mxu0 0.0
  %4339 = vmatpush1.msra.mxu0 0.0
  %4340 = vmatprep.subr.mxu0 0.0
  %4341 = vmatpush1.msra.mxu0 0.0
  %4342 = vmatprep.subr.mxu0 0.0
  %4343 = vmatpush1.msra.mxu0 0.0
  %4344 = vmatprep.subr.mxu0 0.0
  %4345 = vmatpush1.msra.mxu0 0.0
  %4346 = vmatprep.subr.mxu0 0.0
  %4347 = vmatpush1.msra.mxu0 0.0
  %4348 = vmatprep.subr.mxu0 0.0
  %4349 = vmatpush1.msra.mxu0 0.0
  %4350 = vmatprep.subr.mxu0 0.0
  %4351 = vmatpush1.msra.mxu0 0.0
  %4352 = vmatprep.subr.mxu0 0.0
  %4353 = vmatpush1.msra.mxu0 0.0
  %4354 = vmatprep.subr.mxu0 0.0
  %4355 = vmatpush1.msra.mxu0 0.0
  %4356 = vmatprep.subr.mxu0 0.0
  %4357 = vmatpush1.msra.mxu0 0.0
  %4358 = vmatprep.subr.mxu0 0.0
  %4359 = vmatpush1.msra.mxu0 0.0
  %4360 = vmatprep.subr.mxu0 0.0
  %4361 = vmatpush1.msra.mxu0 0.0
  %4362 = vmatprep.subr.mxu0 0.0
  %4363 = vmatpush1.msra.mxu0 0.0
  %4364 = vmatprep.subr.mxu0 0.0
  %4365 = vmatpush1.msra.mxu0 0.0
  %4366 = vmatprep.subr.mxu0 0.0
  %4367 = vmatpush1.msra.mxu0 0.0
  %4368 = vmatprep.subr.mxu0 0.0
  %4369 = vmatpush1.msra.mxu0 0.0
  %4370 = vmatprep.subr.mxu0 0.0
  %4371 = vmatpush1.msra.mxu0 0.0
  %4372 = vmatprep.mubr.f32.mxu0 0.0
  %4373 = vmatmul.mubr.f32.gmra.mrb[0].mxu0 %v4015
  %v4374 = vpop.f32.mrb[0].mxu0
  %v4375 = vadd.f32 0.0, %v4374
  %v4376 = vpop.f32.mrb[0].mxu0
  %4377 = vmatprep.mubr.f32.mxu0 0.0
  %4378 = vmatmul.mubr.f32.gmra.mrb[0].mxu0 %v4018
  %v4379 = vpop.f32.mrb[0].mxu0
  %v4380 = vadd.f32 0.0, %v4379
  %v4381 = vpop.f32.mrb[0].mxu0
  %4382 = vmatprep.mubr.f32.mxu0 0.0
  %4383 = vmatmul.mubr.f32.gmra.mrb[0].mxu0 %v4021
  %v4384 = vpop.f32.mrb[0].mxu0
  %v4385 = vadd.f32 0.0, %v4384
  %v4386 = vpop.f32.mrb[0].mxu0
  %4387 = vmatprep.mubr.f32.mxu0 0.0
  %4388 = vmatmul.mubr.f32.gmra.mrb[0].mxu0 %v4024
  %v4389 = vpop.f32.mrb[0].mxu0
  %v4390 = vadd.f32 0.0, %v4389
  %v4391 = vpop.f32.mrb[0].mxu0
  %4392 = vmatprep.mubr.f32.mxu0 0.0
  %4393 = vmatmul.mubr.f32.gmra.mrb[0].mxu0 %v4027
  %v4394 = vpop.f32.mrb[0].mxu0
  %v4395 = vadd.f32 0.0, %v4394
  %v4396 = vpop.f32.mrb[0].mxu0
  %4397 = vmatprep.mubr.f32.mxu0 0.0
  %4398 = vmatmul.mubr.f32.gmra.mrb[0].mxu0 %v4030
  %v4399 = vpop.f32.mrb[0].mxu0
  %v4400 = vadd.f32 0.0, %v4399
  %v4401 = vpop.f32.mrb[0].mxu0
  %4402 = vmatprep.mubr.f32.mxu0 0.0
  %4403 = vmatmul.mubr.f32.gmra.mrb[0].mxu0 %v4033
  %v4404 = vpop.f32.mrb[0].mxu0
  %v4405 = vadd.f32 0.0, %v4404
  %v4406 = vpop.f32.mrb[0].mxu0
  %4407 = vmatprep.mubr.f32.mxu0 0.0
  %4408 = vmatmul.mubr.f32.gmra.mrb[0].mxu0 %v4036
  %v4409 = vpop.f32.mrb[0].mxu0
  %v4410 = vadd.f32 0.0, %v4409
  %v4411 = vpop.f32.mrb[0].mxu0
  %4412 = vmatprep.mubr.f32.mxu0 0.0
  %4413 = vmatmul.mubr.f32.gmra.mrb[0].mxu0 %v4039
  %v4414 = vpop.f32.mrb[0].mxu0
  %v4415 = vadd.f32 0.0, %v4414
  %v4416 = vpop.f32.mrb[0].mxu0
  %4417 = vmatprep.mubr.f32.mxu0 0.0
  %4418 = vmatmul.mubr.f32.gmra.mrb[0].mxu0 %v4042
  %v4419 = vpop.f32.mrb[0].mxu0
  %v4420 = vadd.f32 0.0, %v4419
  %v4421 = vpop.f32.mrb[0].mxu0
  %4422 = vmatprep.mubr.f32.mxu0 0.0
  %4423 = vmatmul.mubr.f32.gmra.mrb[0].mxu0 %v4045
  %v4424 = vpop.f32.mrb[0].mxu0
  %v4425 = vadd.f32 0.0, %v4424
  %v4426 = vpop.f32.mrb[0].mxu0
  %4427 = vmatprep.mubr.f32.mxu0 0.0
  %4428 = vmatmul.mubr.f32.gmra.mrb[0].mxu0 %v4048
  %v4429 = vpop.f32.mrb[0].mxu0
  %v4430 = vadd.f32 0.0, %v4429
  %v4431 = vpop.f32.mrb[0].mxu0
  %4432 = vmatprep.mubr.f32.mxu0 0.0
  %4433 = vmatmul.mubr.f32.gmra.mrb[0].mxu0 %v4051
  %v4434 = vpop.f32.mrb[0].mxu0
  %v4435 = vadd.f32 0.0, %v4434
  %v4436 = vpop.f32.mrb[0].mxu0
  %4437 = vmatprep.mubr.f32.mxu0 0.0
  %4438 = vmatmul.mubr.f32.gmra.mrb[0].mxu0 %v4054
  %v4439 = vpop.f32.mrb[0].mxu0
  %v4440 = vadd.f32 0.0, %v4439
  %v4441 = vpop.f32.mrb[0].mxu0
  %4442 = vmatprep.mubr.f32.mxu0 0.0
  %4443 = vmatmul.mubr.f32.gmra.mrb[0].mxu0 %v4057
  %v4444 = vpop.f32.mrb[0].mxu0
  %v4445 = vadd.f32 0.0, %v4444
  %v4446 = vpop.f32.mrb[0].mxu0
  %4447 = vmatprep.mubr.f32.mxu0 0.0
  %4448 = vmatmul.mubr.f32.gmra.mrb[0].mxu0 %v4060
  %v4449 = vpop.f32.mrb[0].mxu0
  %v4450 = vadd.f32 0.0, %v4449
  %v4451 = vpop.f32.mrb[0].mxu0
  %4452 = vmatprep.mubr.f32.mxu0 0.0
  %4453 = vmatmul.mubr.f32.gmra.mrb[0].mxu0 %v4063
  %v4454 = vpop.f32.mrb[0].mxu0
  %v4455 = vadd.f32 0.0, %v4454
  %v4456 = vpop.f32.mrb[0].mxu0
  %4457 = vmatprep.mubr.f32.mxu0 0.0
  %4458 = vmatmul.mubr.f32.gmra.mrb[0].mxu0 %v4066
  %v4459 = vpop.f32.mrb[0].mxu0
  %v4460 = vadd.f32 0.0, %v4459
  %v4461 = vpop.f32.mrb[0].mxu0
  %4462 = vmatprep.mubr.f32.mxu0 0.0
  %4463 = vmatmul.mubr.f32.gmra.mrb[0].mxu0 %v4069
  %v4464 = vpop.f32.mrb[0].mxu0
  %v4465 = vadd.f32 0.0, %v4464
  %v4466 = vpop.f32.mrb[0].mxu0
  %4467 = vmatprep.mubr.f32.mxu0 0.0
  %4468 = vmatmul.mubr.f32.gmra.mrb[0].mxu0 %v4072
  %v4469 = vpop.f32.mrb[0].mxu0
  %v4470 = vadd.f32 0.0, %v4469
  %v4471 = vpop.f32.mrb[0].mxu0
  %4472 = vmatprep.mubr.f32.mxu0 0.0
  %4473 = vmatmul.mubr.f32.gmra.mrb[0].mxu0 %v4075
  %v4474 = vpop.f32.mrb[0].mxu0
  %v4475 = vadd.f32 0.0, %v4474
  %v4476 = vpop.f32.mrb[0].mxu0
  %4477 = vmatprep.mubr.f32.mxu0 0.0
  %4478 = vmatmul.mubr.f32.gmra.mrb[0].mxu0 %v4078
  %v4479 = vpop.f32.mrb[0].mxu0
  %v4480 = vadd.f32 0.0, %v4479
  %v4481 = vpop.f32.mrb[0].mxu0
  %4482 = vmatprep.mubr.f32.mxu0 0.0
  %4483 = vmatmul.mubr.f32.gmra.mrb[0].mxu0 %v4081
  %v4484 = vpop.f32.mrb[0].mxu0
  %v4485 = vadd.f32 0.0, %v4484
  %v4486 = vpop.f32.mrb[0].mxu0
  %4487 = vmatprep.mubr.f32.mxu0 0.0
  %4488 = vmatmul.mubr.f32.gmra.mrb[0].mxu0 %v4084
  %v4489 = vpop.f32.mrb[0].mxu0
  %v4490 = vadd.f32 0.0, %v4489
  %v4491 = vpop.f32.mrb[0].mxu0
  %4492 = vmatprep.mubr.f32.mxu0 0.0
  %4493 = vmatmul.mubr.f32.gmra.mrb[0].mxu0 %v4087
  %v4494 = vpop.f32.mrb[0].mxu0
  %v4495 = vadd.f32 0.0, %v4494
  %v4496 = vpop.f32.mrb[0].mxu0
  %4497 = vmatprep.mubr.f32.mxu0 0.0
  %4498 = vmatmul.mubr.f32.gmra.mrb[0].mxu0 %v4090
  %v4499 = vpop.f32.mrb[0].mxu0
  %v4500 = vadd.f32 0.0, %v4499
  %v4501 = vpop.f32.mrb[0].mxu0
  %4502 = vmatprep.mubr.f32.mxu0 0.0
  %4503 = vmatmul.mubr.f32.gmra.mrb[0].mxu0 %v4093
  %v4504 = vpop.f32.mrb[0].mxu0
  %v4505 = vadd.f32 0.0, %v4504
  %v4506 = vpop.f32.mrb[0].mxu0
  %4507 = vmatprep.mubr.f32.mxu0 0.0
  %4508 = vmatmul.mubr.f32.gmra.mrb[0].mxu0 %v4096
  %v4509 = vpop.f32.mrb[0].mxu0
  %v4510 = vadd.f32 0.0, %v4509
  %v4511 = vpop.f32.mrb[0].mxu0
  %4512 = vmatprep.mubr.f32.mxu0 0.0
  %4513 = vmatmul.mubr.f32.gmra.mrb[0].mxu0 %v4099
  %v4514 = vpop.f32.mrb[0].mxu0
  %v4515 = vadd.f32 0.0, %v4514
  %v4516 = vpop.f32.mrb[0].mxu0
  %4517 = vmatprep.mubr.f32.mxu0 0.0
  %4518 = vmatmul.mubr.f32.gmra.mrb[0].mxu0 %v4102
  %v4519 = vpop.f32.mrb[0].mxu0
  %v4520 = vadd.f32 0.0, %v4519
  %v4521 = vpop.f32.mrb[0].mxu0
  %4522 = vmatprep.mubr.f32.mxu0 0.0
  %4523 = vmatmul.mubr.f32.gmra.mrb[0].mxu0 %v4105
  %v4524 = vpop.f32.mrb[0].mxu0
  %v4525 = vadd.f32 0.0, %v4524
  %v4526 = vpop.f32.mrb[0].mxu0
  %4527 = vmatprep.mubr.f32.mxu0 0.0
  %4528 = vmatmul.mubr.f32.gmra.mrb[0].mxu0 %v4108
  %v4529 = vpop.f32.mrb[0].mxu0
  %v4530 = vadd.f32 0.0, %v4529
  %v4531 = vpop.f32.mrb[0].mxu0
  %4532 = vmatprep.mubr.f32.mxu0 0.0
  %4533 = vmatmul.mubr.f32.gmra.mrb[0].mxu0 %v4111
  %v4534 = vpop.f32.mrb[0].mxu0
  %v4535 = vadd.f32 0.0, %v4534
  %v4536 = vpop.f32.mrb[0].mxu0
  %4537 = vmatprep.mubr.f32.mxu0 0.0
  %4538 = vmatmul.mubr.f32.gmra.mrb[0].mxu0 %v4114
  %v4539 = vpop.f32.mrb[0].mxu0
  %v4540 = vadd.f32 0.0, %v4539
  %v4541 = vpop.f32.mrb[0].mxu0
  %4542 = vmatprep.mubr.f32.mxu0 0.0
  %4543 = vmatmul.mubr.f32.gmra.mrb[0].mxu0 %v4117
  %v4544 = vpop.f32.mrb[0].mxu0
  %v4545 = vadd.f32 0.0, %v4544
  %v4546 = vpop.f32.mrb[0].mxu0
  %4547 = vmatprep.mubr.f32.mxu0 0.0
  %4548 = vmatmul.mubr.f32.gmra.mrb[0].mxu0 %v4120
  %v4549 = vpop.f32.mrb[0].mxu0
  %v4550 = vadd.f32 0.0, %v4549
  %v4551 = vpop.f32.mrb[0].mxu0
  %4552 = vmatprep.mubr.f32.mxu0 0.0
  %4553 = vmatmul.mubr.f32.gmra.mrb[0].mxu0 %v4123
  %v4554 = vpop.f32.mrb[0].mxu0
  %v4555 = vadd.f32 0.0, %v4554
  %v4556 = vpop.f32.mrb[0].mxu0
  %4557 = vmatprep.mubr.f32.mxu0 0.0
  %4558 = vmatmul.mubr.f32.gmra.mrb[0].mxu0 %v4126
  %v4559 = vpop.f32.mrb[0].mxu0
  %v4560 = vadd.f32 0.0, %v4559
  %v4561 = vpop.f32.mrb[0].mxu0
  %4562 = vmatprep.mubr.f32.mxu0 0.0
  %4563 = vmatmul.mubr.f32.gmra.mrb[0].mxu0 %v4129
  %v4564 = vpop.f32.mrb[0].mxu0
  %v4565 = vadd.f32 0.0, %v4564
  %v4566 = vpop.f32.mrb[0].mxu0
  %4567 = vmatprep.mubr.f32.mxu0 0.0
  %4568 = vmatmul.mubr.f32.gmra.mrb[0].mxu0 %v4132
  %v4569 = vpop.f32.mrb[0].mxu0
  %v4570 = vadd.f32 0.0, %v4569
  %v4571 = vpop.f32.mrb[0].mxu0
  %4572 = vmatprep.mubr.f32.mxu0 0.0
  %4573 = vmatmul.mubr.f32.gmra.mrb[0].mxu0 %v4135
  %v4574 = vpop.f32.mrb[0].mxu0
  %v4575 = vadd.f32 0.0, %v4574
  %v4576 = vpop.f32.mrb[0].mxu0
  %4577 = vmatprep.mubr.f32.mxu0 0.0
  %4578 = vmatmul.mubr.f32.gmra.mrb[0].mxu0 %v4138
  %v4579 = vpop.f32.mrb[0].mxu0
  %v4580 = vadd.f32 0.0, %v4579
  %v4581 = vpop.f32.mrb[0].mxu0
  %4582 = vmatprep.mubr.f32.mxu0 0.0
  %4583 = vmatmul.mubr.f32.gmra.mrb[0].mxu0 %v4141
  %v4584 = vpop.f32.mrb[0].mxu0
  %v4585 = vadd.f32 0.0, %v4584
  %v4586 = vpop.f32.mrb[0].mxu0
  %4587 = vmatprep.mubr.f32.mxu0 0.0
  %4588 = vmatmul.mubr.f32.gmra.mrb[0].mxu0 %v4144
  %v4589 = vpop.f32.mrb[0].mxu0
  %v4590 = vadd.f32 0.0, %v4589
  %v4591 = vpop.f32.mrb[0].mxu0
  %4592 = vmatprep.mubr.f32.mxu0 0.0
  %4593 = vmatmul.mubr.f32.gmra.mrb[0].mxu0 %v4147
  %v4594 = vpop.f32.mrb[0].mxu0
  %v4595 = vadd.f32 0.0, %v4594
  %v4596 = vpop.f32.mrb[0].mxu0
  %4597 = vmatprep.mubr.f32.mxu0 0.0
  %4598 = vmatmul.mubr.f32.gmra.mrb[0].mxu0 %v4150
  %v4599 = vpop.f32.mrb[0].mxu0
  %v4600 = vadd.f32 0.0, %v4599
  %v4601 = vpop.f32.mrb[0].mxu0
  %4602 = vmatprep.mubr.f32.mxu0 0.0
  %4603 = vmatmul.mubr.f32.gmra.mrb[0].mxu0 %v4153
  %v4604 = vpop.f32.mrb[0].mxu0
  %v4605 = vadd.f32 0.0, %v4604
  %v4606 = vpop.f32.mrb[0].mxu0
  %4607 = vmatprep.mubr.f32.mxu0 0.0
  %4608 = vmatmul.mubr.f32.gmra.mrb[0].mxu0 %v4156
  %v4609 = vpop.f32.mrb[0].mxu0
  %v4610 = vadd.f32 0.0, %v4609
  %v4611 = vpop.f32.mrb[0].mxu0
  %4612 = vmatprep.mubr.f32.mxu0 0.0
  %4613 = vmatmul.mubr.f32.gmra.mrb[0].mxu0 %v4159
  %v4614 = vpop.f32.mrb[0].mxu0
  %v4615 = vadd.f32 0.0, %v4614
  %v4616 = vpop.f32.mrb[0].mxu0
  %4617 = vmatprep.mubr.f32.mxu0 0.0
  %4618 = vmatmul.mubr.f32.gmra.mrb[0].mxu0 %v4162
  %v4619 = vpop.f32.mrb[0].mxu0
  %v4620 = vadd.f32 0.0, %v4619
  %v4621 = vpop.f32.mrb[0].mxu0
  %4622 = vmatprep.mubr.f32.mxu0 0.0
  %4623 = vmatmul.mubr.f32.gmra.mrb[0].mxu0 %v4165
  %v4624 = vpop.f32.mrb[0].mxu0
  %v4625 = vadd.f32 0.0, %v4624
  %v4626 = vpop.f32.mrb[0].mxu0
  %4627 = vmatprep.mubr.f32.mxu0 0.0
  %4628 = vmatmul.mubr.f32.gmra.mrb[0].mxu0 %v4168
  %v4629 = vpop.f32.mrb[0].mxu0
  %v4630 = vadd.f32 0.0, %v4629
  %v4631 = vpop.f32.mrb[0].mxu0
  %4632 = vmatprep.mubr.f32.mxu0 0.0
  %4633 = vmatmul.mubr.f32.gmra.mrb[0].mxu0 %v4171
  %v4634 = vpop.f32.mrb[0].mxu0
  %v4635 = vadd.f32 0.0, %v4634
  %v4636 = vpop.f32.mrb[0].mxu0
  %4637 = vmatprep.mubr.f32.mxu0 0.0
  %4638 = vmatmul.mubr.f32.gmra.mrb[0].mxu0 %v4174
  %v4639 = vpop.f32.mrb[0].mxu0
  %v4640 = vadd.f32 0.0, %v4639
  %v4641 = vpop.f32.mrb[0].mxu0
  %4642 = vmatprep.mubr.f32.mxu0 0.0
  %4643 = vmatmul.mubr.f32.gmra.mrb[0].mxu0 %v4177
  %v4644 = vpop.f32.mrb[0].mxu0
  %v4645 = vadd.f32 0.0, %v4644
  %v4646 = vpop.f32.mrb[0].mxu0
  %4647 = vmatprep.mubr.f32.mxu0 0.0
  %4648 = vmatmul.mubr.f32.gmra.mrb[0].mxu0 %v4180
  %v4649 = vpop.f32.mrb[0].mxu0
  %v4650 = vadd.f32 0.0, %v4649
  %v4651 = vpop.f32.mrb[0].mxu0
  %4652 = vmatprep.mubr.f32.mxu0 0.0
  %4653 = vmatmul.mubr.f32.gmra.mrb[0].mxu0 %v4183
  %v4654 = vpop.f32.mrb[0].mxu0
  %v4655 = vadd.f32 0.0, %v4654
  %v4656 = vpop.f32.mrb[0].mxu0
  %4657 = vmatprep.mubr.f32.mxu0 0.0
  %4658 = vmatmul.mubr.f32.gmra.mrb[0].mxu0 %v4186
  %v4659 = vpop.f32.mrb[0].mxu0
  %v4660 = vadd.f32 0.0, %v4659
  %v4661 = vpop.f32.mrb[0].mxu0
  %4662 = vmatprep.mubr.f32.mxu0 0.0
  %4663 = vmatmul.mubr.f32.gmra.mrb[0].mxu0 %v4189
  %v4664 = vpop.f32.mrb[0].mxu0
  %v4665 = vadd.f32 0.0, %v4664
  %v4666 = vpop.f32.mrb[0].mxu0
  %4667 = vmatprep.mubr.f32.mxu0 0.0
  %4668 = vmatmul.mubr.f32.gmra.mrb[0].mxu0 %v4192
  %v4669 = vpop.f32.mrb[0].mxu0
  %v4670 = vadd.f32 0.0, %v4669
  %v4671 = vpop.f32.mrb[0].mxu0
  %4672 = vmatprep.mubr.f32.mxu0 0.0
  %4673 = vmatmul.mubr.f32.gmra.mrb[0].mxu0 %v4195
  %v4674 = vpop.f32.mrb[0].mxu0
  %v4675 = vadd.f32 0.0, %v4674
  %v4676 = vpop.f32.mrb[0].mxu0
  %4677 = vmatprep.mubr.f32.mxu0 0.0
  %4678 = vmatmul.mubr.f32.gmra.mrb[0].mxu0 %v4198
  %v4679 = vpop.f32.mrb[0].mxu0
  %v4680 = vadd.f32 0.0, %v4679
  %v4681 = vpop.f32.mrb[0].mxu0
  %4682 = vmatprep.mubr.f32.mxu0 0.0
  %4683 = vmatmul.mubr.f32.gmra.mrb[0].mxu0 %v4201
  %v4684 = vpop.f32.mrb[0].mxu0
  %v4685 = vadd.f32 0.0, %v4684
  %v4686 = vpop.f32.mrb[0].mxu0
  %4687 = vmatprep.mubr.f32.mxu0 0.0
  %4688 = vmatmul.mubr.f32.gmra.mrb[0].mxu0 %v4204
  %v4689 = vpop.f32.mrb[0].mxu0
  %v4690 = vadd.f32 0.0, %v4689
  %v4691 = vpop.f32.mrb[0].mxu0
  %4692 = vmatprep.mubr.f32.mxu0 0.0
  %4693 = vmatmul.mubr.f32.gmra.mrb[0].mxu0 %v4207
  %v4694 = vpop.f32.mrb[0].mxu0
  %v4695 = vadd.f32 0.0, %v4694
  %v4696 = vpop.f32.mrb[0].mxu0
  %4697 = vmatprep.mubr.f32.mxu0 0.0
  %4698 = vmatmul.mubr.f32.gmra.mrb[0].mxu0 %v4210
  %v4699 = vpop.f32.mrb[0].mxu0
  %v4700 = vadd.f32 0.0, %v4699
  %v4701 = vpop.f32.mrb[0].mxu0
  %4702 = vmatprep.mubr.f32.mxu0 0.0
  %4703 = vmatmul.mubr.f32.gmra.mrb[0].mxu0 %v4213
  %v4704 = vpop.f32.mrb[0].mxu0
  %v4705 = vadd.f32 0.0, %v4704
  %v4706 = vpop.f32.mrb[0].mxu0
  %4707 = vmatprep.mubr.f32.mxu0 0.0
  %4708 = vmatmul.mubr.f32.gmra.mrb[0].mxu0 %v4216
  %v4709 = vpop.f32.mrb[0].mxu0
  %v4710 = vadd.f32 0.0, %v4709
  %v4711 = vpop.f32.mrb[0].mxu0
  %4712 = vmatprep.mubr.f32.mxu0 0.0
  %4713 = vmatmul.mubr.f32.gmra.mrb[0].mxu0 %v4219
  %v4714 = vpop.f32.mrb[0].mxu0
  %v4715 = vadd.f32 0.0, %v4714
  %v4716 = vpop.f32.mrb[0].mxu0
  %4717 = vmatprep.mubr.f32.mxu0 0.0
  %4718 = vmatmul.mubr.f32.gmra.mrb[0].mxu0 %v4222
  %v4719 = vpop.f32.mrb[0].mxu0
  %v4720 = vadd.f32 0.0, %v4719
  %v4721 = vpop.f32.mrb[0].mxu0
  %4722 = vmatprep.mubr.f32.mxu0 0.0
  %4723 = vmatmul.mubr.f32.gmra.mrb[0].mxu0 %v4225
  %v4724 = vpop.f32.mrb[0].mxu0
  %v4725 = vadd.f32 0.0, %v4724
  %v4726 = vpop.f32.mrb[0].mxu0
  %4727 = vmatprep.mubr.f32.mxu0 0.0
  %4728 = vmatmul.mubr.f32.gmra.mrb[0].mxu0 %v4228
  %v4729 = vpop.f32.mrb[0].mxu0
  %v4730 = vadd.f32 0.0, %v4729
  %v4731 = vpop.f32.mrb[0].mxu0
  %4732 = vmatprep.mubr.f32.mxu0 0.0
  %4733 = vmatmul.mubr.f32.gmra.mrb[0].mxu0 %v4231
  %v4734 = vpop.f32.mrb[0].mxu0
  %v4735 = vadd.f32 0.0, %v4734
  %v4736 = vpop.f32.mrb[0].mxu0
  %4737 = vmatprep.mubr.f32.mxu0 0.0
  %4738 = vmatmul.mubr.f32.gmra.mrb[0].mxu0 %v4234
  %v4739 = vpop.f32.mrb[0].mxu0
  %v4740 = vadd.f32 0.0, %v4739
  %v4741 = vpop.f32.mrb[0].mxu0
  %4742 = vmatprep.mubr.f32.mxu0 0.0
  %4743 = vmatmul.mubr.f32.gmra.mrb[0].mxu0 %v4237
  %v4744 = vpop.f32.mrb[0].mxu0
  %v4745 = vadd.f32 0.0, %v4744
  %v4746 = vpop.f32.mrb[0].mxu0
  %4747 = vmatprep.mubr.f32.mxu0 0.0
  %4748 = vmatmul.mubr.f32.gmra.mrb[0].mxu0 %v4240
  %v4749 = vpop.f32.mrb[0].mxu0
  %v4750 = vadd.f32 0.0, %v4749
  %v4751 = vpop.f32.mrb[0].mxu0
  %4752 = vmatprep.mubr.f32.mxu0 0.0
  %4753 = vmatmul.mubr.f32.gmra.mrb[0].mxu0 %v4243
  %v4754 = vpop.f32.mrb[0].mxu0
  %v4755 = vadd.f32 0.0, %v4754
  %v4756 = vpop.f32.mrb[0].mxu0
  %4757 = vmatprep.mubr.f32.mxu0 0.0
  %4758 = vmatmul.mubr.f32.gmra.mrb[0].mxu0 %v4246
  %v4759 = vpop.f32.mrb[0].mxu0
  %v4760 = vadd.f32 0.0, %v4759
  %v4761 = vpop.f32.mrb[0].mxu0
  %4762 = vmatprep.mubr.f32.mxu0 0.0
  %4763 = vmatmul.mubr.f32.gmra.mrb[0].mxu0 %v4249
  %v4764 = vpop.f32.mrb[0].mxu0
  %v4765 = vadd.f32 0.0, %v4764
  %v4766 = vpop.f32.mrb[0].mxu0
  %4767 = vmatprep.mubr.f32.mxu0 0.0
  %4768 = vmatmul.mubr.f32.gmra.mrb[0].mxu0 %v4252
  %v4769 = vpop.f32.mrb[0].mxu0
  %v4770 = vadd.f32 0.0, %v4769
  %v4771 = vpop.f32.mrb[0].mxu0
  %4772 = vmatprep.mubr.f32.mxu0 0.0
  %4773 = vmatmul.mubr.f32.gmra.mrb[0].mxu0 %v4255
  %v4774 = vpop.f32.mrb[0].mxu0
  %v4775 = vadd.f32 0.0, %v4774
  %v4776 = vpop.f32.mrb[0].mxu0
  %4777 = vmatprep.mubr.f32.mxu0 0.0
  %4778 = vmatmul.mubr.f32.gmra.mrb[0].mxu0 %v4258
  %v4779 = vpop.f32.mrb[0].mxu0
  %v4780 = vadd.f32 0.0, %v4779
  %v4781 = vpop.f32.mrb[0].mxu0
  %4782 = vmatprep.mubr.f32.mxu0 0.0
  %4783 = vmatmul.mubr.f32.gmra.mrb[0].mxu0 %v4261
  %v4784 = vpop.f32.mrb[0].mxu0
  %v4785 = vadd.f32 0.0, %v4784
  %v4786 = vpop.f32.mrb[0].mxu0
  %4787 = vmatprep.mubr.f32.mxu0 0.0
  %4788 = vmatmul.mubr.f32.gmra.mrb[0].mxu0 %v4264
  %v4789 = vpop.f32.mrb[0].mxu0
  %v4790 = vadd.f32 0.0, %v4789
  %v4791 = vpop.f32.mrb[0].mxu0
  %4792 = vmatprep.mubr.f32.mxu0 0.0
  %4793 = vmatmul.mubr.f32.gmra.mrb[0].mxu0 %v4267
  %v4794 = vpop.f32.mrb[0].mxu0
  %v4795 = vadd.f32 0.0, %v4794
  %v4796 = vpop.f32.mrb[0].mxu0
  %4797 = vmatprep.mubr.f32.mxu0 0.0
  %4798 = vmatmul.mubr.f32.gmra.mrb[0].mxu0 %v4270
  %v4799 = vpop.f32.mrb[0].mxu0
  %v4800 = vadd.f32 0.0, %v4799
  %v4801 = vpop.f32.mrb[0].mxu0
  %4802 = vmatprep.mubr.f32.mxu0 0.0
  %4803 = vmatmul.mubr.f32.gmra.mrb[0].mxu0 %v4273
  %v4804 = vpop.f32.mrb[0].mxu0
  %v4805 = vadd.f32 0.0, %v4804
  %v4806 = vpop.f32.mrb[0].mxu0
  %4807 = vmatprep.mubr.f32.mxu0 0.0
  %4808 = vmatmul.mubr.f32.gmra.mrb[0].mxu0 %v4276
  %v4809 = vpop.f32.mrb[0].mxu0
  %v4810 = vadd.f32 0.0, %v4809
  %v4811 = vpop.f32.mrb[0].mxu0
  %4812 = vmatprep.mubr.f32.mxu0 0.0
  %4813 = vmatmul.mubr.f32.gmra.mrb[0].mxu0 %v4279
  %v4814 = vpop.f32.mrb[0].mxu0
  %v4815 = vadd.f32 0.0, %v4814
  %v4816 = vpop.f32.mrb[0].mxu0
  %4817 = vmatprep.mubr.f32.mxu0 0.0
  %4818 = vmatmul.mubr.f32.gmra.mrb[0].mxu0 %v4282
  %v4819 = vpop.f32.mrb[0].mxu0
  %v4820 = vadd.f32 0.0, %v4819
  %v4821 = vpop.f32.mrb[0].mxu0
  %4822 = vmatprep.mubr.f32.mxu0 0.0
  %4823 = vmatmul.mubr.f32.gmra.mrb[0].mxu0 %v4285
  %v4824 = vpop.f32.mrb[0].mxu0
  %v4825 = vadd.f32 0.0, %v4824
  %v4826 = vpop.f32.mrb[0].mxu0
  %4827 = vmatprep.mubr.f32.mxu0 0.0
  %4828 = vmatmul.mubr.f32.gmra.mrb[0].mxu0 %v4288
  %v4829 = vpop.f32.mrb[0].mxu0
  %v4830 = vadd.f32 0.0, %v4829
  %v4831 = vpop.f32.mrb[0].mxu0
  %4832 = vmatprep.mubr.f32.mxu0 0.0
  %4833 = vmatmul.mubr.f32.gmra.mrb[0].mxu0 %v4291
  %v4834 = vpop.f32.mrb[0].mxu0
  %v4835 = vadd.f32 0.0, %v4834
  %v4836 = vpop.f32.mrb[0].mxu0
  %4837 = vmatprep.mubr.f32.mxu0 0.0
  %4838 = vmatmul.mubr.f32.gmra.mrb[0].mxu0 %v4294
  %v4839 = vpop.f32.mrb[0].mxu0
  %v4840 = vadd.f32 0.0, %v4839
  %v4841 = vpop.f32.mrb[0].mxu0
  %4842 = vmatprep.mubr.f32.mxu0 0.0
  %4843 = vmatmul.mubr.f32.gmra.mrb[0].mxu0 %v4297
  %v4844 = vpop.f32.mrb[0].mxu0
  %v4845 = vadd.f32 0.0, %v4844
  %v4846 = vpop.f32.mrb[0].mxu0
  %4847 = vmatprep.mubr.f32.mxu0 0.0
  %4848 = vmatmul.mubr.f32.gmra.mrb[0].mxu0 %v4300
  %v4849 = vpop.f32.mrb[0].mxu0
  %v4850 = vadd.f32 0.0, %v4849
  %v4851 = vpop.f32.mrb[0].mxu0
  %4852 = vmatprep.mubr.f32.mxu0 0.0
  %4853 = vmatmul.mubr.f32.gmra.mrb[0].mxu0 %v4303
  %v4854 = vpop.f32.mrb[0].mxu0
  %v4855 = vadd.f32 0.0, %v4854
  %v4856 = vpop.f32.mrb[0].mxu0
  %4857 = vmatprep.mubr.f32.mxu0 0.0
  %4858 = vmatmul.mubr.f32.gmra.mrb[0].mxu0 %v4306
  %v4859 = vpop.f32.mrb[0].mxu0
  %v4860 = vadd.f32 0.0, %v4859
  %v4861 = vpop.f32.mrb[0].mxu0
  %4862 = vdwg.mxu0
  %v4863 = vadd.f32 %v3425, %v4375
  %v4864 = vadd.f32 %v3430, %v4380
  %v4865 = vadd.f32 %v3435, %v4385
  %v4866 = vadd.f32 %v3440, %v4390
  %v4867 = vadd.f32 %v3445, %v4395
  %v4868 = vadd.f32 %v3450, %v4400
  %v4869 = vadd.f32 %v3455, %v4405
  %v4870 = vadd.f32 %v3460, %v4410
  %v4871 = vadd.f32 %v3465, %v4415
  %v4872 = vadd.f32 %v3470, %v4420
  %v4873 = vadd.f32 %v3475, %v4425
  %v4874 = vadd.f32 %v3480, %v4430
  %v4875 = vadd.f32 %v3485, %v4435
  %v4876 = vadd.f32 %v3490, %v4440
  %v4877 = vadd.f32 %v3495, %v4445
  %v4878 = vadd.f32 %v3500, %v4450
  %v4879 = vadd.f32 %v3505, %v4455
  %v4880 = vadd.f32 %v3510, %v4460
  %v4881 = vadd.f32 %v3515, %v4465
  %v4882 = vadd.f32 %v3520, %v4470
  %v4883 = vadd.f32 %v3525, %v4475
  %v4884 = vadd.f32 %v3530, %v4480
  %v4885 = vadd.f32 %v3535, %v4485
  %v4886 = vadd.f32 %v3540, %v4490
  %v4887 = vadd.f32 %v3545, %v4495
  %v4888 = vadd.f32 %v3550, %v4500
  %v4889 = vadd.f32 %v3555, %v4505
  %v4890 = vadd.f32 %v3560, %v4510
  %v4891 = vadd.f32 %v3565, %v4515
  %v4892 = vadd.f32 %v3570, %v4520
  %v4893 = vadd.f32 %v3575, %v4525
  %v4894 = vadd.f32 %v3580, %v4530
  %v4895 = vadd.f32 %v3585, %v4535
  %v4896 = vadd.f32 %v3590, %v4540
  %v4897 = vadd.f32 %v3595, %v4545
  %v4898 = vadd.f32 %v3600, %v4550
  %v4899 = vadd.f32 %v3605, %v4555
  %v4900 = vadd.f32 %v3610, %v4560
  %v4901 = vadd.f32 %v3615, %v4565
  %v4902 = vadd.f32 %v3620, %v4570
  %v4903 = vadd.f32 %v3625, %v4575
  %v4904 = vadd.f32 %v3630, %v4580
  %v4905 = vadd.f32 %v3635, %v4585
  %v4906 = vadd.f32 %v3640, %v4590
  %v4907 = vadd.f32 %v3645, %v4595
  %v4908 = vadd.f32 %v3650, %v4600
  %v4909 = vadd.f32 %v3655, %v4605
  %v4910 = vadd.f32 %v3660, %v4610
  %v4911 = vadd.f32 %v3665, %v4615
  %v4912 = vadd.f32 %v3670, %v4620
  %v4913 = vadd.f32 %v3675, %v4625
  %v4914 = vadd.f32 %v3680, %v4630
  %v4915 = vadd.f32 %v3685, %v4635
  %v4916 = vadd.f32 %v3690, %v4640
  %v4917 = vadd.f32 %v3695, %v4645
  %v4918 = vadd.f32 %v3700, %v4650
  %v4919 = vadd.f32 %v3705, %v4655
  %v4920 = vadd.f32 %v3710, %v4660
  %v4921 = vadd.f32 %v3715, %v4665
  %v4922 = vadd.f32 %v3720, %v4670
  %v4923 = vadd.f32 %v3725, %v4675
  %v4924 = vadd.f32 %v3730, %v4680
  %v4925 = vadd.f32 %v3735, %v4685
  %v4926 = vadd.f32 %v3740, %v4690
  %v4927 = vadd.f32 %v3745, %v4695
  %v4928 = vadd.f32 %v3750, %v4700
  %v4929 = vadd.f32 %v3755, %v4705
  %v4930 = vadd.f32 %v3760, %v4710
  %v4931 = vadd.f32 %v3765, %v4715
  %v4932 = vadd.f32 %v3770, %v4720
  %v4933 = vadd.f32 %v3775, %v4725
  %v4934 = vadd.f32 %v3780, %v4730
  %v4935 = vadd.f32 %v3785, %v4735
  %v4936 = vadd.f32 %v3790, %v4740
  %v4937 = vadd.f32 %v3795, %v4745
  %v4938 = vadd.f32 %v3800, %v4750
  %v4939 = vadd.f32 %v3805, %v4755
  %v4940 = vadd.f32 %v3810, %v4760
  %v4941 = vadd.f32 %v3815, %v4765
  %v4942 = vadd.f32 %v3820, %v4770
  %v4943 = vadd.f32 %v3825, %v4775
  %v4944 = vadd.f32 %v3830, %v4780
  %v4945 = vadd.f32 %v3835, %v4785
  %v4946 = vadd.f32 %v3840, %v4790
  %v4947 = vadd.f32 %v3845, %v4795
  %v4948 = vadd.f32 %v3850, %v4800
  %v4949 = vadd.f32 %v3855, %v4805
  %v4950 = vadd.f32 %v3860, %v4810
  %v4951 = vadd.f32 %v3865, %v4815
  %v4952 = vadd.f32 %v3870, %v4820
  %v4953 = vadd.f32 %v3875, %v4825
  %v4954 = vadd.f32 %v3880, %v4830
  %v4955 = vadd.f32 %v3885, %v4835
  %v4956 = vadd.f32 %v3890, %v4840
  %v4957 = vadd.f32 %v3895, %v4845
  %v4958 = vadd.f32 %v3900, %v4850
  %v4959 = vadd.f32 %v3905, %v4855
  %v4960 = vadd.f32 %v3910, %v4860
  %v4961 = vld [vmem:[#allocation3 + $0x1c] sm:$0xff]
  %v4962 = vld [vmem:[#allocation3 + $0x24] sm:$0xff]
  %v4963 = vld [vmem:[#allocation3 + $0x2c] sm:$0xff]
  %v4964 = vld [vmem:[#allocation3 + $0x34] sm:$0xff]
  %v4965 = vld [vmem:[#allocation3 + $0x3c] sm:$0xff]
  %v4966 = vld [vmem:[#allocation3 + $0x44] sm:$0xff]
  %v4967 = vld [vmem:[#allocation3 + $0x4c] sm:$0xff]
  %v4968 = vld [vmem:[#allocation3 + $0x54] sm:$0xff]
  %v4969 = vld [vmem:[#allocation3 + $0x5c] sm:$0xff]
  %v4970 = vld [vmem:[#allocation3 + $0x64] sm:$0xff]
  %v4971 = vld [vmem:[#allocation3 + $0x6c] sm:$0xff]
  %v4972 = vld [vmem:[#allocation3 + $0x74] sm:$0xff]
  %v4973 = vld [vmem:[#allocation3 + $0x7c] sm:$0xff]
  %v4974 = vld [vmem:[#allocation3 + $0x84] sm:$0xff]
  %v4975 = vld [vmem:[#allocation3 + $0x8c] sm:$0xff]
  %v4976 = vld [vmem:[#allocation3 + $0x94] sm:$0xff]
  %v4977 = vld [vmem:[#allocation3 + $0x9c] sm:$0xff]
  %v4978 = vld [vmem:[#allocation3 + $0xa4] sm:$0xff]
  %v4979 = vld [vmem:[#allocation3 + $0xac] sm:$0xff]
  %v4980 = vld [vmem:[#allocation3 + $0xb4] sm:$0xff]
  %v4981 = vld [vmem:[#allocation3 + $0xbc] sm:$0xff]
  %v4982 = vld [vmem:[#allocation3 + $0xc4] sm:$0xff]
  %v4983 = vld [vmem:[#allocation3 + $0xcc] sm:$0xff]
  %v4984 = vld [vmem:[#allocation3 + $0xd4] sm:$0xff]
  %v4985 = vld [vmem:[#allocation3 + $0xdc] sm:$0xff]
  %v4986 = vld [vmem:[#allocation3 + $0xe4] sm:$0xff]
  %v4987 = vld [vmem:[#allocation3 + $0xec] sm:$0xff]
  %v4988 = vld [vmem:[#allocation3 + $0xf4] sm:$0xff]
  %v4989 = vld [vmem:[#allocation3 + $0xfc] sm:$0xff]
  %v4990 = vld [vmem:[#allocation3 + $0x104] sm:$0xff]
  %v4991 = vld [vmem:[#allocation3 + $0x10c] sm:$0xff]
  %v4992 = vld [vmem:[#allocation3 + $0x114] sm:$0xff]
  %v4993 = vld [vmem:[#allocation3 + $0x11c] sm:$0xff]
  %v4994 = vld [vmem:[#allocation3 + $0x124] sm:$0xff]
  %v4995 = vld [vmem:[#allocation3 + $0x12c] sm:$0xff]
  %v4996 = vld [vmem:[#allocation3 + $0x134] sm:$0xff]
  %v4997 = vld [vmem:[#allocation3 + $0x13c] sm:$0xff]
  %v4998 = vld [vmem:[#allocation3 + $0x144] sm:$0xff]
  %v4999 = vld [vmem:[#allocation3 + $0x14c] sm:$0xff]
  %v5000 = vld [vmem:[#allocation3 + $0x154] sm:$0xff]
  %v5001 = vld [vmem:[#allocation3 + $0x15c] sm:$0xff]
  %v5002 = vld [vmem:[#allocation3 + $0x164] sm:$0xff]
  %v5003 = vld [vmem:[#allocation3 + $0x16c] sm:$0xff]
  %v5004 = vld [vmem:[#allocation3 + $0x174] sm:$0xff]
  %v5005 = vld [vmem:[#allocation3 + $0x17c] sm:$0xff]
  %v5006 = vld [vmem:[#allocation3 + $0x184] sm:$0xff]
  %v5007 = vld [vmem:[#allocation3 + $0x18c] sm:$0xff]
  %v5008 = vld [vmem:[#allocation3 + $0x194] sm:$0xff]
  %v5009 = vld [vmem:[#allocation3 + $0x19c] sm:$0xff]
  %v5010 = vld [vmem:[#allocation3 + $0x1a4] sm:$0xff]
  %v5011 = vld [vmem:[#allocation3 + $0x1ac] sm:$0xff]
  %v5012 = vld [vmem:[#allocation3 + $0x1b4] sm:$0xff]
  %v5013 = vld [vmem:[#allocation3 + $0x1bc] sm:$0xff]
  %v5014 = vld [vmem:[#allocation3 + $0x1c4] sm:$0xff]
  %v5015 = vld [vmem:[#allocation3 + $0x1cc] sm:$0xff]
  %v5016 = vld [vmem:[#allocation3 + $0x1d4] sm:$0xff]
  %v5017 = vld [vmem:[#allocation3 + $0x1dc] sm:$0xff]
  %v5018 = vld [vmem:[#allocation3 + $0x1e4] sm:$0xff]
  %v5019 = vld [vmem:[#allocation3 + $0x1ec] sm:$0xff]
  %v5020 = vld [vmem:[#allocation3 + $0x1f4] sm:$0xff]
  %v5021 = vld [vmem:[#allocation3 + $0x1fc] sm:$0xff]
  %v5022 = vld [vmem:[#allocation3 + $0x204] sm:$0xff]
  %v5023 = vld [vmem:[#allocation3 + $0x20c] sm:$0xff]
  %v5024 = vld [vmem:[#allocation3 + $0x214] sm:$0xff]
  %v5025 = vld [vmem:[#allocation3 + $0x21c] sm:$0xff]
  %v5026 = vld [vmem:[#allocation3 + $0x224] sm:$0xff]
  %v5027 = vld [vmem:[#allocation3 + $0x22c] sm:$0xff]
  %v5028 = vld [vmem:[#allocation3 + $0x234] sm:$0xff]
  %v5029 = vld [vmem:[#allocation3 + $0x23c] sm:$0xff]
  %v5030 = vld [vmem:[#allocation3 + $0x244] sm:$0xff]
  %v5031 = vld [vmem:[#allocation3 + $0x24c] sm:$0xff]
  %v5032 = vld [vmem:[#allocation3 + $0x254] sm:$0xff]
  %v5033 = vld [vmem:[#allocation3 + $0x25c] sm:$0xff]
  %v5034 = vld [vmem:[#allocation3 + $0x264] sm:$0xff]
  %v5035 = vld [vmem:[#allocation3 + $0x26c] sm:$0xff]
  %v5036 = vld [vmem:[#allocation3 + $0x274] sm:$0xff]
  %v5037 = vld [vmem:[#allocation3 + $0x27c] sm:$0xff]
  %v5038 = vld [vmem:[#allocation3 + $0x284] sm:$0xff]
  %v5039 = vld [vmem:[#allocation3 + $0x28c] sm:$0xff]
  %v5040 = vld [vmem:[#allocation3 + $0x294] sm:$0xff]
  %v5041 = vld [vmem:[#allocation3 + $0x29c] sm:$0xff]
  %v5042 = vld [vmem:[#allocation3 + $0x2a4] sm:$0xff]
  %v5043 = vld [vmem:[#allocation3 + $0x2ac] sm:$0xff]
  %v5044 = vld [vmem:[#allocation3 + $0x2b4] sm:$0xff]
  %v5045 = vld [vmem:[#allocation3 + $0x2bc] sm:$0xff]
  %v5046 = vld [vmem:[#allocation3 + $0x2c4] sm:$0xff]
  %v5047 = vld [vmem:[#allocation3 + $0x2cc] sm:$0xff]
  %v5048 = vld [vmem:[#allocation3 + $0x2d4] sm:$0xff]
  %v5049 = vld [vmem:[#allocation3 + $0x2dc] sm:$0xff]
  %v5050 = vld [vmem:[#allocation3 + $0x2e4] sm:$0xff]
  %v5051 = vld [vmem:[#allocation3 + $0x2ec] sm:$0xff]
  %v5052 = vld [vmem:[#allocation3 + $0x2f4] sm:$0xff]
  %v5053 = vld [vmem:[#allocation3 + $0x2fc] sm:$0xff]
  %v5054 = vld [vmem:[#allocation3 + $0x304] sm:$0xff]
  %v5055 = vld [vmem:[#allocation3 + $0x30c] sm:$0xff]
  %v5056 = vld [vmem:[#allocation3 + $0x314] sm:$0xff]
  %v5057 = vld [vmem:[#allocation3 + $0x31c] sm:$0xff]
  %v5058 = vld [vmem:[#allocation3 + $0x324] sm:$0xff]
  %s5059 = scalar_lea.vmem %s3, 48
  %v5060 = vld [vmem:[%s5059] sm:$0xff]
  %v5061 = vld [vmem:[%s5059 + $0x8] sm:$0xff]
  %v5063 = vsel %vm46, %v4961, 0
  %v5066 = vsel %vm46, %v4962, 0
  %v5069 = vsel %vm46, %v4963, 0
  %v5072 = vsel %vm46, %v4964, 0
  %v5075 = vsel %vm46, %v4965, 0
  %v5078 = vsel %vm46, %v4966, 0
  %v5081 = vsel %vm46, %v4967, 0
  %v5084 = vsel %vm46, %v4968, 0
  %v5087 = vsel %vm46, %v4969, 0
  %v5090 = vsel %vm46, %v4970, 0
  %v5093 = vsel %vm46, %v4971, 0
  %v5096 = vsel %vm46, %v4972, 0
  %v5099 = vsel %vm46, %v4973, 0
  %v5102 = vsel %vm46, %v4974, 0
  %v5105 = vsel %vm46, %v4975, 0
  %v5108 = vsel %vm46, %v4976, 0
  %v5111 = vsel %vm46, %v4977, 0
  %v5114 = vsel %vm46, %v4978, 0
  %v5117 = vsel %vm46, %v4979, 0
  %v5120 = vsel %vm46, %v4980, 0
  %v5123 = vsel %vm46, %v4981, 0
  %v5126 = vsel %vm46, %v4982, 0
  %v5129 = vsel %vm46, %v4983, 0
  %v5132 = vsel %vm46, %v4984, 0
  %v5135 = vsel %vm46, %v4985, 0
  %v5138 = vsel %vm46, %v4986, 0
  %v5141 = vsel %vm46, %v4987, 0
  %v5144 = vsel %vm46, %v4988, 0
  %v5147 = vsel %vm46, %v4989, 0
  %v5150 = vsel %vm46, %v4990, 0
  %v5153 = vsel %vm46, %v4991, 0
  %v5156 = vsel %vm46, %v4992, 0
  %v5159 = vsel %vm46, %v4993, 0
  %v5162 = vsel %vm46, %v4994, 0
  %v5165 = vsel %vm46, %v4995, 0
  %v5168 = vsel %vm46, %v4996, 0
  %v5171 = vsel %vm46, %v4997, 0
  %v5174 = vsel %vm46, %v4998, 0
  %v5177 = vsel %vm46, %v4999, 0
  %v5180 = vsel %vm46, %v5000, 0
  %v5183 = vsel %vm46, %v5001, 0
  %v5186 = vsel %vm46, %v5002, 0
  %v5189 = vsel %vm46, %v5003, 0
  %v5192 = vsel %vm46, %v5004, 0
  %v5195 = vsel %vm46, %v5005, 0
  %v5198 = vsel %vm46, %v5006, 0
  %v5201 = vsel %vm46, %v5007, 0
  %v5204 = vsel %vm46, %v5008, 0
  %v5207 = vsel %vm46, %v5009, 0
  %v5210 = vsel %vm46, %v5010, 0
  %v5213 = vsel %vm46, %v5011, 0
  %v5216 = vsel %vm46, %v5012, 0
  %v5219 = vsel %vm46, %v5013, 0
  %v5222 = vsel %vm46, %v5014, 0
  %v5225 = vsel %vm46, %v5015, 0
  %v5228 = vsel %vm46, %v5016, 0
  %v5231 = vsel %vm46, %v5017, 0
  %v5234 = vsel %vm46, %v5018, 0
  %v5237 = vsel %vm46, %v5019, 0
  %v5240 = vsel %vm46, %v5020, 0
  %v5243 = vsel %vm46, %v5021, 0
  %v5246 = vsel %vm46, %v5022, 0
  %v5249 = vsel %vm46, %v5023, 0
  %v5252 = vsel %vm46, %v5024, 0
  %v5255 = vsel %vm46, %v5025, 0
  %v5258 = vsel %vm46, %v5026, 0
  %v5261 = vsel %vm46, %v5027, 0
  %v5264 = vsel %vm46, %v5028, 0
  %v5267 = vsel %vm46, %v5029, 0
  %v5270 = vsel %vm46, %v5030, 0
  %v5273 = vsel %vm46, %v5031, 0
  %v5276 = vsel %vm46, %v5032, 0
  %v5279 = vsel %vm46, %v5033, 0
  %v5282 = vsel %vm46, %v5034, 0
  %v5285 = vsel %vm46, %v5035, 0
  %v5288 = vsel %vm46, %v5036, 0
  %v5291 = vsel %vm46, %v5037, 0
  %v5294 = vsel %vm46, %v5038, 0
  %v5297 = vsel %vm46, %v5039, 0
  %v5300 = vsel %vm46, %v5040, 0
  %v5303 = vsel %vm46, %v5041, 0
  %v5306 = vsel %vm46, %v5042, 0
  %v5309 = vsel %vm46, %v5043, 0
  %v5312 = vsel %vm46, %v5044, 0
  %v5315 = vsel %vm46, %v5045, 0
  %v5318 = vsel %vm46, %v5046, 0
  %v5321 = vsel %vm46, %v5047, 0
  %v5324 = vsel %vm46, %v5048, 0
  %v5327 = vsel %vm46, %v5049, 0
  %v5330 = vsel %vm46, %v5050, 0
  %v5333 = vsel %vm46, %v5051, 0
  %v5336 = vsel %vm46, %v5052, 0
  %v5339 = vsel %vm46, %v5053, 0
  %v5342 = vsel %vm46, %v5054, 0
  %v5345 = vsel %vm46, %v5055, 0
  %v5348 = vsel %vm46, %v5056, 0
  %v5351 = vsel %vm46, %v5057, 0
  %v5354 = vsel %vm46, %v5058, 0
  %5356 = vmatprep.subr.mxu0 0.0
  %5357 = vmatpush1.msra.mxu0 %v5060
  %5358 = vmatprep.subr.mxu0 0.0
  %5359 = vmatpush1.msra.mxu0 %v5061
  %5360 = vmatprep.subr.mxu0 0.0
  %5361 = vmatpush1.msra.mxu0 0.0
  %5362 = vmatprep.subr.mxu0 0.0
  %5363 = vmatpush1.msra.mxu0 0.0
  %5364 = vmatprep.subr.mxu0 0.0
  %5365 = vmatpush1.msra.mxu0 0.0
  %5366 = vmatprep.subr.mxu0 0.0
  %5367 = vmatpush1.msra.mxu0 0.0
  %5368 = vmatprep.subr.mxu0 0.0
  %5369 = vmatpush1.msra.mxu0 0.0
  %5370 = vmatprep.subr.mxu0 0.0
  %5371 = vmatpush1.msra.mxu0 0.0
  %5372 = vmatprep.subr.mxu0 0.0
  %5373 = vmatpush1.msra.mxu0 0.0
  %5374 = vmatprep.subr.mxu0 0.0
  %5375 = vmatpush1.msra.mxu0 0.0
  %5376 = vmatprep.subr.mxu0 0.0
  %5377 = vmatpush1.msra.mxu0 0.0
  %5378 = vmatprep.subr.mxu0 0.0
  %5379 = vmatpush1.msra.mxu0 0.0
  %5380 = vmatprep.subr.mxu0 0.0
  %5381 = vmatpush1.msra.mxu0 0.0
  %5382 = vmatprep.subr.mxu0 0.0
  %5383 = vmatpush1.msra.mxu0 0.0
  %5384 = vmatprep.subr.mxu0 0.0
  %5385 = vmatpush1.msra.mxu0 0.0
  %5386 = vmatprep.subr.mxu0 0.0
  %5387 = vmatpush1.msra.mxu0 0.0
  %5388 = vmatprep.subr.mxu0 0.0
  %5389 = vmatpush1.msra.mxu0 0.0
  %5390 = vmatprep.subr.mxu0 0.0
  %5391 = vmatpush1.msra.mxu0 0.0
  %5392 = vmatprep.subr.mxu0 0.0
  %5393 = vmatpush1.msra.mxu0 0.0
  %5394 = vmatprep.subr.mxu0 0.0
  %5395 = vmatpush1.msra.mxu0 0.0
  %5396 = vmatprep.subr.mxu0 0.0
  %5397 = vmatpush1.msra.mxu0 0.0
  %5398 = vmatprep.subr.mxu0 0.0
  %5399 = vmatpush1.msra.mxu0 0.0
  %5400 = vmatprep.subr.mxu0 0.0
  %5401 = vmatpush1.msra.mxu0 0.0
  %5402 = vmatprep.subr.mxu0 0.0
  %5403 = vmatpush1.msra.mxu0 0.0
  %5404 = vmatprep.subr.mxu0 0.0
  %5405 = vmatpush1.msra.mxu0 0.0
  %5406 = vmatprep.subr.mxu0 0.0
  %5407 = vmatpush1.msra.mxu0 0.0
  %5408 = vmatprep.subr.mxu0 0.0
  %5409 = vmatpush1.msra.mxu0 0.0
  %5410 = vmatprep.subr.mxu0 0.0
  %5411 = vmatpush1.msra.mxu0 0.0
  %5412 = vmatprep.subr.mxu0 0.0
  %5413 = vmatpush1.msra.mxu0 0.0
  %5414 = vmatprep.subr.mxu0 0.0
  %5415 = vmatpush1.msra.mxu0 0.0
  %5416 = vmatprep.subr.mxu0 0.0
  %5417 = vmatpush1.msra.mxu0 0.0
  %5418 = vmatprep.subr.mxu0 0.0
  %5419 = vmatpush1.msra.mxu0 0.0
  %5420 = vmatprep.mubr.f32.mxu0 0.0
  %5421 = vmatmul.mubr.f32.gmra.mrb[0].mxu0 %v5063
  %v5422 = vpop.f32.mrb[0].mxu0
  %v5423 = vadd.f32 0.0, %v5422
  %v5424 = vpop.f32.mrb[0].mxu0
  %5425 = vmatprep.mubr.f32.mxu0 0.0
  %5426 = vmatmul.mubr.f32.gmra.mrb[0].mxu0 %v5066
  %v5427 = vpop.f32.mrb[0].mxu0
  %v5428 = vadd.f32 0.0, %v5427
  %v5429 = vpop.f32.mrb[0].mxu0
  %5430 = vmatprep.mubr.f32.mxu0 0.0
  %5431 = vmatmul.mubr.f32.gmra.mrb[0].mxu0 %v5069
  %v5432 = vpop.f32.mrb[0].mxu0
  %v5433 = vadd.f32 0.0, %v5432
  %v5434 = vpop.f32.mrb[0].mxu0
  %5435 = vmatprep.mubr.f32.mxu0 0.0
  %5436 = vmatmul.mubr.f32.gmra.mrb[0].mxu0 %v5072
  %v5437 = vpop.f32.mrb[0].mxu0
  %v5438 = vadd.f32 0.0, %v5437
  %v5439 = vpop.f32.mrb[0].mxu0
  %5440 = vmatprep.mubr.f32.mxu0 0.0
  %5441 = vmatmul.mubr.f32.gmra.mrb[0].mxu0 %v5075
  %v5442 = vpop.f32.mrb[0].mxu0
  %v5443 = vadd.f32 0.0, %v5442
  %v5444 = vpop.f32.mrb[0].mxu0
  %5445 = vmatprep.mubr.f32.mxu0 0.0
  %5446 = vmatmul.mubr.f32.gmra.mrb[0].mxu0 %v5078
  %v5447 = vpop.f32.mrb[0].mxu0
  %v5448 = vadd.f32 0.0, %v5447
  %v5449 = vpop.f32.mrb[0].mxu0
  %5450 = vmatprep.mubr.f32.mxu0 0.0
  %5451 = vmatmul.mubr.f32.gmra.mrb[0].mxu0 %v5081
  %v5452 = vpop.f32.mrb[0].mxu0
  %v5453 = vadd.f32 0.0, %v5452
  %v5454 = vpop.f32.mrb[0].mxu0
  %5455 = vmatprep.mubr.f32.mxu0 0.0
  %5456 = vmatmul.mubr.f32.gmra.mrb[0].mxu0 %v5084
  %v5457 = vpop.f32.mrb[0].mxu0
  %v5458 = vadd.f32 0.0, %v5457
  %v5459 = vpop.f32.mrb[0].mxu0
  %5460 = vmatprep.mubr.f32.mxu0 0.0
  %5461 = vmatmul.mubr.f32.gmra.mrb[0].mxu0 %v5087
  %v5462 = vpop.f32.mrb[0].mxu0
  %v5463 = vadd.f32 0.0, %v5462
  %v5464 = vpop.f32.mrb[0].mxu0
  %5465 = vmatprep.mubr.f32.mxu0 0.0
  %5466 = vmatmul.mubr.f32.gmra.mrb[0].mxu0 %v5090
  %v5467 = vpop.f32.mrb[0].mxu0
  %v5468 = vadd.f32 0.0, %v5467
  %v5469 = vpop.f32.mrb[0].mxu0
  %5470 = vmatprep.mubr.f32.mxu0 0.0
  %5471 = vmatmul.mubr.f32.gmra.mrb[0].mxu0 %v5093
  %v5472 = vpop.f32.mrb[0].mxu0
  %v5473 = vadd.f32 0.0, %v5472
  %v5474 = vpop.f32.mrb[0].mxu0
  %5475 = vmatprep.mubr.f32.mxu0 0.0
  %5476 = vmatmul.mubr.f32.gmra.mrb[0].mxu0 %v5096
  %v5477 = vpop.f32.mrb[0].mxu0
  %v5478 = vadd.f32 0.0, %v5477
  %v5479 = vpop.f32.mrb[0].mxu0
  %5480 = vmatprep.mubr.f32.mxu0 0.0
  %5481 = vmatmul.mubr.f32.gmra.mrb[0].mxu0 %v5099
  %v5482 = vpop.f32.mrb[0].mxu0
  %v5483 = vadd.f32 0.0, %v5482
  %v5484 = vpop.f32.mrb[0].mxu0
  %5485 = vmatprep.mubr.f32.mxu0 0.0
  %5486 = vmatmul.mubr.f32.gmra.mrb[0].mxu0 %v5102
  %v5487 = vpop.f32.mrb[0].mxu0
  %v5488 = vadd.f32 0.0, %v5487
  %v5489 = vpop.f32.mrb[0].mxu0
  %5490 = vmatprep.mubr.f32.mxu0 0.0
  %5491 = vmatmul.mubr.f32.gmra.mrb[0].mxu0 %v5105
  %v5492 = vpop.f32.mrb[0].mxu0
  %v5493 = vadd.f32 0.0, %v5492
  %v5494 = vpop.f32.mrb[0].mxu0
  %5495 = vmatprep.mubr.f32.mxu0 0.0
  %5496 = vmatmul.mubr.f32.gmra.mrb[0].mxu0 %v5108
  %v5497 = vpop.f32.mrb[0].mxu0
  %v5498 = vadd.f32 0.0, %v5497
  %v5499 = vpop.f32.mrb[0].mxu0
  %5500 = vmatprep.mubr.f32.mxu0 0.0
  %5501 = vmatmul.mubr.f32.gmra.mrb[0].mxu0 %v5111
  %v5502 = vpop.f32.mrb[0].mxu0
  %v5503 = vadd.f32 0.0, %v5502
  %v5504 = vpop.f32.mrb[0].mxu0
  %5505 = vmatprep.mubr.f32.mxu0 0.0
  %5506 = vmatmul.mubr.f32.gmra.mrb[0].mxu0 %v5114
  %v5507 = vpop.f32.mrb[0].mxu0
  %v5508 = vadd.f32 0.0, %v5507
  %v5509 = vpop.f32.mrb[0].mxu0
  %5510 = vmatprep.mubr.f32.mxu0 0.0
  %5511 = vmatmul.mubr.f32.gmra.mrb[0].mxu0 %v5117
  %v5512 = vpop.f32.mrb[0].mxu0
  %v5513 = vadd.f32 0.0, %v5512
  %v5514 = vpop.f32.mrb[0].mxu0
  %5515 = vmatprep.mubr.f32.mxu0 0.0
  %5516 = vmatmul.mubr.f32.gmra.mrb[0].mxu0 %v5120
  %v5517 = vpop.f32.mrb[0].mxu0
  %v5518 = vadd.f32 0.0, %v5517
  %v5519 = vpop.f32.mrb[0].mxu0
  %5520 = vmatprep.mubr.f32.mxu0 0.0
  %5521 = vmatmul.mubr.f32.gmra.mrb[0].mxu0 %v5123
  %v5522 = vpop.f32.mrb[0].mxu0
  %v5523 = vadd.f32 0.0, %v5522
  %v5524 = vpop.f32.mrb[0].mxu0
  %5525 = vmatprep.mubr.f32.mxu0 0.0
  %5526 = vmatmul.mubr.f32.gmra.mrb[0].mxu0 %v5126
  %v5527 = vpop.f32.mrb[0].mxu0
  %v5528 = vadd.f32 0.0, %v5527
  %v5529 = vpop.f32.mrb[0].mxu0
  %5530 = vmatprep.mubr.f32.mxu0 0.0
  %5531 = vmatmul.mubr.f32.gmra.mrb[0].mxu0 %v5129
  %v5532 = vpop.f32.mrb[0].mxu0
  %v5533 = vadd.f32 0.0, %v5532
  %v5534 = vpop.f32.mrb[0].mxu0
  %5535 = vmatprep.mubr.f32.mxu0 0.0
  %5536 = vmatmul.mubr.f32.gmra.mrb[0].mxu0 %v5132
  %v5537 = vpop.f32.mrb[0].mxu0
  %v5538 = vadd.f32 0.0, %v5537
  %v5539 = vpop.f32.mrb[0].mxu0
  %5540 = vmatprep.mubr.f32.mxu0 0.0
  %5541 = vmatmul.mubr.f32.gmra.mrb[0].mxu0 %v5135
  %v5542 = vpop.f32.mrb[0].mxu0
  %v5543 = vadd.f32 0.0, %v5542
  %v5544 = vpop.f32.mrb[0].mxu0
  %5545 = vmatprep.mubr.f32.mxu0 0.0
  %5546 = vmatmul.mubr.f32.gmra.mrb[0].mxu0 %v5138
  %v5547 = vpop.f32.mrb[0].mxu0
  %v5548 = vadd.f32 0.0, %v5547
  %v5549 = vpop.f32.mrb[0].mxu0
  %5550 = vmatprep.mubr.f32.mxu0 0.0
  %5551 = vmatmul.mubr.f32.gmra.mrb[0].mxu0 %v5141
  %v5552 = vpop.f32.mrb[0].mxu0
  %v5553 = vadd.f32 0.0, %v5552
  %v5554 = vpop.f32.mrb[0].mxu0
  %5555 = vmatprep.mubr.f32.mxu0 0.0
  %5556 = vmatmul.mubr.f32.gmra.mrb[0].mxu0 %v5144
  %v5557 = vpop.f32.mrb[0].mxu0
  %v5558 = vadd.f32 0.0, %v5557
  %v5559 = vpop.f32.mrb[0].mxu0
  %5560 = vmatprep.mubr.f32.mxu0 0.0
  %5561 = vmatmul.mubr.f32.gmra.mrb[0].mxu0 %v5147
  %v5562 = vpop.f32.mrb[0].mxu0
  %v5563 = vadd.f32 0.0, %v5562
  %v5564 = vpop.f32.mrb[0].mxu0
  %5565 = vmatprep.mubr.f32.mxu0 0.0
  %5566 = vmatmul.mubr.f32.gmra.mrb[0].mxu0 %v5150
  %v5567 = vpop.f32.mrb[0].mxu0
  %v5568 = vadd.f32 0.0, %v5567
  %v5569 = vpop.f32.mrb[0].mxu0
  %5570 = vmatprep.mubr.f32.mxu0 0.0
  %5571 = vmatmul.mubr.f32.gmra.mrb[0].mxu0 %v5153
  %v5572 = vpop.f32.mrb[0].mxu0
  %v5573 = vadd.f32 0.0, %v5572
  %v5574 = vpop.f32.mrb[0].mxu0
  %5575 = vmatprep.mubr.f32.mxu0 0.0
  %5576 = vmatmul.mubr.f32.gmra.mrb[0].mxu0 %v5156
  %v5577 = vpop.f32.mrb[0].mxu0
  %v5578 = vadd.f32 0.0, %v5577
  %v5579 = vpop.f32.mrb[0].mxu0
  %5580 = vmatprep.mubr.f32.mxu0 0.0
  %5581 = vmatmul.mubr.f32.gmra.mrb[0].mxu0 %v5159
  %v5582 = vpop.f32.mrb[0].mxu0
  %v5583 = vadd.f32 0.0, %v5582
  %v5584 = vpop.f32.mrb[0].mxu0
  %5585 = vmatprep.mubr.f32.mxu0 0.0
  %5586 = vmatmul.mubr.f32.gmra.mrb[0].mxu0 %v5162
  %v5587 = vpop.f32.mrb[0].mxu0
  %v5588 = vadd.f32 0.0, %v5587
  %v5589 = vpop.f32.mrb[0].mxu0
  %5590 = vmatprep.mubr.f32.mxu0 0.0
  %5591 = vmatmul.mubr.f32.gmra.mrb[0].mxu0 %v5165
  %v5592 = vpop.f32.mrb[0].mxu0
  %v5593 = vadd.f32 0.0, %v5592
  %v5594 = vpop.f32.mrb[0].mxu0
  %5595 = vmatprep.mubr.f32.mxu0 0.0
  %5596 = vmatmul.mubr.f32.gmra.mrb[0].mxu0 %v5168
  %v5597 = vpop.f32.mrb[0].mxu0
  %v5598 = vadd.f32 0.0, %v5597
  %v5599 = vpop.f32.mrb[0].mxu0
  %5600 = vmatprep.mubr.f32.mxu0 0.0
  %5601 = vmatmul.mubr.f32.gmra.mrb[0].mxu0 %v5171
  %v5602 = vpop.f32.mrb[0].mxu0
  %v5603 = vadd.f32 0.0, %v5602
  %v5604 = vpop.f32.mrb[0].mxu0
  %5605 = vmatprep.mubr.f32.mxu0 0.0
  %5606 = vmatmul.mubr.f32.gmra.mrb[0].mxu0 %v5174
  %v5607 = vpop.f32.mrb[0].mxu0
  %v5608 = vadd.f32 0.0, %v5607
  %v5609 = vpop.f32.mrb[0].mxu0
  %5610 = vmatprep.mubr.f32.mxu0 0.0
  %5611 = vmatmul.mubr.f32.gmra.mrb[0].mxu0 %v5177
  %v5612 = vpop.f32.mrb[0].mxu0
  %v5613 = vadd.f32 0.0, %v5612
  %v5614 = vpop.f32.mrb[0].mxu0
  %5615 = vmatprep.mubr.f32.mxu0 0.0
  %5616 = vmatmul.mubr.f32.gmra.mrb[0].mxu0 %v5180
  %v5617 = vpop.f32.mrb[0].mxu0
  %v5618 = vadd.f32 0.0, %v5617
  %v5619 = vpop.f32.mrb[0].mxu0
  %5620 = vmatprep.mubr.f32.mxu0 0.0
  %5621 = vmatmul.mubr.f32.gmra.mrb[0].mxu0 %v5183
  %v5622 = vpop.f32.mrb[0].mxu0
  %v5623 = vadd.f32 0.0, %v5622
  %v5624 = vpop.f32.mrb[0].mxu0
  %5625 = vmatprep.mubr.f32.mxu0 0.0
  %5626 = vmatmul.mubr.f32.gmra.mrb[0].mxu0 %v5186
  %v5627 = vpop.f32.mrb[0].mxu0
  %v5628 = vadd.f32 0.0, %v5627
  %v5629 = vpop.f32.mrb[0].mxu0
  %5630 = vmatprep.mubr.f32.mxu0 0.0
  %5631 = vmatmul.mubr.f32.gmra.mrb[0].mxu0 %v5189
  %v5632 = vpop.f32.mrb[0].mxu0
  %v5633 = vadd.f32 0.0, %v5632
  %v5634 = vpop.f32.mrb[0].mxu0
  %5635 = vmatprep.mubr.f32.mxu0 0.0
  %5636 = vmatmul.mubr.f32.gmra.mrb[0].mxu0 %v5192
  %v5637 = vpop.f32.mrb[0].mxu0
  %v5638 = vadd.f32 0.0, %v5637
  %v5639 = vpop.f32.mrb[0].mxu0
  %5640 = vmatprep.mubr.f32.mxu0 0.0
  %5641 = vmatmul.mubr.f32.gmra.mrb[0].mxu0 %v5195
  %v5642 = vpop.f32.mrb[0].mxu0
  %v5643 = vadd.f32 0.0, %v5642
  %v5644 = vpop.f32.mrb[0].mxu0
  %5645 = vmatprep.mubr.f32.mxu0 0.0
  %5646 = vmatmul.mubr.f32.gmra.mrb[0].mxu0 %v5198
  %v5647 = vpop.f32.mrb[0].mxu0
  %v5648 = vadd.f32 0.0, %v5647
  %v5649 = vpop.f32.mrb[0].mxu0
  %5650 = vmatprep.mubr.f32.mxu0 0.0
  %5651 = vmatmul.mubr.f32.gmra.mrb[0].mxu0 %v5201
  %v5652 = vpop.f32.mrb[0].mxu0
  %v5653 = vadd.f32 0.0, %v5652
  %v5654 = vpop.f32.mrb[0].mxu0
  %5655 = vmatprep.mubr.f32.mxu0 0.0
  %5656 = vmatmul.mubr.f32.gmra.mrb[0].mxu0 %v5204
  %v5657 = vpop.f32.mrb[0].mxu0
  %v5658 = vadd.f32 0.0, %v5657
  %v5659 = vpop.f32.mrb[0].mxu0
  %5660 = vmatprep.mubr.f32.mxu0 0.0
  %5661 = vmatmul.mubr.f32.gmra.mrb[0].mxu0 %v5207
  %v5662 = vpop.f32.mrb[0].mxu0
  %v5663 = vadd.f32 0.0, %v5662
  %v5664 = vpop.f32.mrb[0].mxu0
  %5665 = vmatprep.mubr.f32.mxu0 0.0
  %5666 = vmatmul.mubr.f32.gmra.mrb[0].mxu0 %v5210
  %v5667 = vpop.f32.mrb[0].mxu0
  %v5668 = vadd.f32 0.0, %v5667
  %v5669 = vpop.f32.mrb[0].mxu0
  %5670 = vmatprep.mubr.f32.mxu0 0.0
  %5671 = vmatmul.mubr.f32.gmra.mrb[0].mxu0 %v5213
  %v5672 = vpop.f32.mrb[0].mxu0
  %v5673 = vadd.f32 0.0, %v5672
  %v5674 = vpop.f32.mrb[0].mxu0
  %5675 = vmatprep.mubr.f32.mxu0 0.0
  %5676 = vmatmul.mubr.f32.gmra.mrb[0].mxu0 %v5216
  %v5677 = vpop.f32.mrb[0].mxu0
  %v5678 = vadd.f32 0.0, %v5677
  %v5679 = vpop.f32.mrb[0].mxu0
  %5680 = vmatprep.mubr.f32.mxu0 0.0
  %5681 = vmatmul.mubr.f32.gmra.mrb[0].mxu0 %v5219
  %v5682 = vpop.f32.mrb[0].mxu0
  %v5683 = vadd.f32 0.0, %v5682
  %v5684 = vpop.f32.mrb[0].mxu0
  %5685 = vmatprep.mubr.f32.mxu0 0.0
  %5686 = vmatmul.mubr.f32.gmra.mrb[0].mxu0 %v5222
  %v5687 = vpop.f32.mrb[0].mxu0
  %v5688 = vadd.f32 0.0, %v5687
  %v5689 = vpop.f32.mrb[0].mxu0
  %5690 = vmatprep.mubr.f32.mxu0 0.0
  %5691 = vmatmul.mubr.f32.gmra.mrb[0].mxu0 %v5225
  %v5692 = vpop.f32.mrb[0].mxu0
  %v5693 = vadd.f32 0.0, %v5692
  %v5694 = vpop.f32.mrb[0].mxu0
  %5695 = vmatprep.mubr.f32.mxu0 0.0
  %5696 = vmatmul.mubr.f32.gmra.mrb[0].mxu0 %v5228
  %v5697 = vpop.f32.mrb[0].mxu0
  %v5698 = vadd.f32 0.0, %v5697
  %v5699 = vpop.f32.mrb[0].mxu0
  %5700 = vmatprep.mubr.f32.mxu0 0.0
  %5701 = vmatmul.mubr.f32.gmra.mrb[0].mxu0 %v5231
  %v5702 = vpop.f32.mrb[0].mxu0
  %v5703 = vadd.f32 0.0, %v5702
  %v5704 = vpop.f32.mrb[0].mxu0
  %5705 = vmatprep.mubr.f32.mxu0 0.0
  %5706 = vmatmul.mubr.f32.gmra.mrb[0].mxu0 %v5234
  %v5707 = vpop.f32.mrb[0].mxu0
  %v5708 = vadd.f32 0.0, %v5707
  %v5709 = vpop.f32.mrb[0].mxu0
  %5710 = vmatprep.mubr.f32.mxu0 0.0
  %5711 = vmatmul.mubr.f32.gmra.mrb[0].mxu0 %v5237
  %v5712 = vpop.f32.mrb[0].mxu0
  %v5713 = vadd.f32 0.0, %v5712
  %v5714 = vpop.f32.mrb[0].mxu0
  %5715 = vmatprep.mubr.f32.mxu0 0.0
  %5716 = vmatmul.mubr.f32.gmra.mrb[0].mxu0 %v5240
  %v5717 = vpop.f32.mrb[0].mxu0
  %v5718 = vadd.f32 0.0, %v5717
  %v5719 = vpop.f32.mrb[0].mxu0
  %5720 = vmatprep.mubr.f32.mxu0 0.0
  %5721 = vmatmul.mubr.f32.gmra.mrb[0].mxu0 %v5243
  %v5722 = vpop.f32.mrb[0].mxu0
  %v5723 = vadd.f32 0.0, %v5722
  %v5724 = vpop.f32.mrb[0].mxu0
  %5725 = vmatprep.mubr.f32.mxu0 0.0
  %5726 = vmatmul.mubr.f32.gmra.mrb[0].mxu0 %v5246
  %v5727 = vpop.f32.mrb[0].mxu0
  %v5728 = vadd.f32 0.0, %v5727
  %v5729 = vpop.f32.mrb[0].mxu0
  %5730 = vmatprep.mubr.f32.mxu0 0.0
  %5731 = vmatmul.mubr.f32.gmra.mrb[0].mxu0 %v5249
  %v5732 = vpop.f32.mrb[0].mxu0
  %v5733 = vadd.f32 0.0, %v5732
  %v5734 = vpop.f32.mrb[0].mxu0
  %5735 = vmatprep.mubr.f32.mxu0 0.0
  %5736 = vmatmul.mubr.f32.gmra.mrb[0].mxu0 %v5252
  %v5737 = vpop.f32.mrb[0].mxu0
  %v5738 = vadd.f32 0.0, %v5737
  %v5739 = vpop.f32.mrb[0].mxu0
  %5740 = vmatprep.mubr.f32.mxu0 0.0
  %5741 = vmatmul.mubr.f32.gmra.mrb[0].mxu0 %v5255
  %v5742 = vpop.f32.mrb[0].mxu0
  %v5743 = vadd.f32 0.0, %v5742
  %v5744 = vpop.f32.mrb[0].mxu0
  %5745 = vmatprep.mubr.f32.mxu0 0.0
  %5746 = vmatmul.mubr.f32.gmra.mrb[0].mxu0 %v5258
  %v5747 = vpop.f32.mrb[0].mxu0
  %v5748 = vadd.f32 0.0, %v5747
  %v5749 = vpop.f32.mrb[0].mxu0
  %5750 = vmatprep.mubr.f32.mxu0 0.0
  %5751 = vmatmul.mubr.f32.gmra.mrb[0].mxu0 %v5261
  %v5752 = vpop.f32.mrb[0].mxu0
  %v5753 = vadd.f32 0.0, %v5752
  %v5754 = vpop.f32.mrb[0].mxu0
  %5755 = vmatprep.mubr.f32.mxu0 0.0
  %5756 = vmatmul.mubr.f32.gmra.mrb[0].mxu0 %v5264
  %v5757 = vpop.f32.mrb[0].mxu0
  %v5758 = vadd.f32 0.0, %v5757
  %v5759 = vpop.f32.mrb[0].mxu0
  %5760 = vmatprep.mubr.f32.mxu0 0.0
  %5761 = vmatmul.mubr.f32.gmra.mrb[0].mxu0 %v5267
  %v5762 = vpop.f32.mrb[0].mxu0
  %v5763 = vadd.f32 0.0, %v5762
  %v5764 = vpop.f32.mrb[0].mxu0
  %5765 = vmatprep.mubr.f32.mxu0 0.0
  %5766 = vmatmul.mubr.f32.gmra.mrb[0].mxu0 %v5270
  %v5767 = vpop.f32.mrb[0].mxu0
  %v5768 = vadd.f32 0.0, %v5767
  %v5769 = vpop.f32.mrb[0].mxu0
  %5770 = vmatprep.mubr.f32.mxu0 0.0
  %5771 = vmatmul.mubr.f32.gmra.mrb[0].mxu0 %v5273
  %v5772 = vpop.f32.mrb[0].mxu0
  %v5773 = vadd.f32 0.0, %v5772
  %v5774 = vpop.f32.mrb[0].mxu0
  %5775 = vmatprep.mubr.f32.mxu0 0.0
  %5776 = vmatmul.mubr.f32.gmra.mrb[0].mxu0 %v5276
  %v5777 = vpop.f32.mrb[0].mxu0
  %v5778 = vadd.f32 0.0, %v5777
  %v5779 = vpop.f32.mrb[0].mxu0
  %5780 = vmatprep.mubr.f32.mxu0 0.0
  %5781 = vmatmul.mubr.f32.gmra.mrb[0].mxu0 %v5279
  %v5782 = vpop.f32.mrb[0].mxu0
  %v5783 = vadd.f32 0.0, %v5782
  %v5784 = vpop.f32.mrb[0].mxu0
  %5785 = vmatprep.mubr.f32.mxu0 0.0
  %5786 = vmatmul.mubr.f32.gmra.mrb[0].mxu0 %v5282
  %v5787 = vpop.f32.mrb[0].mxu0
  %v5788 = vadd.f32 0.0, %v5787
  %v5789 = vpop.f32.mrb[0].mxu0
  %5790 = vmatprep.mubr.f32.mxu0 0.0
  %5791 = vmatmul.mubr.f32.gmra.mrb[0].mxu0 %v5285
  %v5792 = vpop.f32.mrb[0].mxu0
  %v5793 = vadd.f32 0.0, %v5792
  %v5794 = vpop.f32.mrb[0].mxu0
  %5795 = vmatprep.mubr.f32.mxu0 0.0
  %5796 = vmatmul.mubr.f32.gmra.mrb[0].mxu0 %v5288
  %v5797 = vpop.f32.mrb[0].mxu0
  %v5798 = vadd.f32 0.0, %v5797
  %v5799 = vpop.f32.mrb[0].mxu0
  %5800 = vmatprep.mubr.f32.mxu0 0.0
  %5801 = vmatmul.mubr.f32.gmra.mrb[0].mxu0 %v5291
  %v5802 = vpop.f32.mrb[0].mxu0
  %v5803 = vadd.f32 0.0, %v5802
  %v5804 = vpop.f32.mrb[0].mxu0
  %5805 = vmatprep.mubr.f32.mxu0 0.0
  %5806 = vmatmul.mubr.f32.gmra.mrb[0].mxu0 %v5294
  %v5807 = vpop.f32.mrb[0].mxu0
  %v5808 = vadd.f32 0.0, %v5807
  %v5809 = vpop.f32.mrb[0].mxu0
  %5810 = vmatprep.mubr.f32.mxu0 0.0
  %5811 = vmatmul.mubr.f32.gmra.mrb[0].mxu0 %v5297
  %v5812 = vpop.f32.mrb[0].mxu0
  %v5813 = vadd.f32 0.0, %v5812
  %v5814 = vpop.f32.mrb[0].mxu0
  %5815 = vmatprep.mubr.f32.mxu0 0.0
  %5816 = vmatmul.mubr.f32.gmra.mrb[0].mxu0 %v5300
  %v5817 = vpop.f32.mrb[0].mxu0
  %v5818 = vadd.f32 0.0, %v5817
  %v5819 = vpop.f32.mrb[0].mxu0
  %5820 = vmatprep.mubr.f32.mxu0 0.0
  %5821 = vmatmul.mubr.f32.gmra.mrb[0].mxu0 %v5303
  %v5822 = vpop.f32.mrb[0].mxu0
  %v5823 = vadd.f32 0.0, %v5822
  %v5824 = vpop.f32.mrb[0].mxu0
  %5825 = vmatprep.mubr.f32.mxu0 0.0
  %5826 = vmatmul.mubr.f32.gmra.mrb[0].mxu0 %v5306
  %v5827 = vpop.f32.mrb[0].mxu0
  %v5828 = vadd.f32 0.0, %v5827
  %v5829 = vpop.f32.mrb[0].mxu0
  %5830 = vmatprep.mubr.f32.mxu0 0.0
  %5831 = vmatmul.mubr.f32.gmra.mrb[0].mxu0 %v5309
  %v5832 = vpop.f32.mrb[0].mxu0
  %v5833 = vadd.f32 0.0, %v5832
  %v5834 = vpop.f32.mrb[0].mxu0
  %5835 = vmatprep.mubr.f32.mxu0 0.0
  %5836 = vmatmul.mubr.f32.gmra.mrb[0].mxu0 %v5312
  %v5837 = vpop.f32.mrb[0].mxu0
  %v5838 = vadd.f32 0.0, %v5837
  %v5839 = vpop.f32.mrb[0].mxu0
  %5840 = vmatprep.mubr.f32.mxu0 0.0
  %5841 = vmatmul.mubr.f32.gmra.mrb[0].mxu0 %v5315
  %v5842 = vpop.f32.mrb[0].mxu0
  %v5843 = vadd.f32 0.0, %v5842
  %v5844 = vpop.f32.mrb[0].mxu0
  %5845 = vmatprep.mubr.f32.mxu0 0.0
  %5846 = vmatmul.mubr.f32.gmra.mrb[0].mxu0 %v5318
  %v5847 = vpop.f32.mrb[0].mxu0
  %v5848 = vadd.f32 0.0, %v5847
  %v5849 = vpop.f32.mrb[0].mxu0
  %5850 = vmatprep.mubr.f32.mxu0 0.0
  %5851 = vmatmul.mubr.f32.gmra.mrb[0].mxu0 %v5321
  %v5852 = vpop.f32.mrb[0].mxu0
  %v5853 = vadd.f32 0.0, %v5852
  %v5854 = vpop.f32.mrb[0].mxu0
  %5855 = vmatprep.mubr.f32.mxu0 0.0
  %5856 = vmatmul.mubr.f32.gmra.mrb[0].mxu0 %v5324
  %v5857 = vpop.f32.mrb[0].mxu0
  %v5858 = vadd.f32 0.0, %v5857
  %v5859 = vpop.f32.mrb[0].mxu0
  %5860 = vmatprep.mubr.f32.mxu0 0.0
  %5861 = vmatmul.mubr.f32.gmra.mrb[0].mxu0 %v5327
  %v5862 = vpop.f32.mrb[0].mxu0
  %v5863 = vadd.f32 0.0, %v5862
  %v5864 = vpop.f32.mrb[0].mxu0
  %5865 = vmatprep.mubr.f32.mxu0 0.0
  %5866 = vmatmul.mubr.f32.gmra.mrb[0].mxu0 %v5330
  %v5867 = vpop.f32.mrb[0].mxu0
  %v5868 = vadd.f32 0.0, %v5867
  %v5869 = vpop.f32.mrb[0].mxu0
  %5870 = vmatprep.mubr.f32.mxu0 0.0
  %5871 = vmatmul.mubr.f32.gmra.mrb[0].mxu0 %v5333
  %v5872 = vpop.f32.mrb[0].mxu0
  %v5873 = vadd.f32 0.0, %v5872
  %v5874 = vpop.f32.mrb[0].mxu0
  %5875 = vmatprep.mubr.f32.mxu0 0.0
  %5876 = vmatmul.mubr.f32.gmra.mrb[0].mxu0 %v5336
  %v5877 = vpop.f32.mrb[0].mxu0
  %v5878 = vadd.f32 0.0, %v5877
  %v5879 = vpop.f32.mrb[0].mxu0
  %5880 = vmatprep.mubr.f32.mxu0 0.0
  %5881 = vmatmul.mubr.f32.gmra.mrb[0].mxu0 %v5339
  %v5882 = vpop.f32.mrb[0].mxu0
  %v5883 = vadd.f32 0.0, %v5882
  %v5884 = vpop.f32.mrb[0].mxu0
  %5885 = vmatprep.mubr.f32.mxu0 0.0
  %5886 = vmatmul.mubr.f32.gmra.mrb[0].mxu0 %v5342
  %v5887 = vpop.f32.mrb[0].mxu0
  %v5888 = vadd.f32 0.0, %v5887
  %v5889 = vpop.f32.mrb[0].mxu0
  %5890 = vmatprep.mubr.f32.mxu0 0.0
  %5891 = vmatmul.mubr.f32.gmra.mrb[0].mxu0 %v5345
  %v5892 = vpop.f32.mrb[0].mxu0
  %v5893 = vadd.f32 0.0, %v5892
  %v5894 = vpop.f32.mrb[0].mxu0
  %5895 = vmatprep.mubr.f32.mxu0 0.0
  %5896 = vmatmul.mubr.f32.gmra.mrb[0].mxu0 %v5348
  %v5897 = vpop.f32.mrb[0].mxu0
  %v5898 = vadd.f32 0.0, %v5897
  %v5899 = vpop.f32.mrb[0].mxu0
  %5900 = vmatprep.mubr.f32.mxu0 0.0
  %5901 = vmatmul.mubr.f32.gmra.mrb[0].mxu0 %v5351
  %v5902 = vpop.f32.mrb[0].mxu0
  %v5903 = vadd.f32 0.0, %v5902
  %v5904 = vpop.f32.mrb[0].mxu0
  %5905 = vmatprep.mubr.f32.mxu0 0.0
  %5906 = vmatmul.mubr.f32.gmra.mrb[0].mxu0 %v5354
  %v5907 = vpop.f32.mrb[0].mxu0
  %v5908 = vadd.f32 0.0, %v5907
  %v5909 = vpop.f32.mrb[0].mxu0
  %5910 = vdwg.mxu0
  %v5911 = vadd.f32 %v4863, %v5423
  %v5912 = vadd.f32 %v4864, %v5428
  %v5913 = vadd.f32 %v4865, %v5433
  %v5914 = vadd.f32 %v4866, %v5438
  %v5915 = vadd.f32 %v4867, %v5443
  %v5916 = vadd.f32 %v4868, %v5448
  %v5917 = vadd.f32 %v4869, %v5453
  %v5918 = vadd.f32 %v4870, %v5458
  %v5919 = vadd.f32 %v4871, %v5463
  %v5920 = vadd.f32 %v4872, %v5468
  %v5921 = vadd.f32 %v4873, %v5473
  %v5922 = vadd.f32 %v4874, %v5478
  %v5923 = vadd.f32 %v4875, %v5483
  %v5924 = vadd.f32 %v4876, %v5488
  %v5925 = vadd.f32 %v4877, %v5493
  %v5926 = vadd.f32 %v4878, %v5498
  %v5927 = vadd.f32 %v4879, %v5503
  %v5928 = vadd.f32 %v4880, %v5508
  %v5929 = vadd.f32 %v4881, %v5513
  %v5930 = vadd.f32 %v4882, %v5518
  %v5931 = vadd.f32 %v4883, %v5523
  %v5932 = vadd.f32 %v4884, %v5528
  %v5933 = vadd.f32 %v4885, %v5533
  %v5934 = vadd.f32 %v4886, %v5538
  %v5935 = vadd.f32 %v4887, %v5543
  %v5936 = vadd.f32 %v4888, %v5548
  %v5937 = vadd.f32 %v4889, %v5553
  %v5938 = vadd.f32 %v4890, %v5558
  %v5939 = vadd.f32 %v4891, %v5563
  %v5940 = vadd.f32 %v4892, %v5568
  %v5941 = vadd.f32 %v4893, %v5573
  %v5942 = vadd.f32 %v4894, %v5578
  %v5943 = vadd.f32 %v4895, %v5583
  %v5944 = vadd.f32 %v4896, %v5588
  %v5945 = vadd.f32 %v4897, %v5593
  %v5946 = vadd.f32 %v4898, %v5598
  %v5947 = vadd.f32 %v4899, %v5603
  %v5948 = vadd.f32 %v4900, %v5608
  %v5949 = vadd.f32 %v4901, %v5613
  %v5950 = vadd.f32 %v4902, %v5618
  %v5951 = vadd.f32 %v4903, %v5623
  %v5952 = vadd.f32 %v4904, %v5628
  %v5953 = vadd.f32 %v4905, %v5633
  %v5954 = vadd.f32 %v4906, %v5638
  %v5955 = vadd.f32 %v4907, %v5643
  %v5956 = vadd.f32 %v4908, %v5648
  %v5957 = vadd.f32 %v4909, %v5653
  %v5958 = vadd.f32 %v4910, %v5658
  %v5959 = vadd.f32 %v4911, %v5663
  %v5960 = vadd.f32 %v4912, %v5668
  %v5961 = vadd.f32 %v4913, %v5673
  %v5962 = vadd.f32 %v4914, %v5678
  %v5963 = vadd.f32 %v4915, %v5683
  %v5964 = vadd.f32 %v4916, %v5688
  %v5965 = vadd.f32 %v4917, %v5693
  %v5966 = vadd.f32 %v4918, %v5698
  %v5967 = vadd.f32 %v4919, %v5703
  %v5968 = vadd.f32 %v4920, %v5708
  %v5969 = vadd.f32 %v4921, %v5713
  %v5970 = vadd.f32 %v4922, %v5718
  %v5971 = vadd.f32 %v4923, %v5723
  %v5972 = vadd.f32 %v4924, %v5728
  %v5973 = vadd.f32 %v4925, %v5733
  %v5974 = vadd.f32 %v4926, %v5738
  %v5975 = vadd.f32 %v4927, %v5743
  %v5976 = vadd.f32 %v4928, %v5748
  %v5977 = vadd.f32 %v4929, %v5753
  %v5978 = vadd.f32 %v4930, %v5758
  %v5979 = vadd.f32 %v4931, %v5763
  %v5980 = vadd.f32 %v4932, %v5768
  %v5981 = vadd.f32 %v4933, %v5773
  %v5982 = vadd.f32 %v4934, %v5778
  %v5983 = vadd.f32 %v4935, %v5783
  %v5984 = vadd.f32 %v4936, %v5788
  %v5985 = vadd.f32 %v4937, %v5793
  %v5986 = vadd.f32 %v4938, %v5798
  %v5987 = vadd.f32 %v4939, %v5803
  %v5988 = vadd.f32 %v4940, %v5808
  %v5989 = vadd.f32 %v4941, %v5813
  %v5990 = vadd.f32 %v4942, %v5818
  %v5991 = vadd.f32 %v4943, %v5823
  %v5992 = vadd.f32 %v4944, %v5828
  %v5993 = vadd.f32 %v4945, %v5833
  %v5994 = vadd.f32 %v4946, %v5838
  %v5995 = vadd.f32 %v4947, %v5843
  %v5996 = vadd.f32 %v4948, %v5848
  %v5997 = vadd.f32 %v4949, %v5853
  %v5998 = vadd.f32 %v4950, %v5858
  %v5999 = vadd.f32 %v4951, %v5863
  %v6000 = vadd.f32 %v4952, %v5868
  %v6001 = vadd.f32 %v4953, %v5873
  %v6002 = vadd.f32 %v4954, %v5878
  %v6003 = vadd.f32 %v4955, %v5883
  %v6004 = vadd.f32 %v4956, %v5888
  %v6005 = vadd.f32 %v4957, %v5893
  %v6006 = vadd.f32 %v4958, %v5898
  %v6007 = vadd.f32 %v4959, %v5903
  %v6008 = vadd.f32 %v4960, %v5908
  %v6009 = vld [vmem:[#allocation3 + $0x1e] sm:$0xff]
  %v6010 = vld [vmem:[#allocation3 + $0x26] sm:$0xff]
  %v6011 = vld [vmem:[#allocation3 + $0x2e] sm:$0xff]
  %v6012 = vld [vmem:[#allocation3 + $0x36] sm:$0xff]
  %v6013 = vld [vmem:[#allocation3 + $0x3e] sm:$0xff]
  %v6014 = vld [vmem:[#allocation3 + $0x46] sm:$0xff]
  %v6015 = vld [vmem:[#allocation3 + $0x4e] sm:$0xff]
  %v6016 = vld [vmem:[#allocation3 + $0x56] sm:$0xff]
  %v6017 = vld [vmem:[#allocation3 + $0x5e] sm:$0xff]
  %v6018 = vld [vmem:[#allocation3 + $0x66] sm:$0xff]
  %v6019 = vld [vmem:[#allocation3 + $0x6e] sm:$0xff]
  %v6020 = vld [vmem:[#allocation3 + $0x76] sm:$0xff]
  %v6021 = vld [vmem:[#allocation3 + $0x7e] sm:$0xff]
  %v6022 = vld [vmem:[#allocation3 + $0x86] sm:$0xff]
  %v6023 = vld [vmem:[#allocation3 + $0x8e] sm:$0xff]
  %v6024 = vld [vmem:[#allocation3 + $0x96] sm:$0xff]
  %v6025 = vld [vmem:[#allocation3 + $0x9e] sm:$0xff]
  %v6026 = vld [vmem:[#allocation3 + $0xa6] sm:$0xff]
  %v6027 = vld [vmem:[#allocation3 + $0xae] sm:$0xff]
  %v6028 = vld [vmem:[#allocation3 + $0xb6] sm:$0xff]
  %v6029 = vld [vmem:[#allocation3 + $0xbe] sm:$0xff]
  %v6030 = vld [vmem:[#allocation3 + $0xc6] sm:$0xff]
  %v6031 = vld [vmem:[#allocation3 + $0xce] sm:$0xff]
  %v6032 = vld [vmem:[#allocation3 + $0xd6] sm:$0xff]
  %v6033 = vld [vmem:[#allocation3 + $0xde] sm:$0xff]
  %v6034 = vld [vmem:[#allocation3 + $0xe6] sm:$0xff]
  %v6035 = vld [vmem:[#allocation3 + $0xee] sm:$0xff]
  %v6036 = vld [vmem:[#allocation3 + $0xf6] sm:$0xff]
  %v6037 = vld [vmem:[#allocation3 + $0xfe] sm:$0xff]
  %v6038 = vld [vmem:[#allocation3 + $0x106] sm:$0xff]
  %v6039 = vld [vmem:[#allocation3 + $0x10e] sm:$0xff]
  %v6040 = vld [vmem:[#allocation3 + $0x116] sm:$0xff]
  %v6041 = vld [vmem:[#allocation3 + $0x11e] sm:$0xff]
  %v6042 = vld [vmem:[#allocation3 + $0x126] sm:$0xff]
  %v6043 = vld [vmem:[#allocation3 + $0x12e] sm:$0xff]
  %v6044 = vld [vmem:[#allocation3 + $0x136] sm:$0xff]
  %v6045 = vld [vmem:[#allocation3 + $0x13e] sm:$0xff]
  %v6046 = vld [vmem:[#allocation3 + $0x146] sm:$0xff]
  %v6047 = vld [vmem:[#allocation3 + $0x14e] sm:$0xff]
  %v6048 = vld [vmem:[#allocation3 + $0x156] sm:$0xff]
  %v6049 = vld [vmem:[#allocation3 + $0x15e] sm:$0xff]
  %v6050 = vld [vmem:[#allocation3 + $0x166] sm:$0xff]
  %v6051 = vld [vmem:[#allocation3 + $0x16e] sm:$0xff]
  %v6052 = vld [vmem:[#allocation3 + $0x176] sm:$0xff]
  %v6053 = vld [vmem:[#allocation3 + $0x17e] sm:$0xff]
  %v6054 = vld [vmem:[#allocation3 + $0x186] sm:$0xff]
  %v6055 = vld [vmem:[#allocation3 + $0x18e] sm:$0xff]
  %v6056 = vld [vmem:[#allocation3 + $0x196] sm:$0xff]
  %v6057 = vld [vmem:[#allocation3 + $0x19e] sm:$0xff]
  %v6058 = vld [vmem:[#allocation3 + $0x1a6] sm:$0xff]
  %v6059 = vld [vmem:[#allocation3 + $0x1ae] sm:$0xff]
  %v6060 = vld [vmem:[#allocation3 + $0x1b6] sm:$0xff]
  %v6061 = vld [vmem:[#allocation3 + $0x1be] sm:$0xff]
  %v6062 = vld [vmem:[#allocation3 + $0x1c6] sm:$0xff]
  %v6063 = vld [vmem:[#allocation3 + $0x1ce] sm:$0xff]
  %v6064 = vld [vmem:[#allocation3 + $0x1d6] sm:$0xff]
  %v6065 = vld [vmem:[#allocation3 + $0x1de] sm:$0xff]
  %v6066 = vld [vmem:[#allocation3 + $0x1e6] sm:$0xff]
  %v6067 = vld [vmem:[#allocation3 + $0x1ee] sm:$0xff]
  %v6068 = vld [vmem:[#allocation3 + $0x1f6] sm:$0xff]
  %v6069 = vld [vmem:[#allocation3 + $0x1fe] sm:$0xff]
  %v6070 = vld [vmem:[#allocation3 + $0x206] sm:$0xff]
  %v6071 = vld [vmem:[#allocation3 + $0x20e] sm:$0xff]
  %v6072 = vld [vmem:[#allocation3 + $0x216] sm:$0xff]
  %v6073 = vld [vmem:[#allocation3 + $0x21e] sm:$0xff]
  %v6074 = vld [vmem:[#allocation3 + $0x226] sm:$0xff]
  %v6075 = vld [vmem:[#allocation3 + $0x22e] sm:$0xff]
  %v6076 = vld [vmem:[#allocation3 + $0x236] sm:$0xff]
  %v6077 = vld [vmem:[#allocation3 + $0x23e] sm:$0xff]
  %v6078 = vld [vmem:[#allocation3 + $0x246] sm:$0xff]
  %v6079 = vld [vmem:[#allocation3 + $0x24e] sm:$0xff]
  %v6080 = vld [vmem:[#allocation3 + $0x256] sm:$0xff]
  %v6081 = vld [vmem:[#allocation3 + $0x25e] sm:$0xff]
  %v6082 = vld [vmem:[#allocation3 + $0x266] sm:$0xff]
  %v6083 = vld [vmem:[#allocation3 + $0x26e] sm:$0xff]
  %v6084 = vld [vmem:[#allocation3 + $0x276] sm:$0xff]
  %v6085 = vld [vmem:[#allocation3 + $0x27e] sm:$0xff]
  %v6086 = vld [vmem:[#allocation3 + $0x286] sm:$0xff]
  %v6087 = vld [vmem:[#allocation3 + $0x28e] sm:$0xff]
  %v6088 = vld [vmem:[#allocation3 + $0x296] sm:$0xff]
  %v6089 = vld [vmem:[#allocation3 + $0x29e] sm:$0xff]
  %v6090 = vld [vmem:[#allocation3 + $0x2a6] sm:$0xff]
  %v6091 = vld [vmem:[#allocation3 + $0x2ae] sm:$0xff]
  %v6092 = vld [vmem:[#allocation3 + $0x2b6] sm:$0xff]
  %v6093 = vld [vmem:[#allocation3 + $0x2be] sm:$0xff]
  %v6094 = vld [vmem:[#allocation3 + $0x2c6] sm:$0xff]
  %v6095 = vld [vmem:[#allocation3 + $0x2ce] sm:$0xff]
  %v6096 = vld [vmem:[#allocation3 + $0x2d6] sm:$0xff]
  %v6097 = vld [vmem:[#allocation3 + $0x2de] sm:$0xff]
  %v6098 = vld [vmem:[#allocation3 + $0x2e6] sm:$0xff]
  %v6099 = vld [vmem:[#allocation3 + $0x2ee] sm:$0xff]
  %v6100 = vld [vmem:[#allocation3 + $0x2f6] sm:$0xff]
  %v6101 = vld [vmem:[#allocation3 + $0x2fe] sm:$0xff]
  %v6102 = vld [vmem:[#allocation3 + $0x306] sm:$0xff]
  %v6103 = vld [vmem:[#allocation3 + $0x30e] sm:$0xff]
  %v6104 = vld [vmem:[#allocation3 + $0x316] sm:$0xff]
  %v6105 = vld [vmem:[#allocation3 + $0x31e] sm:$0xff]
  %v6106 = vld [vmem:[#allocation3 + $0x326] sm:$0xff]
  %s6107 = scalar_lea.vmem %s3, 64
  %v6108 = vld [vmem:[%s6107] sm:$0xff]
  %v6109 = vld [vmem:[%s6107 + $0x8] sm:$0xff]
  %v6111 = vsel %vm46, %v6009, 0
  %v6114 = vsel %vm46, %v6010, 0
  %v6117 = vsel %vm46, %v6011, 0
  %v6120 = vsel %vm46, %v6012, 0
  %v6123 = vsel %vm46, %v6013, 0
  %v6126 = vsel %vm46, %v6014, 0
  %v6129 = vsel %vm46, %v6015, 0
  %v6132 = vsel %vm46, %v6016, 0
  %v6135 = vsel %vm46, %v6017, 0
  %v6138 = vsel %vm46, %v6018, 0
  %v6141 = vsel %vm46, %v6019, 0
  %v6144 = vsel %vm46, %v6020, 0
  %v6147 = vsel %vm46, %v6021, 0
  %v6150 = vsel %vm46, %v6022, 0
  %v6153 = vsel %vm46, %v6023, 0
  %v6156 = vsel %vm46, %v6024, 0
  %v6159 = vsel %vm46, %v6025, 0
  %v6162 = vsel %vm46, %v6026, 0
  %v6165 = vsel %vm46, %v6027, 0
  %v6168 = vsel %vm46, %v6028, 0
  %v6171 = vsel %vm46, %v6029, 0
  %v6174 = vsel %vm46, %v6030, 0
  %v6177 = vsel %vm46, %v6031, 0
  %v6180 = vsel %vm46, %v6032, 0
  %v6183 = vsel %vm46, %v6033, 0
  %v6186 = vsel %vm46, %v6034, 0
  %v6189 = vsel %vm46, %v6035, 0
  %v6192 = vsel %vm46, %v6036, 0
  %v6195 = vsel %vm46, %v6037, 0
  %v6198 = vsel %vm46, %v6038, 0
  %v6201 = vsel %vm46, %v6039, 0
  %v6204 = vsel %vm46, %v6040, 0
  %v6207 = vsel %vm46, %v6041, 0
  %v6210 = vsel %vm46, %v6042, 0
  %v6213 = vsel %vm46, %v6043, 0
  %v6216 = vsel %vm46, %v6044, 0
  %v6219 = vsel %vm46, %v6045, 0
  %v6222 = vsel %vm46, %v6046, 0
  %v6225 = vsel %vm46, %v6047, 0
  %v6228 = vsel %vm46, %v6048, 0
  %v6231 = vsel %vm46, %v6049, 0
  %v6234 = vsel %vm46, %v6050, 0
  %v6237 = vsel %vm46, %v6051, 0
  %v6240 = vsel %vm46, %v6052, 0
  %v6243 = vsel %vm46, %v6053, 0
  %v6246 = vsel %vm46, %v6054, 0
  %v6249 = vsel %vm46, %v6055, 0
  %v6252 = vsel %vm46, %v6056, 0
  %v6255 = vsel %vm46, %v6057, 0
  %v6258 = vsel %vm46, %v6058, 0
  %v6261 = vsel %vm46, %v6059, 0
  %v6264 = vsel %vm46, %v6060, 0
  %v6267 = vsel %vm46, %v6061, 0
  %v6270 = vsel %vm46, %v6062, 0
  %v6273 = vsel %vm46, %v6063, 0
  %v6276 = vsel %vm46, %v6064, 0
  %v6279 = vsel %vm46, %v6065, 0
  %v6282 = vsel %vm46, %v6066, 0
  %v6285 = vsel %vm46, %v6067, 0
  %v6288 = vsel %vm46, %v6068, 0
  %v6291 = vsel %vm46, %v6069, 0
  %v6294 = vsel %vm46, %v6070, 0
  %v6297 = vsel %vm46, %v6071, 0
  %v6300 = vsel %vm46, %v6072, 0
  %v6303 = vsel %vm46, %v6073, 0
  %v6306 = vsel %vm46, %v6074, 0
  %v6309 = vsel %vm46, %v6075, 0
  %v6312 = vsel %vm46, %v6076, 0
  %v6315 = vsel %vm46, %v6077, 0
  %v6318 = vsel %vm46, %v6078, 0
  %v6321 = vsel %vm46, %v6079, 0
  %v6324 = vsel %vm46, %v6080, 0
  %v6327 = vsel %vm46, %v6081, 0
  %v6330 = vsel %vm46, %v6082, 0
  %v6333 = vsel %vm46, %v6083, 0
  %v6336 = vsel %vm46, %v6084, 0
  %v6339 = vsel %vm46, %v6085, 0
  %v6342 = vsel %vm46, %v6086, 0
  %v6345 = vsel %vm46, %v6087, 0
  %v6348 = vsel %vm46, %v6088, 0
  %v6351 = vsel %vm46, %v6089, 0
  %v6354 = vsel %vm46, %v6090, 0
  %v6357 = vsel %vm46, %v6091, 0
  %v6360 = vsel %vm46, %v6092, 0
  %v6363 = vsel %vm46, %v6093, 0
  %v6366 = vsel %vm46, %v6094, 0
  %v6369 = vsel %vm46, %v6095, 0
  %v6372 = vsel %vm46, %v6096, 0
  %v6375 = vsel %vm46, %v6097, 0
  %v6378 = vsel %vm46, %v6098, 0
  %v6381 = vsel %vm46, %v6099, 0
  %v6384 = vsel %vm46, %v6100, 0
  %v6387 = vsel %vm46, %v6101, 0
  %v6390 = vsel %vm46, %v6102, 0
  %v6393 = vsel %vm46, %v6103, 0
  %v6396 = vsel %vm46, %v6104, 0
  %v6399 = vsel %vm46, %v6105, 0
  %v6402 = vsel %vm46, %v6106, 0
  %6404 = vmatprep.subr.mxu0 0.0
  %6405 = vmatpush1.msra.mxu0 %v6108
  %6406 = vmatprep.subr.mxu0 0.0
  %6407 = vmatpush1.msra.mxu0 %v6109
  %6408 = vmatprep.subr.mxu0 0.0
  %6409 = vmatpush1.msra.mxu0 0.0
  %6410 = vmatprep.subr.mxu0 0.0
  %6411 = vmatpush1.msra.mxu0 0.0
  %6412 = vmatprep.subr.mxu0 0.0
  %6413 = vmatpush1.msra.mxu0 0.0
  %6414 = vmatprep.subr.mxu0 0.0
  %6415 = vmatpush1.msra.mxu0 0.0
  %6416 = vmatprep.subr.mxu0 0.0
  %6417 = vmatpush1.msra.mxu0 0.0
  %6418 = vmatprep.subr.mxu0 0.0
  %6419 = vmatpush1.msra.mxu0 0.0
  %6420 = vmatprep.subr.mxu0 0.0
  %6421 = vmatpush1.msra.mxu0 0.0
  %6422 = vmatprep.subr.mxu0 0.0
  %6423 = vmatpush1.msra.mxu0 0.0
  %6424 = vmatprep.subr.mxu0 0.0
  %6425 = vmatpush1.msra.mxu0 0.0
  %6426 = vmatprep.subr.mxu0 0.0
  %6427 = vmatpush1.msra.mxu0 0.0
  %6428 = vmatprep.subr.mxu0 0.0
  %6429 = vmatpush1.msra.mxu0 0.0
  %6430 = vmatprep.subr.mxu0 0.0
  %6431 = vmatpush1.msra.mxu0 0.0
  %6432 = vmatprep.subr.mxu0 0.0
  %6433 = vmatpush1.msra.mxu0 0.0
  %6434 = vmatprep.subr.mxu0 0.0
  %6435 = vmatpush1.msra.mxu0 0.0
  %6436 = vmatprep.subr.mxu0 0.0
  %6437 = vmatpush1.msra.mxu0 0.0
  %6438 = vmatprep.subr.mxu0 0.0
  %6439 = vmatpush1.msra.mxu0 0.0
  %6440 = vmatprep.subr.mxu0 0.0
  %6441 = vmatpush1.msra.mxu0 0.0
  %6442 = vmatprep.subr.mxu0 0.0
  %6443 = vmatpush1.msra.mxu0 0.0
  %6444 = vmatprep.subr.mxu0 0.0
  %6445 = vmatpush1.msra.mxu0 0.0
  %6446 = vmatprep.subr.mxu0 0.0
  %6447 = vmatpush1.msra.mxu0 0.0
  %6448 = vmatprep.subr.mxu0 0.0
  %6449 = vmatpush1.msra.mxu0 0.0
  %6450 = vmatprep.subr.mxu0 0.0
  %6451 = vmatpush1.msra.mxu0 0.0
  %6452 = vmatprep.subr.mxu0 0.0
  %6453 = vmatpush1.msra.mxu0 0.0
  %6454 = vmatprep.subr.mxu0 0.0
  %6455 = vmatpush1.msra.mxu0 0.0
  %6456 = vmatprep.subr.mxu0 0.0
  %6457 = vmatpush1.msra.mxu0 0.0
  %6458 = vmatprep.subr.mxu0 0.0
  %6459 = vmatpush1.msra.mxu0 0.0
  %6460 = vmatprep.subr.mxu0 0.0
  %6461 = vmatpush1.msra.mxu0 0.0
  %6462 = vmatprep.subr.mxu0 0.0
  %6463 = vmatpush1.msra.mxu0 0.0
  %6464 = vmatprep.subr.mxu0 0.0
  %6465 = vmatpush1.msra.mxu0 0.0
  %6466 = vmatprep.subr.mxu0 0.0
  %6467 = vmatpush1.msra.mxu0 0.0
  %6468 = vmatprep.mubr.f32.mxu0 0.0
  %6469 = vmatmul.mubr.f32.gmra.mrb[0].mxu0 %v6111
  %v6470 = vpop.f32.mrb[0].mxu0
  %v6471 = vadd.f32 0.0, %v6470
  %v6472 = vpop.f32.mrb[0].mxu0
  %6473 = vmatprep.mubr.f32.mxu0 0.0
  %6474 = vmatmul.mubr.f32.gmra.mrb[0].mxu0 %v6114
  %v6475 = vpop.f32.mrb[0].mxu0
  %v6476 = vadd.f32 0.0, %v6475
  %v6477 = vpop.f32.mrb[0].mxu0
  %6478 = vmatprep.mubr.f32.mxu0 0.0
  %6479 = vmatmul.mubr.f32.gmra.mrb[0].mxu0 %v6117
  %v6480 = vpop.f32.mrb[0].mxu0
  %v6481 = vadd.f32 0.0, %v6480
  %v6482 = vpop.f32.mrb[0].mxu0
  %6483 = vmatprep.mubr.f32.mxu0 0.0
  %6484 = vmatmul.mubr.f32.gmra.mrb[0].mxu0 %v6120
  %v6485 = vpop.f32.mrb[0].mxu0
  %v6486 = vadd.f32 0.0, %v6485
  %v6487 = vpop.f32.mrb[0].mxu0
  %6488 = vmatprep.mubr.f32.mxu0 0.0
  %6489 = vmatmul.mubr.f32.gmra.mrb[0].mxu0 %v6123
  %v6490 = vpop.f32.mrb[0].mxu0
  %v6491 = vadd.f32 0.0, %v6490
  %v6492 = vpop.f32.mrb[0].mxu0
  %6493 = vmatprep.mubr.f32.mxu0 0.0
  %6494 = vmatmul.mubr.f32.gmra.mrb[0].mxu0 %v6126
  %v6495 = vpop.f32.mrb[0].mxu0
  %v6496 = vadd.f32 0.0, %v6495
  %v6497 = vpop.f32.mrb[0].mxu0
  %6498 = vmatprep.mubr.f32.mxu0 0.0
  %6499 = vmatmul.mubr.f32.gmra.mrb[0].mxu0 %v6129
  %v6500 = vpop.f32.mrb[0].mxu0
  %v6501 = vadd.f32 0.0, %v6500
  %v6502 = vpop.f32.mrb[0].mxu0
  %6503 = vmatprep.mubr.f32.mxu0 0.0
  %6504 = vmatmul.mubr.f32.gmra.mrb[0].mxu0 %v6132
  %v6505 = vpop.f32.mrb[0].mxu0
  %v6506 = vadd.f32 0.0, %v6505
  %v6507 = vpop.f32.mrb[0].mxu0
  %6508 = vmatprep.mubr.f32.mxu0 0.0
  %6509 = vmatmul.mubr.f32.gmra.mrb[0].mxu0 %v6135
  %v6510 = vpop.f32.mrb[0].mxu0
  %v6511 = vadd.f32 0.0, %v6510
  %v6512 = vpop.f32.mrb[0].mxu0
  %6513 = vmatprep.mubr.f32.mxu0 0.0
  %6514 = vmatmul.mubr.f32.gmra.mrb[0].mxu0 %v6138
  %v6515 = vpop.f32.mrb[0].mxu0
  %v6516 = vadd.f32 0.0, %v6515
  %v6517 = vpop.f32.mrb[0].mxu0
  %6518 = vmatprep.mubr.f32.mxu0 0.0
  %6519 = vmatmul.mubr.f32.gmra.mrb[0].mxu0 %v6141
  %v6520 = vpop.f32.mrb[0].mxu0
  %v6521 = vadd.f32 0.0, %v6520
  %v6522 = vpop.f32.mrb[0].mxu0
  %6523 = vmatprep.mubr.f32.mxu0 0.0
  %6524 = vmatmul.mubr.f32.gmra.mrb[0].mxu0 %v6144
  %v6525 = vpop.f32.mrb[0].mxu0
  %v6526 = vadd.f32 0.0, %v6525
  %v6527 = vpop.f32.mrb[0].mxu0
  %6528 = vmatprep.mubr.f32.mxu0 0.0
  %6529 = vmatmul.mubr.f32.gmra.mrb[0].mxu0 %v6147
  %v6530 = vpop.f32.mrb[0].mxu0
  %v6531 = vadd.f32 0.0, %v6530
  %v6532 = vpop.f32.mrb[0].mxu0
  %6533 = vmatprep.mubr.f32.mxu0 0.0
  %6534 = vmatmul.mubr.f32.gmra.mrb[0].mxu0 %v6150
  %v6535 = vpop.f32.mrb[0].mxu0
  %v6536 = vadd.f32 0.0, %v6535
  %v6537 = vpop.f32.mrb[0].mxu0
  %6538 = vmatprep.mubr.f32.mxu0 0.0
  %6539 = vmatmul.mubr.f32.gmra.mrb[0].mxu0 %v6153
  %v6540 = vpop.f32.mrb[0].mxu0
  %v6541 = vadd.f32 0.0, %v6540
  %v6542 = vpop.f32.mrb[0].mxu0
  %6543 = vmatprep.mubr.f32.mxu0 0.0
  %6544 = vmatmul.mubr.f32.gmra.mrb[0].mxu0 %v6156
  %v6545 = vpop.f32.mrb[0].mxu0
  %v6546 = vadd.f32 0.0, %v6545
  %v6547 = vpop.f32.mrb[0].mxu0
  %6548 = vmatprep.mubr.f32.mxu0 0.0
  %6549 = vmatmul.mubr.f32.gmra.mrb[0].mxu0 %v6159
  %v6550 = vpop.f32.mrb[0].mxu0
  %v6551 = vadd.f32 0.0, %v6550
  %v6552 = vpop.f32.mrb[0].mxu0
  %6553 = vmatprep.mubr.f32.mxu0 0.0
  %6554 = vmatmul.mubr.f32.gmra.mrb[0].mxu0 %v6162
  %v6555 = vpop.f32.mrb[0].mxu0
  %v6556 = vadd.f32 0.0, %v6555
  %v6557 = vpop.f32.mrb[0].mxu0
  %6558 = vmatprep.mubr.f32.mxu0 0.0
  %6559 = vmatmul.mubr.f32.gmra.mrb[0].mxu0 %v6165
  %v6560 = vpop.f32.mrb[0].mxu0
  %v6561 = vadd.f32 0.0, %v6560
  %v6562 = vpop.f32.mrb[0].mxu0
  %6563 = vmatprep.mubr.f32.mxu0 0.0
  %6564 = vmatmul.mubr.f32.gmra.mrb[0].mxu0 %v6168
  %v6565 = vpop.f32.mrb[0].mxu0
  %v6566 = vadd.f32 0.0, %v6565
  %v6567 = vpop.f32.mrb[0].mxu0
  %6568 = vmatprep.mubr.f32.mxu0 0.0
  %6569 = vmatmul.mubr.f32.gmra.mrb[0].mxu0 %v6171
  %v6570 = vpop.f32.mrb[0].mxu0
  %v6571 = vadd.f32 0.0, %v6570
  %v6572 = vpop.f32.mrb[0].mxu0
  %6573 = vmatprep.mubr.f32.mxu0 0.0
  %6574 = vmatmul.mubr.f32.gmra.mrb[0].mxu0 %v6174
  %v6575 = vpop.f32.mrb[0].mxu0
  %v6576 = vadd.f32 0.0, %v6575
  %v6577 = vpop.f32.mrb[0].mxu0
  %6578 = vmatprep.mubr.f32.mxu0 0.0
  %6579 = vmatmul.mubr.f32.gmra.mrb[0].mxu0 %v6177
  %v6580 = vpop.f32.mrb[0].mxu0
  %v6581 = vadd.f32 0.0, %v6580
  %v6582 = vpop.f32.mrb[0].mxu0
  %6583 = vmatprep.mubr.f32.mxu0 0.0
  %6584 = vmatmul.mubr.f32.gmra.mrb[0].mxu0 %v6180
  %v6585 = vpop.f32.mrb[0].mxu0
  %v6586 = vadd.f32 0.0, %v6585
  %v6587 = vpop.f32.mrb[0].mxu0
  %6588 = vmatprep.mubr.f32.mxu0 0.0
  %6589 = vmatmul.mubr.f32.gmra.mrb[0].mxu0 %v6183
  %v6590 = vpop.f32.mrb[0].mxu0
  %v6591 = vadd.f32 0.0, %v6590
  %v6592 = vpop.f32.mrb[0].mxu0
  %6593 = vmatprep.mubr.f32.mxu0 0.0
  %6594 = vmatmul.mubr.f32.gmra.mrb[0].mxu0 %v6186
  %v6595 = vpop.f32.mrb[0].mxu0
  %v6596 = vadd.f32 0.0, %v6595
  %v6597 = vpop.f32.mrb[0].mxu0
  %6598 = vmatprep.mubr.f32.mxu0 0.0
  %6599 = vmatmul.mubr.f32.gmra.mrb[0].mxu0 %v6189
  %v6600 = vpop.f32.mrb[0].mxu0
  %v6601 = vadd.f32 0.0, %v6600
  %v6602 = vpop.f32.mrb[0].mxu0
  %6603 = vmatprep.mubr.f32.mxu0 0.0
  %6604 = vmatmul.mubr.f32.gmra.mrb[0].mxu0 %v6192
  %v6605 = vpop.f32.mrb[0].mxu0
  %v6606 = vadd.f32 0.0, %v6605
  %v6607 = vpop.f32.mrb[0].mxu0
  %6608 = vmatprep.mubr.f32.mxu0 0.0
  %6609 = vmatmul.mubr.f32.gmra.mrb[0].mxu0 %v6195
  %v6610 = vpop.f32.mrb[0].mxu0
  %v6611 = vadd.f32 0.0, %v6610
  %v6612 = vpop.f32.mrb[0].mxu0
  %6613 = vmatprep.mubr.f32.mxu0 0.0
  %6614 = vmatmul.mubr.f32.gmra.mrb[0].mxu0 %v6198
  %v6615 = vpop.f32.mrb[0].mxu0
  %v6616 = vadd.f32 0.0, %v6615
  %v6617 = vpop.f32.mrb[0].mxu0
  %6618 = vmatprep.mubr.f32.mxu0 0.0
  %6619 = vmatmul.mubr.f32.gmra.mrb[0].mxu0 %v6201
  %v6620 = vpop.f32.mrb[0].mxu0
  %v6621 = vadd.f32 0.0, %v6620
  %v6622 = vpop.f32.mrb[0].mxu0
  %6623 = vmatprep.mubr.f32.mxu0 0.0
  %6624 = vmatmul.mubr.f32.gmra.mrb[0].mxu0 %v6204
  %v6625 = vpop.f32.mrb[0].mxu0
  %v6626 = vadd.f32 0.0, %v6625
  %v6627 = vpop.f32.mrb[0].mxu0
  %6628 = vmatprep.mubr.f32.mxu0 0.0
  %6629 = vmatmul.mubr.f32.gmra.mrb[0].mxu0 %v6207
  %v6630 = vpop.f32.mrb[0].mxu0
  %v6631 = vadd.f32 0.0, %v6630
  %v6632 = vpop.f32.mrb[0].mxu0
  %6633 = vmatprep.mubr.f32.mxu0 0.0
  %6634 = vmatmul.mubr.f32.gmra.mrb[0].mxu0 %v6210
  %v6635 = vpop.f32.mrb[0].mxu0
  %v6636 = vadd.f32 0.0, %v6635
  %v6637 = vpop.f32.mrb[0].mxu0
  %6638 = vmatprep.mubr.f32.mxu0 0.0
  %6639 = vmatmul.mubr.f32.gmra.mrb[0].mxu0 %v6213
  %v6640 = vpop.f32.mrb[0].mxu0
  %v6641 = vadd.f32 0.0, %v6640
  %v6642 = vpop.f32.mrb[0].mxu0
  %6643 = vmatprep.mubr.f32.mxu0 0.0
  %6644 = vmatmul.mubr.f32.gmra.mrb[0].mxu0 %v6216
  %v6645 = vpop.f32.mrb[0].mxu0
  %v6646 = vadd.f32 0.0, %v6645
  %v6647 = vpop.f32.mrb[0].mxu0
  %6648 = vmatprep.mubr.f32.mxu0 0.0
  %6649 = vmatmul.mubr.f32.gmra.mrb[0].mxu0 %v6219
  %v6650 = vpop.f32.mrb[0].mxu0
  %v6651 = vadd.f32 0.0, %v6650
  %v6652 = vpop.f32.mrb[0].mxu0
  %6653 = vmatprep.mubr.f32.mxu0 0.0
  %6654 = vmatmul.mubr.f32.gmra.mrb[0].mxu0 %v6222
  %v6655 = vpop.f32.mrb[0].mxu0
  %v6656 = vadd.f32 0.0, %v6655
  %v6657 = vpop.f32.mrb[0].mxu0
  %6658 = vmatprep.mubr.f32.mxu0 0.0
  %6659 = vmatmul.mubr.f32.gmra.mrb[0].mxu0 %v6225
  %v6660 = vpop.f32.mrb[0].mxu0
  %v6661 = vadd.f32 0.0, %v6660
  %v6662 = vpop.f32.mrb[0].mxu0
  %6663 = vmatprep.mubr.f32.mxu0 0.0
  %6664 = vmatmul.mubr.f32.gmra.mrb[0].mxu0 %v6228
  %v6665 = vpop.f32.mrb[0].mxu0
  %v6666 = vadd.f32 0.0, %v6665
  %v6667 = vpop.f32.mrb[0].mxu0
  %6668 = vmatprep.mubr.f32.mxu0 0.0
  %6669 = vmatmul.mubr.f32.gmra.mrb[0].mxu0 %v6231
  %v6670 = vpop.f32.mrb[0].mxu0
  %v6671 = vadd.f32 0.0, %v6670
  %v6672 = vpop.f32.mrb[0].mxu0
  %6673 = vmatprep.mubr.f32.mxu0 0.0
  %6674 = vmatmul.mubr.f32.gmra.mrb[0].mxu0 %v6234
  %v6675 = vpop.f32.mrb[0].mxu0
  %v6676 = vadd.f32 0.0, %v6675
  %v6677 = vpop.f32.mrb[0].mxu0
  %6678 = vmatprep.mubr.f32.mxu0 0.0
  %6679 = vmatmul.mubr.f32.gmra.mrb[0].mxu0 %v6237
  %v6680 = vpop.f32.mrb[0].mxu0
  %v6681 = vadd.f32 0.0, %v6680
  %v6682 = vpop.f32.mrb[0].mxu0
  %6683 = vmatprep.mubr.f32.mxu0 0.0
  %6684 = vmatmul.mubr.f32.gmra.mrb[0].mxu0 %v6240
  %v6685 = vpop.f32.mrb[0].mxu0
  %v6686 = vadd.f32 0.0, %v6685
  %v6687 = vpop.f32.mrb[0].mxu0
  %6688 = vmatprep.mubr.f32.mxu0 0.0
  %6689 = vmatmul.mubr.f32.gmra.mrb[0].mxu0 %v6243
  %v6690 = vpop.f32.mrb[0].mxu0
  %v6691 = vadd.f32 0.0, %v6690
  %v6692 = vpop.f32.mrb[0].mxu0
  %6693 = vmatprep.mubr.f32.mxu0 0.0
  %6694 = vmatmul.mubr.f32.gmra.mrb[0].mxu0 %v6246
  %v6695 = vpop.f32.mrb[0].mxu0
  %v6696 = vadd.f32 0.0, %v6695
  %v6697 = vpop.f32.mrb[0].mxu0
  %6698 = vmatprep.mubr.f32.mxu0 0.0
  %6699 = vmatmul.mubr.f32.gmra.mrb[0].mxu0 %v6249
  %v6700 = vpop.f32.mrb[0].mxu0
  %v6701 = vadd.f32 0.0, %v6700
  %v6702 = vpop.f32.mrb[0].mxu0
  %6703 = vmatprep.mubr.f32.mxu0 0.0
  %6704 = vmatmul.mubr.f32.gmra.mrb[0].mxu0 %v6252
  %v6705 = vpop.f32.mrb[0].mxu0
  %v6706 = vadd.f32 0.0, %v6705
  %v6707 = vpop.f32.mrb[0].mxu0
  %6708 = vmatprep.mubr.f32.mxu0 0.0
  %6709 = vmatmul.mubr.f32.gmra.mrb[0].mxu0 %v6255
  %v6710 = vpop.f32.mrb[0].mxu0
  %v6711 = vadd.f32 0.0, %v6710
  %v6712 = vpop.f32.mrb[0].mxu0
  %6713 = vmatprep.mubr.f32.mxu0 0.0
  %6714 = vmatmul.mubr.f32.gmra.mrb[0].mxu0 %v6258
  %v6715 = vpop.f32.mrb[0].mxu0
  %v6716 = vadd.f32 0.0, %v6715
  %v6717 = vpop.f32.mrb[0].mxu0
  %6718 = vmatprep.mubr.f32.mxu0 0.0
  %6719 = vmatmul.mubr.f32.gmra.mrb[0].mxu0 %v6261
  %v6720 = vpop.f32.mrb[0].mxu0
  %v6721 = vadd.f32 0.0, %v6720
  %v6722 = vpop.f32.mrb[0].mxu0
  %6723 = vmatprep.mubr.f32.mxu0 0.0
  %6724 = vmatmul.mubr.f32.gmra.mrb[0].mxu0 %v6264
  %v6725 = vpop.f32.mrb[0].mxu0
  %v6726 = vadd.f32 0.0, %v6725
  %v6727 = vpop.f32.mrb[0].mxu0
  %6728 = vmatprep.mubr.f32.mxu0 0.0
  %6729 = vmatmul.mubr.f32.gmra.mrb[0].mxu0 %v6267
  %v6730 = vpop.f32.mrb[0].mxu0
  %v6731 = vadd.f32 0.0, %v6730
  %v6732 = vpop.f32.mrb[0].mxu0
  %6733 = vmatprep.mubr.f32.mxu0 0.0
  %6734 = vmatmul.mubr.f32.gmra.mrb[0].mxu0 %v6270
  %v6735 = vpop.f32.mrb[0].mxu0
  %v6736 = vadd.f32 0.0, %v6735
  %v6737 = vpop.f32.mrb[0].mxu0
  %6738 = vmatprep.mubr.f32.mxu0 0.0
  %6739 = vmatmul.mubr.f32.gmra.mrb[0].mxu0 %v6273
  %v6740 = vpop.f32.mrb[0].mxu0
  %v6741 = vadd.f32 0.0, %v6740
  %v6742 = vpop.f32.mrb[0].mxu0
  %6743 = vmatprep.mubr.f32.mxu0 0.0
  %6744 = vmatmul.mubr.f32.gmra.mrb[0].mxu0 %v6276
  %v6745 = vpop.f32.mrb[0].mxu0
  %v6746 = vadd.f32 0.0, %v6745
  %v6747 = vpop.f32.mrb[0].mxu0
  %6748 = vmatprep.mubr.f32.mxu0 0.0
  %6749 = vmatmul.mubr.f32.gmra.mrb[0].mxu0 %v6279
  %v6750 = vpop.f32.mrb[0].mxu0
  %v6751 = vadd.f32 0.0, %v6750
  %v6752 = vpop.f32.mrb[0].mxu0
  %6753 = vmatprep.mubr.f32.mxu0 0.0
  %6754 = vmatmul.mubr.f32.gmra.mrb[0].mxu0 %v6282
  %v6755 = vpop.f32.mrb[0].mxu0
  %v6756 = vadd.f32 0.0, %v6755
  %v6757 = vpop.f32.mrb[0].mxu0
  %6758 = vmatprep.mubr.f32.mxu0 0.0
  %6759 = vmatmul.mubr.f32.gmra.mrb[0].mxu0 %v6285
  %v6760 = vpop.f32.mrb[0].mxu0
  %v6761 = vadd.f32 0.0, %v6760
  %v6762 = vpop.f32.mrb[0].mxu0
  %6763 = vmatprep.mubr.f32.mxu0 0.0
  %6764 = vmatmul.mubr.f32.gmra.mrb[0].mxu0 %v6288
  %v6765 = vpop.f32.mrb[0].mxu0
  %v6766 = vadd.f32 0.0, %v6765
  %v6767 = vpop.f32.mrb[0].mxu0
  %6768 = vmatprep.mubr.f32.mxu0 0.0
  %6769 = vmatmul.mubr.f32.gmra.mrb[0].mxu0 %v6291
  %v6770 = vpop.f32.mrb[0].mxu0
  %v6771 = vadd.f32 0.0, %v6770
  %v6772 = vpop.f32.mrb[0].mxu0
  %6773 = vmatprep.mubr.f32.mxu0 0.0
  %6774 = vmatmul.mubr.f32.gmra.mrb[0].mxu0 %v6294
  %v6775 = vpop.f32.mrb[0].mxu0
  %v6776 = vadd.f32 0.0, %v6775
  %v6777 = vpop.f32.mrb[0].mxu0
  %6778 = vmatprep.mubr.f32.mxu0 0.0
  %6779 = vmatmul.mubr.f32.gmra.mrb[0].mxu0 %v6297
  %v6780 = vpop.f32.mrb[0].mxu0
  %v6781 = vadd.f32 0.0, %v6780
  %v6782 = vpop.f32.mrb[0].mxu0
  %6783 = vmatprep.mubr.f32.mxu0 0.0
  %6784 = vmatmul.mubr.f32.gmra.mrb[0].mxu0 %v6300
  %v6785 = vpop.f32.mrb[0].mxu0
  %v6786 = vadd.f32 0.0, %v6785
  %v6787 = vpop.f32.mrb[0].mxu0
  %6788 = vmatprep.mubr.f32.mxu0 0.0
  %6789 = vmatmul.mubr.f32.gmra.mrb[0].mxu0 %v6303
  %v6790 = vpop.f32.mrb[0].mxu0
  %v6791 = vadd.f32 0.0, %v6790
  %v6792 = vpop.f32.mrb[0].mxu0
  %6793 = vmatprep.mubr.f32.mxu0 0.0
  %6794 = vmatmul.mubr.f32.gmra.mrb[0].mxu0 %v6306
  %v6795 = vpop.f32.mrb[0].mxu0
  %v6796 = vadd.f32 0.0, %v6795
  %v6797 = vpop.f32.mrb[0].mxu0
  %6798 = vmatprep.mubr.f32.mxu0 0.0
  %6799 = vmatmul.mubr.f32.gmra.mrb[0].mxu0 %v6309
  %v6800 = vpop.f32.mrb[0].mxu0
  %v6801 = vadd.f32 0.0, %v6800
  %v6802 = vpop.f32.mrb[0].mxu0
  %6803 = vmatprep.mubr.f32.mxu0 0.0
  %6804 = vmatmul.mubr.f32.gmra.mrb[0].mxu0 %v6312
  %v6805 = vpop.f32.mrb[0].mxu0
  %v6806 = vadd.f32 0.0, %v6805
  %v6807 = vpop.f32.mrb[0].mxu0
  %6808 = vmatprep.mubr.f32.mxu0 0.0
  %6809 = vmatmul.mubr.f32.gmra.mrb[0].mxu0 %v6315
  %v6810 = vpop.f32.mrb[0].mxu0
  %v6811 = vadd.f32 0.0, %v6810
  %v6812 = vpop.f32.mrb[0].mxu0
  %6813 = vmatprep.mubr.f32.mxu0 0.0
  %6814 = vmatmul.mubr.f32.gmra.mrb[0].mxu0 %v6318
  %v6815 = vpop.f32.mrb[0].mxu0
  %v6816 = vadd.f32 0.0, %v6815
  %v6817 = vpop.f32.mrb[0].mxu0
  %6818 = vmatprep.mubr.f32.mxu0 0.0
  %6819 = vmatmul.mubr.f32.gmra.mrb[0].mxu0 %v6321
  %v6820 = vpop.f32.mrb[0].mxu0
  %v6821 = vadd.f32 0.0, %v6820
  %v6822 = vpop.f32.mrb[0].mxu0
  %6823 = vmatprep.mubr.f32.mxu0 0.0
  %6824 = vmatmul.mubr.f32.gmra.mrb[0].mxu0 %v6324
  %v6825 = vpop.f32.mrb[0].mxu0
  %v6826 = vadd.f32 0.0, %v6825
  %v6827 = vpop.f32.mrb[0].mxu0
  %6828 = vmatprep.mubr.f32.mxu0 0.0
  %6829 = vmatmul.mubr.f32.gmra.mrb[0].mxu0 %v6327
  %v6830 = vpop.f32.mrb[0].mxu0
  %v6831 = vadd.f32 0.0, %v6830
  %v6832 = vpop.f32.mrb[0].mxu0
  %6833 = vmatprep.mubr.f32.mxu0 0.0
  %6834 = vmatmul.mubr.f32.gmra.mrb[0].mxu0 %v6330
  %v6835 = vpop.f32.mrb[0].mxu0
  %v6836 = vadd.f32 0.0, %v6835
  %v6837 = vpop.f32.mrb[0].mxu0
  %6838 = vmatprep.mubr.f32.mxu0 0.0
  %6839 = vmatmul.mubr.f32.gmra.mrb[0].mxu0 %v6333
  %v6840 = vpop.f32.mrb[0].mxu0
  %v6841 = vadd.f32 0.0, %v6840
  %v6842 = vpop.f32.mrb[0].mxu0
  %6843 = vmatprep.mubr.f32.mxu0 0.0
  %6844 = vmatmul.mubr.f32.gmra.mrb[0].mxu0 %v6336
  %v6845 = vpop.f32.mrb[0].mxu0
  %v6846 = vadd.f32 0.0, %v6845
  %v6847 = vpop.f32.mrb[0].mxu0
  %6848 = vmatprep.mubr.f32.mxu0 0.0
  %6849 = vmatmul.mubr.f32.gmra.mrb[0].mxu0 %v6339
  %v6850 = vpop.f32.mrb[0].mxu0
  %v6851 = vadd.f32 0.0, %v6850
  %v6852 = vpop.f32.mrb[0].mxu0
  %6853 = vmatprep.mubr.f32.mxu0 0.0
  %6854 = vmatmul.mubr.f32.gmra.mrb[0].mxu0 %v6342
  %v6855 = vpop.f32.mrb[0].mxu0
  %v6856 = vadd.f32 0.0, %v6855
  %v6857 = vpop.f32.mrb[0].mxu0
  %6858 = vmatprep.mubr.f32.mxu0 0.0
  %6859 = vmatmul.mubr.f32.gmra.mrb[0].mxu0 %v6345
  %v6860 = vpop.f32.mrb[0].mxu0
  %v6861 = vadd.f32 0.0, %v6860
  %v6862 = vpop.f32.mrb[0].mxu0
  %6863 = vmatprep.mubr.f32.mxu0 0.0
  %6864 = vmatmul.mubr.f32.gmra.mrb[0].mxu0 %v6348
  %v6865 = vpop.f32.mrb[0].mxu0
  %v6866 = vadd.f32 0.0, %v6865
  %v6867 = vpop.f32.mrb[0].mxu0
  %6868 = vmatprep.mubr.f32.mxu0 0.0
  %6869 = vmatmul.mubr.f32.gmra.mrb[0].mxu0 %v6351
  %v6870 = vpop.f32.mrb[0].mxu0
  %v6871 = vadd.f32 0.0, %v6870
  %v6872 = vpop.f32.mrb[0].mxu0
  %6873 = vmatprep.mubr.f32.mxu0 0.0
  %6874 = vmatmul.mubr.f32.gmra.mrb[0].mxu0 %v6354
  %v6875 = vpop.f32.mrb[0].mxu0
  %v6876 = vadd.f32 0.0, %v6875
  %v6877 = vpop.f32.mrb[0].mxu0
  %6878 = vmatprep.mubr.f32.mxu0 0.0
  %6879 = vmatmul.mubr.f32.gmra.mrb[0].mxu0 %v6357
  %v6880 = vpop.f32.mrb[0].mxu0
  %v6881 = vadd.f32 0.0, %v6880
  %v6882 = vpop.f32.mrb[0].mxu0
  %6883 = vmatprep.mubr.f32.mxu0 0.0
  %6884 = vmatmul.mubr.f32.gmra.mrb[0].mxu0 %v6360
  %v6885 = vpop.f32.mrb[0].mxu0
  %v6886 = vadd.f32 0.0, %v6885
  %v6887 = vpop.f32.mrb[0].mxu0
  %6888 = vmatprep.mubr.f32.mxu0 0.0
  %6889 = vmatmul.mubr.f32.gmra.mrb[0].mxu0 %v6363
  %v6890 = vpop.f32.mrb[0].mxu0
  %v6891 = vadd.f32 0.0, %v6890
  %v6892 = vpop.f32.mrb[0].mxu0
  %6893 = vmatprep.mubr.f32.mxu0 0.0
  %6894 = vmatmul.mubr.f32.gmra.mrb[0].mxu0 %v6366
  %v6895 = vpop.f32.mrb[0].mxu0
  %v6896 = vadd.f32 0.0, %v6895
  %v6897 = vpop.f32.mrb[0].mxu0
  %6898 = vmatprep.mubr.f32.mxu0 0.0
  %6899 = vmatmul.mubr.f32.gmra.mrb[0].mxu0 %v6369
  %v6900 = vpop.f32.mrb[0].mxu0
  %v6901 = vadd.f32 0.0, %v6900
  %v6902 = vpop.f32.mrb[0].mxu0
  %6903 = vmatprep.mubr.f32.mxu0 0.0
  %6904 = vmatmul.mubr.f32.gmra.mrb[0].mxu0 %v6372
  %v6905 = vpop.f32.mrb[0].mxu0
  %v6906 = vadd.f32 0.0, %v6905
  %v6907 = vpop.f32.mrb[0].mxu0
  %6908 = vmatprep.mubr.f32.mxu0 0.0
  %6909 = vmatmul.mubr.f32.gmra.mrb[0].mxu0 %v6375
  %v6910 = vpop.f32.mrb[0].mxu0
  %v6911 = vadd.f32 0.0, %v6910
  %v6912 = vpop.f32.mrb[0].mxu0
  %6913 = vmatprep.mubr.f32.mxu0 0.0
  %6914 = vmatmul.mubr.f32.gmra.mrb[0].mxu0 %v6378
  %v6915 = vpop.f32.mrb[0].mxu0
  %v6916 = vadd.f32 0.0, %v6915
  %v6917 = vpop.f32.mrb[0].mxu0
  %6918 = vmatprep.mubr.f32.mxu0 0.0
  %6919 = vmatmul.mubr.f32.gmra.mrb[0].mxu0 %v6381
  %v6920 = vpop.f32.mrb[0].mxu0
  %v6921 = vadd.f32 0.0, %v6920
  %v6922 = vpop.f32.mrb[0].mxu0
  %6923 = vmatprep.mubr.f32.mxu0 0.0
  %6924 = vmatmul.mubr.f32.gmra.mrb[0].mxu0 %v6384
  %v6925 = vpop.f32.mrb[0].mxu0
  %v6926 = vadd.f32 0.0, %v6925
  %v6927 = vpop.f32.mrb[0].mxu0
  %6928 = vmatprep.mubr.f32.mxu0 0.0
  %6929 = vmatmul.mubr.f32.gmra.mrb[0].mxu0 %v6387
  %v6930 = vpop.f32.mrb[0].mxu0
  %v6931 = vadd.f32 0.0, %v6930
  %v6932 = vpop.f32.mrb[0].mxu0
  %6933 = vmatprep.mubr.f32.mxu0 0.0
  %6934 = vmatmul.mubr.f32.gmra.mrb[0].mxu0 %v6390
  %v6935 = vpop.f32.mrb[0].mxu0
  %v6936 = vadd.f32 0.0, %v6935
  %v6937 = vpop.f32.mrb[0].mxu0
  %6938 = vmatprep.mubr.f32.mxu0 0.0
  %6939 = vmatmul.mubr.f32.gmra.mrb[0].mxu0 %v6393
  %v6940 = vpop.f32.mrb[0].mxu0
  %v6941 = vadd.f32 0.0, %v6940
  %v6942 = vpop.f32.mrb[0].mxu0
  %6943 = vmatprep.mubr.f32.mxu0 0.0
  %6944 = vmatmul.mubr.f32.gmra.mrb[0].mxu0 %v6396
  %v6945 = vpop.f32.mrb[0].mxu0
  %v6946 = vadd.f32 0.0, %v6945
  %v6947 = vpop.f32.mrb[0].mxu0
  %6948 = vmatprep.mubr.f32.mxu0 0.0
  %6949 = vmatmul.mubr.f32.gmra.mrb[0].mxu0 %v6399
  %v6950 = vpop.f32.mrb[0].mxu0
  %v6951 = vadd.f32 0.0, %v6950
  %v6952 = vpop.f32.mrb[0].mxu0
  %6953 = vmatprep.mubr.f32.mxu0 0.0
  %6954 = vmatmul.mubr.f32.gmra.mrb[0].mxu0 %v6402
  %v6955 = vpop.f32.mrb[0].mxu0
  %v6956 = vadd.f32 0.0, %v6955
  %v6957 = vpop.f32.mrb[0].mxu0
  %6958 = vdwg.mxu0
  %v6959 = vadd.f32 %v5911, %v6471
  %v6960 = vadd.f32 %v5912, %v6476
  %v6961 = vadd.f32 %v5913, %v6481
  %v6962 = vadd.f32 %v5914, %v6486
  %v6963 = vadd.f32 %v5915, %v6491
  %v6964 = vadd.f32 %v5916, %v6496
  %v6965 = vadd.f32 %v5917, %v6501
  %v6966 = vadd.f32 %v5918, %v6506
  %v6967 = vadd.f32 %v5919, %v6511
  %v6968 = vadd.f32 %v5920, %v6516
  %v6969 = vadd.f32 %v5921, %v6521
  %v6970 = vadd.f32 %v5922, %v6526
  %v6971 = vadd.f32 %v5923, %v6531
  %v6972 = vadd.f32 %v5924, %v6536
  %v6973 = vadd.f32 %v5925, %v6541
  %v6974 = vadd.f32 %v5926, %v6546
  %v6975 = vadd.f32 %v5927, %v6551
  %v6976 = vadd.f32 %v5928, %v6556
  %v6977 = vadd.f32 %v5929, %v6561
  %v6978 = vadd.f32 %v5930, %v6566
  %v6979 = vadd.f32 %v5931, %v6571
  %v6980 = vadd.f32 %v5932, %v6576
  %v6981 = vadd.f32 %v5933, %v6581
  %v6982 = vadd.f32 %v5934, %v6586
  %v6983 = vadd.f32 %v5935, %v6591
  %v6984 = vadd.f32 %v5936, %v6596
  %v6985 = vadd.f32 %v5937, %v6601
  %v6986 = vadd.f32 %v5938, %v6606
  %v6987 = vadd.f32 %v5939, %v6611
  %v6988 = vadd.f32 %v5940, %v6616
  %v6989 = vadd.f32 %v5941, %v6621
  %v6990 = vadd.f32 %v5942, %v6626
  %v6991 = vadd.f32 %v5943, %v6631
  %v6992 = vadd.f32 %v5944, %v6636
  %v6993 = vadd.f32 %v5945, %v6641
  %v6994 = vadd.f32 %v5946, %v6646
  %v6995 = vadd.f32 %v5947, %v6651
  %v6996 = vadd.f32 %v5948, %v6656
  %v6997 = vadd.f32 %v5949, %v6661
  %v6998 = vadd.f32 %v5950, %v6666
  %v6999 = vadd.f32 %v5951, %v6671
  %v7000 = vadd.f32 %v5952, %v6676
  %v7001 = vadd.f32 %v5953, %v6681
  %v7002 = vadd.f32 %v5954, %v6686
  %v7003 = vadd.f32 %v5955, %v6691
  %v7004 = vadd.f32 %v5956, %v6696
  %v7005 = vadd.f32 %v5957, %v6701
  %v7006 = vadd.f32 %v5958, %v6706
  %v7007 = vadd.f32 %v5959, %v6711
  %v7008 = vadd.f32 %v5960, %v6716
  %v7009 = vadd.f32 %v5961, %v6721
  %v7010 = vadd.f32 %v5962, %v6726
  %v7011 = vadd.f32 %v5963, %v6731
  %v7012 = vadd.f32 %v5964, %v6736
  %v7013 = vadd.f32 %v5965, %v6741
  %v7014 = vadd.f32 %v5966, %v6746
  %v7015 = vadd.f32 %v5967, %v6751
  %v7016 = vadd.f32 %v5968, %v6756
  %v7017 = vadd.f32 %v5969, %v6761
  %v7018 = vadd.f32 %v5970, %v6766
  %v7019 = vadd.f32 %v5971, %v6771
  %v7020 = vadd.f32 %v5972, %v6776
  %v7021 = vadd.f32 %v5973, %v6781
  %v7022 = vadd.f32 %v5974, %v6786
  %v7023 = vadd.f32 %v5975, %v6791
  %v7024 = vadd.f32 %v5976, %v6796
  %v7025 = vadd.f32 %v5977, %v6801
  %v7026 = vadd.f32 %v5978, %v6806
  %v7027 = vadd.f32 %v5979, %v6811
  %v7028 = vadd.f32 %v5980, %v6816
  %v7029 = vadd.f32 %v5981, %v6821
  %v7030 = vadd.f32 %v5982, %v6826
  %v7031 = vadd.f32 %v5983, %v6831
  %v7032 = vadd.f32 %v5984, %v6836
  %v7033 = vadd.f32 %v5985, %v6841
  %v7034 = vadd.f32 %v5986, %v6846
  %v7035 = vadd.f32 %v5987, %v6851
  %v7036 = vadd.f32 %v5988, %v6856
  %v7037 = vadd.f32 %v5989, %v6861
  %v7038 = vadd.f32 %v5990, %v6866
  %v7039 = vadd.f32 %v5991, %v6871
  %v7040 = vadd.f32 %v5992, %v6876
  %v7041 = vadd.f32 %v5993, %v6881
  %v7042 = vadd.f32 %v5994, %v6886
  %v7043 = vadd.f32 %v5995, %v6891
  %v7044 = vadd.f32 %v5996, %v6896
  %v7045 = vadd.f32 %v5997, %v6901
  %v7046 = vadd.f32 %v5998, %v6906
  %v7047 = vadd.f32 %v5999, %v6911
  %v7048 = vadd.f32 %v6000, %v6916
  %v7049 = vadd.f32 %v6001, %v6921
  %v7050 = vadd.f32 %v6002, %v6926
  %v7051 = vadd.f32 %v6003, %v6931
  %v7052 = vadd.f32 %v6004, %v6936
  %v7053 = vadd.f32 %v6005, %v6941
  %v7054 = vadd.f32 %v6006, %v6946
  %v7055 = vadd.f32 %v6007, %v6951
  %v7056 = vadd.f32 %v6008, %v6956
  %v7057 = vld [vmem:[#allocation3 + $0x20] sm:$0xff]
  %v7058 = vld [vmem:[#allocation3 + $0x28] sm:$0xff]
  %v7059 = vld [vmem:[#allocation3 + $0x30] sm:$0xff]
  %v7060 = vld [vmem:[#allocation3 + $0x38] sm:$0xff]
  %v7061 = vld [vmem:[#allocation3 + $0x40] sm:$0xff]
  %v7062 = vld [vmem:[#allocation3 + $0x48] sm:$0xff]
  %v7063 = vld [vmem:[#allocation3 + $0x50] sm:$0xff]
  %v7064 = vld [vmem:[#allocation3 + $0x58] sm:$0xff]
  %v7065 = vld [vmem:[#allocation3 + $0x60] sm:$0xff]
  %v7066 = vld [vmem:[#allocation3 + $0x68] sm:$0xff]
  %v7067 = vld [vmem:[#allocation3 + $0x70] sm:$0xff]
  %v7068 = vld [vmem:[#allocation3 + $0x78] sm:$0xff]
  %v7069 = vld [vmem:[#allocation3 + $0x80] sm:$0xff]
  %v7070 = vld [vmem:[#allocation3 + $0x88] sm:$0xff]
  %v7071 = vld [vmem:[#allocation3 + $0x90] sm:$0xff]
  %v7072 = vld [vmem:[#allocation3 + $0x98] sm:$0xff]
  %v7073 = vld [vmem:[#allocation3 + $0xa0] sm:$0xff]
  %v7074 = vld [vmem:[#allocation3 + $0xa8] sm:$0xff]
  %v7075 = vld [vmem:[#allocation3 + $0xb0] sm:$0xff]
  %v7076 = vld [vmem:[#allocation3 + $0xb8] sm:$0xff]
  %v7077 = vld [vmem:[#allocation3 + $0xc0] sm:$0xff]
  %v7078 = vld [vmem:[#allocation3 + $0xc8] sm:$0xff]
  %v7079 = vld [vmem:[#allocation3 + $0xd0] sm:$0xff]
  %v7080 = vld [vmem:[#allocation3 + $0xd8] sm:$0xff]
  %v7081 = vld [vmem:[#allocation3 + $0xe0] sm:$0xff]
  %v7082 = vld [vmem:[#allocation3 + $0xe8] sm:$0xff]
  %v7083 = vld [vmem:[#allocation3 + $0xf0] sm:$0xff]
  %v7084 = vld [vmem:[#allocation3 + $0xf8] sm:$0xff]
  %v7085 = vld [vmem:[#allocation3 + $0x100] sm:$0xff]
  %v7086 = vld [vmem:[#allocation3 + $0x108] sm:$0xff]
  %v7087 = vld [vmem:[#allocation3 + $0x110] sm:$0xff]
  %v7088 = vld [vmem:[#allocation3 + $0x118] sm:$0xff]
  %v7089 = vld [vmem:[#allocation3 + $0x120] sm:$0xff]
  %v7090 = vld [vmem:[#allocation3 + $0x128] sm:$0xff]
  %v7091 = vld [vmem:[#allocation3 + $0x130] sm:$0xff]
  %v7092 = vld [vmem:[#allocation3 + $0x138] sm:$0xff]
  %v7093 = vld [vmem:[#allocation3 + $0x140] sm:$0xff]
  %v7094 = vld [vmem:[#allocation3 + $0x148] sm:$0xff]
  %v7095 = vld [vmem:[#allocation3 + $0x150] sm:$0xff]
  %v7096 = vld [vmem:[#allocation3 + $0x158] sm:$0xff]
  %v7097 = vld [vmem:[#allocation3 + $0x160] sm:$0xff]
  %v7098 = vld [vmem:[#allocation3 + $0x168] sm:$0xff]
  %v7099 = vld [vmem:[#allocation3 + $0x170] sm:$0xff]
  %v7100 = vld [vmem:[#allocation3 + $0x178] sm:$0xff]
  %v7101 = vld [vmem:[#allocation3 + $0x180] sm:$0xff]
  %v7102 = vld [vmem:[#allocation3 + $0x188] sm:$0xff]
  %v7103 = vld [vmem:[#allocation3 + $0x190] sm:$0xff]
  %v7104 = vld [vmem:[#allocation3 + $0x198] sm:$0xff]
  %v7105 = vld [vmem:[#allocation3 + $0x1a0] sm:$0xff]
  %v7106 = vld [vmem:[#allocation3 + $0x1a8] sm:$0xff]
  %v7107 = vld [vmem:[#allocation3 + $0x1b0] sm:$0xff]
  %v7108 = vld [vmem:[#allocation3 + $0x1b8] sm:$0xff]
  %v7109 = vld [vmem:[#allocation3 + $0x1c0] sm:$0xff]
  %v7110 = vld [vmem:[#allocation3 + $0x1c8] sm:$0xff]
  %v7111 = vld [vmem:[#allocation3 + $0x1d0] sm:$0xff]
  %v7112 = vld [vmem:[#allocation3 + $0x1d8] sm:$0xff]
  %v7113 = vld [vmem:[#allocation3 + $0x1e0] sm:$0xff]
  %v7114 = vld [vmem:[#allocation3 + $0x1e8] sm:$0xff]
  %v7115 = vld [vmem:[#allocation3 + $0x1f0] sm:$0xff]
  %v7116 = vld [vmem:[#allocation3 + $0x1f8] sm:$0xff]
  %v7117 = vld [vmem:[#allocation3 + $0x200] sm:$0xff]
  %v7118 = vld [vmem:[#allocation3 + $0x208] sm:$0xff]
  %v7119 = vld [vmem:[#allocation3 + $0x210] sm:$0xff]
  %v7120 = vld [vmem:[#allocation3 + $0x218] sm:$0xff]
  %v7121 = vld [vmem:[#allocation3 + $0x220] sm:$0xff]
  %v7122 = vld [vmem:[#allocation3 + $0x228] sm:$0xff]
  %v7123 = vld [vmem:[#allocation3 + $0x230] sm:$0xff]
  %v7124 = vld [vmem:[#allocation3 + $0x238] sm:$0xff]
  %v7125 = vld [vmem:[#allocation3 + $0x240] sm:$0xff]
  %v7126 = vld [vmem:[#allocation3 + $0x248] sm:$0xff]
  %v7127 = vld [vmem:[#allocation3 + $0x250] sm:$0xff]
  %v7128 = vld [vmem:[#allocation3 + $0x258] sm:$0xff]
  %v7129 = vld [vmem:[#allocation3 + $0x260] sm:$0xff]
  %v7130 = vld [vmem:[#allocation3 + $0x268] sm:$0xff]
  %v7131 = vld [vmem:[#allocation3 + $0x270] sm:$0xff]
  %v7132 = vld [vmem:[#allocation3 + $0x278] sm:$0xff]
  %v7133 = vld [vmem:[#allocation3 + $0x280] sm:$0xff]
  %v7134 = vld [vmem:[#allocation3 + $0x288] sm:$0xff]
  %v7135 = vld [vmem:[#allocation3 + $0x290] sm:$0xff]
  %v7136 = vld [vmem:[#allocation3 + $0x298] sm:$0xff]
  %v7137 = vld [vmem:[#allocation3 + $0x2a0] sm:$0xff]
  %v7138 = vld [vmem:[#allocation3 + $0x2a8] sm:$0xff]
  %v7139 = vld [vmem:[#allocation3 + $0x2b0] sm:$0xff]
  %v7140 = vld [vmem:[#allocation3 + $0x2b8] sm:$0xff]
  %v7141 = vld [vmem:[#allocation3 + $0x2c0] sm:$0xff]
  %v7142 = vld [vmem:[#allocation3 + $0x2c8] sm:$0xff]
  %v7143 = vld [vmem:[#allocation3 + $0x2d0] sm:$0xff]
  %v7144 = vld [vmem:[#allocation3 + $0x2d8] sm:$0xff]
  %v7145 = vld [vmem:[#allocation3 + $0x2e0] sm:$0xff]
  %v7146 = vld [vmem:[#allocation3 + $0x2e8] sm:$0xff]
  %v7147 = vld [vmem:[#allocation3 + $0x2f0] sm:$0xff]
  %v7148 = vld [vmem:[#allocation3 + $0x2f8] sm:$0xff]
  %v7149 = vld [vmem:[#allocation3 + $0x300] sm:$0xff]
  %v7150 = vld [vmem:[#allocation3 + $0x308] sm:$0xff]
  %v7151 = vld [vmem:[#allocation3 + $0x310] sm:$0xff]
  %v7152 = vld [vmem:[#allocation3 + $0x318] sm:$0xff]
  %v7153 = vld [vmem:[#allocation3 + $0x320] sm:$0xff]
  %v7154 = vld [vmem:[#allocation3 + $0x328] sm:$0xff]
  %s7155 = scalar_lea.vmem %s3, 80
  %v7156 = vld [vmem:[%s7155] sm:$0xff]
  %v7157 = vld [vmem:[%s7155 + $0x8] sm:$0xff]
  %v7159 = vsel %vm46, %v7057, 0
  %v7162 = vsel %vm46, %v7058, 0
  %v7165 = vsel %vm46, %v7059, 0
  %v7168 = vsel %vm46, %v7060, 0
  %v7171 = vsel %vm46, %v7061, 0
  %v7174 = vsel %vm46, %v7062, 0
  %v7177 = vsel %vm46, %v7063, 0
  %v7180 = vsel %vm46, %v7064, 0
  %v7183 = vsel %vm46, %v7065, 0
  %v7186 = vsel %vm46, %v7066, 0
  %v7189 = vsel %vm46, %v7067, 0
  %v7192 = vsel %vm46, %v7068, 0
  %v7195 = vsel %vm46, %v7069, 0
  %v7198 = vsel %vm46, %v7070, 0
  %v7201 = vsel %vm46, %v7071, 0
  %v7204 = vsel %vm46, %v7072, 0
  %v7207 = vsel %vm46, %v7073, 0
  %v7210 = vsel %vm46, %v7074, 0
  %v7213 = vsel %vm46, %v7075, 0
  %v7216 = vsel %vm46, %v7076, 0
  %v7219 = vsel %vm46, %v7077, 0
  %v7222 = vsel %vm46, %v7078, 0
  %v7225 = vsel %vm46, %v7079, 0
  %v7228 = vsel %vm46, %v7080, 0
  %v7231 = vsel %vm46, %v7081, 0
  %v7234 = vsel %vm46, %v7082, 0
  %v7237 = vsel %vm46, %v7083, 0
  %v7240 = vsel %vm46, %v7084, 0
  %v7243 = vsel %vm46, %v7085, 0
  %v7246 = vsel %vm46, %v7086, 0
  %v7249 = vsel %vm46, %v7087, 0
  %v7252 = vsel %vm46, %v7088, 0
  %v7255 = vsel %vm46, %v7089, 0
  %v7258 = vsel %vm46, %v7090, 0
  %v7261 = vsel %vm46, %v7091, 0
  %v7264 = vsel %vm46, %v7092, 0
  %v7267 = vsel %vm46, %v7093, 0
  %v7270 = vsel %vm46, %v7094, 0
  %v7273 = vsel %vm46, %v7095, 0
  %v7276 = vsel %vm46, %v7096, 0
  %v7279 = vsel %vm46, %v7097, 0
  %v7282 = vsel %vm46, %v7098, 0
  %v7285 = vsel %vm46, %v7099, 0
  %v7288 = vsel %vm46, %v7100, 0
  %v7291 = vsel %vm46, %v7101, 0
  %v7294 = vsel %vm46, %v7102, 0
  %v7297 = vsel %vm46, %v7103, 0
  %v7300 = vsel %vm46, %v7104, 0
  %v7303 = vsel %vm46, %v7105, 0
  %v7306 = vsel %vm46, %v7106, 0
  %v7309 = vsel %vm46, %v7107, 0
  %v7312 = vsel %vm46, %v7108, 0
  %v7315 = vsel %vm46, %v7109, 0
  %v7318 = vsel %vm46, %v7110, 0
  %v7321 = vsel %vm46, %v7111, 0
  %v7324 = vsel %vm46, %v7112, 0
  %v7327 = vsel %vm46, %v7113, 0
  %v7330 = vsel %vm46, %v7114, 0
  %v7333 = vsel %vm46, %v7115, 0
  %v7336 = vsel %vm46, %v7116, 0
  %v7339 = vsel %vm46, %v7117, 0
  %v7342 = vsel %vm46, %v7118, 0
  %v7345 = vsel %vm46, %v7119, 0
  %v7348 = vsel %vm46, %v7120, 0
  %v7351 = vsel %vm46, %v7121, 0
  %v7354 = vsel %vm46, %v7122, 0
  %v7357 = vsel %vm46, %v7123, 0
  %v7360 = vsel %vm46, %v7124, 0
  %v7363 = vsel %vm46, %v7125, 0
  %v7366 = vsel %vm46, %v7126, 0
  %v7369 = vsel %vm46, %v7127, 0
  %v7372 = vsel %vm46, %v7128, 0
  %v7375 = vsel %vm46, %v7129, 0
  %v7378 = vsel %vm46, %v7130, 0
  %v7381 = vsel %vm46, %v7131, 0
  %v7384 = vsel %vm46, %v7132, 0
  %v7387 = vsel %vm46, %v7133, 0
  %v7390 = vsel %vm46, %v7134, 0
  %v7393 = vsel %vm46, %v7135, 0
  %v7396 = vsel %vm46, %v7136, 0
  %v7399 = vsel %vm46, %v7137, 0
  %v7402 = vsel %vm46, %v7138, 0
  %v7405 = vsel %vm46, %v7139, 0
  %v7408 = vsel %vm46, %v7140, 0
  %v7411 = vsel %vm46, %v7141, 0
  %v7414 = vsel %vm46, %v7142, 0
  %v7417 = vsel %vm46, %v7143, 0
  %v7420 = vsel %vm46, %v7144, 0
  %v7423 = vsel %vm46, %v7145, 0
  %v7426 = vsel %vm46, %v7146, 0
  %v7429 = vsel %vm46, %v7147, 0
  %v7432 = vsel %vm46, %v7148, 0
  %v7435 = vsel %vm46, %v7149, 0
  %v7438 = vsel %vm46, %v7150, 0
  %v7441 = vsel %vm46, %v7151, 0
  %v7444 = vsel %vm46, %v7152, 0
  %v7447 = vsel %vm46, %v7153, 0
  %v7450 = vsel %vm46, %v7154, 0
  %7452 = vmatprep.subr.mxu0 0.0
  %7453 = vmatpush1.msra.mxu0 %v7156
  %7454 = vmatprep.subr.mxu0 0.0
  %7455 = vmatpush1.msra.mxu0 %v7157
  %7456 = vmatprep.subr.mxu0 0.0
  %7457 = vmatpush1.msra.mxu0 0.0
  %7458 = vmatprep.subr.mxu0 0.0
  %7459 = vmatpush1.msra.mxu0 0.0
  %7460 = vmatprep.subr.mxu0 0.0
  %7461 = vmatpush1.msra.mxu0 0.0
  %7462 = vmatprep.subr.mxu0 0.0
  %7463 = vmatpush1.msra.mxu0 0.0
  %7464 = vmatprep.subr.mxu0 0.0
  %7465 = vmatpush1.msra.mxu0 0.0
  %7466 = vmatprep.subr.mxu0 0.0
  %7467 = vmatpush1.msra.mxu0 0.0
  %7468 = vmatprep.subr.mxu0 0.0
  %7469 = vmatpush1.msra.mxu0 0.0
  %7470 = vmatprep.subr.mxu0 0.0
  %7471 = vmatpush1.msra.mxu0 0.0
  %7472 = vmatprep.subr.mxu0 0.0
  %7473 = vmatpush1.msra.mxu0 0.0
  %7474 = vmatprep.subr.mxu0 0.0
  %7475 = vmatpush1.msra.mxu0 0.0
  %7476 = vmatprep.subr.mxu0 0.0
  %7477 = vmatpush1.msra.mxu0 0.0
  %7478 = vmatprep.subr.mxu0 0.0
  %7479 = vmatpush1.msra.mxu0 0.0
  %7480 = vmatprep.subr.mxu0 0.0
  %7481 = vmatpush1.msra.mxu0 0.0
  %7482 = vmatprep.subr.mxu0 0.0
  %7483 = vmatpush1.msra.mxu0 0.0
  %7484 = vmatprep.subr.mxu0 0.0
  %7485 = vmatpush1.msra.mxu0 0.0
  %7486 = vmatprep.subr.mxu0 0.0
  %7487 = vmatpush1.msra.mxu0 0.0
  %7488 = vmatprep.subr.mxu0 0.0
  %7489 = vmatpush1.msra.mxu0 0.0
  %7490 = vmatprep.subr.mxu0 0.0
  %7491 = vmatpush1.msra.mxu0 0.0
  %7492 = vmatprep.subr.mxu0 0.0
  %7493 = vmatpush1.msra.mxu0 0.0
  %7494 = vmatprep.subr.mxu0 0.0
  %7495 = vmatpush1.msra.mxu0 0.0
  %7496 = vmatprep.subr.mxu0 0.0
  %7497 = vmatpush1.msra.mxu0 0.0
  %7498 = vmatprep.subr.mxu0 0.0
  %7499 = vmatpush1.msra.mxu0 0.0
  %7500 = vmatprep.subr.mxu0 0.0
  %7501 = vmatpush1.msra.mxu0 0.0
  %7502 = vmatprep.subr.mxu0 0.0
  %7503 = vmatpush1.msra.mxu0 0.0
  %7504 = vmatprep.subr.mxu0 0.0
  %7505 = vmatpush1.msra.mxu0 0.0
  %7506 = vmatprep.subr.mxu0 0.0
  %7507 = vmatpush1.msra.mxu0 0.0
  %7508 = vmatprep.subr.mxu0 0.0
  %7509 = vmatpush1.msra.mxu0 0.0
  %7510 = vmatprep.subr.mxu0 0.0
  %7511 = vmatpush1.msra.mxu0 0.0
  %7512 = vmatprep.subr.mxu0 0.0
  %7513 = vmatpush1.msra.mxu0 0.0
  %7514 = vmatprep.subr.mxu0 0.0
  %7515 = vmatpush1.msra.mxu0 0.0
  %7516 = vmatprep.mubr.f32.mxu0 0.0
  %7517 = vmatmul.mubr.f32.gmra.mrb[0].mxu0 %v7159
  %v7518 = vpop.f32.mrb[0].mxu0
  %v7519 = vadd.f32 0.0, %v7518
  %v7520 = vpop.f32.mrb[0].mxu0
  %7521 = vmatprep.mubr.f32.mxu0 0.0
  %7522 = vmatmul.mubr.f32.gmra.mrb[0].mxu0 %v7162
  %v7523 = vpop.f32.mrb[0].mxu0
  %v7524 = vadd.f32 0.0, %v7523
  %v7525 = vpop.f32.mrb[0].mxu0
  %7526 = vmatprep.mubr.f32.mxu0 0.0
  %7527 = vmatmul.mubr.f32.gmra.mrb[0].mxu0 %v7165
  %v7528 = vpop.f32.mrb[0].mxu0
  %v7529 = vadd.f32 0.0, %v7528
  %v7530 = vpop.f32.mrb[0].mxu0
  %7531 = vmatprep.mubr.f32.mxu0 0.0
  %7532 = vmatmul.mubr.f32.gmra.mrb[0].mxu0 %v7168
  %v7533 = vpop.f32.mrb[0].mxu0
  %v7534 = vadd.f32 0.0, %v7533
  %v7535 = vpop.f32.mrb[0].mxu0
  %7536 = vmatprep.mubr.f32.mxu0 0.0
  %7537 = vmatmul.mubr.f32.gmra.mrb[0].mxu0 %v7171
  %v7538 = vpop.f32.mrb[0].mxu0
  %v7539 = vadd.f32 0.0, %v7538
  %v7540 = vpop.f32.mrb[0].mxu0
  %7541 = vmatprep.mubr.f32.mxu0 0.0
  %7542 = vmatmul.mubr.f32.gmra.mrb[0].mxu0 %v7174
  %v7543 = vpop.f32.mrb[0].mxu0
  %v7544 = vadd.f32 0.0, %v7543
  %v7545 = vpop.f32.mrb[0].mxu0
  %7546 = vmatprep.mubr.f32.mxu0 0.0
  %7547 = vmatmul.mubr.f32.gmra.mrb[0].mxu0 %v7177
  %v7548 = vpop.f32.mrb[0].mxu0
  %v7549 = vadd.f32 0.0, %v7548
  %v7550 = vpop.f32.mrb[0].mxu0
  %7551 = vmatprep.mubr.f32.mxu0 0.0
  %7552 = vmatmul.mubr.f32.gmra.mrb[0].mxu0 %v7180
  %v7553 = vpop.f32.mrb[0].mxu0
  %v7554 = vadd.f32 0.0, %v7553
  %v7555 = vpop.f32.mrb[0].mxu0
  %7556 = vmatprep.mubr.f32.mxu0 0.0
  %7557 = vmatmul.mubr.f32.gmra.mrb[0].mxu0 %v7183
  %v7558 = vpop.f32.mrb[0].mxu0
  %v7559 = vadd.f32 0.0, %v7558
  %v7560 = vpop.f32.mrb[0].mxu0
  %7561 = vmatprep.mubr.f32.mxu0 0.0
  %7562 = vmatmul.mubr.f32.gmra.mrb[0].mxu0 %v7186
  %v7563 = vpop.f32.mrb[0].mxu0
  %v7564 = vadd.f32 0.0, %v7563
  %v7565 = vpop.f32.mrb[0].mxu0
  %7566 = vmatprep.mubr.f32.mxu0 0.0
  %7567 = vmatmul.mubr.f32.gmra.mrb[0].mxu0 %v7189
  %v7568 = vpop.f32.mrb[0].mxu0
  %v7569 = vadd.f32 0.0, %v7568
  %v7570 = vpop.f32.mrb[0].mxu0
  %7571 = vmatprep.mubr.f32.mxu0 0.0
  %7572 = vmatmul.mubr.f32.gmra.mrb[0].mxu0 %v7192
  %v7573 = vpop.f32.mrb[0].mxu0
  %v7574 = vadd.f32 0.0, %v7573
  %v7575 = vpop.f32.mrb[0].mxu0
  %7576 = vmatprep.mubr.f32.mxu0 0.0
  %7577 = vmatmul.mubr.f32.gmra.mrb[0].mxu0 %v7195
  %v7578 = vpop.f32.mrb[0].mxu0
  %v7579 = vadd.f32 0.0, %v7578
  %v7580 = vpop.f32.mrb[0].mxu0
  %7581 = vmatprep.mubr.f32.mxu0 0.0
  %7582 = vmatmul.mubr.f32.gmra.mrb[0].mxu0 %v7198
  %v7583 = vpop.f32.mrb[0].mxu0
  %v7584 = vadd.f32 0.0, %v7583
  %v7585 = vpop.f32.mrb[0].mxu0
  %7586 = vmatprep.mubr.f32.mxu0 0.0
  %7587 = vmatmul.mubr.f32.gmra.mrb[0].mxu0 %v7201
  %v7588 = vpop.f32.mrb[0].mxu0
  %v7589 = vadd.f32 0.0, %v7588
  %v7590 = vpop.f32.mrb[0].mxu0
  %7591 = vmatprep.mubr.f32.mxu0 0.0
  %7592 = vmatmul.mubr.f32.gmra.mrb[0].mxu0 %v7204
  %v7593 = vpop.f32.mrb[0].mxu0
  %v7594 = vadd.f32 0.0, %v7593
  %v7595 = vpop.f32.mrb[0].mxu0
  %7596 = vmatprep.mubr.f32.mxu0 0.0
  %7597 = vmatmul.mubr.f32.gmra.mrb[0].mxu0 %v7207
  %v7598 = vpop.f32.mrb[0].mxu0
  %v7599 = vadd.f32 0.0, %v7598
  %v7600 = vpop.f32.mrb[0].mxu0
  %7601 = vmatprep.mubr.f32.mxu0 0.0
  %7602 = vmatmul.mubr.f32.gmra.mrb[0].mxu0 %v7210
  %v7603 = vpop.f32.mrb[0].mxu0
  %v7604 = vadd.f32 0.0, %v7603
  %v7605 = vpop.f32.mrb[0].mxu0
  %7606 = vmatprep.mubr.f32.mxu0 0.0
  %7607 = vmatmul.mubr.f32.gmra.mrb[0].mxu0 %v7213
  %v7608 = vpop.f32.mrb[0].mxu0
  %v7609 = vadd.f32 0.0, %v7608
  %v7610 = vpop.f32.mrb[0].mxu0
  %7611 = vmatprep.mubr.f32.mxu0 0.0
  %7612 = vmatmul.mubr.f32.gmra.mrb[0].mxu0 %v7216
  %v7613 = vpop.f32.mrb[0].mxu0
  %v7614 = vadd.f32 0.0, %v7613
  %v7615 = vpop.f32.mrb[0].mxu0
  %7616 = vmatprep.mubr.f32.mxu0 0.0
  %7617 = vmatmul.mubr.f32.gmra.mrb[0].mxu0 %v7219
  %v7618 = vpop.f32.mrb[0].mxu0
  %v7619 = vadd.f32 0.0, %v7618
  %v7620 = vpop.f32.mrb[0].mxu0
  %7621 = vmatprep.mubr.f32.mxu0 0.0
  %7622 = vmatmul.mubr.f32.gmra.mrb[0].mxu0 %v7222
  %v7623 = vpop.f32.mrb[0].mxu0
  %v7624 = vadd.f32 0.0, %v7623
  %v7625 = vpop.f32.mrb[0].mxu0
  %7626 = vmatprep.mubr.f32.mxu0 0.0
  %7627 = vmatmul.mubr.f32.gmra.mrb[0].mxu0 %v7225
  %v7628 = vpop.f32.mrb[0].mxu0
  %v7629 = vadd.f32 0.0, %v7628
  %v7630 = vpop.f32.mrb[0].mxu0
  %7631 = vmatprep.mubr.f32.mxu0 0.0
  %7632 = vmatmul.mubr.f32.gmra.mrb[0].mxu0 %v7228
  %v7633 = vpop.f32.mrb[0].mxu0
  %v7634 = vadd.f32 0.0, %v7633
  %v7635 = vpop.f32.mrb[0].mxu0
  %7636 = vmatprep.mubr.f32.mxu0 0.0
  %7637 = vmatmul.mubr.f32.gmra.mrb[0].mxu0 %v7231
  %v7638 = vpop.f32.mrb[0].mxu0
  %v7639 = vadd.f32 0.0, %v7638
  %v7640 = vpop.f32.mrb[0].mxu0
  %7641 = vmatprep.mubr.f32.mxu0 0.0
  %7642 = vmatmul.mubr.f32.gmra.mrb[0].mxu0 %v7234
  %v7643 = vpop.f32.mrb[0].mxu0
  %v7644 = vadd.f32 0.0, %v7643
  %v7645 = vpop.f32.mrb[0].mxu0
  %7646 = vmatprep.mubr.f32.mxu0 0.0
  %7647 = vmatmul.mubr.f32.gmra.mrb[0].mxu0 %v7237
  %v7648 = vpop.f32.mrb[0].mxu0
  %v7649 = vadd.f32 0.0, %v7648
  %v7650 = vpop.f32.mrb[0].mxu0
  %7651 = vmatprep.mubr.f32.mxu0 0.0
  %7652 = vmatmul.mubr.f32.gmra.mrb[0].mxu0 %v7240
  %v7653 = vpop.f32.mrb[0].mxu0
  %v7654 = vadd.f32 0.0, %v7653
  %v7655 = vpop.f32.mrb[0].mxu0
  %7656 = vmatprep.mubr.f32.mxu0 0.0
  %7657 = vmatmul.mubr.f32.gmra.mrb[0].mxu0 %v7243
  %v7658 = vpop.f32.mrb[0].mxu0
  %v7659 = vadd.f32 0.0, %v7658
  %v7660 = vpop.f32.mrb[0].mxu0
  %7661 = vmatprep.mubr.f32.mxu0 0.0
  %7662 = vmatmul.mubr.f32.gmra.mrb[0].mxu0 %v7246
  %v7663 = vpop.f32.mrb[0].mxu0
  %v7664 = vadd.f32 0.0, %v7663
  %v7665 = vpop.f32.mrb[0].mxu0
  %7666 = vmatprep.mubr.f32.mxu0 0.0
  %7667 = vmatmul.mubr.f32.gmra.mrb[0].mxu0 %v7249
  %v7668 = vpop.f32.mrb[0].mxu0
  %v7669 = vadd.f32 0.0, %v7668
  %v7670 = vpop.f32.mrb[0].mxu0
  %7671 = vmatprep.mubr.f32.mxu0 0.0
  %7672 = vmatmul.mubr.f32.gmra.mrb[0].mxu0 %v7252
  %v7673 = vpop.f32.mrb[0].mxu0
  %v7674 = vadd.f32 0.0, %v7673
  %v7675 = vpop.f32.mrb[0].mxu0
  %7676 = vmatprep.mubr.f32.mxu0 0.0
  %7677 = vmatmul.mubr.f32.gmra.mrb[0].mxu0 %v7255
  %v7678 = vpop.f32.mrb[0].mxu0
  %v7679 = vadd.f32 0.0, %v7678
  %v7680 = vpop.f32.mrb[0].mxu0
  %7681 = vmatprep.mubr.f32.mxu0 0.0
  %7682 = vmatmul.mubr.f32.gmra.mrb[0].mxu0 %v7258
  %v7683 = vpop.f32.mrb[0].mxu0
  %v7684 = vadd.f32 0.0, %v7683
  %v7685 = vpop.f32.mrb[0].mxu0
  %7686 = vmatprep.mubr.f32.mxu0 0.0
  %7687 = vmatmul.mubr.f32.gmra.mrb[0].mxu0 %v7261
  %v7688 = vpop.f32.mrb[0].mxu0
  %v7689 = vadd.f32 0.0, %v7688
  %v7690 = vpop.f32.mrb[0].mxu0
  %7691 = vmatprep.mubr.f32.mxu0 0.0
  %7692 = vmatmul.mubr.f32.gmra.mrb[0].mxu0 %v7264
  %v7693 = vpop.f32.mrb[0].mxu0
  %v7694 = vadd.f32 0.0, %v7693
  %v7695 = vpop.f32.mrb[0].mxu0
  %7696 = vmatprep.mubr.f32.mxu0 0.0
  %7697 = vmatmul.mubr.f32.gmra.mrb[0].mxu0 %v7267
  %v7698 = vpop.f32.mrb[0].mxu0
  %v7699 = vadd.f32 0.0, %v7698
  %v7700 = vpop.f32.mrb[0].mxu0
  %7701 = vmatprep.mubr.f32.mxu0 0.0
  %7702 = vmatmul.mubr.f32.gmra.mrb[0].mxu0 %v7270
  %v7703 = vpop.f32.mrb[0].mxu0
  %v7704 = vadd.f32 0.0, %v7703
  %v7705 = vpop.f32.mrb[0].mxu0
  %7706 = vmatprep.mubr.f32.mxu0 0.0
  %7707 = vmatmul.mubr.f32.gmra.mrb[0].mxu0 %v7273
  %v7708 = vpop.f32.mrb[0].mxu0
  %v7709 = vadd.f32 0.0, %v7708
  %v7710 = vpop.f32.mrb[0].mxu0
  %7711 = vmatprep.mubr.f32.mxu0 0.0
  %7712 = vmatmul.mubr.f32.gmra.mrb[0].mxu0 %v7276
  %v7713 = vpop.f32.mrb[0].mxu0
  %v7714 = vadd.f32 0.0, %v7713
  %v7715 = vpop.f32.mrb[0].mxu0
  %7716 = vmatprep.mubr.f32.mxu0 0.0
  %7717 = vmatmul.mubr.f32.gmra.mrb[0].mxu0 %v7279
  %v7718 = vpop.f32.mrb[0].mxu0
  %v7719 = vadd.f32 0.0, %v7718
  %v7720 = vpop.f32.mrb[0].mxu0
  %7721 = vmatprep.mubr.f32.mxu0 0.0
  %7722 = vmatmul.mubr.f32.gmra.mrb[0].mxu0 %v7282
  %v7723 = vpop.f32.mrb[0].mxu0
  %v7724 = vadd.f32 0.0, %v7723
  %v7725 = vpop.f32.mrb[0].mxu0
  %7726 = vmatprep.mubr.f32.mxu0 0.0
  %7727 = vmatmul.mubr.f32.gmra.mrb[0].mxu0 %v7285
  %v7728 = vpop.f32.mrb[0].mxu0
  %v7729 = vadd.f32 0.0, %v7728
  %v7730 = vpop.f32.mrb[0].mxu0
  %7731 = vmatprep.mubr.f32.mxu0 0.0
  %7732 = vmatmul.mubr.f32.gmra.mrb[0].mxu0 %v7288
  %v7733 = vpop.f32.mrb[0].mxu0
  %v7734 = vadd.f32 0.0, %v7733
  %v7735 = vpop.f32.mrb[0].mxu0
  %7736 = vmatprep.mubr.f32.mxu0 0.0
  %7737 = vmatmul.mubr.f32.gmra.mrb[0].mxu0 %v7291
  %v7738 = vpop.f32.mrb[0].mxu0
  %v7739 = vadd.f32 0.0, %v7738
  %v7740 = vpop.f32.mrb[0].mxu0
  %7741 = vmatprep.mubr.f32.mxu0 0.0
  %7742 = vmatmul.mubr.f32.gmra.mrb[0].mxu0 %v7294
  %v7743 = vpop.f32.mrb[0].mxu0
  %v7744 = vadd.f32 0.0, %v7743
  %v7745 = vpop.f32.mrb[0].mxu0
  %7746 = vmatprep.mubr.f32.mxu0 0.0
  %7747 = vmatmul.mubr.f32.gmra.mrb[0].mxu0 %v7297
  %v7748 = vpop.f32.mrb[0].mxu0
  %v7749 = vadd.f32 0.0, %v7748
  %v7750 = vpop.f32.mrb[0].mxu0
  %7751 = vmatprep.mubr.f32.mxu0 0.0
  %7752 = vmatmul.mubr.f32.gmra.mrb[0].mxu0 %v7300
  %v7753 = vpop.f32.mrb[0].mxu0
  %v7754 = vadd.f32 0.0, %v7753
  %v7755 = vpop.f32.mrb[0].mxu0
  %7756 = vmatprep.mubr.f32.mxu0 0.0
  %7757 = vmatmul.mubr.f32.gmra.mrb[0].mxu0 %v7303
  %v7758 = vpop.f32.mrb[0].mxu0
  %v7759 = vadd.f32 0.0, %v7758
  %v7760 = vpop.f32.mrb[0].mxu0
  %7761 = vmatprep.mubr.f32.mxu0 0.0
  %7762 = vmatmul.mubr.f32.gmra.mrb[0].mxu0 %v7306
  %v7763 = vpop.f32.mrb[0].mxu0
  %v7764 = vadd.f32 0.0, %v7763
  %v7765 = vpop.f32.mrb[0].mxu0
  %7766 = vmatprep.mubr.f32.mxu0 0.0
  %7767 = vmatmul.mubr.f32.gmra.mrb[0].mxu0 %v7309
  %v7768 = vpop.f32.mrb[0].mxu0
  %v7769 = vadd.f32 0.0, %v7768
  %v7770 = vpop.f32.mrb[0].mxu0
  %7771 = vmatprep.mubr.f32.mxu0 0.0
  %7772 = vmatmul.mubr.f32.gmra.mrb[0].mxu0 %v7312
  %v7773 = vpop.f32.mrb[0].mxu0
  %v7774 = vadd.f32 0.0, %v7773
  %v7775 = vpop.f32.mrb[0].mxu0
  %7776 = vmatprep.mubr.f32.mxu0 0.0
  %7777 = vmatmul.mubr.f32.gmra.mrb[0].mxu0 %v7315
  %v7778 = vpop.f32.mrb[0].mxu0
  %v7779 = vadd.f32 0.0, %v7778
  %v7780 = vpop.f32.mrb[0].mxu0
  %7781 = vmatprep.mubr.f32.mxu0 0.0
  %7782 = vmatmul.mubr.f32.gmra.mrb[0].mxu0 %v7318
  %v7783 = vpop.f32.mrb[0].mxu0
  %v7784 = vadd.f32 0.0, %v7783
  %v7785 = vpop.f32.mrb[0].mxu0
  %7786 = vmatprep.mubr.f32.mxu0 0.0
  %7787 = vmatmul.mubr.f32.gmra.mrb[0].mxu0 %v7321
  %v7788 = vpop.f32.mrb[0].mxu0
  %v7789 = vadd.f32 0.0, %v7788
  %v7790 = vpop.f32.mrb[0].mxu0
  %7791 = vmatprep.mubr.f32.mxu0 0.0
  %7792 = vmatmul.mubr.f32.gmra.mrb[0].mxu0 %v7324
  %v7793 = vpop.f32.mrb[0].mxu0
  %v7794 = vadd.f32 0.0, %v7793
  %v7795 = vpop.f32.mrb[0].mxu0
  %7796 = vmatprep.mubr.f32.mxu0 0.0
  %7797 = vmatmul.mubr.f32.gmra.mrb[0].mxu0 %v7327
  %v7798 = vpop.f32.mrb[0].mxu0
  %v7799 = vadd.f32 0.0, %v7798
  %v7800 = vpop.f32.mrb[0].mxu0
  %7801 = vmatprep.mubr.f32.mxu0 0.0
  %7802 = vmatmul.mubr.f32.gmra.mrb[0].mxu0 %v7330
  %v7803 = vpop.f32.mrb[0].mxu0
  %v7804 = vadd.f32 0.0, %v7803
  %v7805 = vpop.f32.mrb[0].mxu0
  %7806 = vmatprep.mubr.f32.mxu0 0.0
  %7807 = vmatmul.mubr.f32.gmra.mrb[0].mxu0 %v7333
  %v7808 = vpop.f32.mrb[0].mxu0
  %v7809 = vadd.f32 0.0, %v7808
  %v7810 = vpop.f32.mrb[0].mxu0
  %7811 = vmatprep.mubr.f32.mxu0 0.0
  %7812 = vmatmul.mubr.f32.gmra.mrb[0].mxu0 %v7336
  %v7813 = vpop.f32.mrb[0].mxu0
  %v7814 = vadd.f32 0.0, %v7813
  %v7815 = vpop.f32.mrb[0].mxu0
  %7816 = vmatprep.mubr.f32.mxu0 0.0
  %7817 = vmatmul.mubr.f32.gmra.mrb[0].mxu0 %v7339
  %v7818 = vpop.f32.mrb[0].mxu0
  %v7819 = vadd.f32 0.0, %v7818
  %v7820 = vpop.f32.mrb[0].mxu0
  %7821 = vmatprep.mubr.f32.mxu0 0.0
  %7822 = vmatmul.mubr.f32.gmra.mrb[0].mxu0 %v7342
  %v7823 = vpop.f32.mrb[0].mxu0
  %v7824 = vadd.f32 0.0, %v7823
  %v7825 = vpop.f32.mrb[0].mxu0
  %7826 = vmatprep.mubr.f32.mxu0 0.0
  %7827 = vmatmul.mubr.f32.gmra.mrb[0].mxu0 %v7345
  %v7828 = vpop.f32.mrb[0].mxu0
  %v7829 = vadd.f32 0.0, %v7828
  %v7830 = vpop.f32.mrb[0].mxu0
  %7831 = vmatprep.mubr.f32.mxu0 0.0
  %7832 = vmatmul.mubr.f32.gmra.mrb[0].mxu0 %v7348
  %v7833 = vpop.f32.mrb[0].mxu0
  %v7834 = vadd.f32 0.0, %v7833
  %v7835 = vpop.f32.mrb[0].mxu0
  %7836 = vmatprep.mubr.f32.mxu0 0.0
  %7837 = vmatmul.mubr.f32.gmra.mrb[0].mxu0 %v7351
  %v7838 = vpop.f32.mrb[0].mxu0
  %v7839 = vadd.f32 0.0, %v7838
  %v7840 = vpop.f32.mrb[0].mxu0
  %7841 = vmatprep.mubr.f32.mxu0 0.0
  %7842 = vmatmul.mubr.f32.gmra.mrb[0].mxu0 %v7354
  %v7843 = vpop.f32.mrb[0].mxu0
  %v7844 = vadd.f32 0.0, %v7843
  %v7845 = vpop.f32.mrb[0].mxu0
  %7846 = vmatprep.mubr.f32.mxu0 0.0
  %7847 = vmatmul.mubr.f32.gmra.mrb[0].mxu0 %v7357
  %v7848 = vpop.f32.mrb[0].mxu0
  %v7849 = vadd.f32 0.0, %v7848
  %v7850 = vpop.f32.mrb[0].mxu0
  %7851 = vmatprep.mubr.f32.mxu0 0.0
  %7852 = vmatmul.mubr.f32.gmra.mrb[0].mxu0 %v7360
  %v7853 = vpop.f32.mrb[0].mxu0
  %v7854 = vadd.f32 0.0, %v7853
  %v7855 = vpop.f32.mrb[0].mxu0
  %7856 = vmatprep.mubr.f32.mxu0 0.0
  %7857 = vmatmul.mubr.f32.gmra.mrb[0].mxu0 %v7363
  %v7858 = vpop.f32.mrb[0].mxu0
  %v7859 = vadd.f32 0.0, %v7858
  %v7860 = vpop.f32.mrb[0].mxu0
  %7861 = vmatprep.mubr.f32.mxu0 0.0
  %7862 = vmatmul.mubr.f32.gmra.mrb[0].mxu0 %v7366
  %v7863 = vpop.f32.mrb[0].mxu0
  %v7864 = vadd.f32 0.0, %v7863
  %v7865 = vpop.f32.mrb[0].mxu0
  %7866 = vmatprep.mubr.f32.mxu0 0.0
  %7867 = vmatmul.mubr.f32.gmra.mrb[0].mxu0 %v7369
  %v7868 = vpop.f32.mrb[0].mxu0
  %v7869 = vadd.f32 0.0, %v7868
  %v7870 = vpop.f32.mrb[0].mxu0
  %7871 = vmatprep.mubr.f32.mxu0 0.0
  %7872 = vmatmul.mubr.f32.gmra.mrb[0].mxu0 %v7372
  %v7873 = vpop.f32.mrb[0].mxu0
  %v7874 = vadd.f32 0.0, %v7873
  %v7875 = vpop.f32.mrb[0].mxu0
  %7876 = vmatprep.mubr.f32.mxu0 0.0
  %7877 = vmatmul.mubr.f32.gmra.mrb[0].mxu0 %v7375
  %v7878 = vpop.f32.mrb[0].mxu0
  %v7879 = vadd.f32 0.0, %v7878
  %v7880 = vpop.f32.mrb[0].mxu0
  %7881 = vmatprep.mubr.f32.mxu0 0.0
  %7882 = vmatmul.mubr.f32.gmra.mrb[0].mxu0 %v7378
  %v7883 = vpop.f32.mrb[0].mxu0
  %v7884 = vadd.f32 0.0, %v7883
  %v7885 = vpop.f32.mrb[0].mxu0
  %7886 = vmatprep.mubr.f32.mxu0 0.0
  %7887 = vmatmul.mubr.f32.gmra.mrb[0].mxu0 %v7381
  %v7888 = vpop.f32.mrb[0].mxu0
  %v7889 = vadd.f32 0.0, %v7888
  %v7890 = vpop.f32.mrb[0].mxu0
  %7891 = vmatprep.mubr.f32.mxu0 0.0
  %7892 = vmatmul.mubr.f32.gmra.mrb[0].mxu0 %v7384
  %v7893 = vpop.f32.mrb[0].mxu0
  %v7894 = vadd.f32 0.0, %v7893
  %v7895 = vpop.f32.mrb[0].mxu0
  %7896 = vmatprep.mubr.f32.mxu0 0.0
  %7897 = vmatmul.mubr.f32.gmra.mrb[0].mxu0 %v7387
  %v7898 = vpop.f32.mrb[0].mxu0
  %v7899 = vadd.f32 0.0, %v7898
  %v7900 = vpop.f32.mrb[0].mxu0
  %7901 = vmatprep.mubr.f32.mxu0 0.0
  %7902 = vmatmul.mubr.f32.gmra.mrb[0].mxu0 %v7390
  %v7903 = vpop.f32.mrb[0].mxu0
  %v7904 = vadd.f32 0.0, %v7903
  %v7905 = vpop.f32.mrb[0].mxu0
  %7906 = vmatprep.mubr.f32.mxu0 0.0
  %7907 = vmatmul.mubr.f32.gmra.mrb[0].mxu0 %v7393
  %v7908 = vpop.f32.mrb[0].mxu0
  %v7909 = vadd.f32 0.0, %v7908
  %v7910 = vpop.f32.mrb[0].mxu0
  %7911 = vmatprep.mubr.f32.mxu0 0.0
  %7912 = vmatmul.mubr.f32.gmra.mrb[0].mxu0 %v7396
  %v7913 = vpop.f32.mrb[0].mxu0
  %v7914 = vadd.f32 0.0, %v7913
  %v7915 = vpop.f32.mrb[0].mxu0
  %7916 = vmatprep.mubr.f32.mxu0 0.0
  %7917 = vmatmul.mubr.f32.gmra.mrb[0].mxu0 %v7399
  %v7918 = vpop.f32.mrb[0].mxu0
  %v7919 = vadd.f32 0.0, %v7918
  %v7920 = vpop.f32.mrb[0].mxu0
  %7921 = vmatprep.mubr.f32.mxu0 0.0
  %7922 = vmatmul.mubr.f32.gmra.mrb[0].mxu0 %v7402
  %v7923 = vpop.f32.mrb[0].mxu0
  %v7924 = vadd.f32 0.0, %v7923
  %v7925 = vpop.f32.mrb[0].mxu0
  %7926 = vmatprep.mubr.f32.mxu0 0.0
  %7927 = vmatmul.mubr.f32.gmra.mrb[0].mxu0 %v7405
  %v7928 = vpop.f32.mrb[0].mxu0
  %v7929 = vadd.f32 0.0, %v7928
  %v7930 = vpop.f32.mrb[0].mxu0
  %7931 = vmatprep.mubr.f32.mxu0 0.0
  %7932 = vmatmul.mubr.f32.gmra.mrb[0].mxu0 %v7408
  %v7933 = vpop.f32.mrb[0].mxu0
  %v7934 = vadd.f32 0.0, %v7933
  %v7935 = vpop.f32.mrb[0].mxu0
  %7936 = vmatprep.mubr.f32.mxu0 0.0
  %7937 = vmatmul.mubr.f32.gmra.mrb[0].mxu0 %v7411
  %v7938 = vpop.f32.mrb[0].mxu0
  %v7939 = vadd.f32 0.0, %v7938
  %v7940 = vpop.f32.mrb[0].mxu0
  %7941 = vmatprep.mubr.f32.mxu0 0.0
  %7942 = vmatmul.mubr.f32.gmra.mrb[0].mxu0 %v7414
  %v7943 = vpop.f32.mrb[0].mxu0
  %v7944 = vadd.f32 0.0, %v7943
  %v7945 = vpop.f32.mrb[0].mxu0
  %7946 = vmatprep.mubr.f32.mxu0 0.0
  %7947 = vmatmul.mubr.f32.gmra.mrb[0].mxu0 %v7417
  %v7948 = vpop.f32.mrb[0].mxu0
  %v7949 = vadd.f32 0.0, %v7948
  %v7950 = vpop.f32.mrb[0].mxu0
  %7951 = vmatprep.mubr.f32.mxu0 0.0
  %7952 = vmatmul.mubr.f32.gmra.mrb[0].mxu0 %v7420
  %v7953 = vpop.f32.mrb[0].mxu0
  %v7954 = vadd.f32 0.0, %v7953
  %v7955 = vpop.f32.mrb[0].mxu0
  %7956 = vmatprep.mubr.f32.mxu0 0.0
  %7957 = vmatmul.mubr.f32.gmra.mrb[0].mxu0 %v7423
  %v7958 = vpop.f32.mrb[0].mxu0
  %v7959 = vadd.f32 0.0, %v7958
  %v7960 = vpop.f32.mrb[0].mxu0
  %7961 = vmatprep.mubr.f32.mxu0 0.0
  %7962 = vmatmul.mubr.f32.gmra.mrb[0].mxu0 %v7426
  %v7963 = vpop.f32.mrb[0].mxu0
  %v7964 = vadd.f32 0.0, %v7963
  %v7965 = vpop.f32.mrb[0].mxu0
  %7966 = vmatprep.mubr.f32.mxu0 0.0
  %7967 = vmatmul.mubr.f32.gmra.mrb[0].mxu0 %v7429
  %v7968 = vpop.f32.mrb[0].mxu0
  %v7969 = vadd.f32 0.0, %v7968
  %v7970 = vpop.f32.mrb[0].mxu0
  %7971 = vmatprep.mubr.f32.mxu0 0.0
  %7972 = vmatmul.mubr.f32.gmra.mrb[0].mxu0 %v7432
  %v7973 = vpop.f32.mrb[0].mxu0
  %v7974 = vadd.f32 0.0, %v7973
  %v7975 = vpop.f32.mrb[0].mxu0
  %7976 = vmatprep.mubr.f32.mxu0 0.0
  %7977 = vmatmul.mubr.f32.gmra.mrb[0].mxu0 %v7435
  %v7978 = vpop.f32.mrb[0].mxu0
  %v7979 = vadd.f32 0.0, %v7978
  %v7980 = vpop.f32.mrb[0].mxu0
  %7981 = vmatprep.mubr.f32.mxu0 0.0
  %7982 = vmatmul.mubr.f32.gmra.mrb[0].mxu0 %v7438
  %v7983 = vpop.f32.mrb[0].mxu0
  %v7984 = vadd.f32 0.0, %v7983
  %v7985 = vpop.f32.mrb[0].mxu0
  %7986 = vmatprep.mubr.f32.mxu0 0.0
  %7987 = vmatmul.mubr.f32.gmra.mrb[0].mxu0 %v7441
  %v7988 = vpop.f32.mrb[0].mxu0
  %v7989 = vadd.f32 0.0, %v7988
  %v7990 = vpop.f32.mrb[0].mxu0
  %7991 = vmatprep.mubr.f32.mxu0 0.0
  %7992 = vmatmul.mubr.f32.gmra.mrb[0].mxu0 %v7444
  %v7993 = vpop.f32.mrb[0].mxu0
  %v7994 = vadd.f32 0.0, %v7993
  %v7995 = vpop.f32.mrb[0].mxu0
  %7996 = vmatprep.mubr.f32.mxu0 0.0
  %7997 = vmatmul.mubr.f32.gmra.mrb[0].mxu0 %v7447
  %v7998 = vpop.f32.mrb[0].mxu0
  %v7999 = vadd.f32 0.0, %v7998
  %v8000 = vpop.f32.mrb[0].mxu0
  %8001 = vmatprep.mubr.f32.mxu0 0.0
  %8002 = vmatmul.mubr.f32.gmra.mrb[0].mxu0 %v7450
  %v8003 = vpop.f32.mrb[0].mxu0
  %v8004 = vadd.f32 0.0, %v8003
  %v8005 = vpop.f32.mrb[0].mxu0
  %8006 = vdwg.mxu0
  %v8007 = vadd.f32 %v6959, %v7519
  %v8008 = vadd.f32 %v6960, %v7524
  %v8009 = vadd.f32 %v6961, %v7529
  %v8010 = vadd.f32 %v6962, %v7534
  %v8011 = vadd.f32 %v6963, %v7539
  %v8012 = vadd.f32 %v6964, %v7544
  %v8013 = vadd.f32 %v6965, %v7549
  %v8014 = vadd.f32 %v6966, %v7554
  %v8015 = vadd.f32 %v6967, %v7559
  %v8016 = vadd.f32 %v6968, %v7564
  %v8017 = vadd.f32 %v6969, %v7569
  %v8018 = vadd.f32 %v6970, %v7574
  %v8019 = vadd.f32 %v6971, %v7579
  %v8020 = vadd.f32 %v6972, %v7584
  %v8021 = vadd.f32 %v6973, %v7589
  %v8022 = vadd.f32 %v6974, %v7594
  %v8023 = vadd.f32 %v6975, %v7599
  %v8024 = vadd.f32 %v6976, %v7604
  %v8025 = vadd.f32 %v6977, %v7609
  %v8026 = vadd.f32 %v6978, %v7614
  %v8027 = vadd.f32 %v6979, %v7619
  %v8028 = vadd.f32 %v6980, %v7624
  %v8029 = vadd.f32 %v6981, %v7629
  %v8030 = vadd.f32 %v6982, %v7634
  %v8031 = vadd.f32 %v6983, %v7639
  %v8032 = vadd.f32 %v6984, %v7644
  %v8033 = vadd.f32 %v6985, %v7649
  %v8034 = vadd.f32 %v6986, %v7654
  %v8035 = vadd.f32 %v6987, %v7659
  %v8036 = vadd.f32 %v6988, %v7664
  %v8037 = vadd.f32 %v6989, %v7669
  %v8038 = vadd.f32 %v6990, %v7674
  %v8039 = vadd.f32 %v6991, %v7679
  %v8040 = vadd.f32 %v6992, %v7684
  %v8041 = vadd.f32 %v6993, %v7689
  %v8042 = vadd.f32 %v6994, %v7694
  %v8043 = vadd.f32 %v6995, %v7699
  %v8044 = vadd.f32 %v6996, %v7704
  %v8045 = vadd.f32 %v6997, %v7709
  %v8046 = vadd.f32 %v6998, %v7714
  %v8047 = vadd.f32 %v6999, %v7719
  %v8048 = vadd.f32 %v7000, %v7724
  %v8049 = vadd.f32 %v7001, %v7729
  %v8050 = vadd.f32 %v7002, %v7734
  %v8051 = vadd.f32 %v7003, %v7739
  %v8052 = vadd.f32 %v7004, %v7744
  %v8053 = vadd.f32 %v7005, %v7749
  %v8054 = vadd.f32 %v7006, %v7754
  %v8055 = vadd.f32 %v7007, %v7759
  %v8056 = vadd.f32 %v7008, %v7764
  %v8057 = vadd.f32 %v7009, %v7769
  %v8058 = vadd.f32 %v7010, %v7774
  %v8059 = vadd.f32 %v7011, %v7779
  %v8060 = vadd.f32 %v7012, %v7784
  %v8061 = vadd.f32 %v7013, %v7789
  %v8062 = vadd.f32 %v7014, %v7794
  %v8063 = vadd.f32 %v7015, %v7799
  %v8064 = vadd.f32 %v7016, %v7804
  %v8065 = vadd.f32 %v7017, %v7809
  %v8066 = vadd.f32 %v7018, %v7814
  %v8067 = vadd.f32 %v7019, %v7819
  %v8068 = vadd.f32 %v7020, %v7824
  %v8069 = vadd.f32 %v7021, %v7829
  %v8070 = vadd.f32 %v7022, %v7834
  %v8071 = vadd.f32 %v7023, %v7839
  %v8072 = vadd.f32 %v7024, %v7844
  %v8073 = vadd.f32 %v7025, %v7849
  %v8074 = vadd.f32 %v7026, %v7854
  %v8075 = vadd.f32 %v7027, %v7859
  %v8076 = vadd.f32 %v7028, %v7864
  %v8077 = vadd.f32 %v7029, %v7869
  %v8078 = vadd.f32 %v7030, %v7874
  %v8079 = vadd.f32 %v7031, %v7879
  %v8080 = vadd.f32 %v7032, %v7884
  %v8081 = vadd.f32 %v7033, %v7889
  %v8082 = vadd.f32 %v7034, %v7894
  %v8083 = vadd.f32 %v7035, %v7899
  %v8084 = vadd.f32 %v7036, %v7904
  %v8085 = vadd.f32 %v7037, %v7909
  %v8086 = vadd.f32 %v7038, %v7914
  %v8087 = vadd.f32 %v7039, %v7919
  %v8088 = vadd.f32 %v7040, %v7924
  %v8089 = vadd.f32 %v7041, %v7929
  %v8090 = vadd.f32 %v7042, %v7934
  %v8091 = vadd.f32 %v7043, %v7939
  %v8092 = vadd.f32 %v7044, %v7944
  %v8093 = vadd.f32 %v7045, %v7949
  %v8094 = vadd.f32 %v7046, %v7954
  %v8095 = vadd.f32 %v7047, %v7959
  %v8096 = vadd.f32 %v7048, %v7964
  %v8097 = vadd.f32 %v7049, %v7969
  %v8098 = vadd.f32 %v7050, %v7974
  %v8099 = vadd.f32 %v7051, %v7979
  %v8100 = vadd.f32 %v7052, %v7984
  %v8101 = vadd.f32 %v7053, %v7989
  %v8102 = vadd.f32 %v7054, %v7994
  %v8103 = vadd.f32 %v7055, %v7999
  %v8104 = vadd.f32 %v7056, %v8004
  %v8105 = vld [vmem:[#allocation3 + $0x38] sm:$0xff]
  %v8106 = vld [vmem:[#allocation3 + $0x40] sm:$0xff]
  %v8107 = vld [vmem:[#allocation3 + $0x48] sm:$0xff]
  %v8108 = vld [vmem:[#allocation3 + $0x50] sm:$0xff]
  %v8109 = vld [vmem:[#allocation3 + $0x58] sm:$0xff]
  %v8110 = vld [vmem:[#allocation3 + $0x60] sm:$0xff]
  %v8111 = vld [vmem:[#allocation3 + $0x68] sm:$0xff]
  %v8112 = vld [vmem:[#allocation3 + $0x70] sm:$0xff]
  %v8113 = vld [vmem:[#allocation3 + $0x78] sm:$0xff]
  %v8114 = vld [vmem:[#allocation3 + $0x80] sm:$0xff]
  %v8115 = vld [vmem:[#allocation3 + $0x88] sm:$0xff]
  %v8116 = vld [vmem:[#allocation3 + $0x90] sm:$0xff]
  %v8117 = vld [vmem:[#allocation3 + $0x98] sm:$0xff]
  %v8118 = vld [vmem:[#allocation3 + $0xa0] sm:$0xff]
  %v8119 = vld [vmem:[#allocation3 + $0xa8] sm:$0xff]
  %v8120 = vld [vmem:[#allocation3 + $0xb0] sm:$0xff]
  %v8121 = vld [vmem:[#allocation3 + $0xb8] sm:$0xff]
  %v8122 = vld [vmem:[#allocation3 + $0xc0] sm:$0xff]
  %v8123 = vld [vmem:[#allocation3 + $0xc8] sm:$0xff]
  %v8124 = vld [vmem:[#allocation3 + $0xd0] sm:$0xff]
  %v8125 = vld [vmem:[#allocation3 + $0xd8] sm:$0xff]
  %v8126 = vld [vmem:[#allocation3 + $0xe0] sm:$0xff]
  %v8127 = vld [vmem:[#allocation3 + $0xe8] sm:$0xff]
  %v8128 = vld [vmem:[#allocation3 + $0xf0] sm:$0xff]
  %v8129 = vld [vmem:[#allocation3 + $0xf8] sm:$0xff]
  %v8130 = vld [vmem:[#allocation3 + $0x100] sm:$0xff]
  %v8131 = vld [vmem:[#allocation3 + $0x108] sm:$0xff]
  %v8132 = vld [vmem:[#allocation3 + $0x110] sm:$0xff]
  %v8133 = vld [vmem:[#allocation3 + $0x118] sm:$0xff]
  %v8134 = vld [vmem:[#allocation3 + $0x120] sm:$0xff]
  %v8135 = vld [vmem:[#allocation3 + $0x128] sm:$0xff]
  %v8136 = vld [vmem:[#allocation3 + $0x130] sm:$0xff]
  %v8137 = vld [vmem:[#allocation3 + $0x138] sm:$0xff]
  %v8138 = vld [vmem:[#allocation3 + $0x140] sm:$0xff]
  %v8139 = vld [vmem:[#allocation3 + $0x148] sm:$0xff]
  %v8140 = vld [vmem:[#allocation3 + $0x150] sm:$0xff]
  %v8141 = vld [vmem:[#allocation3 + $0x158] sm:$0xff]
  %v8142 = vld [vmem:[#allocation3 + $0x160] sm:$0xff]
  %v8143 = vld [vmem:[#allocation3 + $0x168] sm:$0xff]
  %v8144 = vld [vmem:[#allocation3 + $0x170] sm:$0xff]
  %v8145 = vld [vmem:[#allocation3 + $0x178] sm:$0xff]
  %v8146 = vld [vmem:[#allocation3 + $0x180] sm:$0xff]
  %v8147 = vld [vmem:[#allocation3 + $0x188] sm:$0xff]
  %v8148 = vld [vmem:[#allocation3 + $0x190] sm:$0xff]
  %v8149 = vld [vmem:[#allocation3 + $0x198] sm:$0xff]
  %v8150 = vld [vmem:[#allocation3 + $0x1a0] sm:$0xff]
  %v8151 = vld [vmem:[#allocation3 + $0x1a8] sm:$0xff]
  %v8152 = vld [vmem:[#allocation3 + $0x1b0] sm:$0xff]
  %v8153 = vld [vmem:[#allocation3 + $0x1b8] sm:$0xff]
  %v8154 = vld [vmem:[#allocation3 + $0x1c0] sm:$0xff]
  %v8155 = vld [vmem:[#allocation3 + $0x1c8] sm:$0xff]
  %v8156 = vld [vmem:[#allocation3 + $0x1d0] sm:$0xff]
  %v8157 = vld [vmem:[#allocation3 + $0x1d8] sm:$0xff]
  %v8158 = vld [vmem:[#allocation3 + $0x1e0] sm:$0xff]
  %v8159 = vld [vmem:[#allocation3 + $0x1e8] sm:$0xff]
  %v8160 = vld [vmem:[#allocation3 + $0x1f0] sm:$0xff]
  %v8161 = vld [vmem:[#allocation3 + $0x1f8] sm:$0xff]
  %v8162 = vld [vmem:[#allocation3 + $0x200] sm:$0xff]
  %v8163 = vld [vmem:[#allocation3 + $0x208] sm:$0xff]
  %v8164 = vld [vmem:[#allocation3 + $0x210] sm:$0xff]
  %v8165 = vld [vmem:[#allocation3 + $0x218] sm:$0xff]
  %v8166 = vld [vmem:[#allocation3 + $0x220] sm:$0xff]
  %v8167 = vld [vmem:[#allocation3 + $0x228] sm:$0xff]
  %v8168 = vld [vmem:[#allocation3 + $0x230] sm:$0xff]
  %v8169 = vld [vmem:[#allocation3 + $0x238] sm:$0xff]
  %v8170 = vld [vmem:[#allocation3 + $0x240] sm:$0xff]
  %v8171 = vld [vmem:[#allocation3 + $0x248] sm:$0xff]
  %v8172 = vld [vmem:[#allocation3 + $0x250] sm:$0xff]
  %v8173 = vld [vmem:[#allocation3 + $0x258] sm:$0xff]
  %v8174 = vld [vmem:[#allocation3 + $0x260] sm:$0xff]
  %v8175 = vld [vmem:[#allocation3 + $0x268] sm:$0xff]
  %v8176 = vld [vmem:[#allocation3 + $0x270] sm:$0xff]
  %v8177 = vld [vmem:[#allocation3 + $0x278] sm:$0xff]
  %v8178 = vld [vmem:[#allocation3 + $0x280] sm:$0xff]
  %v8179 = vld [vmem:[#allocation3 + $0x288] sm:$0xff]
  %v8180 = vld [vmem:[#allocation3 + $0x290] sm:$0xff]
  %v8181 = vld [vmem:[#allocation3 + $0x298] sm:$0xff]
  %v8182 = vld [vmem:[#allocation3 + $0x2a0] sm:$0xff]
  %v8183 = vld [vmem:[#allocation3 + $0x2a8] sm:$0xff]
  %v8184 = vld [vmem:[#allocation3 + $0x2b0] sm:$0xff]
  %v8185 = vld [vmem:[#allocation3 + $0x2b8] sm:$0xff]
  %v8186 = vld [vmem:[#allocation3 + $0x2c0] sm:$0xff]
  %v8187 = vld [vmem:[#allocation3 + $0x2c8] sm:$0xff]
  %v8188 = vld [vmem:[#allocation3 + $0x2d0] sm:$0xff]
  %v8189 = vld [vmem:[#allocation3 + $0x2d8] sm:$0xff]
  %v8190 = vld [vmem:[#allocation3 + $0x2e0] sm:$0xff]
  %v8191 = vld [vmem:[#allocation3 + $0x2e8] sm:$0xff]
  %v8192 = vld [vmem:[#allocation3 + $0x2f0] sm:$0xff]
  %v8193 = vld [vmem:[#allocation3 + $0x2f8] sm:$0xff]
  %v8194 = vld [vmem:[#allocation3 + $0x300] sm:$0xff]
  %v8195 = vld [vmem:[#allocation3 + $0x308] sm:$0xff]
  %v8196 = vld [vmem:[#allocation3 + $0x310] sm:$0xff]
  %v8197 = vld [vmem:[#allocation3 + $0x318] sm:$0xff]
  %v8198 = vld [vmem:[#allocation3 + $0x320] sm:$0xff]
  %v8199 = vld [vmem:[#allocation3 + $0x328] sm:$0xff]
  %v8200 = vld [vmem:[#allocation3 + $0x330] sm:$0xff]
  %v8201 = vld [vmem:[#allocation3 + $0x338] sm:$0xff]
  %v8202 = vld [vmem:[#allocation3 + $0x340] sm:$0xff]
  %s8203 = scalar_lea.vmem %s3, 96
  %v8204 = vld [vmem:[%s8203] sm:$0xff]
  %v8205 = vld [vmem:[%s8203 + $0x8] sm:$0xff]
  %v8207 = vsel %vm46, %v8105, 0
  %v8210 = vsel %vm46, %v8106, 0
  %v8213 = vsel %vm46, %v8107, 0
  %v8216 = vsel %vm46, %v8108, 0
  %v8219 = vsel %vm46, %v8109, 0
  %v8222 = vsel %vm46, %v8110, 0
  %v8225 = vsel %vm46, %v8111, 0
  %v8228 = vsel %vm46, %v8112, 0
  %v8231 = vsel %vm46, %v8113, 0
  %v8234 = vsel %vm46, %v8114, 0
  %v8237 = vsel %vm46, %v8115, 0
  %v8240 = vsel %vm46, %v8116, 0
  %v8243 = vsel %vm46, %v8117, 0
  %v8246 = vsel %vm46, %v8118, 0
  %v8249 = vsel %vm46, %v8119, 0
  %v8252 = vsel %vm46, %v8120, 0
  %v8255 = vsel %vm46, %v8121, 0
  %v8258 = vsel %vm46, %v8122, 0
  %v8261 = vsel %vm46, %v8123, 0
  %v8264 = vsel %vm46, %v8124, 0
  %v8267 = vsel %vm46, %v8125, 0
  %v8270 = vsel %vm46, %v8126, 0
  %v8273 = vsel %vm46, %v8127, 0
  %v8276 = vsel %vm46, %v8128, 0
  %v8279 = vsel %vm46, %v8129, 0
  %v8282 = vsel %vm46, %v8130, 0
  %v8285 = vsel %vm46, %v8131, 0
  %v8288 = vsel %vm46, %v8132, 0
  %v8291 = vsel %vm46, %v8133, 0
  %v8294 = vsel %vm46, %v8134, 0
  %v8297 = vsel %vm46, %v8135, 0
  %v8300 = vsel %vm46, %v8136, 0
  %v8303 = vsel %vm46, %v8137, 0
  %v8306 = vsel %vm46, %v8138, 0
  %v8309 = vsel %vm46, %v8139, 0
  %v8312 = vsel %vm46, %v8140, 0
  %v8315 = vsel %vm46, %v8141, 0
  %v8318 = vsel %vm46, %v8142, 0
  %v8321 = vsel %vm46, %v8143, 0
  %v8324 = vsel %vm46, %v8144, 0
  %v8327 = vsel %vm46, %v8145, 0
  %v8330 = vsel %vm46, %v8146, 0
  %v8333 = vsel %vm46, %v8147, 0
  %v8336 = vsel %vm46, %v8148, 0
  %v8339 = vsel %vm46, %v8149, 0
  %v8342 = vsel %vm46, %v8150, 0
  %v8345 = vsel %vm46, %v8151, 0
  %v8348 = vsel %vm46, %v8152, 0
  %v8351 = vsel %vm46, %v8153, 0
  %v8354 = vsel %vm46, %v8154, 0
  %v8357 = vsel %vm46, %v8155, 0
  %v8360 = vsel %vm46, %v8156, 0
  %v8363 = vsel %vm46, %v8157, 0
  %v8366 = vsel %vm46, %v8158, 0
  %v8369 = vsel %vm46, %v8159, 0
  %v8372 = vsel %vm46, %v8160, 0
  %v8375 = vsel %vm46, %v8161, 0
  %v8378 = vsel %vm46, %v8162, 0
  %v8381 = vsel %vm46, %v8163, 0
  %v8384 = vsel %vm46, %v8164, 0
  %v8387 = vsel %vm46, %v8165, 0
  %v8390 = vsel %vm46, %v8166, 0
  %v8393 = vsel %vm46, %v8167, 0
  %v8396 = vsel %vm46, %v8168, 0
  %v8399 = vsel %vm46, %v8169, 0
  %v8402 = vsel %vm46, %v8170, 0
  %v8405 = vsel %vm46, %v8171, 0
  %v8408 = vsel %vm46, %v8172, 0
  %v8411 = vsel %vm46, %v8173, 0
  %v8414 = vsel %vm46, %v8174, 0
  %v8417 = vsel %vm46, %v8175, 0
  %v8420 = vsel %vm46, %v8176, 0
  %v8423 = vsel %vm46, %v8177, 0
  %v8426 = vsel %vm46, %v8178, 0
  %v8429 = vsel %vm46, %v8179, 0
  %v8432 = vsel %vm46, %v8180, 0
  %v8435 = vsel %vm46, %v8181, 0
  %v8438 = vsel %vm46, %v8182, 0
  %v8441 = vsel %vm46, %v8183, 0
  %v8444 = vsel %vm46, %v8184, 0
  %v8447 = vsel %vm46, %v8185, 0
  %v8450 = vsel %vm46, %v8186, 0
  %v8453 = vsel %vm46, %v8187, 0
  %v8456 = vsel %vm46, %v8188, 0
  %v8459 = vsel %vm46, %v8189, 0
  %v8462 = vsel %vm46, %v8190, 0
  %v8465 = vsel %vm46, %v8191, 0
  %v8468 = vsel %vm46, %v8192, 0
  %v8471 = vsel %vm46, %v8193, 0
  %v8474 = vsel %vm46, %v8194, 0
  %v8477 = vsel %vm46, %v8195, 0
  %v8480 = vsel %vm46, %v8196, 0
  %v8483 = vsel %vm46, %v8197, 0
  %v8486 = vsel %vm46, %v8198, 0
  %v8489 = vsel %vm46, %v8199, 0
  %v8492 = vsel %vm46, %v8200, 0
  %v8495 = vsel %vm46, %v8201, 0
  %v8498 = vsel %vm46, %v8202, 0
  %8500 = vmatprep.subr.mxu0 0.0
  %8501 = vmatpush1.msra.mxu0 %v8204
  %8502 = vmatprep.subr.mxu0 0.0
  %8503 = vmatpush1.msra.mxu0 %v8205
  %8504 = vmatprep.subr.mxu0 0.0
  %8505 = vmatpush1.msra.mxu0 0.0
  %8506 = vmatprep.subr.mxu0 0.0
  %8507 = vmatpush1.msra.mxu0 0.0
  %8508 = vmatprep.subr.mxu0 0.0
  %8509 = vmatpush1.msra.mxu0 0.0
  %8510 = vmatprep.subr.mxu0 0.0
  %8511 = vmatpush1.msra.mxu0 0.0
  %8512 = vmatprep.subr.mxu0 0.0
  %8513 = vmatpush1.msra.mxu0 0.0
  %8514 = vmatprep.subr.mxu0 0.0
  %8515 = vmatpush1.msra.mxu0 0.0
  %8516 = vmatprep.subr.mxu0 0.0
  %8517 = vmatpush1.msra.mxu0 0.0
  %8518 = vmatprep.subr.mxu0 0.0
  %8519 = vmatpush1.msra.mxu0 0.0
  %8520 = vmatprep.subr.mxu0 0.0
  %8521 = vmatpush1.msra.mxu0 0.0
  %8522 = vmatprep.subr.mxu0 0.0
  %8523 = vmatpush1.msra.mxu0 0.0
  %8524 = vmatprep.subr.mxu0 0.0
  %8525 = vmatpush1.msra.mxu0 0.0
  %8526 = vmatprep.subr.mxu0 0.0
  %8527 = vmatpush1.msra.mxu0 0.0
  %8528 = vmatprep.subr.mxu0 0.0
  %8529 = vmatpush1.msra.mxu0 0.0
  %8530 = vmatprep.subr.mxu0 0.0
  %8531 = vmatpush1.msra.mxu0 0.0
  %8532 = vmatprep.subr.mxu0 0.0
  %8533 = vmatpush1.msra.mxu0 0.0
  %8534 = vmatprep.subr.mxu0 0.0
  %8535 = vmatpush1.msra.mxu0 0.0
  %8536 = vmatprep.subr.mxu0 0.0
  %8537 = vmatpush1.msra.mxu0 0.0
  %8538 = vmatprep.subr.mxu0 0.0
  %8539 = vmatpush1.msra.mxu0 0.0
  %8540 = vmatprep.subr.mxu0 0.0
  %8541 = vmatpush1.msra.mxu0 0.0
  %8542 = vmatprep.subr.mxu0 0.0
  %8543 = vmatpush1.msra.mxu0 0.0
  %8544 = vmatprep.subr.mxu0 0.0
  %8545 = vmatpush1.msra.mxu0 0.0
  %8546 = vmatprep.subr.mxu0 0.0
  %8547 = vmatpush1.msra.mxu0 0.0
  %8548 = vmatprep.subr.mxu0 0.0
  %8549 = vmatpush1.msra.mxu0 0.0
  %8550 = vmatprep.subr.mxu0 0.0
  %8551 = vmatpush1.msra.mxu0 0.0
  %8552 = vmatprep.subr.mxu0 0.0
  %8553 = vmatpush1.msra.mxu0 0.0
  %8554 = vmatprep.subr.mxu0 0.0
  %8555 = vmatpush1.msra.mxu0 0.0
  %8556 = vmatprep.subr.mxu0 0.0
  %8557 = vmatpush1.msra.mxu0 0.0
  %8558 = vmatprep.subr.mxu0 0.0
  %8559 = vmatpush1.msra.mxu0 0.0
  %8560 = vmatprep.subr.mxu0 0.0
  %8561 = vmatpush1.msra.mxu0 0.0
  %8562 = vmatprep.subr.mxu0 0.0
  %8563 = vmatpush1.msra.mxu0 0.0
  %8564 = vmatprep.mubr.f32.mxu0 0.0
  %8565 = vmatmul.mubr.f32.gmra.mrb[0].mxu0 %v8207
  %v8566 = vpop.f32.mrb[0].mxu0
  %v8567 = vadd.f32 0.0, %v8566
  %v8568 = vpop.f32.mrb[0].mxu0
  %8569 = vmatprep.mubr.f32.mxu0 0.0
  %8570 = vmatmul.mubr.f32.gmra.mrb[0].mxu0 %v8210
  %v8571 = vpop.f32.mrb[0].mxu0
  %v8572 = vadd.f32 0.0, %v8571
  %v8573 = vpop.f32.mrb[0].mxu0
  %8574 = vmatprep.mubr.f32.mxu0 0.0
  %8575 = vmatmul.mubr.f32.gmra.mrb[0].mxu0 %v8213
  %v8576 = vpop.f32.mrb[0].mxu0
  %v8577 = vadd.f32 0.0, %v8576
  %v8578 = vpop.f32.mrb[0].mxu0
  %8579 = vmatprep.mubr.f32.mxu0 0.0
  %8580 = vmatmul.mubr.f32.gmra.mrb[0].mxu0 %v8216
  %v8581 = vpop.f32.mrb[0].mxu0
  %v8582 = vadd.f32 0.0, %v8581
  %v8583 = vpop.f32.mrb[0].mxu0
  %8584 = vmatprep.mubr.f32.mxu0 0.0
  %8585 = vmatmul.mubr.f32.gmra.mrb[0].mxu0 %v8219
  %v8586 = vpop.f32.mrb[0].mxu0
  %v8587 = vadd.f32 0.0, %v8586
  %v8588 = vpop.f32.mrb[0].mxu0
  %8589 = vmatprep.mubr.f32.mxu0 0.0
  %8590 = vmatmul.mubr.f32.gmra.mrb[0].mxu0 %v8222
  %v8591 = vpop.f32.mrb[0].mxu0
  %v8592 = vadd.f32 0.0, %v8591
  %v8593 = vpop.f32.mrb[0].mxu0
  %8594 = vmatprep.mubr.f32.mxu0 0.0
  %8595 = vmatmul.mubr.f32.gmra.mrb[0].mxu0 %v8225
  %v8596 = vpop.f32.mrb[0].mxu0
  %v8597 = vadd.f32 0.0, %v8596
  %v8598 = vpop.f32.mrb[0].mxu0
  %8599 = vmatprep.mubr.f32.mxu0 0.0
  %8600 = vmatmul.mubr.f32.gmra.mrb[0].mxu0 %v8228
  %v8601 = vpop.f32.mrb[0].mxu0
  %v8602 = vadd.f32 0.0, %v8601
  %v8603 = vpop.f32.mrb[0].mxu0
  %8604 = vmatprep.mubr.f32.mxu0 0.0
  %8605 = vmatmul.mubr.f32.gmra.mrb[0].mxu0 %v8231
  %v8606 = vpop.f32.mrb[0].mxu0
  %v8607 = vadd.f32 0.0, %v8606
  %v8608 = vpop.f32.mrb[0].mxu0
  %8609 = vmatprep.mubr.f32.mxu0 0.0
  %8610 = vmatmul.mubr.f32.gmra.mrb[0].mxu0 %v8234
  %v8611 = vpop.f32.mrb[0].mxu0
  %v8612 = vadd.f32 0.0, %v8611
  %v8613 = vpop.f32.mrb[0].mxu0
  %8614 = vmatprep.mubr.f32.mxu0 0.0
  %8615 = vmatmul.mubr.f32.gmra.mrb[0].mxu0 %v8237
  %v8616 = vpop.f32.mrb[0].mxu0
  %v8617 = vadd.f32 0.0, %v8616
  %v8618 = vpop.f32.mrb[0].mxu0
  %8619 = vmatprep.mubr.f32.mxu0 0.0
  %8620 = vmatmul.mubr.f32.gmra.mrb[0].mxu0 %v8240
  %v8621 = vpop.f32.mrb[0].mxu0
  %v8622 = vadd.f32 0.0, %v8621
  %v8623 = vpop.f32.mrb[0].mxu0
  %8624 = vmatprep.mubr.f32.mxu0 0.0
  %8625 = vmatmul.mubr.f32.gmra.mrb[0].mxu0 %v8243
  %v8626 = vpop.f32.mrb[0].mxu0
  %v8627 = vadd.f32 0.0, %v8626
  %v8628 = vpop.f32.mrb[0].mxu0
  %8629 = vmatprep.mubr.f32.mxu0 0.0
  %8630 = vmatmul.mubr.f32.gmra.mrb[0].mxu0 %v8246
  %v8631 = vpop.f32.mrb[0].mxu0
  %v8632 = vadd.f32 0.0, %v8631
  %v8633 = vpop.f32.mrb[0].mxu0
  %8634 = vmatprep.mubr.f32.mxu0 0.0
  %8635 = vmatmul.mubr.f32.gmra.mrb[0].mxu0 %v8249
  %v8636 = vpop.f32.mrb[0].mxu0
  %v8637 = vadd.f32 0.0, %v8636
  %v8638 = vpop.f32.mrb[0].mxu0
  %8639 = vmatprep.mubr.f32.mxu0 0.0
  %8640 = vmatmul.mubr.f32.gmra.mrb[0].mxu0 %v8252
  %v8641 = vpop.f32.mrb[0].mxu0
  %v8642 = vadd.f32 0.0, %v8641
  %v8643 = vpop.f32.mrb[0].mxu0
  %8644 = vmatprep.mubr.f32.mxu0 0.0
  %8645 = vmatmul.mubr.f32.gmra.mrb[0].mxu0 %v8255
  %v8646 = vpop.f32.mrb[0].mxu0
  %v8647 = vadd.f32 0.0, %v8646
  %v8648 = vpop.f32.mrb[0].mxu0
  %8649 = vmatprep.mubr.f32.mxu0 0.0
  %8650 = vmatmul.mubr.f32.gmra.mrb[0].mxu0 %v8258
  %v8651 = vpop.f32.mrb[0].mxu0
  %v8652 = vadd.f32 0.0, %v8651
  %v8653 = vpop.f32.mrb[0].mxu0
  %8654 = vmatprep.mubr.f32.mxu0 0.0
  %8655 = vmatmul.mubr.f32.gmra.mrb[0].mxu0 %v8261
  %v8656 = vpop.f32.mrb[0].mxu0
  %v8657 = vadd.f32 0.0, %v8656
  %v8658 = vpop.f32.mrb[0].mxu0
  %8659 = vmatprep.mubr.f32.mxu0 0.0
  %8660 = vmatmul.mubr.f32.gmra.mrb[0].mxu0 %v8264
  %v8661 = vpop.f32.mrb[0].mxu0
  %v8662 = vadd.f32 0.0, %v8661
  %v8663 = vpop.f32.mrb[0].mxu0
  %8664 = vmatprep.mubr.f32.mxu0 0.0
  %8665 = vmatmul.mubr.f32.gmra.mrb[0].mxu0 %v8267
  %v8666 = vpop.f32.mrb[0].mxu0
  %v8667 = vadd.f32 0.0, %v8666
  %v8668 = vpop.f32.mrb[0].mxu0
  %8669 = vmatprep.mubr.f32.mxu0 0.0
  %8670 = vmatmul.mubr.f32.gmra.mrb[0].mxu0 %v8270
  %v8671 = vpop.f32.mrb[0].mxu0
  %v8672 = vadd.f32 0.0, %v8671
  %v8673 = vpop.f32.mrb[0].mxu0
  %8674 = vmatprep.mubr.f32.mxu0 0.0
  %8675 = vmatmul.mubr.f32.gmra.mrb[0].mxu0 %v8273
  %v8676 = vpop.f32.mrb[0].mxu0
  %v8677 = vadd.f32 0.0, %v8676
  %v8678 = vpop.f32.mrb[0].mxu0
  %8679 = vmatprep.mubr.f32.mxu0 0.0
  %8680 = vmatmul.mubr.f32.gmra.mrb[0].mxu0 %v8276
  %v8681 = vpop.f32.mrb[0].mxu0
  %v8682 = vadd.f32 0.0, %v8681
  %v8683 = vpop.f32.mrb[0].mxu0
  %8684 = vmatprep.mubr.f32.mxu0 0.0
  %8685 = vmatmul.mubr.f32.gmra.mrb[0].mxu0 %v8279
  %v8686 = vpop.f32.mrb[0].mxu0
  %v8687 = vadd.f32 0.0, %v8686
  %v8688 = vpop.f32.mrb[0].mxu0
  %8689 = vmatprep.mubr.f32.mxu0 0.0
  %8690 = vmatmul.mubr.f32.gmra.mrb[0].mxu0 %v8282
  %v8691 = vpop.f32.mrb[0].mxu0
  %v8692 = vadd.f32 0.0, %v8691
  %v8693 = vpop.f32.mrb[0].mxu0
  %8694 = vmatprep.mubr.f32.mxu0 0.0
  %8695 = vmatmul.mubr.f32.gmra.mrb[0].mxu0 %v8285
  %v8696 = vpop.f32.mrb[0].mxu0
  %v8697 = vadd.f32 0.0, %v8696
  %v8698 = vpop.f32.mrb[0].mxu0
  %8699 = vmatprep.mubr.f32.mxu0 0.0
  %8700 = vmatmul.mubr.f32.gmra.mrb[0].mxu0 %v8288
  %v8701 = vpop.f32.mrb[0].mxu0
  %v8702 = vadd.f32 0.0, %v8701
  %v8703 = vpop.f32.mrb[0].mxu0
  %8704 = vmatprep.mubr.f32.mxu0 0.0
  %8705 = vmatmul.mubr.f32.gmra.mrb[0].mxu0 %v8291
  %v8706 = vpop.f32.mrb[0].mxu0
  %v8707 = vadd.f32 0.0, %v8706
  %v8708 = vpop.f32.mrb[0].mxu0
  %8709 = vmatprep.mubr.f32.mxu0 0.0
  %8710 = vmatmul.mubr.f32.gmra.mrb[0].mxu0 %v8294
  %v8711 = vpop.f32.mrb[0].mxu0
  %v8712 = vadd.f32 0.0, %v8711
  %v8713 = vpop.f32.mrb[0].mxu0
  %8714 = vmatprep.mubr.f32.mxu0 0.0
  %8715 = vmatmul.mubr.f32.gmra.mrb[0].mxu0 %v8297
  %v8716 = vpop.f32.mrb[0].mxu0
  %v8717 = vadd.f32 0.0, %v8716
  %v8718 = vpop.f32.mrb[0].mxu0
  %8719 = vmatprep.mubr.f32.mxu0 0.0
  %8720 = vmatmul.mubr.f32.gmra.mrb[0].mxu0 %v8300
  %v8721 = vpop.f32.mrb[0].mxu0
  %v8722 = vadd.f32 0.0, %v8721
  %v8723 = vpop.f32.mrb[0].mxu0
  %8724 = vmatprep.mubr.f32.mxu0 0.0
  %8725 = vmatmul.mubr.f32.gmra.mrb[0].mxu0 %v8303
  %v8726 = vpop.f32.mrb[0].mxu0
  %v8727 = vadd.f32 0.0, %v8726
  %v8728 = vpop.f32.mrb[0].mxu0
  %8729 = vmatprep.mubr.f32.mxu0 0.0
  %8730 = vmatmul.mubr.f32.gmra.mrb[0].mxu0 %v8306
  %v8731 = vpop.f32.mrb[0].mxu0
  %v8732 = vadd.f32 0.0, %v8731
  %v8733 = vpop.f32.mrb[0].mxu0
  %8734 = vmatprep.mubr.f32.mxu0 0.0
  %8735 = vmatmul.mubr.f32.gmra.mrb[0].mxu0 %v8309
  %v8736 = vpop.f32.mrb[0].mxu0
  %v8737 = vadd.f32 0.0, %v8736
  %v8738 = vpop.f32.mrb[0].mxu0
  %8739 = vmatprep.mubr.f32.mxu0 0.0
  %8740 = vmatmul.mubr.f32.gmra.mrb[0].mxu0 %v8312
  %v8741 = vpop.f32.mrb[0].mxu0
  %v8742 = vadd.f32 0.0, %v8741
  %v8743 = vpop.f32.mrb[0].mxu0
  %8744 = vmatprep.mubr.f32.mxu0 0.0
  %8745 = vmatmul.mubr.f32.gmra.mrb[0].mxu0 %v8315
  %v8746 = vpop.f32.mrb[0].mxu0
  %v8747 = vadd.f32 0.0, %v8746
  %v8748 = vpop.f32.mrb[0].mxu0
  %8749 = vmatprep.mubr.f32.mxu0 0.0
  %8750 = vmatmul.mubr.f32.gmra.mrb[0].mxu0 %v8318
  %v8751 = vpop.f32.mrb[0].mxu0
  %v8752 = vadd.f32 0.0, %v8751
  %v8753 = vpop.f32.mrb[0].mxu0
  %8754 = vmatprep.mubr.f32.mxu0 0.0
  %8755 = vmatmul.mubr.f32.gmra.mrb[0].mxu0 %v8321
  %v8756 = vpop.f32.mrb[0].mxu0
  %v8757 = vadd.f32 0.0, %v8756
  %v8758 = vpop.f32.mrb[0].mxu0
  %8759 = vmatprep.mubr.f32.mxu0 0.0
  %8760 = vmatmul.mubr.f32.gmra.mrb[0].mxu0 %v8324
  %v8761 = vpop.f32.mrb[0].mxu0
  %v8762 = vadd.f32 0.0, %v8761
  %v8763 = vpop.f32.mrb[0].mxu0
  %8764 = vmatprep.mubr.f32.mxu0 0.0
  %8765 = vmatmul.mubr.f32.gmra.mrb[0].mxu0 %v8327
  %v8766 = vpop.f32.mrb[0].mxu0
  %v8767 = vadd.f32 0.0, %v8766
  %v8768 = vpop.f32.mrb[0].mxu0
  %8769 = vmatprep.mubr.f32.mxu0 0.0
  %8770 = vmatmul.mubr.f32.gmra.mrb[0].mxu0 %v8330
  %v8771 = vpop.f32.mrb[0].mxu0
  %v8772 = vadd.f32 0.0, %v8771
  %v8773 = vpop.f32.mrb[0].mxu0
  %8774 = vmatprep.mubr.f32.mxu0 0.0
  %8775 = vmatmul.mubr.f32.gmra.mrb[0].mxu0 %v8333
  %v8776 = vpop.f32.mrb[0].mxu0
  %v8777 = vadd.f32 0.0, %v8776
  %v8778 = vpop.f32.mrb[0].mxu0
  %8779 = vmatprep.mubr.f32.mxu0 0.0
  %8780 = vmatmul.mubr.f32.gmra.mrb[0].mxu0 %v8336
  %v8781 = vpop.f32.mrb[0].mxu0
  %v8782 = vadd.f32 0.0, %v8781
  %v8783 = vpop.f32.mrb[0].mxu0
  %8784 = vmatprep.mubr.f32.mxu0 0.0
  %8785 = vmatmul.mubr.f32.gmra.mrb[0].mxu0 %v8339
  %v8786 = vpop.f32.mrb[0].mxu0
  %v8787 = vadd.f32 0.0, %v8786
  %v8788 = vpop.f32.mrb[0].mxu0
  %8789 = vmatprep.mubr.f32.mxu0 0.0
  %8790 = vmatmul.mubr.f32.gmra.mrb[0].mxu0 %v8342
  %v8791 = vpop.f32.mrb[0].mxu0
  %v8792 = vadd.f32 0.0, %v8791
  %v8793 = vpop.f32.mrb[0].mxu0
  %8794 = vmatprep.mubr.f32.mxu0 0.0
  %8795 = vmatmul.mubr.f32.gmra.mrb[0].mxu0 %v8345
  %v8796 = vpop.f32.mrb[0].mxu0
  %v8797 = vadd.f32 0.0, %v8796
  %v8798 = vpop.f32.mrb[0].mxu0
  %8799 = vmatprep.mubr.f32.mxu0 0.0
  %8800 = vmatmul.mubr.f32.gmra.mrb[0].mxu0 %v8348
  %v8801 = vpop.f32.mrb[0].mxu0
  %v8802 = vadd.f32 0.0, %v8801
  %v8803 = vpop.f32.mrb[0].mxu0
  %8804 = vmatprep.mubr.f32.mxu0 0.0
  %8805 = vmatmul.mubr.f32.gmra.mrb[0].mxu0 %v8351
  %v8806 = vpop.f32.mrb[0].mxu0
  %v8807 = vadd.f32 0.0, %v8806
  %v8808 = vpop.f32.mrb[0].mxu0
  %8809 = vmatprep.mubr.f32.mxu0 0.0
  %8810 = vmatmul.mubr.f32.gmra.mrb[0].mxu0 %v8354
  %v8811 = vpop.f32.mrb[0].mxu0
  %v8812 = vadd.f32 0.0, %v8811
  %v8813 = vpop.f32.mrb[0].mxu0
  %8814 = vmatprep.mubr.f32.mxu0 0.0
  %8815 = vmatmul.mubr.f32.gmra.mrb[0].mxu0 %v8357
  %v8816 = vpop.f32.mrb[0].mxu0
  %v8817 = vadd.f32 0.0, %v8816
  %v8818 = vpop.f32.mrb[0].mxu0
  %8819 = vmatprep.mubr.f32.mxu0 0.0
  %8820 = vmatmul.mubr.f32.gmra.mrb[0].mxu0 %v8360
  %v8821 = vpop.f32.mrb[0].mxu0
  %v8822 = vadd.f32 0.0, %v8821
  %v8823 = vpop.f32.mrb[0].mxu0
  %8824 = vmatprep.mubr.f32.mxu0 0.0
  %8825 = vmatmul.mubr.f32.gmra.mrb[0].mxu0 %v8363
  %v8826 = vpop.f32.mrb[0].mxu0
  %v8827 = vadd.f32 0.0, %v8826
  %v8828 = vpop.f32.mrb[0].mxu0
  %8829 = vmatprep.mubr.f32.mxu0 0.0
  %8830 = vmatmul.mubr.f32.gmra.mrb[0].mxu0 %v8366
  %v8831 = vpop.f32.mrb[0].mxu0
  %v8832 = vadd.f32 0.0, %v8831
  %v8833 = vpop.f32.mrb[0].mxu0
  %8834 = vmatprep.mubr.f32.mxu0 0.0
  %8835 = vmatmul.mubr.f32.gmra.mrb[0].mxu0 %v8369
  %v8836 = vpop.f32.mrb[0].mxu0
  %v8837 = vadd.f32 0.0, %v8836
  %v8838 = vpop.f32.mrb[0].mxu0
  %8839 = vmatprep.mubr.f32.mxu0 0.0
  %8840 = vmatmul.mubr.f32.gmra.mrb[0].mxu0 %v8372
  %v8841 = vpop.f32.mrb[0].mxu0
  %v8842 = vadd.f32 0.0, %v8841
  %v8843 = vpop.f32.mrb[0].mxu0
  %8844 = vmatprep.mubr.f32.mxu0 0.0
  %8845 = vmatmul.mubr.f32.gmra.mrb[0].mxu0 %v8375
  %v8846 = vpop.f32.mrb[0].mxu0
  %v8847 = vadd.f32 0.0, %v8846
  %v8848 = vpop.f32.mrb[0].mxu0
  %8849 = vmatprep.mubr.f32.mxu0 0.0
  %8850 = vmatmul.mubr.f32.gmra.mrb[0].mxu0 %v8378
  %v8851 = vpop.f32.mrb[0].mxu0
  %v8852 = vadd.f32 0.0, %v8851
  %v8853 = vpop.f32.mrb[0].mxu0
  %8854 = vmatprep.mubr.f32.mxu0 0.0
  %8855 = vmatmul.mubr.f32.gmra.mrb[0].mxu0 %v8381
  %v8856 = vpop.f32.mrb[0].mxu0
  %v8857 = vadd.f32 0.0, %v8856
  %v8858 = vpop.f32.mrb[0].mxu0
  %8859 = vmatprep.mubr.f32.mxu0 0.0
  %8860 = vmatmul.mubr.f32.gmra.mrb[0].mxu0 %v8384
  %v8861 = vpop.f32.mrb[0].mxu0
  %v8862 = vadd.f32 0.0, %v8861
  %v8863 = vpop.f32.mrb[0].mxu0
  %8864 = vmatprep.mubr.f32.mxu0 0.0
  %8865 = vmatmul.mubr.f32.gmra.mrb[0].mxu0 %v8387
  %v8866 = vpop.f32.mrb[0].mxu0
  %v8867 = vadd.f32 0.0, %v8866
  %v8868 = vpop.f32.mrb[0].mxu0
  %8869 = vmatprep.mubr.f32.mxu0 0.0
  %8870 = vmatmul.mubr.f32.gmra.mrb[0].mxu0 %v8390
  %v8871 = vpop.f32.mrb[0].mxu0
  %v8872 = vadd.f32 0.0, %v8871
  %v8873 = vpop.f32.mrb[0].mxu0
  %8874 = vmatprep.mubr.f32.mxu0 0.0
  %8875 = vmatmul.mubr.f32.gmra.mrb[0].mxu0 %v8393
  %v8876 = vpop.f32.mrb[0].mxu0
  %v8877 = vadd.f32 0.0, %v8876
  %v8878 = vpop.f32.mrb[0].mxu0
  %8879 = vmatprep.mubr.f32.mxu0 0.0
  %8880 = vmatmul.mubr.f32.gmra.mrb[0].mxu0 %v8396
  %v8881 = vpop.f32.mrb[0].mxu0
  %v8882 = vadd.f32 0.0, %v8881
  %v8883 = vpop.f32.mrb[0].mxu0
  %8884 = vmatprep.mubr.f32.mxu0 0.0
  %8885 = vmatmul.mubr.f32.gmra.mrb[0].mxu0 %v8399
  %v8886 = vpop.f32.mrb[0].mxu0
  %v8887 = vadd.f32 0.0, %v8886
  %v8888 = vpop.f32.mrb[0].mxu0
  %8889 = vmatprep.mubr.f32.mxu0 0.0
  %8890 = vmatmul.mubr.f32.gmra.mrb[0].mxu0 %v8402
  %v8891 = vpop.f32.mrb[0].mxu0
  %v8892 = vadd.f32 0.0, %v8891
  %v8893 = vpop.f32.mrb[0].mxu0
  %8894 = vmatprep.mubr.f32.mxu0 0.0
  %8895 = vmatmul.mubr.f32.gmra.mrb[0].mxu0 %v8405
  %v8896 = vpop.f32.mrb[0].mxu0
  %v8897 = vadd.f32 0.0, %v8896
  %v8898 = vpop.f32.mrb[0].mxu0
  %8899 = vmatprep.mubr.f32.mxu0 0.0
  %8900 = vmatmul.mubr.f32.gmra.mrb[0].mxu0 %v8408
  %v8901 = vpop.f32.mrb[0].mxu0
  %v8902 = vadd.f32 0.0, %v8901
  %v8903 = vpop.f32.mrb[0].mxu0
  %8904 = vmatprep.mubr.f32.mxu0 0.0
  %8905 = vmatmul.mubr.f32.gmra.mrb[0].mxu0 %v8411
  %v8906 = vpop.f32.mrb[0].mxu0
  %v8907 = vadd.f32 0.0, %v8906
  %v8908 = vpop.f32.mrb[0].mxu0
  %8909 = vmatprep.mubr.f32.mxu0 0.0
  %8910 = vmatmul.mubr.f32.gmra.mrb[0].mxu0 %v8414
  %v8911 = vpop.f32.mrb[0].mxu0
  %v8912 = vadd.f32 0.0, %v8911
  %v8913 = vpop.f32.mrb[0].mxu0
  %8914 = vmatprep.mubr.f32.mxu0 0.0
  %8915 = vmatmul.mubr.f32.gmra.mrb[0].mxu0 %v8417
  %v8916 = vpop.f32.mrb[0].mxu0
  %v8917 = vadd.f32 0.0, %v8916
  %v8918 = vpop.f32.mrb[0].mxu0
  %8919 = vmatprep.mubr.f32.mxu0 0.0
  %8920 = vmatmul.mubr.f32.gmra.mrb[0].mxu0 %v8420
  %v8921 = vpop.f32.mrb[0].mxu0
  %v8922 = vadd.f32 0.0, %v8921
  %v8923 = vpop.f32.mrb[0].mxu0
  %8924 = vmatprep.mubr.f32.mxu0 0.0
  %8925 = vmatmul.mubr.f32.gmra.mrb[0].mxu0 %v8423
  %v8926 = vpop.f32.mrb[0].mxu0
  %v8927 = vadd.f32 0.0, %v8926
  %v8928 = vpop.f32.mrb[0].mxu0
  %8929 = vmatprep.mubr.f32.mxu0 0.0
  %8930 = vmatmul.mubr.f32.gmra.mrb[0].mxu0 %v8426
  %v8931 = vpop.f32.mrb[0].mxu0
  %v8932 = vadd.f32 0.0, %v8931
  %v8933 = vpop.f32.mrb[0].mxu0
  %8934 = vmatprep.mubr.f32.mxu0 0.0
  %8935 = vmatmul.mubr.f32.gmra.mrb[0].mxu0 %v8429
  %v8936 = vpop.f32.mrb[0].mxu0
  %v8937 = vadd.f32 0.0, %v8936
  %v8938 = vpop.f32.mrb[0].mxu0
  %8939 = vmatprep.mubr.f32.mxu0 0.0
  %8940 = vmatmul.mubr.f32.gmra.mrb[0].mxu0 %v8432
  %v8941 = vpop.f32.mrb[0].mxu0
  %v8942 = vadd.f32 0.0, %v8941
  %v8943 = vpop.f32.mrb[0].mxu0
  %8944 = vmatprep.mubr.f32.mxu0 0.0
  %8945 = vmatmul.mubr.f32.gmra.mrb[0].mxu0 %v8435
  %v8946 = vpop.f32.mrb[0].mxu0
  %v8947 = vadd.f32 0.0, %v8946
  %v8948 = vpop.f32.mrb[0].mxu0
  %8949 = vmatprep.mubr.f32.mxu0 0.0
  %8950 = vmatmul.mubr.f32.gmra.mrb[0].mxu0 %v8438
  %v8951 = vpop.f32.mrb[0].mxu0
  %v8952 = vadd.f32 0.0, %v8951
  %v8953 = vpop.f32.mrb[0].mxu0
  %8954 = vmatprep.mubr.f32.mxu0 0.0
  %8955 = vmatmul.mubr.f32.gmra.mrb[0].mxu0 %v8441
  %v8956 = vpop.f32.mrb[0].mxu0
  %v8957 = vadd.f32 0.0, %v8956
  %v8958 = vpop.f32.mrb[0].mxu0
  %8959 = vmatprep.mubr.f32.mxu0 0.0
  %8960 = vmatmul.mubr.f32.gmra.mrb[0].mxu0 %v8444
  %v8961 = vpop.f32.mrb[0].mxu0
  %v8962 = vadd.f32 0.0, %v8961
  %v8963 = vpop.f32.mrb[0].mxu0
  %8964 = vmatprep.mubr.f32.mxu0 0.0
  %8965 = vmatmul.mubr.f32.gmra.mrb[0].mxu0 %v8447
  %v8966 = vpop.f32.mrb[0].mxu0
  %v8967 = vadd.f32 0.0, %v8966
  %v8968 = vpop.f32.mrb[0].mxu0
  %8969 = vmatprep.mubr.f32.mxu0 0.0
  %8970 = vmatmul.mubr.f32.gmra.mrb[0].mxu0 %v8450
  %v8971 = vpop.f32.mrb[0].mxu0
  %v8972 = vadd.f32 0.0, %v8971
  %v8973 = vpop.f32.mrb[0].mxu0
  %8974 = vmatprep.mubr.f32.mxu0 0.0
  %8975 = vmatmul.mubr.f32.gmra.mrb[0].mxu0 %v8453
  %v8976 = vpop.f32.mrb[0].mxu0
  %v8977 = vadd.f32 0.0, %v8976
  %v8978 = vpop.f32.mrb[0].mxu0
  %8979 = vmatprep.mubr.f32.mxu0 0.0
  %8980 = vmatmul.mubr.f32.gmra.mrb[0].mxu0 %v8456
  %v8981 = vpop.f32.mrb[0].mxu0
  %v8982 = vadd.f32 0.0, %v8981
  %v8983 = vpop.f32.mrb[0].mxu0
  %8984 = vmatprep.mubr.f32.mxu0 0.0
  %8985 = vmatmul.mubr.f32.gmra.mrb[0].mxu0 %v8459
  %v8986 = vpop.f32.mrb[0].mxu0
  %v8987 = vadd.f32 0.0, %v8986
  %v8988 = vpop.f32.mrb[0].mxu0
  %8989 = vmatprep.mubr.f32.mxu0 0.0
  %8990 = vmatmul.mubr.f32.gmra.mrb[0].mxu0 %v8462
  %v8991 = vpop.f32.mrb[0].mxu0
  %v8992 = vadd.f32 0.0, %v8991
  %v8993 = vpop.f32.mrb[0].mxu0
  %8994 = vmatprep.mubr.f32.mxu0 0.0
  %8995 = vmatmul.mubr.f32.gmra.mrb[0].mxu0 %v8465
  %v8996 = vpop.f32.mrb[0].mxu0
  %v8997 = vadd.f32 0.0, %v8996
  %v8998 = vpop.f32.mrb[0].mxu0
  %8999 = vmatprep.mubr.f32.mxu0 0.0
  %9000 = vmatmul.mubr.f32.gmra.mrb[0].mxu0 %v8468
  %v9001 = vpop.f32.mrb[0].mxu0
  %v9002 = vadd.f32 0.0, %v9001
  %v9003 = vpop.f32.mrb[0].mxu0
  %9004 = vmatprep.mubr.f32.mxu0 0.0
  %9005 = vmatmul.mubr.f32.gmra.mrb[0].mxu0 %v8471
  %v9006 = vpop.f32.mrb[0].mxu0
  %v9007 = vadd.f32 0.0, %v9006
  %v9008 = vpop.f32.mrb[0].mxu0
  %9009 = vmatprep.mubr.f32.mxu0 0.0
  %9010 = vmatmul.mubr.f32.gmra.mrb[0].mxu0 %v8474
  %v9011 = vpop.f32.mrb[0].mxu0
  %v9012 = vadd.f32 0.0, %v9011
  %v9013 = vpop.f32.mrb[0].mxu0
  %9014 = vmatprep.mubr.f32.mxu0 0.0
  %9015 = vmatmul.mubr.f32.gmra.mrb[0].mxu0 %v8477
  %v9016 = vpop.f32.mrb[0].mxu0
  %v9017 = vadd.f32 0.0, %v9016
  %v9018 = vpop.f32.mrb[0].mxu0
  %9019 = vmatprep.mubr.f32.mxu0 0.0
  %9020 = vmatmul.mubr.f32.gmra.mrb[0].mxu0 %v8480
  %v9021 = vpop.f32.mrb[0].mxu0
  %v9022 = vadd.f32 0.0, %v9021
  %v9023 = vpop.f32.mrb[0].mxu0
  %9024 = vmatprep.mubr.f32.mxu0 0.0
  %9025 = vmatmul.mubr.f32.gmra.mrb[0].mxu0 %v8483
  %v9026 = vpop.f32.mrb[0].mxu0
  %v9027 = vadd.f32 0.0, %v9026
  %v9028 = vpop.f32.mrb[0].mxu0
  %9029 = vmatprep.mubr.f32.mxu0 0.0
  %9030 = vmatmul.mubr.f32.gmra.mrb[0].mxu0 %v8486
  %v9031 = vpop.f32.mrb[0].mxu0
  %v9032 = vadd.f32 0.0, %v9031
  %v9033 = vpop.f32.mrb[0].mxu0
  %9034 = vmatprep.mubr.f32.mxu0 0.0
  %9035 = vmatmul.mubr.f32.gmra.mrb[0].mxu0 %v8489
  %v9036 = vpop.f32.mrb[0].mxu0
  %v9037 = vadd.f32 0.0, %v9036
  %v9038 = vpop.f32.mrb[0].mxu0
  %9039 = vmatprep.mubr.f32.mxu0 0.0
  %9040 = vmatmul.mubr.f32.gmra.mrb[0].mxu0 %v8492
  %v9041 = vpop.f32.mrb[0].mxu0
  %v9042 = vadd.f32 0.0, %v9041
  %v9043 = vpop.f32.mrb[0].mxu0
  %9044 = vmatprep.mubr.f32.mxu0 0.0
  %9045 = vmatmul.mubr.f32.gmra.mrb[0].mxu0 %v8495
  %v9046 = vpop.f32.mrb[0].mxu0
  %v9047 = vadd.f32 0.0, %v9046
  %v9048 = vpop.f32.mrb[0].mxu0
  %9049 = vmatprep.mubr.f32.mxu0 0.0
  %9050 = vmatmul.mubr.f32.gmra.mrb[0].mxu0 %v8498
  %v9051 = vpop.f32.mrb[0].mxu0
  %v9052 = vadd.f32 0.0, %v9051
  %v9053 = vpop.f32.mrb[0].mxu0
  %9054 = vdwg.mxu0
  %v9055 = vadd.f32 %v8007, %v8567
  %v9056 = vadd.f32 %v8008, %v8572
  %v9057 = vadd.f32 %v8009, %v8577
  %v9058 = vadd.f32 %v8010, %v8582
  %v9059 = vadd.f32 %v8011, %v8587
  %v9060 = vadd.f32 %v8012, %v8592
  %v9061 = vadd.f32 %v8013, %v8597
  %v9062 = vadd.f32 %v8014, %v8602
  %v9063 = vadd.f32 %v8015, %v8607
  %v9064 = vadd.f32 %v8016, %v8612
  %v9065 = vadd.f32 %v8017, %v8617
  %v9066 = vadd.f32 %v8018, %v8622
  %v9067 = vadd.f32 %v8019, %v8627
  %v9068 = vadd.f32 %v8020, %v8632
  %v9069 = vadd.f32 %v8021, %v8637
  %v9070 = vadd.f32 %v8022, %v8642
  %v9071 = vadd.f32 %v8023, %v8647
  %v9072 = vadd.f32 %v8024, %v8652
  %v9073 = vadd.f32 %v8025, %v8657
  %v9074 = vadd.f32 %v8026, %v8662
  %v9075 = vadd.f32 %v8027, %v8667
  %v9076 = vadd.f32 %v8028, %v8672
  %v9077 = vadd.f32 %v8029, %v8677
  %v9078 = vadd.f32 %v8030, %v8682
  %v9079 = vadd.f32 %v8031, %v8687
  %v9080 = vadd.f32 %v8032, %v8692
  %v9081 = vadd.f32 %v8033, %v8697
  %v9082 = vadd.f32 %v8034, %v8702
  %v9083 = vadd.f32 %v8035, %v8707
  %v9084 = vadd.f32 %v8036, %v8712
  %v9085 = vadd.f32 %v8037, %v8717
  %v9086 = vadd.f32 %v8038, %v8722
  %v9087 = vadd.f32 %v8039, %v8727
  %v9088 = vadd.f32 %v8040, %v8732
  %v9089 = vadd.f32 %v8041, %v8737
  %v9090 = vadd.f32 %v8042, %v8742
  %v9091 = vadd.f32 %v8043, %v8747
  %v9092 = vadd.f32 %v8044, %v8752
  %v9093 = vadd.f32 %v8045, %v8757
  %v9094 = vadd.f32 %v8046, %v8762
  %v9095 = vadd.f32 %v8047, %v8767
  %v9096 = vadd.f32 %v8048, %v8772
  %v9097 = vadd.f32 %v8049, %v8777
  %v9098 = vadd.f32 %v8050, %v8782
  %v9099 = vadd.f32 %v8051, %v8787
  %v9100 = vadd.f32 %v8052, %v8792
  %v9101 = vadd.f32 %v8053, %v8797
  %v9102 = vadd.f32 %v8054, %v8802
  %v9103 = vadd.f32 %v8055, %v8807
  %v9104 = vadd.f32 %v8056, %v8812
  %v9105 = vadd.f32 %v8057, %v8817
  %v9106 = vadd.f32 %v8058, %v8822
  %v9107 = vadd.f32 %v8059, %v8827
  %v9108 = vadd.f32 %v8060, %v8832
  %v9109 = vadd.f32 %v8061, %v8837
  %v9110 = vadd.f32 %v8062, %v8842
  %v9111 = vadd.f32 %v8063, %v8847
  %v9112 = vadd.f32 %v8064, %v8852
  %v9113 = vadd.f32 %v8065, %v8857
  %v9114 = vadd.f32 %v8066, %v8862
  %v9115 = vadd.f32 %v8067, %v8867
  %v9116 = vadd.f32 %v8068, %v8872
  %v9117 = vadd.f32 %v8069, %v8877
  %v9118 = vadd.f32 %v8070, %v8882
  %v9119 = vadd.f32 %v8071, %v8887
  %v9120 = vadd.f32 %v8072, %v8892
  %v9121 = vadd.f32 %v8073, %v8897
  %v9122 = vadd.f32 %v8074, %v8902
  %v9123 = vadd.f32 %v8075, %v8907
  %v9124 = vadd.f32 %v8076, %v8912
  %v9125 = vadd.f32 %v8077, %v8917
  %v9126 = vadd.f32 %v8078, %v8922
  %v9127 = vadd.f32 %v8079, %v8927
  %v9128 = vadd.f32 %v8080, %v8932
  %v9129 = vadd.f32 %v8081, %v8937
  %v9130 = vadd.f32 %v8082, %v8942
  %v9131 = vadd.f32 %v8083, %v8947
  %v9132 = vadd.f32 %v8084, %v8952
  %v9133 = vadd.f32 %v8085, %v8957
  %v9134 = vadd.f32 %v8086, %v8962
  %v9135 = vadd.f32 %v8087, %v8967
  %v9136 = vadd.f32 %v8088, %v8972
  %v9137 = vadd.f32 %v8089, %v8977
  %v9138 = vadd.f32 %v8090, %v8982
  %v9139 = vadd.f32 %v8091, %v8987
  %v9140 = vadd.f32 %v8092, %v8992
  %v9141 = vadd.f32 %v8093, %v8997
  %v9142 = vadd.f32 %v8094, %v9002
  %v9143 = vadd.f32 %v8095, %v9007
  %v9144 = vadd.f32 %v8096, %v9012
  %v9145 = vadd.f32 %v8097, %v9017
  %v9146 = vadd.f32 %v8098, %v9022
  %v9147 = vadd.f32 %v8099, %v9027
  %v9148 = vadd.f32 %v8100, %v9032
  %v9149 = vadd.f32 %v8101, %v9037
  %v9150 = vadd.f32 %v8102, %v9042
  %v9151 = vadd.f32 %v8103, %v9047
  %v9152 = vadd.f32 %v8104, %v9052
  %v9153 = vld [vmem:[#allocation3 + $0x3a] sm:$0xff]
  %v9154 = vld [vmem:[#allocation3 + $0x42] sm:$0xff]
  %v9155 = vld [vmem:[#allocation3 + $0x4a] sm:$0xff]
  %v9156 = vld [vmem:[#allocation3 + $0x52] sm:$0xff]
  %v9157 = vld [vmem:[#allocation3 + $0x5a] sm:$0xff]
  %v9158 = vld [vmem:[#allocation3 + $0x62] sm:$0xff]
  %v9159 = vld [vmem:[#allocation3 + $0x6a] sm:$0xff]
  %v9160 = vld [vmem:[#allocation3 + $0x72] sm:$0xff]
  %v9161 = vld [vmem:[#allocation3 + $0x7a] sm:$0xff]
  %v9162 = vld [vmem:[#allocation3 + $0x82] sm:$0xff]
  %v9163 = vld [vmem:[#allocation3 + $0x8a] sm:$0xff]
  %v9164 = vld [vmem:[#allocation3 + $0x92] sm:$0xff]
  %v9165 = vld [vmem:[#allocation3 + $0x9a] sm:$0xff]
  %v9166 = vld [vmem:[#allocation3 + $0xa2] sm:$0xff]
  %v9167 = vld [vmem:[#allocation3 + $0xaa] sm:$0xff]
  %v9168 = vld [vmem:[#allocation3 + $0xb2] sm:$0xff]
  %v9169 = vld [vmem:[#allocation3 + $0xba] sm:$0xff]
  %v9170 = vld [vmem:[#allocation3 + $0xc2] sm:$0xff]
  %v9171 = vld [vmem:[#allocation3 + $0xca] sm:$0xff]
  %v9172 = vld [vmem:[#allocation3 + $0xd2] sm:$0xff]
  %v9173 = vld [vmem:[#allocation3 + $0xda] sm:$0xff]
  %v9174 = vld [vmem:[#allocation3 + $0xe2] sm:$0xff]
  %v9175 = vld [vmem:[#allocation3 + $0xea] sm:$0xff]
  %v9176 = vld [vmem:[#allocation3 + $0xf2] sm:$0xff]
  %v9177 = vld [vmem:[#allocation3 + $0xfa] sm:$0xff]
  %v9178 = vld [vmem:[#allocation3 + $0x102] sm:$0xff]
  %v9179 = vld [vmem:[#allocation3 + $0x10a] sm:$0xff]
  %v9180 = vld [vmem:[#allocation3 + $0x112] sm:$0xff]
  %v9181 = vld [vmem:[#allocation3 + $0x11a] sm:$0xff]
  %v9182 = vld [vmem:[#allocation3 + $0x122] sm:$0xff]
  %v9183 = vld [vmem:[#allocation3 + $0x12a] sm:$0xff]
  %v9184 = vld [vmem:[#allocation3 + $0x132] sm:$0xff]
  %v9185 = vld [vmem:[#allocation3 + $0x13a] sm:$0xff]
  %v9186 = vld [vmem:[#allocation3 + $0x142] sm:$0xff]
  %v9187 = vld [vmem:[#allocation3 + $0x14a] sm:$0xff]
  %v9188 = vld [vmem:[#allocation3 + $0x152] sm:$0xff]
  %v9189 = vld [vmem:[#allocation3 + $0x15a] sm:$0xff]
  %v9190 = vld [vmem:[#allocation3 + $0x162] sm:$0xff]
  %v9191 = vld [vmem:[#allocation3 + $0x16a] sm:$0xff]
  %v9192 = vld [vmem:[#allocation3 + $0x172] sm:$0xff]
  %v9193 = vld [vmem:[#allocation3 + $0x17a] sm:$0xff]
  %v9194 = vld [vmem:[#allocation3 + $0x182] sm:$0xff]
  %v9195 = vld [vmem:[#allocation3 + $0x18a] sm:$0xff]
  %v9196 = vld [vmem:[#allocation3 + $0x192] sm:$0xff]
  %v9197 = vld [vmem:[#allocation3 + $0x19a] sm:$0xff]
  %v9198 = vld [vmem:[#allocation3 + $0x1a2] sm:$0xff]
  %v9199 = vld [vmem:[#allocation3 + $0x1aa] sm:$0xff]
  %v9200 = vld [vmem:[#allocation3 + $0x1b2] sm:$0xff]
  %v9201 = vld [vmem:[#allocation3 + $0x1ba] sm:$0xff]
  %v9202 = vld [vmem:[#allocation3 + $0x1c2] sm:$0xff]
  %v9203 = vld [vmem:[#allocation3 + $0x1ca] sm:$0xff]
  %v9204 = vld [vmem:[#allocation3 + $0x1d2] sm:$0xff]
  %v9205 = vld [vmem:[#allocation3 + $0x1da] sm:$0xff]
  %v9206 = vld [vmem:[#allocation3 + $0x1e2] sm:$0xff]
  %v9207 = vld [vmem:[#allocation3 + $0x1ea] sm:$0xff]
  %v9208 = vld [vmem:[#allocation3 + $0x1f2] sm:$0xff]
  %v9209 = vld [vmem:[#allocation3 + $0x1fa] sm:$0xff]
  %v9210 = vld [vmem:[#allocation3 + $0x202] sm:$0xff]
  %v9211 = vld [vmem:[#allocation3 + $0x20a] sm:$0xff]
  %v9212 = vld [vmem:[#allocation3 + $0x212] sm:$0xff]
  %v9213 = vld [vmem:[#allocation3 + $0x21a] sm:$0xff]
  %v9214 = vld [vmem:[#allocation3 + $0x222] sm:$0xff]
  %v9215 = vld [vmem:[#allocation3 + $0x22a] sm:$0xff]
  %v9216 = vld [vmem:[#allocation3 + $0x232] sm:$0xff]
  %v9217 = vld [vmem:[#allocation3 + $0x23a] sm:$0xff]
  %v9218 = vld [vmem:[#allocation3 + $0x242] sm:$0xff]
  %v9219 = vld [vmem:[#allocation3 + $0x24a] sm:$0xff]
  %v9220 = vld [vmem:[#allocation3 + $0x252] sm:$0xff]
  %v9221 = vld [vmem:[#allocation3 + $0x25a] sm:$0xff]
  %v9222 = vld [vmem:[#allocation3 + $0x262] sm:$0xff]
  %v9223 = vld [vmem:[#allocation3 + $0x26a] sm:$0xff]
  %v9224 = vld [vmem:[#allocation3 + $0x272] sm:$0xff]
  %v9225 = vld [vmem:[#allocation3 + $0x27a] sm:$0xff]
  %v9226 = vld [vmem:[#allocation3 + $0x282] sm:$0xff]
  %v9227 = vld [vmem:[#allocation3 + $0x28a] sm:$0xff]
  %v9228 = vld [vmem:[#allocation3 + $0x292] sm:$0xff]
  %v9229 = vld [vmem:[#allocation3 + $0x29a] sm:$0xff]
  %v9230 = vld [vmem:[#allocation3 + $0x2a2] sm:$0xff]
  %v9231 = vld [vmem:[#allocation3 + $0x2aa] sm:$0xff]
  %v9232 = vld [vmem:[#allocation3 + $0x2b2] sm:$0xff]
  %v9233 = vld [vmem:[#allocation3 + $0x2ba] sm:$0xff]
  %v9234 = vld [vmem:[#allocation3 + $0x2c2] sm:$0xff]
  %v9235 = vld [vmem:[#allocation3 + $0x2ca] sm:$0xff]
  %v9236 = vld [vmem:[#allocation3 + $0x2d2] sm:$0xff]
  %v9237 = vld [vmem:[#allocation3 + $0x2da] sm:$0xff]
  %v9238 = vld [vmem:[#allocation3 + $0x2e2] sm:$0xff]
  %v9239 = vld [vmem:[#allocation3 + $0x2ea] sm:$0xff]
  %v9240 = vld [vmem:[#allocation3 + $0x2f2] sm:$0xff]
  %v9241 = vld [vmem:[#allocation3 + $0x2fa] sm:$0xff]
  %v9242 = vld [vmem:[#allocation3 + $0x302] sm:$0xff]
  %v9243 = vld [vmem:[#allocation3 + $0x30a] sm:$0xff]
  %v9244 = vld [vmem:[#allocation3 + $0x312] sm:$0xff]
  %v9245 = vld [vmem:[#allocation3 + $0x31a] sm:$0xff]
  %v9246 = vld [vmem:[#allocation3 + $0x322] sm:$0xff]
  %v9247 = vld [vmem:[#allocation3 + $0x32a] sm:$0xff]
  %v9248 = vld [vmem:[#allocation3 + $0x332] sm:$0xff]
  %v9249 = vld [vmem:[#allocation3 + $0x33a] sm:$0xff]
  %v9250 = vld [vmem:[#allocation3 + $0x342] sm:$0xff]
  %s9251 = scalar_lea.vmem %s3, 112
  %v9252 = vld [vmem:[%s9251] sm:$0xff]
  %v9253 = vld [vmem:[%s9251 + $0x8] sm:$0xff]
  %v9255 = vsel %vm46, %v9153, 0
  %v9258 = vsel %vm46, %v9154, 0
  %v9261 = vsel %vm46, %v9155, 0
  %v9264 = vsel %vm46, %v9156, 0
  %v9267 = vsel %vm46, %v9157, 0
  %v9270 = vsel %vm46, %v9158, 0
  %v9273 = vsel %vm46, %v9159, 0
  %v9276 = vsel %vm46, %v9160, 0
  %v9279 = vsel %vm46, %v9161, 0
  %v9282 = vsel %vm46, %v9162, 0
  %v9285 = vsel %vm46, %v9163, 0
  %v9288 = vsel %vm46, %v9164, 0
  %v9291 = vsel %vm46, %v9165, 0
  %v9294 = vsel %vm46, %v9166, 0
  %v9297 = vsel %vm46, %v9167, 0
  %v9300 = vsel %vm46, %v9168, 0
  %v9303 = vsel %vm46, %v9169, 0
  %v9306 = vsel %vm46, %v9170, 0
  %v9309 = vsel %vm46, %v9171, 0
  %v9312 = vsel %vm46, %v9172, 0
  %v9315 = vsel %vm46, %v9173, 0
  %v9318 = vsel %vm46, %v9174, 0
  %v9321 = vsel %vm46, %v9175, 0
  %v9324 = vsel %vm46, %v9176, 0
  %v9327 = vsel %vm46, %v9177, 0
  %v9330 = vsel %vm46, %v9178, 0
  %v9333 = vsel %vm46, %v9179, 0
  %v9336 = vsel %vm46, %v9180, 0
  %v9339 = vsel %vm46, %v9181, 0
  %v9342 = vsel %vm46, %v9182, 0
  %v9345 = vsel %vm46, %v9183, 0
  %v9348 = vsel %vm46, %v9184, 0
  %v9351 = vsel %vm46, %v9185, 0
  %v9354 = vsel %vm46, %v9186, 0
  %v9357 = vsel %vm46, %v9187, 0
  %v9360 = vsel %vm46, %v9188, 0
  %v9363 = vsel %vm46, %v9189, 0
  %v9366 = vsel %vm46, %v9190, 0
  %v9369 = vsel %vm46, %v9191, 0
  %v9372 = vsel %vm46, %v9192, 0
  %v9375 = vsel %vm46, %v9193, 0
  %v9378 = vsel %vm46, %v9194, 0
  %v9381 = vsel %vm46, %v9195, 0
  %v9384 = vsel %vm46, %v9196, 0
  %v9387 = vsel %vm46, %v9197, 0
  %v9390 = vsel %vm46, %v9198, 0
  %v9393 = vsel %vm46, %v9199, 0
  %v9396 = vsel %vm46, %v9200, 0
  %v9399 = vsel %vm46, %v9201, 0
  %v9402 = vsel %vm46, %v9202, 0
  %v9405 = vsel %vm46, %v9203, 0
  %v9408 = vsel %vm46, %v9204, 0
  %v9411 = vsel %vm46, %v9205, 0
  %v9414 = vsel %vm46, %v9206, 0
  %v9417 = vsel %vm46, %v9207, 0
  %v9420 = vsel %vm46, %v9208, 0
  %v9423 = vsel %vm46, %v9209, 0
  %v9426 = vsel %vm46, %v9210, 0
  %v9429 = vsel %vm46, %v9211, 0
  %v9432 = vsel %vm46, %v9212, 0
  %v9435 = vsel %vm46, %v9213, 0
  %v9438 = vsel %vm46, %v9214, 0
  %v9441 = vsel %vm46, %v9215, 0
  %v9444 = vsel %vm46, %v9216, 0
  %v9447 = vsel %vm46, %v9217, 0
  %v9450 = vsel %vm46, %v9218, 0
  %v9453 = vsel %vm46, %v9219, 0
  %v9456 = vsel %vm46, %v9220, 0
  %v9459 = vsel %vm46, %v9221, 0
  %v9462 = vsel %vm46, %v9222, 0
  %v9465 = vsel %vm46, %v9223, 0
  %v9468 = vsel %vm46, %v9224, 0
  %v9471 = vsel %vm46, %v9225, 0
  %v9474 = vsel %vm46, %v9226, 0
  %v9477 = vsel %vm46, %v9227, 0
  %v9480 = vsel %vm46, %v9228, 0
  %v9483 = vsel %vm46, %v9229, 0
  %v9486 = vsel %vm46, %v9230, 0
  %v9489 = vsel %vm46, %v9231, 0
  %v9492 = vsel %vm46, %v9232, 0
  %v9495 = vsel %vm46, %v9233, 0
  %v9498 = vsel %vm46, %v9234, 0
  %v9501 = vsel %vm46, %v9235, 0
  %v9504 = vsel %vm46, %v9236, 0
  %v9507 = vsel %vm46, %v9237, 0
  %v9510 = vsel %vm46, %v9238, 0
  %v9513 = vsel %vm46, %v9239, 0
  %v9516 = vsel %vm46, %v9240, 0
  %v9519 = vsel %vm46, %v9241, 0
  %v9522 = vsel %vm46, %v9242, 0
  %v9525 = vsel %vm46, %v9243, 0
  %v9528 = vsel %vm46, %v9244, 0
  %v9531 = vsel %vm46, %v9245, 0
  %v9534 = vsel %vm46, %v9246, 0
  %v9537 = vsel %vm46, %v9247, 0
  %v9540 = vsel %vm46, %v9248, 0
  %v9543 = vsel %vm46, %v9249, 0
  %v9546 = vsel %vm46, %v9250, 0
  %9548 = vmatprep.subr.mxu0 0.0
  %9549 = vmatpush1.msra.mxu0 %v9252
  %9550 = vmatprep.subr.mxu0 0.0
  %9551 = vmatpush1.msra.mxu0 %v9253
  %9552 = vmatprep.subr.mxu0 0.0
  %9553 = vmatpush1.msra.mxu0 0.0
  %9554 = vmatprep.subr.mxu0 0.0
  %9555 = vmatpush1.msra.mxu0 0.0
  %9556 = vmatprep.subr.mxu0 0.0
  %9557 = vmatpush1.msra.mxu0 0.0
  %9558 = vmatprep.subr.mxu0 0.0
  %9559 = vmatpush1.msra.mxu0 0.0
  %9560 = vmatprep.subr.mxu0 0.0
  %9561 = vmatpush1.msra.mxu0 0.0
  %9562 = vmatprep.subr.mxu0 0.0
  %9563 = vmatpush1.msra.mxu0 0.0
  %9564 = vmatprep.subr.mxu0 0.0
  %9565 = vmatpush1.msra.mxu0 0.0
  %9566 = vmatprep.subr.mxu0 0.0
  %9567 = vmatpush1.msra.mxu0 0.0
  %9568 = vmatprep.subr.mxu0 0.0
  %9569 = vmatpush1.msra.mxu0 0.0
  %9570 = vmatprep.subr.mxu0 0.0
  %9571 = vmatpush1.msra.mxu0 0.0
  %9572 = vmatprep.subr.mxu0 0.0
  %9573 = vmatpush1.msra.mxu0 0.0
  %9574 = vmatprep.subr.mxu0 0.0
  %9575 = vmatpush1.msra.mxu0 0.0
  %9576 = vmatprep.subr.mxu0 0.0
  %9577 = vmatpush1.msra.mxu0 0.0
  %9578 = vmatprep.subr.mxu0 0.0
  %9579 = vmatpush1.msra.mxu0 0.0
  %9580 = vmatprep.subr.mxu0 0.0
  %9581 = vmatpush1.msra.mxu0 0.0
  %9582 = vmatprep.subr.mxu0 0.0
  %9583 = vmatpush1.msra.mxu0 0.0
  %9584 = vmatprep.subr.mxu0 0.0
  %9585 = vmatpush1.msra.mxu0 0.0
  %9586 = vmatprep.subr.mxu0 0.0
  %9587 = vmatpush1.msra.mxu0 0.0
  %9588 = vmatprep.subr.mxu0 0.0
  %9589 = vmatpush1.msra.mxu0 0.0
  %9590 = vmatprep.subr.mxu0 0.0
  %9591 = vmatpush1.msra.mxu0 0.0
  %9592 = vmatprep.subr.mxu0 0.0
  %9593 = vmatpush1.msra.mxu0 0.0
  %9594 = vmatprep.subr.mxu0 0.0
  %9595 = vmatpush1.msra.mxu0 0.0
  %9596 = vmatprep.subr.mxu0 0.0
  %9597 = vmatpush1.msra.mxu0 0.0
  %9598 = vmatprep.subr.mxu0 0.0
  %9599 = vmatpush1.msra.mxu0 0.0
  %9600 = vmatprep.subr.mxu0 0.0
  %9601 = vmatpush1.msra.mxu0 0.0
  %9602 = vmatprep.subr.mxu0 0.0
  %9603 = vmatpush1.msra.mxu0 0.0
  %9604 = vmatprep.subr.mxu0 0.0
  %9605 = vmatpush1.msra.mxu0 0.0
  %9606 = vmatprep.subr.mxu0 0.0
  %9607 = vmatpush1.msra.mxu0 0.0
  %9608 = vmatprep.subr.mxu0 0.0
  %9609 = vmatpush1.msra.mxu0 0.0
  %9610 = vmatprep.subr.mxu0 0.0
  %9611 = vmatpush1.msra.mxu0 0.0
  %9612 = vmatprep.mubr.f32.mxu0 0.0
  %9613 = vmatmul.mubr.f32.gmra.mrb[0].mxu0 %v9255
  %v9614 = vpop.f32.mrb[0].mxu0
  %v9615 = vadd.f32 0.0, %v9614
  %v9616 = vpop.f32.mrb[0].mxu0
  %9617 = vmatprep.mubr.f32.mxu0 0.0
  %9618 = vmatmul.mubr.f32.gmra.mrb[0].mxu0 %v9258
  %v9619 = vpop.f32.mrb[0].mxu0
  %v9620 = vadd.f32 0.0, %v9619
  %v9621 = vpop.f32.mrb[0].mxu0
  %9622 = vmatprep.mubr.f32.mxu0 0.0
  %9623 = vmatmul.mubr.f32.gmra.mrb[0].mxu0 %v9261
  %v9624 = vpop.f32.mrb[0].mxu0
  %v9625 = vadd.f32 0.0, %v9624
  %v9626 = vpop.f32.mrb[0].mxu0
  %9627 = vmatprep.mubr.f32.mxu0 0.0
  %9628 = vmatmul.mubr.f32.gmra.mrb[0].mxu0 %v9264
  %v9629 = vpop.f32.mrb[0].mxu0
  %v9630 = vadd.f32 0.0, %v9629
  %v9631 = vpop.f32.mrb[0].mxu0
  %9632 = vmatprep.mubr.f32.mxu0 0.0
  %9633 = vmatmul.mubr.f32.gmra.mrb[0].mxu0 %v9267
  %v9634 = vpop.f32.mrb[0].mxu0
  %v9635 = vadd.f32 0.0, %v9634
  %v9636 = vpop.f32.mrb[0].mxu0
  %9637 = vmatprep.mubr.f32.mxu0 0.0
  %9638 = vmatmul.mubr.f32.gmra.mrb[0].mxu0 %v9270
  %v9639 = vpop.f32.mrb[0].mxu0
  %v9640 = vadd.f32 0.0, %v9639
  %v9641 = vpop.f32.mrb[0].mxu0
  %9642 = vmatprep.mubr.f32.mxu0 0.0
  %9643 = vmatmul.mubr.f32.gmra.mrb[0].mxu0 %v9273
  %v9644 = vpop.f32.mrb[0].mxu0
  %v9645 = vadd.f32 0.0, %v9644
  %v9646 = vpop.f32.mrb[0].mxu0
  %9647 = vmatprep.mubr.f32.mxu0 0.0
  %9648 = vmatmul.mubr.f32.gmra.mrb[0].mxu0 %v9276
  %v9649 = vpop.f32.mrb[0].mxu0
  %v9650 = vadd.f32 0.0, %v9649
  %v9651 = vpop.f32.mrb[0].mxu0
  %9652 = vmatprep.mubr.f32.mxu0 0.0
  %9653 = vmatmul.mubr.f32.gmra.mrb[0].mxu0 %v9279
  %v9654 = vpop.f32.mrb[0].mxu0
  %v9655 = vadd.f32 0.0, %v9654
  %v9656 = vpop.f32.mrb[0].mxu0
  %9657 = vmatprep.mubr.f32.mxu0 0.0
  %9658 = vmatmul.mubr.f32.gmra.mrb[0].mxu0 %v9282
  %v9659 = vpop.f32.mrb[0].mxu0
  %v9660 = vadd.f32 0.0, %v9659
  %v9661 = vpop.f32.mrb[0].mxu0
  %9662 = vmatprep.mubr.f32.mxu0 0.0
  %9663 = vmatmul.mubr.f32.gmra.mrb[0].mxu0 %v9285
  %v9664 = vpop.f32.mrb[0].mxu0
  %v9665 = vadd.f32 0.0, %v9664
  %v9666 = vpop.f32.mrb[0].mxu0
  %9667 = vmatprep.mubr.f32.mxu0 0.0
  %9668 = vmatmul.mubr.f32.gmra.mrb[0].mxu0 %v9288
  %v9669 = vpop.f32.mrb[0].mxu0
  %v9670 = vadd.f32 0.0, %v9669
  %v9671 = vpop.f32.mrb[0].mxu0
  %9672 = vmatprep.mubr.f32.mxu0 0.0
  %9673 = vmatmul.mubr.f32.gmra.mrb[0].mxu0 %v9291
  %v9674 = vpop.f32.mrb[0].mxu0
  %v9675 = vadd.f32 0.0, %v9674
  %v9676 = vpop.f32.mrb[0].mxu0
  %9677 = vmatprep.mubr.f32.mxu0 0.0
  %9678 = vmatmul.mubr.f32.gmra.mrb[0].mxu0 %v9294
  %v9679 = vpop.f32.mrb[0].mxu0
  %v9680 = vadd.f32 0.0, %v9679
  %v9681 = vpop.f32.mrb[0].mxu0
  %9682 = vmatprep.mubr.f32.mxu0 0.0
  %9683 = vmatmul.mubr.f32.gmra.mrb[0].mxu0 %v9297
  %v9684 = vpop.f32.mrb[0].mxu0
  %v9685 = vadd.f32 0.0, %v9684
  %v9686 = vpop.f32.mrb[0].mxu0
  %9687 = vmatprep.mubr.f32.mxu0 0.0
  %9688 = vmatmul.mubr.f32.gmra.mrb[0].mxu0 %v9300
  %v9689 = vpop.f32.mrb[0].mxu0
  %v9690 = vadd.f32 0.0, %v9689
  %v9691 = vpop.f32.mrb[0].mxu0
  %9692 = vmatprep.mubr.f32.mxu0 0.0
  %9693 = vmatmul.mubr.f32.gmra.mrb[0].mxu0 %v9303
  %v9694 = vpop.f32.mrb[0].mxu0
  %v9695 = vadd.f32 0.0, %v9694
  %v9696 = vpop.f32.mrb[0].mxu0
  %9697 = vmatprep.mubr.f32.mxu0 0.0
  %9698 = vmatmul.mubr.f32.gmra.mrb[0].mxu0 %v9306
  %v9699 = vpop.f32.mrb[0].mxu0
  %v9700 = vadd.f32 0.0, %v9699
  %v9701 = vpop.f32.mrb[0].mxu0
  %9702 = vmatprep.mubr.f32.mxu0 0.0
  %9703 = vmatmul.mubr.f32.gmra.mrb[0].mxu0 %v9309
  %v9704 = vpop.f32.mrb[0].mxu0
  %v9705 = vadd.f32 0.0, %v9704
  %v9706 = vpop.f32.mrb[0].mxu0
  %9707 = vmatprep.mubr.f32.mxu0 0.0
  %9708 = vmatmul.mubr.f32.gmra.mrb[0].mxu0 %v9312
  %v9709 = vpop.f32.mrb[0].mxu0
  %v9710 = vadd.f32 0.0, %v9709
  %v9711 = vpop.f32.mrb[0].mxu0
  %9712 = vmatprep.mubr.f32.mxu0 0.0
  %9713 = vmatmul.mubr.f32.gmra.mrb[0].mxu0 %v9315
  %v9714 = vpop.f32.mrb[0].mxu0
  %v9715 = vadd.f32 0.0, %v9714
  %v9716 = vpop.f32.mrb[0].mxu0
  %9717 = vmatprep.mubr.f32.mxu0 0.0
  %9718 = vmatmul.mubr.f32.gmra.mrb[0].mxu0 %v9318
  %v9719 = vpop.f32.mrb[0].mxu0
  %v9720 = vadd.f32 0.0, %v9719
  %v9721 = vpop.f32.mrb[0].mxu0
  %9722 = vmatprep.mubr.f32.mxu0 0.0
  %9723 = vmatmul.mubr.f32.gmra.mrb[0].mxu0 %v9321
  %v9724 = vpop.f32.mrb[0].mxu0
  %v9725 = vadd.f32 0.0, %v9724
  %v9726 = vpop.f32.mrb[0].mxu0
  %9727 = vmatprep.mubr.f32.mxu0 0.0
  %9728 = vmatmul.mubr.f32.gmra.mrb[0].mxu0 %v9324
  %v9729 = vpop.f32.mrb[0].mxu0
  %v9730 = vadd.f32 0.0, %v9729
  %v9731 = vpop.f32.mrb[0].mxu0
  %9732 = vmatprep.mubr.f32.mxu0 0.0
  %9733 = vmatmul.mubr.f32.gmra.mrb[0].mxu0 %v9327
  %v9734 = vpop.f32.mrb[0].mxu0
  %v9735 = vadd.f32 0.0, %v9734
  %v9736 = vpop.f32.mrb[0].mxu0
  %9737 = vmatprep.mubr.f32.mxu0 0.0
  %9738 = vmatmul.mubr.f32.gmra.mrb[0].mxu0 %v9330
  %v9739 = vpop.f32.mrb[0].mxu0
  %v9740 = vadd.f32 0.0, %v9739
  %v9741 = vpop.f32.mrb[0].mxu0
  %9742 = vmatprep.mubr.f32.mxu0 0.0
  %9743 = vmatmul.mubr.f32.gmra.mrb[0].mxu0 %v9333
  %v9744 = vpop.f32.mrb[0].mxu0
  %v9745 = vadd.f32 0.0, %v9744
  %v9746 = vpop.f32.mrb[0].mxu0
  %9747 = vmatprep.mubr.f32.mxu0 0.0
  %9748 = vmatmul.mubr.f32.gmra.mrb[0].mxu0 %v9336
  %v9749 = vpop.f32.mrb[0].mxu0
  %v9750 = vadd.f32 0.0, %v9749
  %v9751 = vpop.f32.mrb[0].mxu0
  %9752 = vmatprep.mubr.f32.mxu0 0.0
  %9753 = vmatmul.mubr.f32.gmra.mrb[0].mxu0 %v9339
  %v9754 = vpop.f32.mrb[0].mxu0
  %v9755 = vadd.f32 0.0, %v9754
  %v9756 = vpop.f32.mrb[0].mxu0
  %9757 = vmatprep.mubr.f32.mxu0 0.0
  %9758 = vmatmul.mubr.f32.gmra.mrb[0].mxu0 %v9342
  %v9759 = vpop.f32.mrb[0].mxu0
  %v9760 = vadd.f32 0.0, %v9759
  %v9761 = vpop.f32.mrb[0].mxu0
  %9762 = vmatprep.mubr.f32.mxu0 0.0
  %9763 = vmatmul.mubr.f32.gmra.mrb[0].mxu0 %v9345
  %v9764 = vpop.f32.mrb[0].mxu0
  %v9765 = vadd.f32 0.0, %v9764
  %v9766 = vpop.f32.mrb[0].mxu0
  %9767 = vmatprep.mubr.f32.mxu0 0.0
  %9768 = vmatmul.mubr.f32.gmra.mrb[0].mxu0 %v9348
  %v9769 = vpop.f32.mrb[0].mxu0
  %v9770 = vadd.f32 0.0, %v9769
  %v9771 = vpop.f32.mrb[0].mxu0
  %9772 = vmatprep.mubr.f32.mxu0 0.0
  %9773 = vmatmul.mubr.f32.gmra.mrb[0].mxu0 %v9351
  %v9774 = vpop.f32.mrb[0].mxu0
  %v9775 = vadd.f32 0.0, %v9774
  %v9776 = vpop.f32.mrb[0].mxu0
  %9777 = vmatprep.mubr.f32.mxu0 0.0
  %9778 = vmatmul.mubr.f32.gmra.mrb[0].mxu0 %v9354
  %v9779 = vpop.f32.mrb[0].mxu0
  %v9780 = vadd.f32 0.0, %v9779
  %v9781 = vpop.f32.mrb[0].mxu0
  %9782 = vmatprep.mubr.f32.mxu0 0.0
  %9783 = vmatmul.mubr.f32.gmra.mrb[0].mxu0 %v9357
  %v9784 = vpop.f32.mrb[0].mxu0
  %v9785 = vadd.f32 0.0, %v9784
  %v9786 = vpop.f32.mrb[0].mxu0
  %9787 = vmatprep.mubr.f32.mxu0 0.0
  %9788 = vmatmul.mubr.f32.gmra.mrb[0].mxu0 %v9360
  %v9789 = vpop.f32.mrb[0].mxu0
  %v9790 = vadd.f32 0.0, %v9789
  %v9791 = vpop.f32.mrb[0].mxu0
  %9792 = vmatprep.mubr.f32.mxu0 0.0
  %9793 = vmatmul.mubr.f32.gmra.mrb[0].mxu0 %v9363
  %v9794 = vpop.f32.mrb[0].mxu0
  %v9795 = vadd.f32 0.0, %v9794
  %v9796 = vpop.f32.mrb[0].mxu0
  %9797 = vmatprep.mubr.f32.mxu0 0.0
  %9798 = vmatmul.mubr.f32.gmra.mrb[0].mxu0 %v9366
  %v9799 = vpop.f32.mrb[0].mxu0
  %v9800 = vadd.f32 0.0, %v9799
  %v9801 = vpop.f32.mrb[0].mxu0
  %9802 = vmatprep.mubr.f32.mxu0 0.0
  %9803 = vmatmul.mubr.f32.gmra.mrb[0].mxu0 %v9369
  %v9804 = vpop.f32.mrb[0].mxu0
  %v9805 = vadd.f32 0.0, %v9804
  %v9806 = vpop.f32.mrb[0].mxu0
  %9807 = vmatprep.mubr.f32.mxu0 0.0
  %9808 = vmatmul.mubr.f32.gmra.mrb[0].mxu0 %v9372
  %v9809 = vpop.f32.mrb[0].mxu0
  %v9810 = vadd.f32 0.0, %v9809
  %v9811 = vpop.f32.mrb[0].mxu0
  %9812 = vmatprep.mubr.f32.mxu0 0.0
  %9813 = vmatmul.mubr.f32.gmra.mrb[0].mxu0 %v9375
  %v9814 = vpop.f32.mrb[0].mxu0
  %v9815 = vadd.f32 0.0, %v9814
  %v9816 = vpop.f32.mrb[0].mxu0
  %9817 = vmatprep.mubr.f32.mxu0 0.0
  %9818 = vmatmul.mubr.f32.gmra.mrb[0].mxu0 %v9378
  %v9819 = vpop.f32.mrb[0].mxu0
  %v9820 = vadd.f32 0.0, %v9819
  %v9821 = vpop.f32.mrb[0].mxu0
  %9822 = vmatprep.mubr.f32.mxu0 0.0
  %9823 = vmatmul.mubr.f32.gmra.mrb[0].mxu0 %v9381
  %v9824 = vpop.f32.mrb[0].mxu0
  %v9825 = vadd.f32 0.0, %v9824
  %v9826 = vpop.f32.mrb[0].mxu0
  %9827 = vmatprep.mubr.f32.mxu0 0.0
  %9828 = vmatmul.mubr.f32.gmra.mrb[0].mxu0 %v9384
  %v9829 = vpop.f32.mrb[0].mxu0
  %v9830 = vadd.f32 0.0, %v9829
  %v9831 = vpop.f32.mrb[0].mxu0
  %9832 = vmatprep.mubr.f32.mxu0 0.0
  %9833 = vmatmul.mubr.f32.gmra.mrb[0].mxu0 %v9387
  %v9834 = vpop.f32.mrb[0].mxu0
  %v9835 = vadd.f32 0.0, %v9834
  %v9836 = vpop.f32.mrb[0].mxu0
  %9837 = vmatprep.mubr.f32.mxu0 0.0
  %9838 = vmatmul.mubr.f32.gmra.mrb[0].mxu0 %v9390
  %v9839 = vpop.f32.mrb[0].mxu0
  %v9840 = vadd.f32 0.0, %v9839
  %v9841 = vpop.f32.mrb[0].mxu0
  %9842 = vmatprep.mubr.f32.mxu0 0.0
  %9843 = vmatmul.mubr.f32.gmra.mrb[0].mxu0 %v9393
  %v9844 = vpop.f32.mrb[0].mxu0
  %v9845 = vadd.f32 0.0, %v9844
  %v9846 = vpop.f32.mrb[0].mxu0
  %9847 = vmatprep.mubr.f32.mxu0 0.0
  %9848 = vmatmul.mubr.f32.gmra.mrb[0].mxu0 %v9396
  %v9849 = vpop.f32.mrb[0].mxu0
  %v9850 = vadd.f32 0.0, %v9849
  %v9851 = vpop.f32.mrb[0].mxu0
  %9852 = vmatprep.mubr.f32.mxu0 0.0
  %9853 = vmatmul.mubr.f32.gmra.mrb[0].mxu0 %v9399
  %v9854 = vpop.f32.mrb[0].mxu0
  %v9855 = vadd.f32 0.0, %v9854
  %v9856 = vpop.f32.mrb[0].mxu0
  %9857 = vmatprep.mubr.f32.mxu0 0.0
  %9858 = vmatmul.mubr.f32.gmra.mrb[0].mxu0 %v9402
  %v9859 = vpop.f32.mrb[0].mxu0
  %v9860 = vadd.f32 0.0, %v9859
  %v9861 = vpop.f32.mrb[0].mxu0
  %9862 = vmatprep.mubr.f32.mxu0 0.0
  %9863 = vmatmul.mubr.f32.gmra.mrb[0].mxu0 %v9405
  %v9864 = vpop.f32.mrb[0].mxu0
  %v9865 = vadd.f32 0.0, %v9864
  %v9866 = vpop.f32.mrb[0].mxu0
  %9867 = vmatprep.mubr.f32.mxu0 0.0
  %9868 = vmatmul.mubr.f32.gmra.mrb[0].mxu0 %v9408
  %v9869 = vpop.f32.mrb[0].mxu0
  %v9870 = vadd.f32 0.0, %v9869
  %v9871 = vpop.f32.mrb[0].mxu0
  %9872 = vmatprep.mubr.f32.mxu0 0.0
  %9873 = vmatmul.mubr.f32.gmra.mrb[0].mxu0 %v9411
  %v9874 = vpop.f32.mrb[0].mxu0
  %v9875 = vadd.f32 0.0, %v9874
  %v9876 = vpop.f32.mrb[0].mxu0
  %9877 = vmatprep.mubr.f32.mxu0 0.0
  %9878 = vmatmul.mubr.f32.gmra.mrb[0].mxu0 %v9414
  %v9879 = vpop.f32.mrb[0].mxu0
  %v9880 = vadd.f32 0.0, %v9879
  %v9881 = vpop.f32.mrb[0].mxu0
  %9882 = vmatprep.mubr.f32.mxu0 0.0
  %9883 = vmatmul.mubr.f32.gmra.mrb[0].mxu0 %v9417
  %v9884 = vpop.f32.mrb[0].mxu0
  %v9885 = vadd.f32 0.0, %v9884
  %v9886 = vpop.f32.mrb[0].mxu0
  %9887 = vmatprep.mubr.f32.mxu0 0.0
  %9888 = vmatmul.mubr.f32.gmra.mrb[0].mxu0 %v9420
  %v9889 = vpop.f32.mrb[0].mxu0
  %v9890 = vadd.f32 0.0, %v9889
  %v9891 = vpop.f32.mrb[0].mxu0
  %9892 = vmatprep.mubr.f32.mxu0 0.0
  %9893 = vmatmul.mubr.f32.gmra.mrb[0].mxu0 %v9423
  %v9894 = vpop.f32.mrb[0].mxu0
  %v9895 = vadd.f32 0.0, %v9894
  %v9896 = vpop.f32.mrb[0].mxu0
  %9897 = vmatprep.mubr.f32.mxu0 0.0
  %9898 = vmatmul.mubr.f32.gmra.mrb[0].mxu0 %v9426
  %v9899 = vpop.f32.mrb[0].mxu0
  %v9900 = vadd.f32 0.0, %v9899
  %v9901 = vpop.f32.mrb[0].mxu0
  %9902 = vmatprep.mubr.f32.mxu0 0.0
  %9903 = vmatmul.mubr.f32.gmra.mrb[0].mxu0 %v9429
  %v9904 = vpop.f32.mrb[0].mxu0
  %v9905 = vadd.f32 0.0, %v9904
  %v9906 = vpop.f32.mrb[0].mxu0
  %9907 = vmatprep.mubr.f32.mxu0 0.0
  %9908 = vmatmul.mubr.f32.gmra.mrb[0].mxu0 %v9432
  %v9909 = vpop.f32.mrb[0].mxu0
  %v9910 = vadd.f32 0.0, %v9909
  %v9911 = vpop.f32.mrb[0].mxu0
  %9912 = vmatprep.mubr.f32.mxu0 0.0
  %9913 = vmatmul.mubr.f32.gmra.mrb[0].mxu0 %v9435
  %v9914 = vpop.f32.mrb[0].mxu0
  %v9915 = vadd.f32 0.0, %v9914
  %v9916 = vpop.f32.mrb[0].mxu0
  %9917 = vmatprep.mubr.f32.mxu0 0.0
  %9918 = vmatmul.mubr.f32.gmra.mrb[0].mxu0 %v9438
  %v9919 = vpop.f32.mrb[0].mxu0
  %v9920 = vadd.f32 0.0, %v9919
  %v9921 = vpop.f32.mrb[0].mxu0
  %9922 = vmatprep.mubr.f32.mxu0 0.0
  %9923 = vmatmul.mubr.f32.gmra.mrb[0].mxu0 %v9441
  %v9924 = vpop.f32.mrb[0].mxu0
  %v9925 = vadd.f32 0.0, %v9924
  %v9926 = vpop.f32.mrb[0].mxu0
  %9927 = vmatprep.mubr.f32.mxu0 0.0
  %9928 = vmatmul.mubr.f32.gmra.mrb[0].mxu0 %v9444
  %v9929 = vpop.f32.mrb[0].mxu0
  %v9930 = vadd.f32 0.0, %v9929
  %v9931 = vpop.f32.mrb[0].mxu0
  %9932 = vmatprep.mubr.f32.mxu0 0.0
  %9933 = vmatmul.mubr.f32.gmra.mrb[0].mxu0 %v9447
  %v9934 = vpop.f32.mrb[0].mxu0
  %v9935 = vadd.f32 0.0, %v9934
  %v9936 = vpop.f32.mrb[0].mxu0
  %9937 = vmatprep.mubr.f32.mxu0 0.0
  %9938 = vmatmul.mubr.f32.gmra.mrb[0].mxu0 %v9450
  %v9939 = vpop.f32.mrb[0].mxu0
  %v9940 = vadd.f32 0.0, %v9939
  %v9941 = vpop.f32.mrb[0].mxu0
  %9942 = vmatprep.mubr.f32.mxu0 0.0
  %9943 = vmatmul.mubr.f32.gmra.mrb[0].mxu0 %v9453
  %v9944 = vpop.f32.mrb[0].mxu0
  %v9945 = vadd.f32 0.0, %v9944
  %v9946 = vpop.f32.mrb[0].mxu0
  %9947 = vmatprep.mubr.f32.mxu0 0.0
  %9948 = vmatmul.mubr.f32.gmra.mrb[0].mxu0 %v9456
  %v9949 = vpop.f32.mrb[0].mxu0
  %v9950 = vadd.f32 0.0, %v9949
  %v9951 = vpop.f32.mrb[0].mxu0
  %9952 = vmatprep.mubr.f32.mxu0 0.0
  %9953 = vmatmul.mubr.f32.gmra.mrb[0].mxu0 %v9459
  %v9954 = vpop.f32.mrb[0].mxu0
  %v9955 = vadd.f32 0.0, %v9954
  %v9956 = vpop.f32.mrb[0].mxu0
  %9957 = vmatprep.mubr.f32.mxu0 0.0
  %9958 = vmatmul.mubr.f32.gmra.mrb[0].mxu0 %v9462
  %v9959 = vpop.f32.mrb[0].mxu0
  %v9960 = vadd.f32 0.0, %v9959
  %v9961 = vpop.f32.mrb[0].mxu0
  %9962 = vmatprep.mubr.f32.mxu0 0.0
  %9963 = vmatmul.mubr.f32.gmra.mrb[0].mxu0 %v9465
  %v9964 = vpop.f32.mrb[0].mxu0
  %v9965 = vadd.f32 0.0, %v9964
  %v9966 = vpop.f32.mrb[0].mxu0
  %9967 = vmatprep.mubr.f32.mxu0 0.0
  %9968 = vmatmul.mubr.f32.gmra.mrb[0].mxu0 %v9468
  %v9969 = vpop.f32.mrb[0].mxu0
  %v9970 = vadd.f32 0.0, %v9969
  %v9971 = vpop.f32.mrb[0].mxu0
  %9972 = vmatprep.mubr.f32.mxu0 0.0
  %9973 = vmatmul.mubr.f32.gmra.mrb[0].mxu0 %v9471
  %v9974 = vpop.f32.mrb[0].mxu0
  %v9975 = vadd.f32 0.0, %v9974
  %v9976 = vpop.f32.mrb[0].mxu0
  %9977 = vmatprep.mubr.f32.mxu0 0.0
  %9978 = vmatmul.mubr.f32.gmra.mrb[0].mxu0 %v9474
  %v9979 = vpop.f32.mrb[0].mxu0
  %v9980 = vadd.f32 0.0, %v9979
  %v9981 = vpop.f32.mrb[0].mxu0
  %9982 = vmatprep.mubr.f32.mxu0 0.0
  %9983 = vmatmul.mubr.f32.gmra.mrb[0].mxu0 %v9477
  %v9984 = vpop.f32.mrb[0].mxu0
  %v9985 = vadd.f32 0.0, %v9984
  %v9986 = vpop.f32.mrb[0].mxu0
  %9987 = vmatprep.mubr.f32.mxu0 0.0
  %9988 = vmatmul.mubr.f32.gmra.mrb[0].mxu0 %v9480
  %v9989 = vpop.f32.mrb[0].mxu0
  %v9990 = vadd.f32 0.0, %v9989
  %v9991 = vpop.f32.mrb[0].mxu0
  %9992 = vmatprep.mubr.f32.mxu0 0.0
  %9993 = vmatmul.mubr.f32.gmra.mrb[0].mxu0 %v9483
  %v9994 = vpop.f32.mrb[0].mxu0
  %v9995 = vadd.f32 0.0, %v9994
  %v9996 = vpop.f32.mrb[0].mxu0
  %9997 = vmatprep.mubr.f32.mxu0 0.0
  %9998 = vmatmul.mubr.f32.gmra.mrb[0].mxu0 %v9486
  %v9999 = vpop.f32.mrb[0].mxu0
  %v10000 = vadd.f32 0.0, %v9999
  %v10001 = vpop.f32.mrb[0].mxu0
  %10002 = vmatprep.mubr.f32.mxu0 0.0
  %10003 = vmatmul.mubr.f32.gmra.mrb[0].mxu0 %v9489
  %v10004 = vpop.f32.mrb[0].mxu0
  %v10005 = vadd.f32 0.0, %v10004
  %v10006 = vpop.f32.mrb[0].mxu0
  %10007 = vmatprep.mubr.f32.mxu0 0.0
  %10008 = vmatmul.mubr.f32.gmra.mrb[0].mxu0 %v9492
  %v10009 = vpop.f32.mrb[0].mxu0
  %v10010 = vadd.f32 0.0, %v10009
  %v10011 = vpop.f32.mrb[0].mxu0
  %10012 = vmatprep.mubr.f32.mxu0 0.0
  %10013 = vmatmul.mubr.f32.gmra.mrb[0].mxu0 %v9495
  %v10014 = vpop.f32.mrb[0].mxu0
  %v10015 = vadd.f32 0.0, %v10014
  %v10016 = vpop.f32.mrb[0].mxu0
  %10017 = vmatprep.mubr.f32.mxu0 0.0
  %10018 = vmatmul.mubr.f32.gmra.mrb[0].mxu0 %v9498
  %v10019 = vpop.f32.mrb[0].mxu0
  %v10020 = vadd.f32 0.0, %v10019
  %v10021 = vpop.f32.mrb[0].mxu0
  %10022 = vmatprep.mubr.f32.mxu0 0.0
  %10023 = vmatmul.mubr.f32.gmra.mrb[0].mxu0 %v9501
  %v10024 = vpop.f32.mrb[0].mxu0
  %v10025 = vadd.f32 0.0, %v10024
  %v10026 = vpop.f32.mrb[0].mxu0
  %10027 = vmatprep.mubr.f32.mxu0 0.0
  %10028 = vmatmul.mubr.f32.gmra.mrb[0].mxu0 %v9504
  %v10029 = vpop.f32.mrb[0].mxu0
  %v10030 = vadd.f32 0.0, %v10029
  %v10031 = vpop.f32.mrb[0].mxu0
  %10032 = vmatprep.mubr.f32.mxu0 0.0
  %10033 = vmatmul.mubr.f32.gmra.mrb[0].mxu0 %v9507
  %v10034 = vpop.f32.mrb[0].mxu0
  %v10035 = vadd.f32 0.0, %v10034
  %v10036 = vpop.f32.mrb[0].mxu0
  %10037 = vmatprep.mubr.f32.mxu0 0.0
  %10038 = vmatmul.mubr.f32.gmra.mrb[0].mxu0 %v9510
  %v10039 = vpop.f32.mrb[0].mxu0
  %v10040 = vadd.f32 0.0, %v10039
  %v10041 = vpop.f32.mrb[0].mxu0
  %10042 = vmatprep.mubr.f32.mxu0 0.0
  %10043 = vmatmul.mubr.f32.gmra.mrb[0].mxu0 %v9513
  %v10044 = vpop.f32.mrb[0].mxu0
  %v10045 = vadd.f32 0.0, %v10044
  %v10046 = vpop.f32.mrb[0].mxu0
  %10047 = vmatprep.mubr.f32.mxu0 0.0
  %10048 = vmatmul.mubr.f32.gmra.mrb[0].mxu0 %v9516
  %v10049 = vpop.f32.mrb[0].mxu0
  %v10050 = vadd.f32 0.0, %v10049
  %v10051 = vpop.f32.mrb[0].mxu0
  %10052 = vmatprep.mubr.f32.mxu0 0.0
  %10053 = vmatmul.mubr.f32.gmra.mrb[0].mxu0 %v9519
  %v10054 = vpop.f32.mrb[0].mxu0
  %v10055 = vadd.f32 0.0, %v10054
  %v10056 = vpop.f32.mrb[0].mxu0
  %10057 = vmatprep.mubr.f32.mxu0 0.0
  %10058 = vmatmul.mubr.f32.gmra.mrb[0].mxu0 %v9522
  %v10059 = vpop.f32.mrb[0].mxu0
  %v10060 = vadd.f32 0.0, %v10059
  %v10061 = vpop.f32.mrb[0].mxu0
  %10062 = vmatprep.mubr.f32.mxu0 0.0
  %10063 = vmatmul.mubr.f32.gmra.mrb[0].mxu0 %v9525
  %v10064 = vpop.f32.mrb[0].mxu0
  %v10065 = vadd.f32 0.0, %v10064
  %v10066 = vpop.f32.mrb[0].mxu0
  %10067 = vmatprep.mubr.f32.mxu0 0.0
  %10068 = vmatmul.mubr.f32.gmra.mrb[0].mxu0 %v9528
  %v10069 = vpop.f32.mrb[0].mxu0
  %v10070 = vadd.f32 0.0, %v10069
  %v10071 = vpop.f32.mrb[0].mxu0
  %10072 = vmatprep.mubr.f32.mxu0 0.0
  %10073 = vmatmul.mubr.f32.gmra.mrb[0].mxu0 %v9531
  %v10074 = vpop.f32.mrb[0].mxu0
  %v10075 = vadd.f32 0.0, %v10074
  %v10076 = vpop.f32.mrb[0].mxu0
  %10077 = vmatprep.mubr.f32.mxu0 0.0
  %10078 = vmatmul.mubr.f32.gmra.mrb[0].mxu0 %v9534
  %v10079 = vpop.f32.mrb[0].mxu0
  %v10080 = vadd.f32 0.0, %v10079
  %v10081 = vpop.f32.mrb[0].mxu0
  %10082 = vmatprep.mubr.f32.mxu0 0.0
  %10083 = vmatmul.mubr.f32.gmra.mrb[0].mxu0 %v9537
  %v10084 = vpop.f32.mrb[0].mxu0
  %v10085 = vadd.f32 0.0, %v10084
  %v10086 = vpop.f32.mrb[0].mxu0
  %10087 = vmatprep.mubr.f32.mxu0 0.0
  %10088 = vmatmul.mubr.f32.gmra.mrb[0].mxu0 %v9540
  %v10089 = vpop.f32.mrb[0].mxu0
  %v10090 = vadd.f32 0.0, %v10089
  %v10091 = vpop.f32.mrb[0].mxu0
  %10092 = vmatprep.mubr.f32.mxu0 0.0
  %10093 = vmatmul.mubr.f32.gmra.mrb[0].mxu0 %v9543
  %v10094 = vpop.f32.mrb[0].mxu0
  %v10095 = vadd.f32 0.0, %v10094
  %v10096 = vpop.f32.mrb[0].mxu0
  %10097 = vmatprep.mubr.f32.mxu0 0.0
  %10098 = vmatmul.mubr.f32.gmra.mrb[0].mxu0 %v9546
  %v10099 = vpop.f32.mrb[0].mxu0
  %v10100 = vadd.f32 0.0, %v10099
  %v10101 = vpop.f32.mrb[0].mxu0
  %10102 = vdwg.mxu0
  %v10103 = vadd.f32 %v9055, %v9615
  %v10104 = vadd.f32 %v9056, %v9620
  %v10105 = vadd.f32 %v9057, %v9625
  %v10106 = vadd.f32 %v9058, %v9630
  %v10107 = vadd.f32 %v9059, %v9635
  %v10108 = vadd.f32 %v9060, %v9640
  %v10109 = vadd.f32 %v9061, %v9645
  %v10110 = vadd.f32 %v9062, %v9650
  %v10111 = vadd.f32 %v9063, %v9655
  %v10112 = vadd.f32 %v9064, %v9660
  %v10113 = vadd.f32 %v9065, %v9665
  %v10114 = vadd.f32 %v9066, %v9670
  %v10115 = vadd.f32 %v9067, %v9675
  %v10116 = vadd.f32 %v9068, %v9680
  %v10117 = vadd.f32 %v9069, %v9685
  %v10118 = vadd.f32 %v9070, %v9690
  %v10119 = vadd.f32 %v9071, %v9695
  %v10120 = vadd.f32 %v9072, %v9700
  %v10121 = vadd.f32 %v9073, %v9705
  %v10122 = vadd.f32 %v9074, %v9710
  %v10123 = vadd.f32 %v9075, %v9715
  %v10124 = vadd.f32 %v9076, %v9720
  %v10125 = vadd.f32 %v9077, %v9725
  %v10126 = vadd.f32 %v9078, %v9730
  %v10127 = vadd.f32 %v9079, %v9735
  %v10128 = vadd.f32 %v9080, %v9740
  %v10129 = vadd.f32 %v9081, %v9745
  %v10130 = vadd.f32 %v9082, %v9750
  %v10131 = vadd.f32 %v9083, %v9755
  %v10132 = vadd.f32 %v9084, %v9760
  %v10133 = vadd.f32 %v9085, %v9765
  %v10134 = vadd.f32 %v9086, %v9770
  %v10135 = vadd.f32 %v9087, %v9775
  %v10136 = vadd.f32 %v9088, %v9780
  %v10137 = vadd.f32 %v9089, %v9785
  %v10138 = vadd.f32 %v9090, %v9790
  %v10139 = vadd.f32 %v9091, %v9795
  %v10140 = vadd.f32 %v9092, %v9800
  %v10141 = vadd.f32 %v9093, %v9805
  %v10142 = vadd.f32 %v9094, %v9810
  %v10143 = vadd.f32 %v9095, %v9815
  %v10144 = vadd.f32 %v9096, %v9820
  %v10145 = vadd.f32 %v9097, %v9825
  %v10146 = vadd.f32 %v9098, %v9830
  %v10147 = vadd.f32 %v9099, %v9835
  %v10148 = vadd.f32 %v9100, %v9840
  %v10149 = vadd.f32 %v9101, %v9845
  %v10150 = vadd.f32 %v9102, %v9850
  %v10151 = vadd.f32 %v9103, %v9855
  %v10152 = vadd.f32 %v9104, %v9860
  %v10153 = vadd.f32 %v9105, %v9865
  %v10154 = vadd.f32 %v9106, %v9870
  %v10155 = vadd.f32 %v9107, %v9875
  %v10156 = vadd.f32 %v9108, %v9880
  %v10157 = vadd.f32 %v9109, %v9885
  %v10158 = vadd.f32 %v9110, %v9890
  %v10159 = vadd.f32 %v9111, %v9895
  %v10160 = vadd.f32 %v9112, %v9900
  %v10161 = vadd.f32 %v9113, %v9905
  %v10162 = vadd.f32 %v9114, %v9910
  %v10163 = vadd.f32 %v9115, %v9915
  %v10164 = vadd.f32 %v9116, %v9920
  %v10165 = vadd.f32 %v9117, %v9925
  %v10166 = vadd.f32 %v9118, %v9930
  %v10167 = vadd.f32 %v9119, %v9935
  %v10168 = vadd.f32 %v9120, %v9940
  %v10169 = vadd.f32 %v9121, %v9945
  %v10170 = vadd.f32 %v9122, %v9950
  %v10171 = vadd.f32 %v9123, %v9955
  %v10172 = vadd.f32 %v9124, %v9960
  %v10173 = vadd.f32 %v9125, %v9965
  %v10174 = vadd.f32 %v9126, %v9970
  %v10175 = vadd.f32 %v9127, %v9975
  %v10176 = vadd.f32 %v9128, %v9980
  %v10177 = vadd.f32 %v9129, %v9985
  %v10178 = vadd.f32 %v9130, %v9990
  %v10179 = vadd.f32 %v9131, %v9995
  %v10180 = vadd.f32 %v9132, %v10000
  %v10181 = vadd.f32 %v9133, %v10005
  %v10182 = vadd.f32 %v9134, %v10010
  %v10183 = vadd.f32 %v9135, %v10015
  %v10184 = vadd.f32 %v9136, %v10020
  %v10185 = vadd.f32 %v9137, %v10025
  %v10186 = vadd.f32 %v9138, %v10030
  %v10187 = vadd.f32 %v9139, %v10035
  %v10188 = vadd.f32 %v9140, %v10040
  %v10189 = vadd.f32 %v9141, %v10045
  %v10190 = vadd.f32 %v9142, %v10050
  %v10191 = vadd.f32 %v9143, %v10055
  %v10192 = vadd.f32 %v9144, %v10060
  %v10193 = vadd.f32 %v9145, %v10065
  %v10194 = vadd.f32 %v9146, %v10070
  %v10195 = vadd.f32 %v9147, %v10075
  %v10196 = vadd.f32 %v9148, %v10080
  %v10197 = vadd.f32 %v9149, %v10085
  %v10198 = vadd.f32 %v9150, %v10090
  %v10199 = vadd.f32 %v9151, %v10095
  %v10200 = vadd.f32 %v9152, %v10100
  %v10201 = vld [vmem:[#allocation3 + $0x3c] sm:$0xff]
  %v10202 = vld [vmem:[#allocation3 + $0x44] sm:$0xff]
  %v10203 = vld [vmem:[#allocation3 + $0x4c] sm:$0xff]
  %v10204 = vld [vmem:[#allocation3 + $0x54] sm:$0xff]
  %v10205 = vld [vmem:[#allocation3 + $0x5c] sm:$0xff]
  %v10206 = vld [vmem:[#allocation3 + $0x64] sm:$0xff]
  %v10207 = vld [vmem:[#allocation3 + $0x6c] sm:$0xff]
  %v10208 = vld [vmem:[#allocation3 + $0x74] sm:$0xff]
  %v10209 = vld [vmem:[#allocation3 + $0x7c] sm:$0xff]
  %v10210 = vld [vmem:[#allocation3 + $0x84] sm:$0xff]
  %v10211 = vld [vmem:[#allocation3 + $0x8c] sm:$0xff]
  %v10212 = vld [vmem:[#allocation3 + $0x94] sm:$0xff]
  %v10213 = vld [vmem:[#allocation3 + $0x9c] sm:$0xff]
  %v10214 = vld [vmem:[#allocation3 + $0xa4] sm:$0xff]
  %v10215 = vld [vmem:[#allocation3 + $0xac] sm:$0xff]
  %v10216 = vld [vmem:[#allocation3 + $0xb4] sm:$0xff]
  %v10217 = vld [vmem:[#allocation3 + $0xbc] sm:$0xff]
  %v10218 = vld [vmem:[#allocation3 + $0xc4] sm:$0xff]
  %v10219 = vld [vmem:[#allocation3 + $0xcc] sm:$0xff]
  %v10220 = vld [vmem:[#allocation3 + $0xd4] sm:$0xff]
  %v10221 = vld [vmem:[#allocation3 + $0xdc] sm:$0xff]
  %v10222 = vld [vmem:[#allocation3 + $0xe4] sm:$0xff]
  %v10223 = vld [vmem:[#allocation3 + $0xec] sm:$0xff]
  %v10224 = vld [vmem:[#allocation3 + $0xf4] sm:$0xff]
  %v10225 = vld [vmem:[#allocation3 + $0xfc] sm:$0xff]
  %v10226 = vld [vmem:[#allocation3 + $0x104] sm:$0xff]
  %v10227 = vld [vmem:[#allocation3 + $0x10c] sm:$0xff]
  %v10228 = vld [vmem:[#allocation3 + $0x114] sm:$0xff]
  %v10229 = vld [vmem:[#allocation3 + $0x11c] sm:$0xff]
  %v10230 = vld [vmem:[#allocation3 + $0x124] sm:$0xff]
  %v10231 = vld [vmem:[#allocation3 + $0x12c] sm:$0xff]
  %v10232 = vld [vmem:[#allocation3 + $0x134] sm:$0xff]
  %v10233 = vld [vmem:[#allocation3 + $0x13c] sm:$0xff]
  %v10234 = vld [vmem:[#allocation3 + $0x144] sm:$0xff]
  %v10235 = vld [vmem:[#allocation3 + $0x14c] sm:$0xff]
  %v10236 = vld [vmem:[#allocation3 + $0x154] sm:$0xff]
  %v10237 = vld [vmem:[#allocation3 + $0x15c] sm:$0xff]
  %v10238 = vld [vmem:[#allocation3 + $0x164] sm:$0xff]
  %v10239 = vld [vmem:[#allocation3 + $0x16c] sm:$0xff]
  %v10240 = vld [vmem:[#allocation3 + $0x174] sm:$0xff]
  %v10241 = vld [vmem:[#allocation3 + $0x17c] sm:$0xff]
  %v10242 = vld [vmem:[#allocation3 + $0x184] sm:$0xff]
  %v10243 = vld [vmem:[#allocation3 + $0x18c] sm:$0xff]
  %v10244 = vld [vmem:[#allocation3 + $0x194] sm:$0xff]
  %v10245 = vld [vmem:[#allocation3 + $0x19c] sm:$0xff]
  %v10246 = vld [vmem:[#allocation3 + $0x1a4] sm:$0xff]
  %v10247 = vld [vmem:[#allocation3 + $0x1ac] sm:$0xff]
  %v10248 = vld [vmem:[#allocation3 + $0x1b4] sm:$0xff]
  %v10249 = vld [vmem:[#allocation3 + $0x1bc] sm:$0xff]
  %v10250 = vld [vmem:[#allocation3 + $0x1c4] sm:$0xff]
  %v10251 = vld [vmem:[#allocation3 + $0x1cc] sm:$0xff]
  %v10252 = vld [vmem:[#allocation3 + $0x1d4] sm:$0xff]
  %v10253 = vld [vmem:[#allocation3 + $0x1dc] sm:$0xff]
  %v10254 = vld [vmem:[#allocation3 + $0x1e4] sm:$0xff]
  %v10255 = vld [vmem:[#allocation3 + $0x1ec] sm:$0xff]
  %v10256 = vld [vmem:[#allocation3 + $0x1f4] sm:$0xff]
  %v10257 = vld [vmem:[#allocation3 + $0x1fc] sm:$0xff]
  %v10258 = vld [vmem:[#allocation3 + $0x204] sm:$0xff]
  %v10259 = vld [vmem:[#allocation3 + $0x20c] sm:$0xff]
  %v10260 = vld [vmem:[#allocation3 + $0x214] sm:$0xff]
  %v10261 = vld [vmem:[#allocation3 + $0x21c] sm:$0xff]
  %v10262 = vld [vmem:[#allocation3 + $0x224] sm:$0xff]
  %v10263 = vld [vmem:[#allocation3 + $0x22c] sm:$0xff]
  %v10264 = vld [vmem:[#allocation3 + $0x234] sm:$0xff]
  %v10265 = vld [vmem:[#allocation3 + $0x23c] sm:$0xff]
  %v10266 = vld [vmem:[#allocation3 + $0x244] sm:$0xff]
  %v10267 = vld [vmem:[#allocation3 + $0x24c] sm:$0xff]
  %v10268 = vld [vmem:[#allocation3 + $0x254] sm:$0xff]
  %v10269 = vld [vmem:[#allocation3 + $0x25c] sm:$0xff]
  %v10270 = vld [vmem:[#allocation3 + $0x264] sm:$0xff]
  %v10271 = vld [vmem:[#allocation3 + $0x26c] sm:$0xff]
  %v10272 = vld [vmem:[#allocation3 + $0x274] sm:$0xff]
  %v10273 = vld [vmem:[#allocation3 + $0x27c] sm:$0xff]
  %v10274 = vld [vmem:[#allocation3 + $0x284] sm:$0xff]
  %v10275 = vld [vmem:[#allocation3 + $0x28c] sm:$0xff]
  %v10276 = vld [vmem:[#allocation3 + $0x294] sm:$0xff]
  %v10277 = vld [vmem:[#allocation3 + $0x29c] sm:$0xff]
  %v10278 = vld [vmem:[#allocation3 + $0x2a4] sm:$0xff]
  %v10279 = vld [vmem:[#allocation3 + $0x2ac] sm:$0xff]
  %v10280 = vld [vmem:[#allocation3 + $0x2b4] sm:$0xff]
  %v10281 = vld [vmem:[#allocation3 + $0x2bc] sm:$0xff]
  %v10282 = vld [vmem:[#allocation3 + $0x2c4] sm:$0xff]
  %v10283 = vld [vmem:[#allocation3 + $0x2cc] sm:$0xff]
  %v10284 = vld [vmem:[#allocation3 + $0x2d4] sm:$0xff]
  %v10285 = vld [vmem:[#allocation3 + $0x2dc] sm:$0xff]
  %v10286 = vld [vmem:[#allocation3 + $0x2e4] sm:$0xff]
  %v10287 = vld [vmem:[#allocation3 + $0x2ec] sm:$0xff]
  %v10288 = vld [vmem:[#allocation3 + $0x2f4] sm:$0xff]
  %v10289 = vld [vmem:[#allocation3 + $0x2fc] sm:$0xff]
  %v10290 = vld [vmem:[#allocation3 + $0x304] sm:$0xff]
  %v10291 = vld [vmem:[#allocation3 + $0x30c] sm:$0xff]
  %v10292 = vld [vmem:[#allocation3 + $0x314] sm:$0xff]
  %v10293 = vld [vmem:[#allocation3 + $0x31c] sm:$0xff]
  %v10294 = vld [vmem:[#allocation3 + $0x324] sm:$0xff]
  %v10295 = vld [vmem:[#allocation3 + $0x32c] sm:$0xff]
  %v10296 = vld [vmem:[#allocation3 + $0x334] sm:$0xff]
  %v10297 = vld [vmem:[#allocation3 + $0x33c] sm:$0xff]
  %v10298 = vld [vmem:[#allocation3 + $0x344] sm:$0xff]
  %s10299 = scalar_lea.vmem %s3, 128
  %v10300 = vld [vmem:[%s10299] sm:$0xff]
  %v10301 = vld [vmem:[%s10299 + $0x8] sm:$0xff]
  %v10303 = vsel %vm46, %v10201, 0
  %v10306 = vsel %vm46, %v10202, 0
  %v10309 = vsel %vm46, %v10203, 0
  %v10312 = vsel %vm46, %v10204, 0
  %v10315 = vsel %vm46, %v10205, 0
  %v10318 = vsel %vm46, %v10206, 0
  %v10321 = vsel %vm46, %v10207, 0
  %v10324 = vsel %vm46, %v10208, 0
  %v10327 = vsel %vm46, %v10209, 0
  %v10330 = vsel %vm46, %v10210, 0
  %v10333 = vsel %vm46, %v10211, 0
  %v10336 = vsel %vm46, %v10212, 0
  %v10339 = vsel %vm46, %v10213, 0
  %v10342 = vsel %vm46, %v10214, 0
  %v10345 = vsel %vm46, %v10215, 0
  %v10348 = vsel %vm46, %v10216, 0
  %v10351 = vsel %vm46, %v10217, 0
  %v10354 = vsel %vm46, %v10218, 0
  %v10357 = vsel %vm46, %v10219, 0
  %v10360 = vsel %vm46, %v10220, 0
  %v10363 = vsel %vm46, %v10221, 0
  %v10366 = vsel %vm46, %v10222, 0
  %v10369 = vsel %vm46, %v10223, 0
  %v10372 = vsel %vm46, %v10224, 0
  %v10375 = vsel %vm46, %v10225, 0
  %v10378 = vsel %vm46, %v10226, 0
  %v10381 = vsel %vm46, %v10227, 0
  %v10384 = vsel %vm46, %v10228, 0
  %v10387 = vsel %vm46, %v10229, 0
  %v10390 = vsel %vm46, %v10230, 0
  %v10393 = vsel %vm46, %v10231, 0
  %v10396 = vsel %vm46, %v10232, 0
  %v10399 = vsel %vm46, %v10233, 0
  %v10402 = vsel %vm46, %v10234, 0
  %v10405 = vsel %vm46, %v10235, 0
  %v10408 = vsel %vm46, %v10236, 0
  %v10411 = vsel %vm46, %v10237, 0
  %v10414 = vsel %vm46, %v10238, 0
  %v10417 = vsel %vm46, %v10239, 0
  %v10420 = vsel %vm46, %v10240, 0
  %v10423 = vsel %vm46, %v10241, 0
  %v10426 = vsel %vm46, %v10242, 0
  %v10429 = vsel %vm46, %v10243, 0
  %v10432 = vsel %vm46, %v10244, 0
  %v10435 = vsel %vm46, %v10245, 0
  %v10438 = vsel %vm46, %v10246, 0
  %v10441 = vsel %vm46, %v10247, 0
  %v10444 = vsel %vm46, %v10248, 0
  %v10447 = vsel %vm46, %v10249, 0
  %v10450 = vsel %vm46, %v10250, 0
  %v10453 = vsel %vm46, %v10251, 0
  %v10456 = vsel %vm46, %v10252, 0
  %v10459 = vsel %vm46, %v10253, 0
  %v10462 = vsel %vm46, %v10254, 0
  %v10465 = vsel %vm46, %v10255, 0
  %v10468 = vsel %vm46, %v10256, 0
  %v10471 = vsel %vm46, %v10257, 0
  %v10474 = vsel %vm46, %v10258, 0
  %v10477 = vsel %vm46, %v10259, 0
  %v10480 = vsel %vm46, %v10260, 0
  %v10483 = vsel %vm46, %v10261, 0
  %v10486 = vsel %vm46, %v10262, 0
  %v10489 = vsel %vm46, %v10263, 0
  %v10492 = vsel %vm46, %v10264, 0
  %v10495 = vsel %vm46, %v10265, 0
  %v10498 = vsel %vm46, %v10266, 0
  %v10501 = vsel %vm46, %v10267, 0
  %v10504 = vsel %vm46, %v10268, 0
  %v10507 = vsel %vm46, %v10269, 0
  %v10510 = vsel %vm46, %v10270, 0
  %v10513 = vsel %vm46, %v10271, 0
  %v10516 = vsel %vm46, %v10272, 0
  %v10519 = vsel %vm46, %v10273, 0
  %v10522 = vsel %vm46, %v10274, 0
  %v10525 = vsel %vm46, %v10275, 0
  %v10528 = vsel %vm46, %v10276, 0
  %v10531 = vsel %vm46, %v10277, 0
  %v10534 = vsel %vm46, %v10278, 0
  %v10537 = vsel %vm46, %v10279, 0
  %v10540 = vsel %vm46, %v10280, 0
  %v10543 = vsel %vm46, %v10281, 0
  %v10546 = vsel %vm46, %v10282, 0
  %v10549 = vsel %vm46, %v10283, 0
  %v10552 = vsel %vm46, %v10284, 0
  %v10555 = vsel %vm46, %v10285, 0
  %v10558 = vsel %vm46, %v10286, 0
  %v10561 = vsel %vm46, %v10287, 0
  %v10564 = vsel %vm46, %v10288, 0
  %v10567 = vsel %vm46, %v10289, 0
  %v10570 = vsel %vm46, %v10290, 0
  %v10573 = vsel %vm46, %v10291, 0
  %v10576 = vsel %vm46, %v10292, 0
  %v10579 = vsel %vm46, %v10293, 0
  %v10582 = vsel %vm46, %v10294, 0
  %v10585 = vsel %vm46, %v10295, 0
  %v10588 = vsel %vm46, %v10296, 0
  %v10591 = vsel %vm46, %v10297, 0
  %v10594 = vsel %vm46, %v10298, 0
  %10596 = vmatprep.subr.mxu0 0.0
  %10597 = vmatpush1.msra.mxu0 %v10300
  %10598 = vmatprep.subr.mxu0 0.0
  %10599 = vmatpush1.msra.mxu0 %v10301
  %10600 = vmatprep.subr.mxu0 0.0
  %10601 = vmatpush1.msra.mxu0 0.0
  %10602 = vmatprep.subr.mxu0 0.0
  %10603 = vmatpush1.msra.mxu0 0.0
  %10604 = vmatprep.subr.mxu0 0.0
  %10605 = vmatpush1.msra.mxu0 0.0
  %10606 = vmatprep.subr.mxu0 0.0
  %10607 = vmatpush1.msra.mxu0 0.0
  %10608 = vmatprep.subr.mxu0 0.0
  %10609 = vmatpush1.msra.mxu0 0.0
  %10610 = vmatprep.subr.mxu0 0.0
  %10611 = vmatpush1.msra.mxu0 0.0
  %10612 = vmatprep.subr.mxu0 0.0
  %10613 = vmatpush1.msra.mxu0 0.0
  %10614 = vmatprep.subr.mxu0 0.0
  %10615 = vmatpush1.msra.mxu0 0.0
  %10616 = vmatprep.subr.mxu0 0.0
  %10617 = vmatpush1.msra.mxu0 0.0
  %10618 = vmatprep.subr.mxu0 0.0
  %10619 = vmatpush1.msra.mxu0 0.0
  %10620 = vmatprep.subr.mxu0 0.0
  %10621 = vmatpush1.msra.mxu0 0.0
  %10622 = vmatprep.subr.mxu0 0.0
  %10623 = vmatpush1.msra.mxu0 0.0
  %10624 = vmatprep.subr.mxu0 0.0
  %10625 = vmatpush1.msra.mxu0 0.0
  %10626 = vmatprep.subr.mxu0 0.0
  %10627 = vmatpush1.msra.mxu0 0.0
  %10628 = vmatprep.subr.mxu0 0.0
  %10629 = vmatpush1.msra.mxu0 0.0
  %10630 = vmatprep.subr.mxu0 0.0
  %10631 = vmatpush1.msra.mxu0 0.0
  %10632 = vmatprep.subr.mxu0 0.0
  %10633 = vmatpush1.msra.mxu0 0.0
  %10634 = vmatprep.subr.mxu0 0.0
  %10635 = vmatpush1.msra.mxu0 0.0
  %10636 = vmatprep.subr.mxu0 0.0
  %10637 = vmatpush1.msra.mxu0 0.0
  %10638 = vmatprep.subr.mxu0 0.0
  %10639 = vmatpush1.msra.mxu0 0.0
  %10640 = vmatprep.subr.mxu0 0.0
  %10641 = vmatpush1.msra.mxu0 0.0
  %10642 = vmatprep.subr.mxu0 0.0
  %10643 = vmatpush1.msra.mxu0 0.0
  %10644 = vmatprep.subr.mxu0 0.0
  %10645 = vmatpush1.msra.mxu0 0.0
  %10646 = vmatprep.subr.mxu0 0.0
  %10647 = vmatpush1.msra.mxu0 0.0
  %10648 = vmatprep.subr.mxu0 0.0
  %10649 = vmatpush1.msra.mxu0 0.0
  %10650 = vmatprep.subr.mxu0 0.0
  %10651 = vmatpush1.msra.mxu0 0.0
  %10652 = vmatprep.subr.mxu0 0.0
  %10653 = vmatpush1.msra.mxu0 0.0
  %10654 = vmatprep.subr.mxu0 0.0
  %10655 = vmatpush1.msra.mxu0 0.0
  %10656 = vmatprep.subr.mxu0 0.0
  %10657 = vmatpush1.msra.mxu0 0.0
  %10658 = vmatprep.subr.mxu0 0.0
  %10659 = vmatpush1.msra.mxu0 0.0
  %10660 = vmatprep.mubr.f32.mxu0 0.0
  %10661 = vmatmul.mubr.f32.gmra.mrb[0].mxu0 %v10303
  %v10662 = vpop.f32.mrb[0].mxu0
  %v10663 = vadd.f32 0.0, %v10662
  %v10664 = vpop.f32.mrb[0].mxu0
  %10665 = vmatprep.mubr.f32.mxu0 0.0
  %10666 = vmatmul.mubr.f32.gmra.mrb[0].mxu0 %v10306
  %v10667 = vpop.f32.mrb[0].mxu0
  %v10668 = vadd.f32 0.0, %v10667
  %v10669 = vpop.f32.mrb[0].mxu0
  %10670 = vmatprep.mubr.f32.mxu0 0.0
  %10671 = vmatmul.mubr.f32.gmra.mrb[0].mxu0 %v10309
  %v10672 = vpop.f32.mrb[0].mxu0
  %v10673 = vadd.f32 0.0, %v10672
  %v10674 = vpop.f32.mrb[0].mxu0
  %10675 = vmatprep.mubr.f32.mxu0 0.0
  %10676 = vmatmul.mubr.f32.gmra.mrb[0].mxu0 %v10312
  %v10677 = vpop.f32.mrb[0].mxu0
  %v10678 = vadd.f32 0.0, %v10677
  %v10679 = vpop.f32.mrb[0].mxu0
  %10680 = vmatprep.mubr.f32.mxu0 0.0
  %10681 = vmatmul.mubr.f32.gmra.mrb[0].mxu0 %v10315
  %v10682 = vpop.f32.mrb[0].mxu0
  %v10683 = vadd.f32 0.0, %v10682
  %v10684 = vpop.f32.mrb[0].mxu0
  %10685 = vmatprep.mubr.f32.mxu0 0.0
  %10686 = vmatmul.mubr.f32.gmra.mrb[0].mxu0 %v10318
  %v10687 = vpop.f32.mrb[0].mxu0
  %v10688 = vadd.f32 0.0, %v10687
  %v10689 = vpop.f32.mrb[0].mxu0
  %10690 = vmatprep.mubr.f32.mxu0 0.0
  %10691 = vmatmul.mubr.f32.gmra.mrb[0].mxu0 %v10321
  %v10692 = vpop.f32.mrb[0].mxu0
  %v10693 = vadd.f32 0.0, %v10692
  %v10694 = vpop.f32.mrb[0].mxu0
  %10695 = vmatprep.mubr.f32.mxu0 0.0
  %10696 = vmatmul.mubr.f32.gmra.mrb[0].mxu0 %v10324
  %v10697 = vpop.f32.mrb[0].mxu0
  %v10698 = vadd.f32 0.0, %v10697
  %v10699 = vpop.f32.mrb[0].mxu0
  %10700 = vmatprep.mubr.f32.mxu0 0.0
  %10701 = vmatmul.mubr.f32.gmra.mrb[0].mxu0 %v10327
  %v10702 = vpop.f32.mrb[0].mxu0
  %v10703 = vadd.f32 0.0, %v10702
  %v10704 = vpop.f32.mrb[0].mxu0
  %10705 = vmatprep.mubr.f32.mxu0 0.0
  %10706 = vmatmul.mubr.f32.gmra.mrb[0].mxu0 %v10330
  %v10707 = vpop.f32.mrb[0].mxu0
  %v10708 = vadd.f32 0.0, %v10707
  %v10709 = vpop.f32.mrb[0].mxu0
  %10710 = vmatprep.mubr.f32.mxu0 0.0
  %10711 = vmatmul.mubr.f32.gmra.mrb[0].mxu0 %v10333
  %v10712 = vpop.f32.mrb[0].mxu0
  %v10713 = vadd.f32 0.0, %v10712
  %v10714 = vpop.f32.mrb[0].mxu0
  %10715 = vmatprep.mubr.f32.mxu0 0.0
  %10716 = vmatmul.mubr.f32.gmra.mrb[0].mxu0 %v10336
  %v10717 = vpop.f32.mrb[0].mxu0
  %v10718 = vadd.f32 0.0, %v10717
  %v10719 = vpop.f32.mrb[0].mxu0
  %10720 = vmatprep.mubr.f32.mxu0 0.0
  %10721 = vmatmul.mubr.f32.gmra.mrb[0].mxu0 %v10339
  %v10722 = vpop.f32.mrb[0].mxu0
  %v10723 = vadd.f32 0.0, %v10722
  %v10724 = vpop.f32.mrb[0].mxu0
  %10725 = vmatprep.mubr.f32.mxu0 0.0
  %10726 = vmatmul.mubr.f32.gmra.mrb[0].mxu0 %v10342
  %v10727 = vpop.f32.mrb[0].mxu0
  %v10728 = vadd.f32 0.0, %v10727
  %v10729 = vpop.f32.mrb[0].mxu0
  %10730 = vmatprep.mubr.f32.mxu0 0.0
  %10731 = vmatmul.mubr.f32.gmra.mrb[0].mxu0 %v10345
  %v10732 = vpop.f32.mrb[0].mxu0
  %v10733 = vadd.f32 0.0, %v10732
  %v10734 = vpop.f32.mrb[0].mxu0
  %10735 = vmatprep.mubr.f32.mxu0 0.0
  %10736 = vmatmul.mubr.f32.gmra.mrb[0].mxu0 %v10348
  %v10737 = vpop.f32.mrb[0].mxu0
  %v10738 = vadd.f32 0.0, %v10737
  %v10739 = vpop.f32.mrb[0].mxu0
  %10740 = vmatprep.mubr.f32.mxu0 0.0
  %10741 = vmatmul.mubr.f32.gmra.mrb[0].mxu0 %v10351
  %v10742 = vpop.f32.mrb[0].mxu0
  %v10743 = vadd.f32 0.0, %v10742
  %v10744 = vpop.f32.mrb[0].mxu0
  %10745 = vmatprep.mubr.f32.mxu0 0.0
  %10746 = vmatmul.mubr.f32.gmra.mrb[0].mxu0 %v10354
  %v10747 = vpop.f32.mrb[0].mxu0
  %v10748 = vadd.f32 0.0, %v10747
  %v10749 = vpop.f32.mrb[0].mxu0
  %10750 = vmatprep.mubr.f32.mxu0 0.0
  %10751 = vmatmul.mubr.f32.gmra.mrb[0].mxu0 %v10357
  %v10752 = vpop.f32.mrb[0].mxu0
  %v10753 = vadd.f32 0.0, %v10752
  %v10754 = vpop.f32.mrb[0].mxu0
  %10755 = vmatprep.mubr.f32.mxu0 0.0
  %10756 = vmatmul.mubr.f32.gmra.mrb[0].mxu0 %v10360
  %v10757 = vpop.f32.mrb[0].mxu0
  %v10758 = vadd.f32 0.0, %v10757
  %v10759 = vpop.f32.mrb[0].mxu0
  %10760 = vmatprep.mubr.f32.mxu0 0.0
  %10761 = vmatmul.mubr.f32.gmra.mrb[0].mxu0 %v10363
  %v10762 = vpop.f32.mrb[0].mxu0
  %v10763 = vadd.f32 0.0, %v10762
  %v10764 = vpop.f32.mrb[0].mxu0
  %10765 = vmatprep.mubr.f32.mxu0 0.0
  %10766 = vmatmul.mubr.f32.gmra.mrb[0].mxu0 %v10366
  %v10767 = vpop.f32.mrb[0].mxu0
  %v10768 = vadd.f32 0.0, %v10767
  %v10769 = vpop.f32.mrb[0].mxu0
  %10770 = vmatprep.mubr.f32.mxu0 0.0
  %10771 = vmatmul.mubr.f32.gmra.mrb[0].mxu0 %v10369
  %v10772 = vpop.f32.mrb[0].mxu0
  %v10773 = vadd.f32 0.0, %v10772
  %v10774 = vpop.f32.mrb[0].mxu0
  %10775 = vmatprep.mubr.f32.mxu0 0.0
  %10776 = vmatmul.mubr.f32.gmra.mrb[0].mxu0 %v10372
  %v10777 = vpop.f32.mrb[0].mxu0
  %v10778 = vadd.f32 0.0, %v10777
  %v10779 = vpop.f32.mrb[0].mxu0
  %10780 = vmatprep.mubr.f32.mxu0 0.0
  %10781 = vmatmul.mubr.f32.gmra.mrb[0].mxu0 %v10375
  %v10782 = vpop.f32.mrb[0].mxu0
  %v10783 = vadd.f32 0.0, %v10782
  %v10784 = vpop.f32.mrb[0].mxu0
  %10785 = vmatprep.mubr.f32.mxu0 0.0
  %10786 = vmatmul.mubr.f32.gmra.mrb[0].mxu0 %v10378
  %v10787 = vpop.f32.mrb[0].mxu0
  %v10788 = vadd.f32 0.0, %v10787
  %v10789 = vpop.f32.mrb[0].mxu0
  %10790 = vmatprep.mubr.f32.mxu0 0.0
  %10791 = vmatmul.mubr.f32.gmra.mrb[0].mxu0 %v10381
  %v10792 = vpop.f32.mrb[0].mxu0
  %v10793 = vadd.f32 0.0, %v10792
  %v10794 = vpop.f32.mrb[0].mxu0
  %10795 = vmatprep.mubr.f32.mxu0 0.0
  %10796 = vmatmul.mubr.f32.gmra.mrb[0].mxu0 %v10384
  %v10797 = vpop.f32.mrb[0].mxu0
  %v10798 = vadd.f32 0.0, %v10797
  %v10799 = vpop.f32.mrb[0].mxu0
  %10800 = vmatprep.mubr.f32.mxu0 0.0
  %10801 = vmatmul.mubr.f32.gmra.mrb[0].mxu0 %v10387
  %v10802 = vpop.f32.mrb[0].mxu0
  %v10803 = vadd.f32 0.0, %v10802
  %v10804 = vpop.f32.mrb[0].mxu0
  %10805 = vmatprep.mubr.f32.mxu0 0.0
  %10806 = vmatmul.mubr.f32.gmra.mrb[0].mxu0 %v10390
  %v10807 = vpop.f32.mrb[0].mxu0
  %v10808 = vadd.f32 0.0, %v10807
  %v10809 = vpop.f32.mrb[0].mxu0
  %10810 = vmatprep.mubr.f32.mxu0 0.0
  %10811 = vmatmul.mubr.f32.gmra.mrb[0].mxu0 %v10393
  %v10812 = vpop.f32.mrb[0].mxu0
  %v10813 = vadd.f32 0.0, %v10812
  %v10814 = vpop.f32.mrb[0].mxu0
  %10815 = vmatprep.mubr.f32.mxu0 0.0
  %10816 = vmatmul.mubr.f32.gmra.mrb[0].mxu0 %v10396
  %v10817 = vpop.f32.mrb[0].mxu0
  %v10818 = vadd.f32 0.0, %v10817
  %v10819 = vpop.f32.mrb[0].mxu0
  %10820 = vmatprep.mubr.f32.mxu0 0.0
  %10821 = vmatmul.mubr.f32.gmra.mrb[0].mxu0 %v10399
  %v10822 = vpop.f32.mrb[0].mxu0
  %v10823 = vadd.f32 0.0, %v10822
  %v10824 = vpop.f32.mrb[0].mxu0
  %10825 = vmatprep.mubr.f32.mxu0 0.0
  %10826 = vmatmul.mubr.f32.gmra.mrb[0].mxu0 %v10402
  %v10827 = vpop.f32.mrb[0].mxu0
  %v10828 = vadd.f32 0.0, %v10827
  %v10829 = vpop.f32.mrb[0].mxu0
  %10830 = vmatprep.mubr.f32.mxu0 0.0
  %10831 = vmatmul.mubr.f32.gmra.mrb[0].mxu0 %v10405
  %v10832 = vpop.f32.mrb[0].mxu0
  %v10833 = vadd.f32 0.0, %v10832
  %v10834 = vpop.f32.mrb[0].mxu0
  %10835 = vmatprep.mubr.f32.mxu0 0.0
  %10836 = vmatmul.mubr.f32.gmra.mrb[0].mxu0 %v10408
  %v10837 = vpop.f32.mrb[0].mxu0
  %v10838 = vadd.f32 0.0, %v10837
  %v10839 = vpop.f32.mrb[0].mxu0
  %10840 = vmatprep.mubr.f32.mxu0 0.0
  %10841 = vmatmul.mubr.f32.gmra.mrb[0].mxu0 %v10411
  %v10842 = vpop.f32.mrb[0].mxu0
  %v10843 = vadd.f32 0.0, %v10842
  %v10844 = vpop.f32.mrb[0].mxu0
  %10845 = vmatprep.mubr.f32.mxu0 0.0
  %10846 = vmatmul.mubr.f32.gmra.mrb[0].mxu0 %v10414
  %v10847 = vpop.f32.mrb[0].mxu0
  %v10848 = vadd.f32 0.0, %v10847
  %v10849 = vpop.f32.mrb[0].mxu0
  %10850 = vmatprep.mubr.f32.mxu0 0.0
  %10851 = vmatmul.mubr.f32.gmra.mrb[0].mxu0 %v10417
  %v10852 = vpop.f32.mrb[0].mxu0
  %v10853 = vadd.f32 0.0, %v10852
  %v10854 = vpop.f32.mrb[0].mxu0
  %10855 = vmatprep.mubr.f32.mxu0 0.0
  %10856 = vmatmul.mubr.f32.gmra.mrb[0].mxu0 %v10420
  %v10857 = vpop.f32.mrb[0].mxu0
  %v10858 = vadd.f32 0.0, %v10857
  %v10859 = vpop.f32.mrb[0].mxu0
  %10860 = vmatprep.mubr.f32.mxu0 0.0
  %10861 = vmatmul.mubr.f32.gmra.mrb[0].mxu0 %v10423
  %v10862 = vpop.f32.mrb[0].mxu0
  %v10863 = vadd.f32 0.0, %v10862
  %v10864 = vpop.f32.mrb[0].mxu0
  %10865 = vmatprep.mubr.f32.mxu0 0.0
  %10866 = vmatmul.mubr.f32.gmra.mrb[0].mxu0 %v10426
  %v10867 = vpop.f32.mrb[0].mxu0
  %v10868 = vadd.f32 0.0, %v10867
  %v10869 = vpop.f32.mrb[0].mxu0
  %10870 = vmatprep.mubr.f32.mxu0 0.0
  %10871 = vmatmul.mubr.f32.gmra.mrb[0].mxu0 %v10429
  %v10872 = vpop.f32.mrb[0].mxu0
  %v10873 = vadd.f32 0.0, %v10872
  %v10874 = vpop.f32.mrb[0].mxu0
  %10875 = vmatprep.mubr.f32.mxu0 0.0
  %10876 = vmatmul.mubr.f32.gmra.mrb[0].mxu0 %v10432
  %v10877 = vpop.f32.mrb[0].mxu0
  %v10878 = vadd.f32 0.0, %v10877
  %v10879 = vpop.f32.mrb[0].mxu0
  %10880 = vmatprep.mubr.f32.mxu0 0.0
  %10881 = vmatmul.mubr.f32.gmra.mrb[0].mxu0 %v10435
  %v10882 = vpop.f32.mrb[0].mxu0
  %v10883 = vadd.f32 0.0, %v10882
  %v10884 = vpop.f32.mrb[0].mxu0
  %10885 = vmatprep.mubr.f32.mxu0 0.0
  %10886 = vmatmul.mubr.f32.gmra.mrb[0].mxu0 %v10438
  %v10887 = vpop.f32.mrb[0].mxu0
  %v10888 = vadd.f32 0.0, %v10887
  %v10889 = vpop.f32.mrb[0].mxu0
  %10890 = vmatprep.mubr.f32.mxu0 0.0
  %10891 = vmatmul.mubr.f32.gmra.mrb[0].mxu0 %v10441
  %v10892 = vpop.f32.mrb[0].mxu0
  %v10893 = vadd.f32 0.0, %v10892
  %v10894 = vpop.f32.mrb[0].mxu0
  %10895 = vmatprep.mubr.f32.mxu0 0.0
  %10896 = vmatmul.mubr.f32.gmra.mrb[0].mxu0 %v10444
  %v10897 = vpop.f32.mrb[0].mxu0
  %v10898 = vadd.f32 0.0, %v10897
  %v10899 = vpop.f32.mrb[0].mxu0
  %10900 = vmatprep.mubr.f32.mxu0 0.0
  %10901 = vmatmul.mubr.f32.gmra.mrb[0].mxu0 %v10447
  %v10902 = vpop.f32.mrb[0].mxu0
  %v10903 = vadd.f32 0.0, %v10902
  %v10904 = vpop.f32.mrb[0].mxu0
  %10905 = vmatprep.mubr.f32.mxu0 0.0
  %10906 = vmatmul.mubr.f32.gmra.mrb[0].mxu0 %v10450
  %v10907 = vpop.f32.mrb[0].mxu0
  %v10908 = vadd.f32 0.0, %v10907
  %v10909 = vpop.f32.mrb[0].mxu0
  %10910 = vmatprep.mubr.f32.mxu0 0.0
  %10911 = vmatmul.mubr.f32.gmra.mrb[0].mxu0 %v10453
  %v10912 = vpop.f32.mrb[0].mxu0
  %v10913 = vadd.f32 0.0, %v10912
  %v10914 = vpop.f32.mrb[0].mxu0
  %10915 = vmatprep.mubr.f32.mxu0 0.0
  %10916 = vmatmul.mubr.f32.gmra.mrb[0].mxu0 %v10456
  %v10917 = vpop.f32.mrb[0].mxu0
  %v10918 = vadd.f32 0.0, %v10917
  %v10919 = vpop.f32.mrb[0].mxu0
  %10920 = vmatprep.mubr.f32.mxu0 0.0
  %10921 = vmatmul.mubr.f32.gmra.mrb[0].mxu0 %v10459
  %v10922 = vpop.f32.mrb[0].mxu0
  %v10923 = vadd.f32 0.0, %v10922
  %v10924 = vpop.f32.mrb[0].mxu0
  %10925 = vmatprep.mubr.f32.mxu0 0.0
  %10926 = vmatmul.mubr.f32.gmra.mrb[0].mxu0 %v10462
  %v10927 = vpop.f32.mrb[0].mxu0
  %v10928 = vadd.f32 0.0, %v10927
  %v10929 = vpop.f32.mrb[0].mxu0
  %10930 = vmatprep.mubr.f32.mxu0 0.0
  %10931 = vmatmul.mubr.f32.gmra.mrb[0].mxu0 %v10465
  %v10932 = vpop.f32.mrb[0].mxu0
  %v10933 = vadd.f32 0.0, %v10932
  %v10934 = vpop.f32.mrb[0].mxu0
  %10935 = vmatprep.mubr.f32.mxu0 0.0
  %10936 = vmatmul.mubr.f32.gmra.mrb[0].mxu0 %v10468
  %v10937 = vpop.f32.mrb[0].mxu0
  %v10938 = vadd.f32 0.0, %v10937
  %v10939 = vpop.f32.mrb[0].mxu0
  %10940 = vmatprep.mubr.f32.mxu0 0.0
  %10941 = vmatmul.mubr.f32.gmra.mrb[0].mxu0 %v10471
  %v10942 = vpop.f32.mrb[0].mxu0
  %v10943 = vadd.f32 0.0, %v10942
  %v10944 = vpop.f32.mrb[0].mxu0
  %10945 = vmatprep.mubr.f32.mxu0 0.0
  %10946 = vmatmul.mubr.f32.gmra.mrb[0].mxu0 %v10474
  %v10947 = vpop.f32.mrb[0].mxu0
  %v10948 = vadd.f32 0.0, %v10947
  %v10949 = vpop.f32.mrb[0].mxu0
  %10950 = vmatprep.mubr.f32.mxu0 0.0
  %10951 = vmatmul.mubr.f32.gmra.mrb[0].mxu0 %v10477
  %v10952 = vpop.f32.mrb[0].mxu0
  %v10953 = vadd.f32 0.0, %v10952
  %v10954 = vpop.f32.mrb[0].mxu0
  %10955 = vmatprep.mubr.f32.mxu0 0.0
  %10956 = vmatmul.mubr.f32.gmra.mrb[0].mxu0 %v10480
  %v10957 = vpop.f32.mrb[0].mxu0
  %v10958 = vadd.f32 0.0, %v10957
  %v10959 = vpop.f32.mrb[0].mxu0
  %10960 = vmatprep.mubr.f32.mxu0 0.0
  %10961 = vmatmul.mubr.f32.gmra.mrb[0].mxu0 %v10483
  %v10962 = vpop.f32.mrb[0].mxu0
  %v10963 = vadd.f32 0.0, %v10962
  %v10964 = vpop.f32.mrb[0].mxu0
  %10965 = vmatprep.mubr.f32.mxu0 0.0
  %10966 = vmatmul.mubr.f32.gmra.mrb[0].mxu0 %v10486
  %v10967 = vpop.f32.mrb[0].mxu0
  %v10968 = vadd.f32 0.0, %v10967
  %v10969 = vpop.f32.mrb[0].mxu0
  %10970 = vmatprep.mubr.f32.mxu0 0.0
  %10971 = vmatmul.mubr.f32.gmra.mrb[0].mxu0 %v10489
  %v10972 = vpop.f32.mrb[0].mxu0
  %v10973 = vadd.f32 0.0, %v10972
  %v10974 = vpop.f32.mrb[0].mxu0
  %10975 = vmatprep.mubr.f32.mxu0 0.0
  %10976 = vmatmul.mubr.f32.gmra.mrb[0].mxu0 %v10492
  %v10977 = vpop.f32.mrb[0].mxu0
  %v10978 = vadd.f32 0.0, %v10977
  %v10979 = vpop.f32.mrb[0].mxu0
  %10980 = vmatprep.mubr.f32.mxu0 0.0
  %10981 = vmatmul.mubr.f32.gmra.mrb[0].mxu0 %v10495
  %v10982 = vpop.f32.mrb[0].mxu0
  %v10983 = vadd.f32 0.0, %v10982
  %v10984 = vpop.f32.mrb[0].mxu0
  %10985 = vmatprep.mubr.f32.mxu0 0.0
  %10986 = vmatmul.mubr.f32.gmra.mrb[0].mxu0 %v10498
  %v10987 = vpop.f32.mrb[0].mxu0
  %v10988 = vadd.f32 0.0, %v10987
  %v10989 = vpop.f32.mrb[0].mxu0
  %10990 = vmatprep.mubr.f32.mxu0 0.0
  %10991 = vmatmul.mubr.f32.gmra.mrb[0].mxu0 %v10501
  %v10992 = vpop.f32.mrb[0].mxu0
  %v10993 = vadd.f32 0.0, %v10992
  %v10994 = vpop.f32.mrb[0].mxu0
  %10995 = vmatprep.mubr.f32.mxu0 0.0
  %10996 = vmatmul.mubr.f32.gmra.mrb[0].mxu0 %v10504
  %v10997 = vpop.f32.mrb[0].mxu0
  %v10998 = vadd.f32 0.0, %v10997
  %v10999 = vpop.f32.mrb[0].mxu0
  %11000 = vmatprep.mubr.f32.mxu0 0.0
  %11001 = vmatmul.mubr.f32.gmra.mrb[0].mxu0 %v10507
  %v11002 = vpop.f32.mrb[0].mxu0
  %v11003 = vadd.f32 0.0, %v11002
  %v11004 = vpop.f32.mrb[0].mxu0
  %11005 = vmatprep.mubr.f32.mxu0 0.0
  %11006 = vmatmul.mubr.f32.gmra.mrb[0].mxu0 %v10510
  %v11007 = vpop.f32.mrb[0].mxu0
  %v11008 = vadd.f32 0.0, %v11007
  %v11009 = vpop.f32.mrb[0].mxu0
  %11010 = vmatprep.mubr.f32.mxu0 0.0
  %11011 = vmatmul.mubr.f32.gmra.mrb[0].mxu0 %v10513
  %v11012 = vpop.f32.mrb[0].mxu0
  %v11013 = vadd.f32 0.0, %v11012
  %v11014 = vpop.f32.mrb[0].mxu0
  %11015 = vmatprep.mubr.f32.mxu0 0.0
  %11016 = vmatmul.mubr.f32.gmra.mrb[0].mxu0 %v10516
  %v11017 = vpop.f32.mrb[0].mxu0
  %v11018 = vadd.f32 0.0, %v11017
  %v11019 = vpop.f32.mrb[0].mxu0
  %11020 = vmatprep.mubr.f32.mxu0 0.0
  %11021 = vmatmul.mubr.f32.gmra.mrb[0].mxu0 %v10519
  %v11022 = vpop.f32.mrb[0].mxu0
  %v11023 = vadd.f32 0.0, %v11022
  %v11024 = vpop.f32.mrb[0].mxu0
  %11025 = vmatprep.mubr.f32.mxu0 0.0
  %11026 = vmatmul.mubr.f32.gmra.mrb[0].mxu0 %v10522
  %v11027 = vpop.f32.mrb[0].mxu0
  %v11028 = vadd.f32 0.0, %v11027
  %v11029 = vpop.f32.mrb[0].mxu0
  %11030 = vmatprep.mubr.f32.mxu0 0.0
  %11031 = vmatmul.mubr.f32.gmra.mrb[0].mxu0 %v10525
  %v11032 = vpop.f32.mrb[0].mxu0
  %v11033 = vadd.f32 0.0, %v11032
  %v11034 = vpop.f32.mrb[0].mxu0
  %11035 = vmatprep.mubr.f32.mxu0 0.0
  %11036 = vmatmul.mubr.f32.gmra.mrb[0].mxu0 %v10528
  %v11037 = vpop.f32.mrb[0].mxu0
  %v11038 = vadd.f32 0.0, %v11037
  %v11039 = vpop.f32.mrb[0].mxu0
  %11040 = vmatprep.mubr.f32.mxu0 0.0
  %11041 = vmatmul.mubr.f32.gmra.mrb[0].mxu0 %v10531
  %v11042 = vpop.f32.mrb[0].mxu0
  %v11043 = vadd.f32 0.0, %v11042
  %v11044 = vpop.f32.mrb[0].mxu0
  %11045 = vmatprep.mubr.f32.mxu0 0.0
  %11046 = vmatmul.mubr.f32.gmra.mrb[0].mxu0 %v10534
  %v11047 = vpop.f32.mrb[0].mxu0
  %v11048 = vadd.f32 0.0, %v11047
  %v11049 = vpop.f32.mrb[0].mxu0
  %11050 = vmatprep.mubr.f32.mxu0 0.0
  %11051 = vmatmul.mubr.f32.gmra.mrb[0].mxu0 %v10537
  %v11052 = vpop.f32.mrb[0].mxu0
  %v11053 = vadd.f32 0.0, %v11052
  %v11054 = vpop.f32.mrb[0].mxu0
  %11055 = vmatprep.mubr.f32.mxu0 0.0
  %11056 = vmatmul.mubr.f32.gmra.mrb[0].mxu0 %v10540
  %v11057 = vpop.f32.mrb[0].mxu0
  %v11058 = vadd.f32 0.0, %v11057
  %v11059 = vpop.f32.mrb[0].mxu0
  %11060 = vmatprep.mubr.f32.mxu0 0.0
  %11061 = vmatmul.mubr.f32.gmra.mrb[0].mxu0 %v10543
  %v11062 = vpop.f32.mrb[0].mxu0
  %v11063 = vadd.f32 0.0, %v11062
  %v11064 = vpop.f32.mrb[0].mxu0
  %11065 = vmatprep.mubr.f32.mxu0 0.0
  %11066 = vmatmul.mubr.f32.gmra.mrb[0].mxu0 %v10546
  %v11067 = vpop.f32.mrb[0].mxu0
  %v11068 = vadd.f32 0.0, %v11067
  %v11069 = vpop.f32.mrb[0].mxu0
  %11070 = vmatprep.mubr.f32.mxu0 0.0
  %11071 = vmatmul.mubr.f32.gmra.mrb[0].mxu0 %v10549
  %v11072 = vpop.f32.mrb[0].mxu0
  %v11073 = vadd.f32 0.0, %v11072
  %v11074 = vpop.f32.mrb[0].mxu0
  %11075 = vmatprep.mubr.f32.mxu0 0.0
  %11076 = vmatmul.mubr.f32.gmra.mrb[0].mxu0 %v10552
  %v11077 = vpop.f32.mrb[0].mxu0
  %v11078 = vadd.f32 0.0, %v11077
  %v11079 = vpop.f32.mrb[0].mxu0
  %11080 = vmatprep.mubr.f32.mxu0 0.0
  %11081 = vmatmul.mubr.f32.gmra.mrb[0].mxu0 %v10555
  %v11082 = vpop.f32.mrb[0].mxu0
  %v11083 = vadd.f32 0.0, %v11082
  %v11084 = vpop.f32.mrb[0].mxu0
  %11085 = vmatprep.mubr.f32.mxu0 0.0
  %11086 = vmatmul.mubr.f32.gmra.mrb[0].mxu0 %v10558
  %v11087 = vpop.f32.mrb[0].mxu0
  %v11088 = vadd.f32 0.0, %v11087
  %v11089 = vpop.f32.mrb[0].mxu0
  %11090 = vmatprep.mubr.f32.mxu0 0.0
  %11091 = vmatmul.mubr.f32.gmra.mrb[0].mxu0 %v10561
  %v11092 = vpop.f32.mrb[0].mxu0
  %v11093 = vadd.f32 0.0, %v11092
  %v11094 = vpop.f32.mrb[0].mxu0
  %11095 = vmatprep.mubr.f32.mxu0 0.0
  %11096 = vmatmul.mubr.f32.gmra.mrb[0].mxu0 %v10564
  %v11097 = vpop.f32.mrb[0].mxu0
  %v11098 = vadd.f32 0.0, %v11097
  %v11099 = vpop.f32.mrb[0].mxu0
  %11100 = vmatprep.mubr.f32.mxu0 0.0
  %11101 = vmatmul.mubr.f32.gmra.mrb[0].mxu0 %v10567
  %v11102 = vpop.f32.mrb[0].mxu0
  %v11103 = vadd.f32 0.0, %v11102
  %v11104 = vpop.f32.mrb[0].mxu0
  %11105 = vmatprep.mubr.f32.mxu0 0.0
  %11106 = vmatmul.mubr.f32.gmra.mrb[0].mxu0 %v10570
  %v11107 = vpop.f32.mrb[0].mxu0
  %v11108 = vadd.f32 0.0, %v11107
  %v11109 = vpop.f32.mrb[0].mxu0
  %11110 = vmatprep.mubr.f32.mxu0 0.0
  %11111 = vmatmul.mubr.f32.gmra.mrb[0].mxu0 %v10573
  %v11112 = vpop.f32.mrb[0].mxu0
  %v11113 = vadd.f32 0.0, %v11112
  %v11114 = vpop.f32.mrb[0].mxu0
  %11115 = vmatprep.mubr.f32.mxu0 0.0
  %11116 = vmatmul.mubr.f32.gmra.mrb[0].mxu0 %v10576
  %v11117 = vpop.f32.mrb[0].mxu0
  %v11118 = vadd.f32 0.0, %v11117
  %v11119 = vpop.f32.mrb[0].mxu0
  %11120 = vmatprep.mubr.f32.mxu0 0.0
  %11121 = vmatmul.mubr.f32.gmra.mrb[0].mxu0 %v10579
  %v11122 = vpop.f32.mrb[0].mxu0
  %v11123 = vadd.f32 0.0, %v11122
  %v11124 = vpop.f32.mrb[0].mxu0
  %11125 = vmatprep.mubr.f32.mxu0 0.0
  %11126 = vmatmul.mubr.f32.gmra.mrb[0].mxu0 %v10582
  %v11127 = vpop.f32.mrb[0].mxu0
  %v11128 = vadd.f32 0.0, %v11127
  %v11129 = vpop.f32.mrb[0].mxu0
  %11130 = vmatprep.mubr.f32.mxu0 0.0
  %11131 = vmatmul.mubr.f32.gmra.mrb[0].mxu0 %v10585
  %v11132 = vpop.f32.mrb[0].mxu0
  %v11133 = vadd.f32 0.0, %v11132
  %v11134 = vpop.f32.mrb[0].mxu0
  %11135 = vmatprep.mubr.f32.mxu0 0.0
  %11136 = vmatmul.mubr.f32.gmra.mrb[0].mxu0 %v10588
  %v11137 = vpop.f32.mrb[0].mxu0
  %v11138 = vadd.f32 0.0, %v11137
  %v11139 = vpop.f32.mrb[0].mxu0
  %11140 = vmatprep.mubr.f32.mxu0 0.0
  %11141 = vmatmul.mubr.f32.gmra.mrb[0].mxu0 %v10591
  %v11142 = vpop.f32.mrb[0].mxu0
  %v11143 = vadd.f32 0.0, %v11142
  %v11144 = vpop.f32.mrb[0].mxu0
  %11145 = vmatprep.mubr.f32.mxu0 0.0
  %11146 = vmatmul.mubr.f32.gmra.mrb[0].mxu0 %v10594
  %v11147 = vpop.f32.mrb[0].mxu0
  %v11148 = vadd.f32 0.0, %v11147
  %v11149 = vpop.f32.mrb[0].mxu0
  %11150 = vdwg.mxu0
  %v11151 = vadd.f32 %v10103, %v10663
  %v11152 = vadd.f32 %v10104, %v10668
  %v11153 = vadd.f32 %v10105, %v10673
  %v11154 = vadd.f32 %v10106, %v10678
  %v11155 = vadd.f32 %v10107, %v10683
  %v11156 = vadd.f32 %v10108, %v10688
  %v11157 = vadd.f32 %v10109, %v10693
  %v11158 = vadd.f32 %v10110, %v10698
  %v11159 = vadd.f32 %v10111, %v10703
  %v11160 = vadd.f32 %v10112, %v10708
  %v11161 = vadd.f32 %v10113, %v10713
  %v11162 = vadd.f32 %v10114, %v10718
  %v11163 = vadd.f32 %v10115, %v10723
  %v11164 = vadd.f32 %v10116, %v10728
  %v11165 = vadd.f32 %v10117, %v10733
  %v11166 = vadd.f32 %v10118, %v10738
  %v11167 = vadd.f32 %v10119, %v10743
  %v11168 = vadd.f32 %v10120, %v10748
  %v11169 = vadd.f32 %v10121, %v10753
  %v11170 = vadd.f32 %v10122, %v10758
  %v11171 = vadd.f32 %v10123, %v10763
  %v11172 = vadd.f32 %v10124, %v10768
  %v11173 = vadd.f32 %v10125, %v10773
  %v11174 = vadd.f32 %v10126, %v10778
  %v11175 = vadd.f32 %v10127, %v10783
  %v11176 = vadd.f32 %v10128, %v10788
  %v11177 = vadd.f32 %v10129, %v10793
  %v11178 = vadd.f32 %v10130, %v10798
  %v11179 = vadd.f32 %v10131, %v10803
  %v11180 = vadd.f32 %v10132, %v10808
  %v11181 = vadd.f32 %v10133, %v10813
  %v11182 = vadd.f32 %v10134, %v10818
  %v11183 = vadd.f32 %v10135, %v10823
  %v11184 = vadd.f32 %v10136, %v10828
  %v11185 = vadd.f32 %v10137, %v10833
  %v11186 = vadd.f32 %v10138, %v10838
  %v11187 = vadd.f32 %v10139, %v10843
  %v11188 = vadd.f32 %v10140, %v10848
  %v11189 = vadd.f32 %v10141, %v10853
  %v11190 = vadd.f32 %v10142, %v10858
  %v11191 = vadd.f32 %v10143, %v10863
  %v11192 = vadd.f32 %v10144, %v10868
  %v11193 = vadd.f32 %v10145, %v10873
  %v11194 = vadd.f32 %v10146, %v10878
  %v11195 = vadd.f32 %v10147, %v10883
  %v11196 = vadd.f32 %v10148, %v10888
  %v11197 = vadd.f32 %v10149, %v10893
  %v11198 = vadd.f32 %v10150, %v10898
  %v11199 = vadd.f32 %v10151, %v10903
  %v11200 = vadd.f32 %v10152, %v10908
  %v11201 = vadd.f32 %v10153, %v10913
  %v11202 = vadd.f32 %v10154, %v10918
  %v11203 = vadd.f32 %v10155, %v10923
  %v11204 = vadd.f32 %v10156, %v10928
  %v11205 = vadd.f32 %v10157, %v10933
  %v11206 = vadd.f32 %v10158, %v10938
  %v11207 = vadd.f32 %v10159, %v10943
  %v11208 = vadd.f32 %v10160, %v10948
  %v11209 = vadd.f32 %v10161, %v10953
  %v11210 = vadd.f32 %v10162, %v10958
  %v11211 = vadd.f32 %v10163, %v10963
  %v11212 = vadd.f32 %v10164, %v10968
  %v11213 = vadd.f32 %v10165, %v10973
  %v11214 = vadd.f32 %v10166, %v10978
  %v11215 = vadd.f32 %v10167, %v10983
  %v11216 = vadd.f32 %v10168, %v10988
  %v11217 = vadd.f32 %v10169, %v10993
  %v11218 = vadd.f32 %v10170, %v10998
  %v11219 = vadd.f32 %v10171, %v11003
  %v11220 = vadd.f32 %v10172, %v11008
  %v11221 = vadd.f32 %v10173, %v11013
  %v11222 = vadd.f32 %v10174, %v11018
  %v11223 = vadd.f32 %v10175, %v11023
  %v11224 = vadd.f32 %v10176, %v11028
  %v11225 = vadd.f32 %v10177, %v11033
  %v11226 = vadd.f32 %v10178, %v11038
  %v11227 = vadd.f32 %v10179, %v11043
  %v11228 = vadd.f32 %v10180, %v11048
  %v11229 = vadd.f32 %v10181, %v11053
  %v11230 = vadd.f32 %v10182, %v11058
  %v11231 = vadd.f32 %v10183, %v11063
  %v11232 = vadd.f32 %v10184, %v11068
  %v11233 = vadd.f32 %v10185, %v11073
  %v11234 = vadd.f32 %v10186, %v11078
  %v11235 = vadd.f32 %v10187, %v11083
  %v11236 = vadd.f32 %v10188, %v11088
  %v11237 = vadd.f32 %v10189, %v11093
  %v11238 = vadd.f32 %v10190, %v11098
  %v11239 = vadd.f32 %v10191, %v11103
  %v11240 = vadd.f32 %v10192, %v11108
  %v11241 = vadd.f32 %v10193, %v11113
  %v11242 = vadd.f32 %v10194, %v11118
  %v11243 = vadd.f32 %v10195, %v11123
  %v11244 = vadd.f32 %v10196, %v11128
  %v11245 = vadd.f32 %v10197, %v11133
  %v11246 = vadd.f32 %v10198, %v11138
  %v11247 = vadd.f32 %v10199, %v11143
  %v11248 = vadd.f32 %v10200, %v11148
  %v11249 = vld [vmem:[%s4] sm:$0x1]
  %v11251 = vlaneseq
  %v11252 = vshrl.u32 %v11251, 7
  %v11253 = vsub.s32 0, %v11252
  %v11254 = vrot.slane %v11249, %v11253
  %v11256 = vadd.f32 %v11151, %v11254
  %v11257 = vadd.f32 %v11152, %v11254
  %v11258 = vadd.f32 %v11153, %v11254
  %v11259 = vadd.f32 %v11154, %v11254
  %v11260 = vadd.f32 %v11155, %v11254
  %v11261 = vadd.f32 %v11156, %v11254
  %v11262 = vadd.f32 %v11157, %v11254
  %v11263 = vadd.f32 %v11158, %v11254
  %v11264 = vadd.f32 %v11159, %v11254
  %v11265 = vadd.f32 %v11160, %v11254
  %v11266 = vadd.f32 %v11161, %v11254
  %v11267 = vadd.f32 %v11162, %v11254
  %v11268 = vadd.f32 %v11163, %v11254
  %v11269 = vadd.f32 %v11164, %v11254
  %v11270 = vadd.f32 %v11165, %v11254
  %v11271 = vadd.f32 %v11166, %v11254
  %v11272 = vadd.f32 %v11167, %v11254
  %v11273 = vadd.f32 %v11168, %v11254
  %v11274 = vadd.f32 %v11169, %v11254
  %v11275 = vadd.f32 %v11170, %v11254
  %v11276 = vadd.f32 %v11171, %v11254
  %v11277 = vadd.f32 %v11172, %v11254
  %v11278 = vadd.f32 %v11173, %v11254
  %v11279 = vadd.f32 %v11174, %v11254
  %v11280 = vadd.f32 %v11175, %v11254
  %v11281 = vadd.f32 %v11176, %v11254
  %v11282 = vadd.f32 %v11177, %v11254
  %v11283 = vadd.f32 %v11178, %v11254
  %v11284 = vadd.f32 %v11179, %v11254
  %v11285 = vadd.f32 %v11180, %v11254
  %v11286 = vadd.f32 %v11181, %v11254
  %v11287 = vadd.f32 %v11182, %v11254
  %v11288 = vadd.f32 %v11183, %v11254
  %v11289 = vadd.f32 %v11184, %v11254
  %v11290 = vadd.f32 %v11185, %v11254
  %v11291 = vadd.f32 %v11186, %v11254
  %v11292 = vadd.f32 %v11187, %v11254
  %v11293 = vadd.f32 %v11188, %v11254
  %v11294 = vadd.f32 %v11189, %v11254
  %v11295 = vadd.f32 %v11190, %v11254
  %v11296 = vadd.f32 %v11191, %v11254
  %v11297 = vadd.f32 %v11192, %v11254
  %v11298 = vadd.f32 %v11193, %v11254
  %v11299 = vadd.f32 %v11194, %v11254
  %v11300 = vadd.f32 %v11195, %v11254
  %v11301 = vadd.f32 %v11196, %v11254
  %v11302 = vadd.f32 %v11197, %v11254
  %v11303 = vadd.f32 %v11198, %v11254
  %v11304 = vadd.f32 %v11199, %v11254
  %v11305 = vadd.f32 %v11200, %v11254
  %v11306 = vadd.f32 %v11201, %v11254
  %v11307 = vadd.f32 %v11202, %v11254
  %v11308 = vadd.f32 %v11203, %v11254
  %v11309 = vadd.f32 %v11204, %v11254
  %v11310 = vadd.f32 %v11205, %v11254
  %v11311 = vadd.f32 %v11206, %v11254
  %v11312 = vadd.f32 %v11207, %v11254
  %v11313 = vadd.f32 %v11208, %v11254
  %v11314 = vadd.f32 %v11209, %v11254
  %v11315 = vadd.f32 %v11210, %v11254
  %v11316 = vadd.f32 %v11211, %v11254
  %v11317 = vadd.f32 %v11212, %v11254
  %v11318 = vadd.f32 %v11213, %v11254
  %v11319 = vadd.f32 %v11214, %v11254
  %v11320 = vadd.f32 %v11215, %v11254
  %v11321 = vadd.f32 %v11216, %v11254
  %v11322 = vadd.f32 %v11217, %v11254
  %v11323 = vadd.f32 %v11218, %v11254
  %v11324 = vadd.f32 %v11219, %v11254
  %v11325 = vadd.f32 %v11220, %v11254
  %v11326 = vadd.f32 %v11221, %v11254
  %v11327 = vadd.f32 %v11222, %v11254
  %v11328 = vadd.f32 %v11223, %v11254
  %v11329 = vadd.f32 %v11224, %v11254
  %v11330 = vadd.f32 %v11225, %v11254
  %v11331 = vadd.f32 %v11226, %v11254
  %v11332 = vadd.f32 %v11227, %v11254
  %v11333 = vadd.f32 %v11228, %v11254
  %v11334 = vadd.f32 %v11229, %v11254
  %v11335 = vadd.f32 %v11230, %v11254
  %v11336 = vadd.f32 %v11231, %v11254
  %v11337 = vadd.f32 %v11232, %v11254
  %v11338 = vadd.f32 %v11233, %v11254
  %v11339 = vadd.f32 %v11234, %v11254
  %v11340 = vadd.f32 %v11235, %v11254
  %v11341 = vadd.f32 %v11236, %v11254
  %v11342 = vadd.f32 %v11237, %v11254
  %v11343 = vadd.f32 %v11238, %v11254
  %v11344 = vadd.f32 %v11239, %v11254
  %v11345 = vadd.f32 %v11240, %v11254
  %v11346 = vadd.f32 %v11241, %v11254
  %v11347 = vadd.f32 %v11242, %v11254
  %v11348 = vadd.f32 %v11243, %v11254
  %v11349 = vadd.f32 %v11244, %v11254
  %v11350 = vadd.f32 %v11245, %v11254
  %v11351 = vadd.f32 %v11246, %v11254
  %v11352 = vadd.f32 %v11247, %v11254
  %v11353 = vadd.f32 %v11248, %v11254
  %v11354 = vmax.f32 %v11256, 0.0
  %v11355 = vmax.f32 %v11257, 0.0
  %v11356 = vmax.f32 %v11258, 0.0
  %v11357 = vmax.f32 %v11259, 0.0
  %v11358 = vmax.f32 %v11260, 0.0
  %v11359 = vmax.f32 %v11261, 0.0
  %v11360 = vmax.f32 %v11262, 0.0
  %v11361 = vmax.f32 %v11263, 0.0
  %v11362 = vmax.f32 %v11264, 0.0
  %v11363 = vmax.f32 %v11265, 0.0
  %v11364 = vmax.f32 %v11266, 0.0
  %v11365 = vmax.f32 %v11267, 0.0
  %v11366 = vmax.f32 %v11268, 0.0
  %v11367 = vmax.f32 %v11269, 0.0
  %v11368 = vmax.f32 %v11270, 0.0
  %v11369 = vmax.f32 %v11271, 0.0
  %v11370 = vmax.f32 %v11272, 0.0
  %v11371 = vmax.f32 %v11273, 0.0
  %v11372 = vmax.f32 %v11274, 0.0
  %v11373 = vmax.f32 %v11275, 0.0
  %v11374 = vmax.f32 %v11276, 0.0
  %v11375 = vmax.f32 %v11277, 0.0
  %v11376 = vmax.f32 %v11278, 0.0
  %v11377 = vmax.f32 %v11279, 0.0
  %v11378 = vmax.f32 %v11280, 0.0
  %v11379 = vmax.f32 %v11281, 0.0
  %v11380 = vmax.f32 %v11282, 0.0
  %v11381 = vmax.f32 %v11283, 0.0
  %v11382 = vmax.f32 %v11284, 0.0
  %v11383 = vmax.f32 %v11285, 0.0
  %v11384 = vmax.f32 %v11286, 0.0
  %v11385 = vmax.f32 %v11287, 0.0
  %v11386 = vmax.f32 %v11288, 0.0
  %v11387 = vmax.f32 %v11289, 0.0
  %v11388 = vmax.f32 %v11290, 0.0
  %v11389 = vmax.f32 %v11291, 0.0
  %v11390 = vmax.f32 %v11292, 0.0
  %v11391 = vmax.f32 %v11293, 0.0
  %v11392 = vmax.f32 %v11294, 0.0
  %v11393 = vmax.f32 %v11295, 0.0
  %v11394 = vmax.f32 %v11296, 0.0
  %v11395 = vmax.f32 %v11297, 0.0
  %v11396 = vmax.f32 %v11298, 0.0
  %v11397 = vmax.f32 %v11299, 0.0
  %v11398 = vmax.f32 %v11300, 0.0
  %v11399 = vmax.f32 %v11301, 0.0
  %v11400 = vmax.f32 %v11302, 0.0
  %v11401 = vmax.f32 %v11303, 0.0
  %v11402 = vmax.f32 %v11304, 0.0
  %v11403 = vmax.f32 %v11305, 0.0
  %v11404 = vmax.f32 %v11306, 0.0
  %v11405 = vmax.f32 %v11307, 0.0
  %v11406 = vmax.f32 %v11308, 0.0
  %v11407 = vmax.f32 %v11309, 0.0
  %v11408 = vmax.f32 %v11310, 0.0
  %v11409 = vmax.f32 %v11311, 0.0
  %v11410 = vmax.f32 %v11312, 0.0
  %v11411 = vmax.f32 %v11313, 0.0
  %v11412 = vmax.f32 %v11314, 0.0
  %v11413 = vmax.f32 %v11315, 0.0
  %v11414 = vmax.f32 %v11316, 0.0
  %v11415 = vmax.f32 %v11317, 0.0
  %v11416 = vmax.f32 %v11318, 0.0
  %v11417 = vmax.f32 %v11319, 0.0
  %v11418 = vmax.f32 %v11320, 0.0
  %v11419 = vmax.f32 %v11321, 0.0
  %v11420 = vmax.f32 %v11322, 0.0
  %v11421 = vmax.f32 %v11323, 0.0
  %v11422 = vmax.f32 %v11324, 0.0
  %v11423 = vmax.f32 %v11325, 0.0
  %v11424 = vmax.f32 %v11326, 0.0
  %v11425 = vmax.f32 %v11327, 0.0
  %v11426 = vmax.f32 %v11328, 0.0
  %v11427 = vmax.f32 %v11329, 0.0
  %v11428 = vmax.f32 %v11330, 0.0
  %v11429 = vmax.f32 %v11331, 0.0
  %v11430 = vmax.f32 %v11332, 0.0
  %v11431 = vmax.f32 %v11333, 0.0
  %v11432 = vmax.f32 %v11334, 0.0
  %v11433 = vmax.f32 %v11335, 0.0
  %v11434 = vmax.f32 %v11336, 0.0
  %v11435 = vmax.f32 %v11337, 0.0
  %v11436 = vmax.f32 %v11338, 0.0
  %v11437 = vmax.f32 %v11339, 0.0
  %v11438 = vmax.f32 %v11340, 0.0
  %v11439 = vmax.f32 %v11341, 0.0
  %v11440 = vmax.f32 %v11342, 0.0
  %v11441 = vmax.f32 %v11343, 0.0
  %v11442 = vmax.f32 %v11344, 0.0
  %v11443 = vmax.f32 %v11345, 0.0
  %v11444 = vmax.f32 %v11346, 0.0
  %v11445 = vmax.f32 %v11347, 0.0
  %v11446 = vmax.f32 %v11348, 0.0
  %v11447 = vmax.f32 %v11349, 0.0
  %v11448 = vmax.f32 %v11350, 0.0
  %v11449 = vmax.f32 %v11351, 0.0
  %v11450 = vmax.f32 %v11352, 0.0
  %v11451 = vmax.f32 %v11353, 0.0
  %11452 = vst.msk [vmem:[#allocation4] sm:$0xff] %vm63, %v11354
  %11453 = vst.msk [vmem:[#allocation4 + $0x8] sm:$0xff] %vm63, %v11355
  %11454 = vst.msk [vmem:[#allocation4 + $0x10] sm:$0xff] %vm63, %v11356
  %11455 = vst.msk [vmem:[#allocation4 + $0x18] sm:$0xff] %vm63, %v11357
  %11456 = vst.msk [vmem:[#allocation4 + $0x20] sm:$0xff] %vm63, %v11358
  %11457 = vst.msk [vmem:[#allocation4 + $0x28] sm:$0xff] %vm63, %v11359
  %11458 = vst.msk [vmem:[#allocation4 + $0x30] sm:$0xff] %vm63, %v11360
  %11459 = vst.msk [vmem:[#allocation4 + $0x38] sm:$0xff] %vm63, %v11361
  %11460 = vst.msk [vmem:[#allocation4 + $0x40] sm:$0xff] %vm63, %v11362
  %11461 = vst.msk [vmem:[#allocation4 + $0x48] sm:$0xff] %vm63, %v11363
  %11462 = vst.msk [vmem:[#allocation4 + $0x50] sm:$0xff] %vm63, %v11364
  %11463 = vst.msk [vmem:[#allocation4 + $0x58] sm:$0xff] %vm63, %v11365
  %11464 = vst.msk [vmem:[#allocation4 + $0x60] sm:$0xff] %vm63, %v11366
  %11465 = vst.msk [vmem:[#allocation4 + $0x68] sm:$0xff] %vm63, %v11367
  %11466 = vst.msk [vmem:[#allocation4 + $0x70] sm:$0xff] %vm63, %v11368
  %11467 = vst.msk [vmem:[#allocation4 + $0x78] sm:$0xff] %vm63, %v11369
  %11468 = vst.msk [vmem:[#allocation4 + $0x80] sm:$0xff] %vm63, %v11370
  %11469 = vst.msk [vmem:[#allocation4 + $0x88] sm:$0xff] %vm63, %v11371
  %11470 = vst.msk [vmem:[#allocation4 + $0x90] sm:$0xff] %vm63, %v11372
  %11471 = vst.msk [vmem:[#allocation4 + $0x98] sm:$0xff] %vm63, %v11373
  %11472 = vst.msk [vmem:[#allocation4 + $0xa0] sm:$0xff] %vm63, %v11374
  %11473 = vst.msk [vmem:[#allocation4 + $0xa8] sm:$0xff] %vm63, %v11375
  %11474 = vst.msk [vmem:[#allocation4 + $0xb0] sm:$0xff] %vm63, %v11376
  %11475 = vst.msk [vmem:[#allocation4 + $0xb8] sm:$0xff] %vm63, %v11377
  %11476 = vst.msk [vmem:[#allocation4 + $0xc0] sm:$0xff] %vm63, %v11378
  %11477 = vst.msk [vmem:[#allocation4 + $0xc8] sm:$0xff] %vm63, %v11379
  %11478 = vst.msk [vmem:[#allocation4 + $0xd0] sm:$0xff] %vm63, %v11380
  %11479 = vst.msk [vmem:[#allocation4 + $0xd8] sm:$0xff] %vm63, %v11381
  %11480 = vst.msk [vmem:[#allocation4 + $0xe0] sm:$0xff] %vm63, %v11382
  %11481 = vst.msk [vmem:[#allocation4 + $0xe8] sm:$0xff] %vm63, %v11383
  %11482 = vst.msk [vmem:[#allocation4 + $0xf0] sm:$0xff] %vm63, %v11384
  %11483 = vst.msk [vmem:[#allocation4 + $0xf8] sm:$0xff] %vm63, %v11385
  %11484 = vst.msk [vmem:[#allocation4 + $0x100] sm:$0xff] %vm63, %v11386
  %11485 = vst.msk [vmem:[#allocation4 + $0x108] sm:$0xff] %vm63, %v11387
  %11486 = vst.msk [vmem:[#allocation4 + $0x110] sm:$0xff] %vm63, %v11388
  %11487 = vst.msk [vmem:[#allocation4 + $0x118] sm:$0xff] %vm63, %v11389
  %11488 = vst.msk [vmem:[#allocation4 + $0x120] sm:$0xff] %vm63, %v11390
  %11489 = vst.msk [vmem:[#allocation4 + $0x128] sm:$0xff] %vm63, %v11391
  %11490 = vst.msk [vmem:[#allocation4 + $0x130] sm:$0xff] %vm63, %v11392
  %11491 = vst.msk [vmem:[#allocation4 + $0x138] sm:$0xff] %vm63, %v11393
  %11492 = vst.msk [vmem:[#allocation4 + $0x140] sm:$0xff] %vm63, %v11394
  %11493 = vst.msk [vmem:[#allocation4 + $0x148] sm:$0xff] %vm63, %v11395
  %11494 = vst.msk [vmem:[#allocation4 + $0x150] sm:$0xff] %vm63, %v11396
  %11495 = vst.msk [vmem:[#allocation4 + $0x158] sm:$0xff] %vm63, %v11397
  %11496 = vst.msk [vmem:[#allocation4 + $0x160] sm:$0xff] %vm63, %v11398
  %11497 = vst.msk [vmem:[#allocation4 + $0x168] sm:$0xff] %vm63, %v11399
  %11498 = vst.msk [vmem:[#allocation4 + $0x170] sm:$0xff] %vm63, %v11400
  %11499 = vst.msk [vmem:[#allocation4 + $0x178] sm:$0xff] %vm63, %v11401
  %11500 = vst.msk [vmem:[#allocation4 + $0x180] sm:$0xff] %vm63, %v11402
  %11501 = vst.msk [vmem:[#allocation4 + $0x188] sm:$0xff] %vm63, %v11403
  %11502 = vst.msk [vmem:[#allocation4 + $0x190] sm:$0xff] %vm63, %v11404
  %11503 = vst.msk [vmem:[#allocation4 + $0x198] sm:$0xff] %vm63, %v11405
  %11504 = vst.msk [vmem:[#allocation4 + $0x1a0] sm:$0xff] %vm63, %v11406
  %11505 = vst.msk [vmem:[#allocation4 + $0x1a8] sm:$0xff] %vm63, %v11407
  %11506 = vst.msk [vmem:[#allocation4 + $0x1b0] sm:$0xff] %vm63, %v11408
  %11507 = vst.msk [vmem:[#allocation4 + $0x1b8] sm:$0xff] %vm63, %v11409
  %11508 = vst.msk [vmem:[#allocation4 + $0x1c0] sm:$0xff] %vm63, %v11410
  %11509 = vst.msk [vmem:[#allocation4 + $0x1c8] sm:$0xff] %vm63, %v11411
  %11510 = vst.msk [vmem:[#allocation4 + $0x1d0] sm:$0xff] %vm63, %v11412
  %11511 = vst.msk [vmem:[#allocation4 + $0x1d8] sm:$0xff] %vm63, %v11413
  %11512 = vst.msk [vmem:[#allocation4 + $0x1e0] sm:$0xff] %vm63, %v11414
  %11513 = vst.msk [vmem:[#allocation4 + $0x1e8] sm:$0xff] %vm63, %v11415
  %11514 = vst.msk [vmem:[#allocation4 + $0x1f0] sm:$0xff] %vm63, %v11416
  %11515 = vst.msk [vmem:[#allocation4 + $0x1f8] sm:$0xff] %vm63, %v11417
  %11516 = vst.msk [vmem:[#allocation4 + $0x200] sm:$0xff] %vm63, %v11418
  %11517 = vst.msk [vmem:[#allocation4 + $0x208] sm:$0xff] %vm63, %v11419
  %11518 = vst.msk [vmem:[#allocation4 + $0x210] sm:$0xff] %vm63, %v11420
  %11519 = vst.msk [vmem:[#allocation4 + $0x218] sm:$0xff] %vm63, %v11421
  %11520 = vst.msk [vmem:[#allocation4 + $0x220] sm:$0xff] %vm63, %v11422
  %11521 = vst.msk [vmem:[#allocation4 + $0x228] sm:$0xff] %vm63, %v11423
  %11522 = vst.msk [vmem:[#allocation4 + $0x230] sm:$0xff] %vm63, %v11424
  %11523 = vst.msk [vmem:[#allocation4 + $0x238] sm:$0xff] %vm63, %v11425
  %11524 = vst.msk [vmem:[#allocation4 + $0x240] sm:$0xff] %vm63, %v11426
  %11525 = vst.msk [vmem:[#allocation4 + $0x248] sm:$0xff] %vm63, %v11427
  %11526 = vst.msk [vmem:[#allocation4 + $0x250] sm:$0xff] %vm63, %v11428
  %11527 = vst.msk [vmem:[#allocation4 + $0x258] sm:$0xff] %vm63, %v11429
  %11528 = vst.msk [vmem:[#allocation4 + $0x260] sm:$0xff] %vm63, %v11430
  %11529 = vst.msk [vmem:[#allocation4 + $0x268] sm:$0xff] %vm63, %v11431
  %11530 = vst.msk [vmem:[#allocation4 + $0x270] sm:$0xff] %vm63, %v11432
  %11531 = vst.msk [vmem:[#allocation4 + $0x278] sm:$0xff] %vm63, %v11433
  %11532 = vst.msk [vmem:[#allocation4 + $0x280] sm:$0xff] %vm63, %v11434
  %11533 = vst.msk [vmem:[#allocation4 + $0x288] sm:$0xff] %vm63, %v11435
  %11534 = vst.msk [vmem:[#allocation4 + $0x290] sm:$0xff] %vm63, %v11436
  %11535 = vst.msk [vmem:[#allocation4 + $0x298] sm:$0xff] %vm63, %v11437
  %11536 = vst.msk [vmem:[#allocation4 + $0x2a0] sm:$0xff] %vm63, %v11438
  %11537 = vst.msk [vmem:[#allocation4 + $0x2a8] sm:$0xff] %vm63, %v11439
  %11538 = vst.msk [vmem:[#allocation4 + $0x2b0] sm:$0xff] %vm63, %v11440
  %11539 = vst.msk [vmem:[#allocation4 + $0x2b8] sm:$0xff] %vm63, %v11441
  %11540 = vst.msk [vmem:[#allocation4 + $0x2c0] sm:$0xff] %vm63, %v11442
  %11541 = vst.msk [vmem:[#allocation4 + $0x2c8] sm:$0xff] %vm63, %v11443
  %11542 = vst.msk [vmem:[#allocation4 + $0x2d0] sm:$0xff] %vm63, %v11444
  %11543 = vst.msk [vmem:[#allocation4 + $0x2d8] sm:$0xff] %vm63, %v11445
  %11544 = vst.msk [vmem:[#allocation4 + $0x2e0] sm:$0xff] %vm63, %v11446
  %11545 = vst.msk [vmem:[#allocation4 + $0x2e8] sm:$0xff] %vm63, %v11447
  %11546 = vst.msk [vmem:[#allocation4 + $0x2f0] sm:$0xff] %vm63, %v11448
  %11547 = vst.msk [vmem:[#allocation4 + $0x2f8] sm:$0xff] %vm63, %v11449
  %11548 = vst.msk [vmem:[#allocation4 + $0x300] sm:$0xff] %vm63, %v11450
  %11549 = vst.msk [vmem:[#allocation4 + $0x308] sm:$0xff] %vm63, %v11451
  %v11550 = vld [vmem:[#allocation4] sm:$0xff]
  %v11551 = vld [vmem:[#allocation4 + $0x8] sm:$0xff]
  %v11552 = vld [vmem:[#allocation4 + $0x10] sm:$0xff]
  %v11553 = vld [vmem:[#allocation4 + $0x18] sm:$0xff]
  %v11554 = vld [vmem:[#allocation4 + $0x20] sm:$0xff]
  %v11555 = vld [vmem:[#allocation4 + $0x28] sm:$0xff]
  %v11556 = vld [vmem:[#allocation4 + $0x30] sm:$0xff]
  %v11557 = vld [vmem:[#allocation4 + $0x38] sm:$0xff]
  %v11558 = vld [vmem:[#allocation4 + $0x40] sm:$0xff]
  %v11559 = vld [vmem:[#allocation4 + $0x48] sm:$0xff]
  %v11560 = vld [vmem:[#allocation4 + $0x50] sm:$0xff]
  %v11561 = vld [vmem:[#allocation4 + $0x58] sm:$0xff]
  %v11562 = vld [vmem:[#allocation4 + $0x60] sm:$0xff]
  %v11563 = vld [vmem:[#allocation4 + $0x68] sm:$0xff]
  %v11564 = vld [vmem:[#allocation4 + $0x70] sm:$0xff]
  %v11565 = vld [vmem:[#allocation4 + $0x78] sm:$0xff]
  %v11566 = vld [vmem:[#allocation4 + $0x80] sm:$0xff]
  %v11567 = vld [vmem:[#allocation4 + $0x88] sm:$0xff]
  %v11568 = vld [vmem:[#allocation4 + $0x90] sm:$0xff]
  %v11569 = vld [vmem:[#allocation4 + $0x98] sm:$0xff]
  %v11570 = vld [vmem:[#allocation4 + $0xa0] sm:$0xff]
  %v11571 = vld [vmem:[#allocation4 + $0xa8] sm:$0xff]
  %v11572 = vld [vmem:[#allocation4 + $0xb0] sm:$0xff]
  %v11573 = vld [vmem:[#allocation4 + $0xb8] sm:$0xff]
  %v11574 = vld [vmem:[#allocation4 + $0xc0] sm:$0xff]
  %v11575 = vld [vmem:[#allocation4 + $0xc8] sm:$0xff]
  %v11576 = vld [vmem:[#allocation4 + $0xd0] sm:$0xff]
  %v11577 = vld [vmem:[#allocation4 + $0xd8] sm:$0xff]
  %v11578 = vld [vmem:[#allocation4 + $0xe0] sm:$0xff]
  %v11579 = vld [vmem:[#allocation4 + $0xe8] sm:$0xff]
  %v11580 = vld [vmem:[#allocation4 + $0xf0] sm:$0xff]
  %v11581 = vld [vmem:[#allocation4 + $0xf8] sm:$0xff]
  %v11582 = vld [vmem:[#allocation4 + $0x100] sm:$0xff]
  %v11583 = vld [vmem:[#allocation4 + $0x108] sm:$0xff]
  %v11584 = vld [vmem:[#allocation4 + $0x110] sm:$0xff]
  %v11585 = vld [vmem:[#allocation4 + $0x118] sm:$0xff]
  %v11586 = vld [vmem:[#allocation4 + $0x120] sm:$0xff]
  %v11587 = vld [vmem:[#allocation4 + $0x128] sm:$0xff]
  %v11588 = vld [vmem:[#allocation4 + $0x130] sm:$0xff]
  %v11589 = vld [vmem:[#allocation4 + $0x138] sm:$0xff]
  %v11590 = vld [vmem:[#allocation4 + $0x140] sm:$0xff]
  %v11591 = vld [vmem:[#allocation4 + $0x148] sm:$0xff]
  %v11592 = vld [vmem:[#allocation4 + $0x150] sm:$0xff]
  %v11593 = vld [vmem:[#allocation4 + $0x158] sm:$0xff]
  %v11594 = vld [vmem:[#allocation4 + $0x160] sm:$0xff]
  %v11595 = vld [vmem:[#allocation4 + $0x168] sm:$0xff]
  %v11596 = vld [vmem:[#allocation4 + $0x170] sm:$0xff]
  %v11597 = vld [vmem:[#allocation4 + $0x178] sm:$0xff]
  %v11598 = vld [vmem:[#allocation4 + $0x180] sm:$0xff]
  %v11599 = vld [vmem:[#allocation4 + $0x188] sm:$0xff]
  %v11600 = vld [vmem:[#allocation4 + $0x190] sm:$0xff]
  %v11601 = vld [vmem:[#allocation4 + $0x198] sm:$0xff]
  %v11602 = vld [vmem:[#allocation4 + $0x1a0] sm:$0xff]
  %v11603 = vld [vmem:[#allocation4 + $0x1a8] sm:$0xff]
  %v11604 = vld [vmem:[#allocation4 + $0x1b0] sm:$0xff]
  %v11605 = vld [vmem:[#allocation4 + $0x1b8] sm:$0xff]
  %v11606 = vld [vmem:[#allocation4 + $0x1c0] sm:$0xff]
  %v11607 = vld [vmem:[#allocation4 + $0x1c8] sm:$0xff]
  %v11608 = vld [vmem:[#allocation4 + $0x1d0] sm:$0xff]
  %v11609 = vld [vmem:[#allocation4 + $0x1d8] sm:$0xff]
  %v11610 = vld [vmem:[#allocation4 + $0x1e0] sm:$0xff]
  %v11611 = vld [vmem:[#allocation4 + $0x1e8] sm:$0xff]
  %v11612 = vld [vmem:[#allocation4 + $0x1f0] sm:$0xff]
  %v11613 = vld [vmem:[#allocation4 + $0x1f8] sm:$0xff]
  %v11614 = vld [vmem:[#allocation4 + $0x200] sm:$0xff]
  %v11615 = vld [vmem:[#allocation4 + $0x208] sm:$0xff]
  %v11616 = vld [vmem:[#allocation4 + $0x210] sm:$0xff]
  %v11617 = vld [vmem:[#allocation4 + $0x218] sm:$0xff]
  %v11618 = vld [vmem:[#allocation4 + $0x220] sm:$0xff]
  %v11619 = vld [vmem:[#allocation4 + $0x228] sm:$0xff]
  %v11620 = vld [vmem:[#allocation4 + $0x230] sm:$0xff]
  %v11621 = vld [vmem:[#allocation4 + $0x238] sm:$0xff]
  %v11622 = vld [vmem:[#allocation4 + $0x240] sm:$0xff]
  %v11623 = vld [vmem:[#allocation4 + $0x248] sm:$0xff]
  %v11624 = vld [vmem:[#allocation4 + $0x250] sm:$0xff]
  %v11625 = vld [vmem:[#allocation4 + $0x258] sm:$0xff]
  %v11626 = vld [vmem:[#allocation4 + $0x260] sm:$0xff]
  %v11627 = vld [vmem:[#allocation4 + $0x268] sm:$0xff]
  %v11628 = vld [vmem:[#allocation4 + $0x270] sm:$0xff]
  %v11629 = vld [vmem:[#allocation4 + $0x278] sm:$0xff]
  %v11630 = vld [vmem:[#allocation4 + $0x280] sm:$0xff]
  %v11631 = vld [vmem:[#allocation4 + $0x288] sm:$0xff]
  %v11632 = vld [vmem:[#allocation4 + $0x290] sm:$0xff]
  %v11633 = vld [vmem:[#allocation4 + $0x298] sm:$0xff]
  %v11634 = vld [vmem:[#allocation4 + $0x2a0] sm:$0xff]
  %v11635 = vld [vmem:[#allocation4 + $0x2a8] sm:$0xff]
  %v11636 = vld [vmem:[#allocation4 + $0x2b0] sm:$0xff]
  %v11637 = vld [vmem:[#allocation4 + $0x2b8] sm:$0xff]
  %v11638 = vld [vmem:[#allocation4 + $0x2c0] sm:$0xff]
  %v11639 = vld [vmem:[#allocation4 + $0x2c8] sm:$0xff]
  %v11640 = vld [vmem:[#allocation4 + $0x2d0] sm:$0xff]
  %v11641 = vld [vmem:[#allocation4 + $0x2d8] sm:$0xff]
  %v11642 = vld [vmem:[#allocation4 + $0x2e0] sm:$0xff]
  %v11643 = vld [vmem:[#allocation4 + $0x2e8] sm:$0xff]
  %v11644 = vld [vmem:[#allocation4 + $0x2f0] sm:$0xff]
  %v11645 = vld [vmem:[#allocation4 + $0x2f8] sm:$0xff]
  %v11646 = vld [vmem:[#allocation4 + $0x300] sm:$0xff]
  %v11647 = vld [vmem:[#allocation4 + $0x308] sm:$0xff]
  %v11648 = vld [vmem:[#allocation4 + $0x2] sm:$0xff]
  %v11649 = vld [vmem:[#allocation4 + $0xa] sm:$0xff]
  %v11650 = vld [vmem:[#allocation4 + $0x12] sm:$0xff]
  %v11651 = vld [vmem:[#allocation4 + $0x1a] sm:$0xff]
  %v11652 = vld [vmem:[#allocation4 + $0x22] sm:$0xff]
  %v11653 = vld [vmem:[#allocation4 + $0x2a] sm:$0xff]
  %v11654 = vld [vmem:[#allocation4 + $0x32] sm:$0xff]
  %v11655 = vld [vmem:[#allocation4 + $0x3a] sm:$0xff]
  %v11656 = vld [vmem:[#allocation4 + $0x42] sm:$0xff]
  %v11657 = vld [vmem:[#allocation4 + $0x4a] sm:$0xff]
  %v11658 = vld [vmem:[#allocation4 + $0x52] sm:$0xff]
  %v11659 = vld [vmem:[#allocation4 + $0x5a] sm:$0xff]
  %v11660 = vld [vmem:[#allocation4 + $0x62] sm:$0xff]
  %v11661 = vld [vmem:[#allocation4 + $0x6a] sm:$0xff]
  %v11662 = vld [vmem:[#allocation4 + $0x72] sm:$0xff]
  %v11663 = vld [vmem:[#allocation4 + $0x7a] sm:$0xff]
  %v11664 = vld [vmem:[#allocation4 + $0x82] sm:$0xff]
  %v11665 = vld [vmem:[#allocation4 + $0x8a] sm:$0xff]
  %v11666 = vld [vmem:[#allocation4 + $0x92] sm:$0xff]
  %v11667 = vld [vmem:[#allocation4 + $0x9a] sm:$0xff]
  %v11668 = vld [vmem:[#allocation4 + $0xa2] sm:$0xff]
  %v11669 = vld [vmem:[#allocation4 + $0xaa] sm:$0xff]
  %v11670 = vld [vmem:[#allocation4 + $0xb2] sm:$0xff]
  %v11671 = vld [vmem:[#allocation4 + $0xba] sm:$0xff]
  %v11672 = vld [vmem:[#allocation4 + $0xc2] sm:$0xff]
  %v11673 = vld [vmem:[#allocation4 + $0xca] sm:$0xff]
  %v11674 = vld [vmem:[#allocation4 + $0xd2] sm:$0xff]
  %v11675 = vld [vmem:[#allocation4 + $0xda] sm:$0xff]
  %v11676 = vld [vmem:[#allocation4 + $0xe2] sm:$0xff]
  %v11677 = vld [vmem:[#allocation4 + $0xea] sm:$0xff]
  %v11678 = vld [vmem:[#allocation4 + $0xf2] sm:$0xff]
  %v11679 = vld [vmem:[#allocation4 + $0xfa] sm:$0xff]
  %v11680 = vld [vmem:[#allocation4 + $0x102] sm:$0xff]
  %v11681 = vld [vmem:[#allocation4 + $0x10a] sm:$0xff]
  %v11682 = vld [vmem:[#allocation4 + $0x112] sm:$0xff]
  %v11683 = vld [vmem:[#allocation4 + $0x11a] sm:$0xff]
  %v11684 = vld [vmem:[#allocation4 + $0x122] sm:$0xff]
  %v11685 = vld [vmem:[#allocation4 + $0x12a] sm:$0xff]
  %v11686 = vld [vmem:[#allocation4 + $0x132] sm:$0xff]
  %v11687 = vld [vmem:[#allocation4 + $0x13a] sm:$0xff]
  %v11688 = vld [vmem:[#allocation4 + $0x142] sm:$0xff]
  %v11689 = vld [vmem:[#allocation4 + $0x14a] sm:$0xff]
  %v11690 = vld [vmem:[#allocation4 + $0x152] sm:$0xff]
  %v11691 = vld [vmem:[#allocation4 + $0x15a] sm:$0xff]
  %v11692 = vld [vmem:[#allocation4 + $0x162] sm:$0xff]
  %v11693 = vld [vmem:[#allocation4 + $0x16a] sm:$0xff]
  %v11694 = vld [vmem:[#allocation4 + $0x172] sm:$0xff]
  %v11695 = vld [vmem:[#allocation4 + $0x17a] sm:$0xff]
  %v11696 = vld [vmem:[#allocation4 + $0x182] sm:$0xff]
  %v11697 = vld [vmem:[#allocation4 + $0x18a] sm:$0xff]
  %v11698 = vld [vmem:[#allocation4 + $0x192] sm:$0xff]
  %v11699 = vld [vmem:[#allocation4 + $0x19a] sm:$0xff]
  %v11700 = vld [vmem:[#allocation4 + $0x1a2] sm:$0xff]
  %v11701 = vld [vmem:[#allocation4 + $0x1aa] sm:$0xff]
  %v11702 = vld [vmem:[#allocation4 + $0x1b2] sm:$0xff]
  %v11703 = vld [vmem:[#allocation4 + $0x1ba] sm:$0xff]
  %v11704 = vld [vmem:[#allocation4 + $0x1c2] sm:$0xff]
  %v11705 = vld [vmem:[#allocation4 + $0x1ca] sm:$0xff]
  %v11706 = vld [vmem:[#allocation4 + $0x1d2] sm:$0xff]
  %v11707 = vld [vmem:[#allocation4 + $0x1da] sm:$0xff]
  %v11708 = vld [vmem:[#allocation4 + $0x1e2] sm:$0xff]
  %v11709 = vld [vmem:[#allocation4 + $0x1ea] sm:$0xff]
  %v11710 = vld [vmem:[#allocation4 + $0x1f2] sm:$0xff]
  %v11711 = vld [vmem:[#allocation4 + $0x1fa] sm:$0xff]
  %v11712 = vld [vmem:[#allocation4 + $0x202] sm:$0xff]
  %v11713 = vld [vmem:[#allocation4 + $0x20a] sm:$0xff]
  %v11714 = vld [vmem:[#allocation4 + $0x212] sm:$0xff]
  %v11715 = vld [vmem:[#allocation4 + $0x21a] sm:$0xff]
  %v11716 = vld [vmem:[#allocation4 + $0x222] sm:$0xff]
  %v11717 = vld [vmem:[#allocation4 + $0x22a] sm:$0xff]
  %v11718 = vld [vmem:[#allocation4 + $0x232] sm:$0xff]
  %v11719 = vld [vmem:[#allocation4 + $0x23a] sm:$0xff]
  %v11720 = vld [vmem:[#allocation4 + $0x242] sm:$0xff]
  %v11721 = vld [vmem:[#allocation4 + $0x24a] sm:$0xff]
  %v11722 = vld [vmem:[#allocation4 + $0x252] sm:$0xff]
  %v11723 = vld [vmem:[#allocation4 + $0x25a] sm:$0xff]
  %v11724 = vld [vmem:[#allocation4 + $0x262] sm:$0xff]
  %v11725 = vld [vmem:[#allocation4 + $0x26a] sm:$0xff]
  %v11726 = vld [vmem:[#allocation4 + $0x272] sm:$0xff]
  %v11727 = vld [vmem:[#allocation4 + $0x27a] sm:$0xff]
  %v11728 = vld [vmem:[#allocation4 + $0x282] sm:$0xff]
  %v11729 = vld [vmem:[#allocation4 + $0x28a] sm:$0xff]
  %v11730 = vld [vmem:[#allocation4 + $0x292] sm:$0xff]
  %v11731 = vld [vmem:[#allocation4 + $0x29a] sm:$0xff]
  %v11732 = vld [vmem:[#allocation4 + $0x2a2] sm:$0xff]
  %v11733 = vld [vmem:[#allocation4 + $0x2aa] sm:$0xff]
  %v11734 = vld [vmem:[#allocation4 + $0x2b2] sm:$0xff]
  %v11735 = vld [vmem:[#allocation4 + $0x2ba] sm:$0xff]
  %v11736 = vld [vmem:[#allocation4 + $0x2c2] sm:$0xff]
  %v11737 = vld [vmem:[#allocation4 + $0x2ca] sm:$0xff]
  %v11738 = vld [vmem:[#allocation4 + $0x2d2] sm:$0xff]
  %v11739 = vld [vmem:[#allocation4 + $0x2da] sm:$0xff]
  %v11740 = vld [vmem:[#allocation4 + $0x2e2] sm:$0xff]
  %v11741 = vld [vmem:[#allocation4 + $0x2ea] sm:$0xff]
  %v11742 = vld [vmem:[#allocation4 + $0x2f2] sm:$0xff]
  %v11743 = vld [vmem:[#allocation4 + $0x2fa] sm:$0xff]
  %v11744 = vld [vmem:[#allocation4 + $0x302] sm:$0xff]
  %v11745 = vld [vmem:[#allocation4 + $0x30a] sm:$0xff]
  %v11746 = vmax.f32 %v11550, %v11648
  %v11747 = vmax.f32 %v11551, %v11649
  %v11748 = vmax.f32 %v11552, %v11650
  %v11749 = vmax.f32 %v11553, %v11651
  %v11750 = vmax.f32 %v11554, %v11652
  %v11751 = vmax.f32 %v11555, %v11653
  %v11752 = vmax.f32 %v11556, %v11654
  %v11753 = vmax.f32 %v11557, %v11655
  %v11754 = vmax.f32 %v11558, %v11656
  %v11755 = vmax.f32 %v11559, %v11657
  %v11756 = vmax.f32 %v11560, %v11658
  %v11757 = vmax.f32 %v11561, %v11659
  %v11758 = vmax.f32 %v11562, %v11660
  %v11759 = vmax.f32 %v11563, %v11661
  %v11760 = vmax.f32 %v11564, %v11662
  %v11761 = vmax.f32 %v11565, %v11663
  %v11762 = vmax.f32 %v11566, %v11664
  %v11763 = vmax.f32 %v11567, %v11665
  %v11764 = vmax.f32 %v11568, %v11666
  %v11765 = vmax.f32 %v11569, %v11667
  %v11766 = vmax.f32 %v11570, %v11668
  %v11767 = vmax.f32 %v11571, %v11669
  %v11768 = vmax.f32 %v11572, %v11670
  %v11769 = vmax.f32 %v11573, %v11671
  %v11770 = vmax.f32 %v11574, %v11672
  %v11771 = vmax.f32 %v11575, %v11673
  %v11772 = vmax.f32 %v11576, %v11674
  %v11773 = vmax.f32 %v11577, %v11675
  %v11774 = vmax.f32 %v11578, %v11676
  %v11775 = vmax.f32 %v11579, %v11677
  %v11776 = vmax.f32 %v11580, %v11678
  %v11777 = vmax.f32 %v11581, %v11679
  %v11778 = vmax.f32 %v11582, %v11680
  %v11779 = vmax.f32 %v11583, %v11681
  %v11780 = vmax.f32 %v11584, %v11682
  %v11781 = vmax.f32 %v11585, %v11683
  %v11782 = vmax.f32 %v11586, %v11684
  %v11783 = vmax.f32 %v11587, %v11685
  %v11784 = vmax.f32 %v11588, %v11686
  %v11785 = vmax.f32 %v11589, %v11687
  %v11786 = vmax.f32 %v11590, %v11688
  %v11787 = vmax.f32 %v11591, %v11689
  %v11788 = vmax.f32 %v11592, %v11690
  %v11789 = vmax.f32 %v11593, %v11691
  %v11790 = vmax.f32 %v11594, %v11692
  %v11791 = vmax.f32 %v11595, %v11693
  %v11792 = vmax.f32 %v11596, %v11694
  %v11793 = vmax.f32 %v11597, %v11695
  %v11794 = vmax.f32 %v11598, %v11696
  %v11795 = vmax.f32 %v11599, %v11697
  %v11796 = vmax.f32 %v11600, %v11698
  %v11797 = vmax.f32 %v11601, %v11699
  %v11798 = vmax.f32 %v11602, %v11700
  %v11799 = vmax.f32 %v11603, %v11701
  %v11800 = vmax.f32 %v11604, %v11702
  %v11801 = vmax.f32 %v11605, %v11703
  %v11802 = vmax.f32 %v11606, %v11704
  %v11803 = vmax.f32 %v11607, %v11705
  %v11804 = vmax.f32 %v11608, %v11706
  %v11805 = vmax.f32 %v11609, %v11707
  %v11806 = vmax.f32 %v11610, %v11708
  %v11807 = vmax.f32 %v11611, %v11709
  %v11808 = vmax.f32 %v11612, %v11710
  %v11809 = vmax.f32 %v11613, %v11711
  %v11810 = vmax.f32 %v11614, %v11712
  %v11811 = vmax.f32 %v11615, %v11713
  %v11812 = vmax.f32 %v11616, %v11714
  %v11813 = vmax.f32 %v11617, %v11715
  %v11814 = vmax.f32 %v11618, %v11716
  %v11815 = vmax.f32 %v11619, %v11717
  %v11816 = vmax.f32 %v11620, %v11718
  %v11817 = vmax.f32 %v11621, %v11719
  %v11818 = vmax.f32 %v11622, %v11720
  %v11819 = vmax.f32 %v11623, %v11721
  %v11820 = vmax.f32 %v11624, %v11722
  %v11821 = vmax.f32 %v11625, %v11723
  %v11822 = vmax.f32 %v11626, %v11724
  %v11823 = vmax.f32 %v11627, %v11725
  %v11824 = vmax.f32 %v11628, %v11726
  %v11825 = vmax.f32 %v11629, %v11727
  %v11826 = vmax.f32 %v11630, %v11728
  %v11827 = vmax.f32 %v11631, %v11729
  %v11828 = vmax.f32 %v11632, %v11730
  %v11829 = vmax.f32 %v11633, %v11731
  %v11830 = vmax.f32 %v11634, %v11732
  %v11831 = vmax.f32 %v11635, %v11733
  %v11832 = vmax.f32 %v11636, %v11734
  %v11833 = vmax.f32 %v11637, %v11735
  %v11834 = vmax.f32 %v11638, %v11736
  %v11835 = vmax.f32 %v11639, %v11737
  %v11836 = vmax.f32 %v11640, %v11738
  %v11837 = vmax.f32 %v11641, %v11739
  %v11838 = vmax.f32 %v11642, %v11740
  %v11839 = vmax.f32 %v11643, %v11741
  %v11840 = vmax.f32 %v11644, %v11742
  %v11841 = vmax.f32 %v11645, %v11743
  %v11842 = vmax.f32 %v11646, %v11744
  %v11843 = vmax.f32 %v11647, %v11745
  %v11844 = vld [vmem:[#allocation4 + $0x1c] sm:$0xff]
  %v11845 = vld [vmem:[#allocation4 + $0x24] sm:$0xff]
  %v11846 = vld [vmem:[#allocation4 + $0x2c] sm:$0xff]
  %v11847 = vld [vmem:[#allocation4 + $0x34] sm:$0xff]
  %v11848 = vld [vmem:[#allocation4 + $0x3c] sm:$0xff]
  %v11849 = vld [vmem:[#allocation4 + $0x44] sm:$0xff]
  %v11850 = vld [vmem:[#allocation4 + $0x4c] sm:$0xff]
  %v11851 = vld [vmem:[#allocation4 + $0x54] sm:$0xff]
  %v11852 = vld [vmem:[#allocation4 + $0x5c] sm:$0xff]
  %v11853 = vld [vmem:[#allocation4 + $0x64] sm:$0xff]
  %v11854 = vld [vmem:[#allocation4 + $0x6c] sm:$0xff]
  %v11855 = vld [vmem:[#allocation4 + $0x74] sm:$0xff]
  %v11856 = vld [vmem:[#allocation4 + $0x7c] sm:$0xff]
  %v11857 = vld [vmem:[#allocation4 + $0x84] sm:$0xff]
  %v11858 = vld [vmem:[#allocation4 + $0x8c] sm:$0xff]
  %v11859 = vld [vmem:[#allocation4 + $0x94] sm:$0xff]
  %v11860 = vld [vmem:[#allocation4 + $0x9c] sm:$0xff]
  %v11861 = vld [vmem:[#allocation4 + $0xa4] sm:$0xff]
  %v11862 = vld [vmem:[#allocation4 + $0xac] sm:$0xff]
  %v11863 = vld [vmem:[#allocation4 + $0xb4] sm:$0xff]
  %v11864 = vld [vmem:[#allocation4 + $0xbc] sm:$0xff]
  %v11865 = vld [vmem:[#allocation4 + $0xc4] sm:$0xff]
  %v11866 = vld [vmem:[#allocation4 + $0xcc] sm:$0xff]
  %v11867 = vld [vmem:[#allocation4 + $0xd4] sm:$0xff]
  %v11868 = vld [vmem:[#allocation4 + $0xdc] sm:$0xff]
  %v11869 = vld [vmem:[#allocation4 + $0xe4] sm:$0xff]
  %v11870 = vld [vmem:[#allocation4 + $0xec] sm:$0xff]
  %v11871 = vld [vmem:[#allocation4 + $0xf4] sm:$0xff]
  %v11872 = vld [vmem:[#allocation4 + $0xfc] sm:$0xff]
  %v11873 = vld [vmem:[#allocation4 + $0x104] sm:$0xff]
  %v11874 = vld [vmem:[#allocation4 + $0x10c] sm:$0xff]
  %v11875 = vld [vmem:[#allocation4 + $0x114] sm:$0xff]
  %v11876 = vld [vmem:[#allocation4 + $0x11c] sm:$0xff]
  %v11877 = vld [vmem:[#allocation4 + $0x124] sm:$0xff]
  %v11878 = vld [vmem:[#allocation4 + $0x12c] sm:$0xff]
  %v11879 = vld [vmem:[#allocation4 + $0x134] sm:$0xff]
  %v11880 = vld [vmem:[#allocation4 + $0x13c] sm:$0xff]
  %v11881 = vld [vmem:[#allocation4 + $0x144] sm:$0xff]
  %v11882 = vld [vmem:[#allocation4 + $0x14c] sm:$0xff]
  %v11883 = vld [vmem:[#allocation4 + $0x154] sm:$0xff]
  %v11884 = vld [vmem:[#allocation4 + $0x15c] sm:$0xff]
  %v11885 = vld [vmem:[#allocation4 + $0x164] sm:$0xff]
  %v11886 = vld [vmem:[#allocation4 + $0x16c] sm:$0xff]
  %v11887 = vld [vmem:[#allocation4 + $0x174] sm:$0xff]
  %v11888 = vld [vmem:[#allocation4 + $0x17c] sm:$0xff]
  %v11889 = vld [vmem:[#allocation4 + $0x184] sm:$0xff]
  %v11890 = vld [vmem:[#allocation4 + $0x18c] sm:$0xff]
  %v11891 = vld [vmem:[#allocation4 + $0x194] sm:$0xff]
  %v11892 = vld [vmem:[#allocation4 + $0x19c] sm:$0xff]
  %v11893 = vld [vmem:[#allocation4 + $0x1a4] sm:$0xff]
  %v11894 = vld [vmem:[#allocation4 + $0x1ac] sm:$0xff]
  %v11895 = vld [vmem:[#allocation4 + $0x1b4] sm:$0xff]
  %v11896 = vld [vmem:[#allocation4 + $0x1bc] sm:$0xff]
  %v11897 = vld [vmem:[#allocation4 + $0x1c4] sm:$0xff]
  %v11898 = vld [vmem:[#allocation4 + $0x1cc] sm:$0xff]
  %v11899 = vld [vmem:[#allocation4 + $0x1d4] sm:$0xff]
  %v11900 = vld [vmem:[#allocation4 + $0x1dc] sm:$0xff]
  %v11901 = vld [vmem:[#allocation4 + $0x1e4] sm:$0xff]
  %v11902 = vld [vmem:[#allocation4 + $0x1ec] sm:$0xff]
  %v11903 = vld [vmem:[#allocation4 + $0x1f4] sm:$0xff]
  %v11904 = vld [vmem:[#allocation4 + $0x1fc] sm:$0xff]
  %v11905 = vld [vmem:[#allocation4 + $0x204] sm:$0xff]
  %v11906 = vld [vmem:[#allocation4 + $0x20c] sm:$0xff]
  %v11907 = vld [vmem:[#allocation4 + $0x214] sm:$0xff]
  %v11908 = vld [vmem:[#allocation4 + $0x21c] sm:$0xff]
  %v11909 = vld [vmem:[#allocation4 + $0x224] sm:$0xff]
  %v11910 = vld [vmem:[#allocation4 + $0x22c] sm:$0xff]
  %v11911 = vld [vmem:[#allocation4 + $0x234] sm:$0xff]
  %v11912 = vld [vmem:[#allocation4 + $0x23c] sm:$0xff]
  %v11913 = vld [vmem:[#allocation4 + $0x244] sm:$0xff]
  %v11914 = vld [vmem:[#allocation4 + $0x24c] sm:$0xff]
  %v11915 = vld [vmem:[#allocation4 + $0x254] sm:$0xff]
  %v11916 = vld [vmem:[#allocation4 + $0x25c] sm:$0xff]
  %v11917 = vld [vmem:[#allocation4 + $0x264] sm:$0xff]
  %v11918 = vld [vmem:[#allocation4 + $0x26c] sm:$0xff]
  %v11919 = vld [vmem:[#allocation4 + $0x274] sm:$0xff]
  %v11920 = vld [vmem:[#allocation4 + $0x27c] sm:$0xff]
  %v11921 = vld [vmem:[#allocation4 + $0x284] sm:$0xff]
  %v11922 = vld [vmem:[#allocation4 + $0x28c] sm:$0xff]
  %v11923 = vld [vmem:[#allocation4 + $0x294] sm:$0xff]
  %v11924 = vld [vmem:[#allocation4 + $0x29c] sm:$0xff]
  %v11925 = vld [vmem:[#allocation4 + $0x2a4] sm:$0xff]
  %v11926 = vld [vmem:[#allocation4 + $0x2ac] sm:$0xff]
  %v11927 = vld [vmem:[#allocation4 + $0x2b4] sm:$0xff]
  %v11928 = vld [vmem:[#allocation4 + $0x2bc] sm:$0xff]
  %v11929 = vld [vmem:[#allocation4 + $0x2c4] sm:$0xff]
  %v11930 = vld [vmem:[#allocation4 + $0x2cc] sm:$0xff]
  %v11931 = vld [vmem:[#allocation4 + $0x2d4] sm:$0xff]
  %v11932 = vld [vmem:[#allocation4 + $0x2dc] sm:$0xff]
  %v11933 = vld [vmem:[#allocation4 + $0x2e4] sm:$0xff]
  %v11934 = vld [vmem:[#allocation4 + $0x2ec] sm:$0xff]
  %v11935 = vld [vmem:[#allocation4 + $0x2f4] sm:$0xff]
  %v11936 = vld [vmem:[#allocation4 + $0x2fc] sm:$0xff]
  %v11937 = vld [vmem:[#allocation4 + $0x304] sm:$0xff]
  %v11938 = vld [vmem:[#allocation4 + $0x30c] sm:$0xff]
  %v11939 = vld [vmem:[#allocation4 + $0x314] sm:$0xff]
  %v11940 = vld [vmem:[#allocation4 + $0x31c] sm:$0xff]
  %v11941 = vld [vmem:[#allocation4 + $0x324] sm:$0xff]
  %v11942 = vmax.f32 %v11746, %v11844
  %v11943 = vmax.f32 %v11747, %v11845
  %v11944 = vmax.f32 %v11748, %v11846
  %v11945 = vmax.f32 %v11749, %v11847
  %v11946 = vmax.f32 %v11750, %v11848
  %v11947 = vmax.f32 %v11751, %v11849
  %v11948 = vmax.f32 %v11752, %v11850
  %v11949 = vmax.f32 %v11753, %v11851
  %v11950 = vmax.f32 %v11754, %v11852
  %v11951 = vmax.f32 %v11755, %v11853
  %v11952 = vmax.f32 %v11756, %v11854
  %v11953 = vmax.f32 %v11757, %v11855
  %v11954 = vmax.f32 %v11758, %v11856
  %v11955 = vmax.f32 %v11759, %v11857
  %v11956 = vmax.f32 %v11760, %v11858
  %v11957 = vmax.f32 %v11761, %v11859
  %v11958 = vmax.f32 %v11762, %v11860
  %v11959 = vmax.f32 %v11763, %v11861
  %v11960 = vmax.f32 %v11764, %v11862
  %v11961 = vmax.f32 %v11765, %v11863
  %v11962 = vmax.f32 %v11766, %v11864
  %v11963 = vmax.f32 %v11767, %v11865
  %v11964 = vmax.f32 %v11768, %v11866
  %v11965 = vmax.f32 %v11769, %v11867
  %v11966 = vmax.f32 %v11770, %v11868
  %v11967 = vmax.f32 %v11771, %v11869
  %v11968 = vmax.f32 %v11772, %v11870
  %v11969 = vmax.f32 %v11773, %v11871
  %v11970 = vmax.f32 %v11774, %v11872
  %v11971 = vmax.f32 %v11775, %v11873
  %v11972 = vmax.f32 %v11776, %v11874
  %v11973 = vmax.f32 %v11777, %v11875
  %v11974 = vmax.f32 %v11778, %v11876
  %v11975 = vmax.f32 %v11779, %v11877
  %v11976 = vmax.f32 %v11780, %v11878
  %v11977 = vmax.f32 %v11781, %v11879
  %v11978 = vmax.f32 %v11782, %v11880
  %v11979 = vmax.f32 %v11783, %v11881
  %v11980 = vmax.f32 %v11784, %v11882
  %v11981 = vmax.f32 %v11785, %v11883
  %v11982 = vmax.f32 %v11786, %v11884
  %v11983 = vmax.f32 %v11787, %v11885
  %v11984 = vmax.f32 %v11788, %v11886
  %v11985 = vmax.f32 %v11789, %v11887
  %v11986 = vmax.f32 %v11790, %v11888
  %v11987 = vmax.f32 %v11791, %v11889
  %v11988 = vmax.f32 %v11792, %v11890
  %v11989 = vmax.f32 %v11793, %v11891
  %v11990 = vmax.f32 %v11794, %v11892
  %v11991 = vmax.f32 %v11795, %v11893
  %v11992 = vmax.f32 %v11796, %v11894
  %v11993 = vmax.f32 %v11797, %v11895
  %v11994 = vmax.f32 %v11798, %v11896
  %v11995 = vmax.f32 %v11799, %v11897
  %v11996 = vmax.f32 %v11800, %v11898
  %v11997 = vmax.f32 %v11801, %v11899
  %v11998 = vmax.f32 %v11802, %v11900
  %v11999 = vmax.f32 %v11803, %v11901
  %v12000 = vmax.f32 %v11804, %v11902
  %v12001 = vmax.f32 %v11805, %v11903
  %v12002 = vmax.f32 %v11806, %v11904
  %v12003 = vmax.f32 %v11807, %v11905
  %v12004 = vmax.f32 %v11808, %v11906
  %v12005 = vmax.f32 %v11809, %v11907
  %v12006 = vmax.f32 %v11810, %v11908
  %v12007 = vmax.f32 %v11811, %v11909
  %v12008 = vmax.f32 %v11812, %v11910
  %v12009 = vmax.f32 %v11813, %v11911
  %v12010 = vmax.f32 %v11814, %v11912
  %v12011 = vmax.f32 %v11815, %v11913
  %v12012 = vmax.f32 %v11816, %v11914
  %v12013 = vmax.f32 %v11817, %v11915
  %v12014 = vmax.f32 %v11818, %v11916
  %v12015 = vmax.f32 %v11819, %v11917
  %v12016 = vmax.f32 %v11820, %v11918
  %v12017 = vmax.f32 %v11821, %v11919
  %v12018 = vmax.f32 %v11822, %v11920
  %v12019 = vmax.f32 %v11823, %v11921
  %v12020 = vmax.f32 %v11824, %v11922
  %v12021 = vmax.f32 %v11825, %v11923
  %v12022 = vmax.f32 %v11826, %v11924
  %v12023 = vmax.f32 %v11827, %v11925
  %v12024 = vmax.f32 %v11828, %v11926
  %v12025 = vmax.f32 %v11829, %v11927
  %v12026 = vmax.f32 %v11830, %v11928
  %v12027 = vmax.f32 %v11831, %v11929
  %v12028 = vmax.f32 %v11832, %v11930
  %v12029 = vmax.f32 %v11833, %v11931
  %v12030 = vmax.f32 %v11834, %v11932
  %v12031 = vmax.f32 %v11835, %v11933
  %v12032 = vmax.f32 %v11836, %v11934
  %v12033 = vmax.f32 %v11837, %v11935
  %v12034 = vmax.f32 %v11838, %v11936
  %v12035 = vmax.f32 %v11839, %v11937
  %v12036 = vmax.f32 %v11840, %v11938
  %v12037 = vmax.f32 %v11841, %v11939
  %v12038 = vmax.f32 %v11842, %v11940
  %v12039 = vmax.f32 %v11843, %v11941
  %v12040 = vld [vmem:[#allocation4 + $0x1e] sm:$0xff]
  %v12041 = vld [vmem:[#allocation4 + $0x26] sm:$0xff]
  %v12042 = vld [vmem:[#allocation4 + $0x2e] sm:$0xff]
  %v12043 = vld [vmem:[#allocation4 + $0x36] sm:$0xff]
  %v12044 = vld [vmem:[#allocation4 + $0x3e] sm:$0xff]
  %v12045 = vld [vmem:[#allocation4 + $0x46] sm:$0xff]
  %v12046 = vld [vmem:[#allocation4 + $0x4e] sm:$0xff]
  %v12047 = vld [vmem:[#allocation4 + $0x56] sm:$0xff]
  %v12048 = vld [vmem:[#allocation4 + $0x5e] sm:$0xff]
  %v12049 = vld [vmem:[#allocation4 + $0x66] sm:$0xff]
  %v12050 = vld [vmem:[#allocation4 + $0x6e] sm:$0xff]
  %v12051 = vld [vmem:[#allocation4 + $0x76] sm:$0xff]
  %v12052 = vld [vmem:[#allocation4 + $0x7e] sm:$0xff]
  %v12053 = vld [vmem:[#allocation4 + $0x86] sm:$0xff]
  %v12054 = vld [vmem:[#allocation4 + $0x8e] sm:$0xff]
  %v12055 = vld [vmem:[#allocation4 + $0x96] sm:$0xff]
  %v12056 = vld [vmem:[#allocation4 + $0x9e] sm:$0xff]
  %v12057 = vld [vmem:[#allocation4 + $0xa6] sm:$0xff]
  %v12058 = vld [vmem:[#allocation4 + $0xae] sm:$0xff]
  %v12059 = vld [vmem:[#allocation4 + $0xb6] sm:$0xff]
  %v12060 = vld [vmem:[#allocation4 + $0xbe] sm:$0xff]
  %v12061 = vld [vmem:[#allocation4 + $0xc6] sm:$0xff]
  %v12062 = vld [vmem:[#allocation4 + $0xce] sm:$0xff]
  %v12063 = vld [vmem:[#allocation4 + $0xd6] sm:$0xff]
  %v12064 = vld [vmem:[#allocation4 + $0xde] sm:$0xff]
  %v12065 = vld [vmem:[#allocation4 + $0xe6] sm:$0xff]
  %v12066 = vld [vmem:[#allocation4 + $0xee] sm:$0xff]
  %v12067 = vld [vmem:[#allocation4 + $0xf6] sm:$0xff]
  %v12068 = vld [vmem:[#allocation4 + $0xfe] sm:$0xff]
  %v12069 = vld [vmem:[#allocation4 + $0x106] sm:$0xff]
  %v12070 = vld [vmem:[#allocation4 + $0x10e] sm:$0xff]
  %v12071 = vld [vmem:[#allocation4 + $0x116] sm:$0xff]
  %v12072 = vld [vmem:[#allocation4 + $0x11e] sm:$0xff]
  %v12073 = vld [vmem:[#allocation4 + $0x126] sm:$0xff]
  %v12074 = vld [vmem:[#allocation4 + $0x12e] sm:$0xff]
  %v12075 = vld [vmem:[#allocation4 + $0x136] sm:$0xff]
  %v12076 = vld [vmem:[#allocation4 + $0x13e] sm:$0xff]
  %v12077 = vld [vmem:[#allocation4 + $0x146] sm:$0xff]
  %v12078 = vld [vmem:[#allocation4 + $0x14e] sm:$0xff]
  %v12079 = vld [vmem:[#allocation4 + $0x156] sm:$0xff]
  %v12080 = vld [vmem:[#allocation4 + $0x15e] sm:$0xff]
  %v12081 = vld [vmem:[#allocation4 + $0x166] sm:$0xff]
  %v12082 = vld [vmem:[#allocation4 + $0x16e] sm:$0xff]
  %v12083 = vld [vmem:[#allocation4 + $0x176] sm:$0xff]
  %v12084 = vld [vmem:[#allocation4 + $0x17e] sm:$0xff]
  %v12085 = vld [vmem:[#allocation4 + $0x186] sm:$0xff]
  %v12086 = vld [vmem:[#allocation4 + $0x18e] sm:$0xff]
  %v12087 = vld [vmem:[#allocation4 + $0x196] sm:$0xff]
  %v12088 = vld [vmem:[#allocation4 + $0x19e] sm:$0xff]
  %v12089 = vld [vmem:[#allocation4 + $0x1a6] sm:$0xff]
  %v12090 = vld [vmem:[#allocation4 + $0x1ae] sm:$0xff]
  %v12091 = vld [vmem:[#allocation4 + $0x1b6] sm:$0xff]
  %v12092 = vld [vmem:[#allocation4 + $0x1be] sm:$0xff]
  %v12093 = vld [vmem:[#allocation4 + $0x1c6] sm:$0xff]
  %v12094 = vld [vmem:[#allocation4 + $0x1ce] sm:$0xff]
  %v12095 = vld [vmem:[#allocation4 + $0x1d6] sm:$0xff]
  %v12096 = vld [vmem:[#allocation4 + $0x1de] sm:$0xff]
  %v12097 = vld [vmem:[#allocation4 + $0x1e6] sm:$0xff]
  %v12098 = vld [vmem:[#allocation4 + $0x1ee] sm:$0xff]
  %v12099 = vld [vmem:[#allocation4 + $0x1f6] sm:$0xff]
  %v12100 = vld [vmem:[#allocation4 + $0x1fe] sm:$0xff]
  %v12101 = vld [vmem:[#allocation4 + $0x206] sm:$0xff]
  %v12102 = vld [vmem:[#allocation4 + $0x20e] sm:$0xff]
  %v12103 = vld [vmem:[#allocation4 + $0x216] sm:$0xff]
  %v12104 = vld [vmem:[#allocation4 + $0x21e] sm:$0xff]
  %v12105 = vld [vmem:[#allocation4 + $0x226] sm:$0xff]
  %v12106 = vld [vmem:[#allocation4 + $0x22e] sm:$0xff]
  %v12107 = vld [vmem:[#allocation4 + $0x236] sm:$0xff]
  %v12108 = vld [vmem:[#allocation4 + $0x23e] sm:$0xff]
  %v12109 = vld [vmem:[#allocation4 + $0x246] sm:$0xff]
  %v12110 = vld [vmem:[#allocation4 + $0x24e] sm:$0xff]
  %v12111 = vld [vmem:[#allocation4 + $0x256] sm:$0xff]
  %v12112 = vld [vmem:[#allocation4 + $0x25e] sm:$0xff]
  %v12113 = vld [vmem:[#allocation4 + $0x266] sm:$0xff]
  %v12114 = vld [vmem:[#allocation4 + $0x26e] sm:$0xff]
  %v12115 = vld [vmem:[#allocation4 + $0x276] sm:$0xff]
  %v12116 = vld [vmem:[#allocation4 + $0x27e] sm:$0xff]
  %v12117 = vld [vmem:[#allocation4 + $0x286] sm:$0xff]
  %v12118 = vld [vmem:[#allocation4 + $0x28e] sm:$0xff]
  %v12119 = vld [vmem:[#allocation4 + $0x296] sm:$0xff]
  %v12120 = vld [vmem:[#allocation4 + $0x29e] sm:$0xff]
  %v12121 = vld [vmem:[#allocation4 + $0x2a6] sm:$0xff]
  %v12122 = vld [vmem:[#allocation4 + $0x2ae] sm:$0xff]
  %v12123 = vld [vmem:[#allocation4 + $0x2b6] sm:$0xff]
  %v12124 = vld [vmem:[#allocation4 + $0x2be] sm:$0xff]
  %v12125 = vld [vmem:[#allocation4 + $0x2c6] sm:$0xff]
  %v12126 = vld [vmem:[#allocation4 + $0x2ce] sm:$0xff]
  %v12127 = vld [vmem:[#allocation4 + $0x2d6] sm:$0xff]
  %v12128 = vld [vmem:[#allocation4 + $0x2de] sm:$0xff]
  %v12129 = vld [vmem:[#allocation4 + $0x2e6] sm:$0xff]
  %v12130 = vld [vmem:[#allocation4 + $0x2ee] sm:$0xff]
  %v12131 = vld [vmem:[#allocation4 + $0x2f6] sm:$0xff]
  %v12132 = vld [vmem:[#allocation4 + $0x2fe] sm:$0xff]
  %v12133 = vld [vmem:[#allocation4 + $0x306] sm:$0xff]
  %v12134 = vld [vmem:[#allocation4 + $0x30e] sm:$0xff]
  %v12135 = vld [vmem:[#allocation4 + $0x316] sm:$0xff]
  %v12136 = vld [vmem:[#allocation4 + $0x31e] sm:$0xff]
  %v12137 = vld [vmem:[#allocation4 + $0x326] sm:$0xff]
  %v12138 = vmax.f32 %v11942, %v12040
  %v12139 = vmax.f32 %v11943, %v12041
  %v12140 = vmax.f32 %v11944, %v12042
  %v12141 = vmax.f32 %v11945, %v12043
  %v12142 = vmax.f32 %v11946, %v12044
  %v12143 = vmax.f32 %v11947, %v12045
  %v12144 = vmax.f32 %v11948, %v12046
  %v12145 = vmax.f32 %v11949, %v12047
  %v12146 = vmax.f32 %v11950, %v12048
  %v12147 = vmax.f32 %v11951, %v12049
  %v12148 = vmax.f32 %v11952, %v12050
  %v12149 = vmax.f32 %v11953, %v12051
  %v12150 = vmax.f32 %v11954, %v12052
  %v12151 = vmax.f32 %v11955, %v12053
  %v12152 = vmax.f32 %v11956, %v12054
  %v12153 = vmax.f32 %v11957, %v12055
  %v12154 = vmax.f32 %v11958, %v12056
  %v12155 = vmax.f32 %v11959, %v12057
  %v12156 = vmax.f32 %v11960, %v12058
  %v12157 = vmax.f32 %v11961, %v12059
  %v12158 = vmax.f32 %v11962, %v12060
  %v12159 = vmax.f32 %v11963, %v12061
  %v12160 = vmax.f32 %v11964, %v12062
  %v12161 = vmax.f32 %v11965, %v12063
  %v12162 = vmax.f32 %v11966, %v12064
  %v12163 = vmax.f32 %v11967, %v12065
  %v12164 = vmax.f32 %v11968, %v12066
  %v12165 = vmax.f32 %v11969, %v12067
  %v12166 = vmax.f32 %v11970, %v12068
  %v12167 = vmax.f32 %v11971, %v12069
  %v12168 = vmax.f32 %v11972, %v12070
  %v12169 = vmax.f32 %v11973, %v12071
  %v12170 = vmax.f32 %v11974, %v12072
  %v12171 = vmax.f32 %v11975, %v12073
  %v12172 = vmax.f32 %v11976, %v12074
  %v12173 = vmax.f32 %v11977, %v12075
  %v12174 = vmax.f32 %v11978, %v12076
  %v12175 = vmax.f32 %v11979, %v12077
  %v12176 = vmax.f32 %v11980, %v12078
  %v12177 = vmax.f32 %v11981, %v12079
  %v12178 = vmax.f32 %v11982, %v12080
  %v12179 = vmax.f32 %v11983, %v12081
  %v12180 = vmax.f32 %v11984, %v12082
  %v12181 = vmax.f32 %v11985, %v12083
  %v12182 = vmax.f32 %v11986, %v12084
  %v12183 = vmax.f32 %v11987, %v12085
  %v12184 = vmax.f32 %v11988, %v12086
  %v12185 = vmax.f32 %v11989, %v12087
  %v12186 = vmax.f32 %v11990, %v12088
  %v12187 = vmax.f32 %v11991, %v12089
  %v12188 = vmax.f32 %v11992, %v12090
  %v12189 = vmax.f32 %v11993, %v12091
  %v12190 = vmax.f32 %v11994, %v12092
  %v12191 = vmax.f32 %v11995, %v12093
  %v12192 = vmax.f32 %v11996, %v12094
  %v12193 = vmax.f32 %v11997, %v12095
  %v12194 = vmax.f32 %v11998, %v12096
  %v12195 = vmax.f32 %v11999, %v12097
  %v12196 = vmax.f32 %v12000, %v12098
  %v12197 = vmax.f32 %v12001, %v12099
  %v12198 = vmax.f32 %v12002, %v12100
  %v12199 = vmax.f32 %v12003, %v12101
  %v12200 = vmax.f32 %v12004, %v12102
  %v12201 = vmax.f32 %v12005, %v12103
  %v12202 = vmax.f32 %v12006, %v12104
  %v12203 = vmax.f32 %v12007, %v12105
  %v12204 = vmax.f32 %v12008, %v12106
  %v12205 = vmax.f32 %v12009, %v12107
  %v12206 = vmax.f32 %v12010, %v12108
  %v12207 = vmax.f32 %v12011, %v12109
  %v12208 = vmax.f32 %v12012, %v12110
  %v12209 = vmax.f32 %v12013, %v12111
  %v12210 = vmax.f32 %v12014, %v12112
  %v12211 = vmax.f32 %v12015, %v12113
  %v12212 = vmax.f32 %v12016, %v12114
  %v12213 = vmax.f32 %v12017, %v12115
  %v12214 = vmax.f32 %v12018, %v12116
  %v12215 = vmax.f32 %v12019, %v12117
  %v12216 = vmax.f32 %v12020, %v12118
  %v12217 = vmax.f32 %v12021, %v12119
  %v12218 = vmax.f32 %v12022, %v12120
  %v12219 = vmax.f32 %v12023, %v12121
  %v12220 = vmax.f32 %v12024, %v12122
  %v12221 = vmax.f32 %v12025, %v12123
  %v12222 = vmax.f32 %v12026, %v12124
  %v12223 = vmax.f32 %v12027, %v12125
  %v12224 = vmax.f32 %v12028, %v12126
  %v12225 = vmax.f32 %v12029, %v12127
  %v12226 = vmax.f32 %v12030, %v12128
  %v12227 = vmax.f32 %v12031, %v12129
  %v12228 = vmax.f32 %v12032, %v12130
  %v12229 = vmax.f32 %v12033, %v12131
  %v12230 = vmax.f32 %v12034, %v12132
  %v12231 = vmax.f32 %v12035, %v12133
  %v12232 = vmax.f32 %v12036, %v12134
  %v12233 = vmax.f32 %v12037, %v12135
  %v12234 = vmax.f32 %v12038, %v12136
  %v12235 = vmax.f32 %v12039, %v12137
  %12236 = vst.msk [vmem:[#allocation5] sm:$0xff] %vm63, %v12138
  %12237 = vst.msk [vmem:[#allocation5 + $0x8] sm:$0xff] %vm63, %v12139
  %12238 = vst.msk [vmem:[#allocation5 + $0x10] sm:$0xff] %vm63, %v12140
  %12239 = vst.msk [vmem:[#allocation5 + $0x18] sm:$0xff] %vm63, %v12141
  %12240 = vst.msk [vmem:[#allocation5 + $0x20] sm:$0xff] %vm63, %v12142
  %12241 = vst.msk [vmem:[#allocation5 + $0x28] sm:$0xff] %vm63, %v12143
  %12242 = vst.msk [vmem:[#allocation5 + $0x30] sm:$0xff] %vm63, %v12144
  %12243 = vst.msk [vmem:[#allocation5 + $0x38] sm:$0xff] %vm63, %v12145
  %12244 = vst.msk [vmem:[#allocation5 + $0x40] sm:$0xff] %vm63, %v12146
  %12245 = vst.msk [vmem:[#allocation5 + $0x48] sm:$0xff] %vm63, %v12147
  %12246 = vst.msk [vmem:[#allocation5 + $0x50] sm:$0xff] %vm63, %v12148
  %12247 = vst.msk [vmem:[#allocation5 + $0x58] sm:$0xff] %vm63, %v12149
  %12248 = vst.msk [vmem:[#allocation5 + $0x60] sm:$0xff] %vm63, %v12150
  %12249 = vst.msk [vmem:[#allocation5 + $0x68] sm:$0xff] %vm63, %v12151
  %12250 = vst.msk [vmem:[#allocation5 + $0x70] sm:$0xff] %vm63, %v12152
  %12251 = vst.msk [vmem:[#allocation5 + $0x78] sm:$0xff] %vm63, %v12153
  %12252 = vst.msk [vmem:[#allocation5 + $0x80] sm:$0xff] %vm63, %v12154
  %12253 = vst.msk [vmem:[#allocation5 + $0x88] sm:$0xff] %vm63, %v12155
  %12254 = vst.msk [vmem:[#allocation5 + $0x90] sm:$0xff] %vm63, %v12156
  %12255 = vst.msk [vmem:[#allocation5 + $0x98] sm:$0xff] %vm63, %v12157
  %12256 = vst.msk [vmem:[#allocation5 + $0xa0] sm:$0xff] %vm63, %v12158
  %12257 = vst.msk [vmem:[#allocation5 + $0xa8] sm:$0xff] %vm63, %v12159
  %12258 = vst.msk [vmem:[#allocation5 + $0xb0] sm:$0xff] %vm63, %v12160
  %12259 = vst.msk [vmem:[#allocation5 + $0xb8] sm:$0xff] %vm63, %v12161
  %12260 = vst.msk [vmem:[#allocation5 + $0xc0] sm:$0xff] %vm63, %v12162
  %12261 = vst.msk [vmem:[#allocation5 + $0xc8] sm:$0xff] %vm63, %v12163
  %12262 = vst.msk [vmem:[#allocation5 + $0xd0] sm:$0xff] %vm63, %v12164
  %12263 = vst.msk [vmem:[#allocation5 + $0xd8] sm:$0xff] %vm63, %v12165
  %12264 = vst.msk [vmem:[#allocation5 + $0xe0] sm:$0xff] %vm63, %v12166
  %12265 = vst.msk [vmem:[#allocation5 + $0xe8] sm:$0xff] %vm63, %v12167
  %12266 = vst.msk [vmem:[#allocation5 + $0xf0] sm:$0xff] %vm63, %v12168
  %12267 = vst.msk [vmem:[#allocation5 + $0xf8] sm:$0xff] %vm63, %v12169
  %12268 = vst.msk [vmem:[#allocation5 + $0x100] sm:$0xff] %vm63, %v12170
  %12269 = vst.msk [vmem:[#allocation5 + $0x108] sm:$0xff] %vm63, %v12171
  %12270 = vst.msk [vmem:[#allocation5 + $0x110] sm:$0xff] %vm63, %v12172
  %12271 = vst.msk [vmem:[#allocation5 + $0x118] sm:$0xff] %vm63, %v12173
  %12272 = vst.msk [vmem:[#allocation5 + $0x120] sm:$0xff] %vm63, %v12174
  %12273 = vst.msk [vmem:[#allocation5 + $0x128] sm:$0xff] %vm63, %v12175
  %12274 = vst.msk [vmem:[#allocation5 + $0x130] sm:$0xff] %vm63, %v12176
  %12275 = vst.msk [vmem:[#allocation5 + $0x138] sm:$0xff] %vm63, %v12177
  %12276 = vst.msk [vmem:[#allocation5 + $0x140] sm:$0xff] %vm63, %v12178
  %12277 = vst.msk [vmem:[#allocation5 + $0x148] sm:$0xff] %vm63, %v12179
  %12278 = vst.msk [vmem:[#allocation5 + $0x150] sm:$0xff] %vm63, %v12180
  %12279 = vst.msk [vmem:[#allocation5 + $0x158] sm:$0xff] %vm63, %v12181
  %12280 = vst.msk [vmem:[#allocation5 + $0x160] sm:$0xff] %vm63, %v12182
  %12281 = vst.msk [vmem:[#allocation5 + $0x168] sm:$0xff] %vm63, %v12183
  %12282 = vst.msk [vmem:[#allocation5 + $0x170] sm:$0xff] %vm63, %v12184
  %12283 = vst.msk [vmem:[#allocation5 + $0x178] sm:$0xff] %vm63, %v12185
  %12284 = vst.msk [vmem:[#allocation5 + $0x180] sm:$0xff] %vm63, %v12186
  %12285 = vst.msk [vmem:[#allocation5 + $0x188] sm:$0xff] %vm63, %v12187
  %12286 = vst.msk [vmem:[#allocation5 + $0x190] sm:$0xff] %vm63, %v12188
  %12287 = vst.msk [vmem:[#allocation5 + $0x198] sm:$0xff] %vm63, %v12189
  %12288 = vst.msk [vmem:[#allocation5 + $0x1a0] sm:$0xff] %vm63, %v12190
  %12289 = vst.msk [vmem:[#allocation5 + $0x1a8] sm:$0xff] %vm63, %v12191
  %12290 = vst.msk [vmem:[#allocation5 + $0x1b0] sm:$0xff] %vm63, %v12192
  %12291 = vst.msk [vmem:[#allocation5 + $0x1b8] sm:$0xff] %vm63, %v12193
  %12292 = vst.msk [vmem:[#allocation5 + $0x1c0] sm:$0xff] %vm63, %v12194
  %12293 = vst.msk [vmem:[#allocation5 + $0x1c8] sm:$0xff] %vm63, %v12195
  %12294 = vst.msk [vmem:[#allocation5 + $0x1d0] sm:$0xff] %vm63, %v12196
  %12295 = vst.msk [vmem:[#allocation5 + $0x1d8] sm:$0xff] %vm63, %v12197
  %12296 = vst.msk [vmem:[#allocation5 + $0x1e0] sm:$0xff] %vm63, %v12198
  %12297 = vst.msk [vmem:[#allocation5 + $0x1e8] sm:$0xff] %vm63, %v12199
  %12298 = vst.msk [vmem:[#allocation5 + $0x1f0] sm:$0xff] %vm63, %v12200
  %12299 = vst.msk [vmem:[#allocation5 + $0x1f8] sm:$0xff] %vm63, %v12201
  %12300 = vst.msk [vmem:[#allocation5 + $0x200] sm:$0xff] %vm63, %v12202
  %12301 = vst.msk [vmem:[#allocation5 + $0x208] sm:$0xff] %vm63, %v12203
  %12302 = vst.msk [vmem:[#allocation5 + $0x210] sm:$0xff] %vm63, %v12204
  %12303 = vst.msk [vmem:[#allocation5 + $0x218] sm:$0xff] %vm63, %v12205
  %12304 = vst.msk [vmem:[#allocation5 + $0x220] sm:$0xff] %vm63, %v12206
  %12305 = vst.msk [vmem:[#allocation5 + $0x228] sm:$0xff] %vm63, %v12207
  %12306 = vst.msk [vmem:[#allocation5 + $0x230] sm:$0xff] %vm63, %v12208
  %12307 = vst.msk [vmem:[#allocation5 + $0x238] sm:$0xff] %vm63, %v12209
  %12308 = vst.msk [vmem:[#allocation5 + $0x240] sm:$0xff] %vm63, %v12210
  %12309 = vst.msk [vmem:[#allocation5 + $0x248] sm:$0xff] %vm63, %v12211
  %12310 = vst.msk [vmem:[#allocation5 + $0x250] sm:$0xff] %vm63, %v12212
  %12311 = vst.msk [vmem:[#allocation5 + $0x258] sm:$0xff] %vm63, %v12213
  %12312 = vst.msk [vmem:[#allocation5 + $0x260] sm:$0xff] %vm63, %v12214
  %12313 = vst.msk [vmem:[#allocation5 + $0x268] sm:$0xff] %vm63, %v12215
  %12314 = vst.msk [vmem:[#allocation5 + $0x270] sm:$0xff] %vm63, %v12216
  %12315 = vst.msk [vmem:[#allocation5 + $0x278] sm:$0xff] %vm63, %v12217
  %12316 = vst.msk [vmem:[#allocation5 + $0x280] sm:$0xff] %vm63, %v12218
  %12317 = vst.msk [vmem:[#allocation5 + $0x288] sm:$0xff] %vm63, %v12219
  %12318 = vst.msk [vmem:[#allocation5 + $0x290] sm:$0xff] %vm63, %v12220
  %12319 = vst.msk [vmem:[#allocation5 + $0x298] sm:$0xff] %vm63, %v12221
  %12320 = vst.msk [vmem:[#allocation5 + $0x2a0] sm:$0xff] %vm63, %v12222
  %12321 = vst.msk [vmem:[#allocation5 + $0x2a8] sm:$0xff] %vm63, %v12223
  %12322 = vst.msk [vmem:[#allocation5 + $0x2b0] sm:$0xff] %vm63, %v12224
  %12323 = vst.msk [vmem:[#allocation5 + $0x2b8] sm:$0xff] %vm63, %v12225
  %12324 = vst.msk [vmem:[#allocation5 + $0x2c0] sm:$0xff] %vm63, %v12226
  %12325 = vst.msk [vmem:[#allocation5 + $0x2c8] sm:$0xff] %vm63, %v12227
  %12326 = vst.msk [vmem:[#allocation5 + $0x2d0] sm:$0xff] %vm63, %v12228
  %12327 = vst.msk [vmem:[#allocation5 + $0x2d8] sm:$0xff] %vm63, %v12229
  %12328 = vst.msk [vmem:[#allocation5 + $0x2e0] sm:$0xff] %vm63, %v12230
  %12329 = vst.msk [vmem:[#allocation5 + $0x2e8] sm:$0xff] %vm63, %v12231
  %12330 = vst.msk [vmem:[#allocation5 + $0x2f0] sm:$0xff] %vm63, %v12232
  %12331 = vst.msk [vmem:[#allocation5 + $0x2f8] sm:$0xff] %vm63, %v12233
  %12332 = vst.msk [vmem:[#allocation5 + $0x300] sm:$0xff] %vm63, %v12234
  %12333 = vst.msk [vmem:[#allocation5 + $0x308] sm:$0xff] %vm63, %v12235
  %v12334 = vld [vmem:[#allocation5] ss:$196 sm:$0xf]
  %s12335 = scalar_lea.vmem [#allocation5], 4
  %v12336 = vld [vmem:[%s12335] ss:$196 sm:$0xf]
  %s12337 = scalar_lea.vmem [#allocation5], 56
  %v12338 = vld [vmem:[%s12337] ss:$196 sm:$0xf]
  %s12339 = scalar_lea.vmem [#allocation5], 60
  %v12340 = vld [vmem:[%s12339] ss:$196 sm:$0xf]
  %12342 = vrot.lane.b32.xlu0 %v12336, 32
  %v12343 = vpop.permute.xlu0 %12342
  %12346 = vrot.lane.b32.xlu0 %v12338, 64
  %v12347 = vpop.permute.xlu0 %12346
  %12350 = vrot.lane.b32.xlu0 %v12340, 96
  %v12351 = vpop.permute.xlu0 %12350
  %v12353 = vsel %vm63, %v12334, %v12343
  %vm12354 = vcmask 523264
  %v12355 = vsel %vm12354, %v12353, %v12347
  %vm12356 = vcmask 785408
  %v12357 = vsel %vm12356, %v12355, %v12351
  %v12358 = vld [vmem:[%s5] sm:$0xff]
  %v12359 = vld [vmem:[%s5 + $0x8] sm:$0xff]
  %v12360 = vld [vmem:[%s5 + $0x10] sm:$0xff]
  %v12361 = vld [vmem:[%s5 + $0x18] sm:$0xff]
  %v12362 = vld [vmem:[%s5 + $0x20] sm:$0xff]
  %v12363 = vld [vmem:[%s5 + $0x28] sm:$0xff]
  %v12364 = vld [vmem:[%s5 + $0x30] sm:$0xff]
  %v12365 = vld [vmem:[%s5 + $0x38] sm:$0xff]
  %v12366 = vld [vmem:[%s5 + $0x40] sm:$0xff]
  %v12367 = vld [vmem:[%s5 + $0x48] sm:$0xff]
  %v12368 = vld [vmem:[%s5 + $0x50] sm:$0xff]
  %v12369 = vld [vmem:[%s5 + $0x58] sm:$0xff]
  %v12370 = vld [vmem:[%s5 + $0x60] sm:$0xff]
  %v12371 = vld [vmem:[%s5 + $0x68] sm:$0xff]
  %v12372 = vld [vmem:[%s5 + $0x70] sm:$0xff]
  %v12373 = vld [vmem:[%s5 + $0x78] sm:$0xff]
  %v12374 = vld [vmem:[%s6] sm:$0x1]
  %v12376 = vlaneseq
  %v12377 = vshrl.u32 %v12376, 7
  %v12378 = vsub.s32 0, %v12377
  %v12379 = vrot.slane %v12374, %v12378
  %12381 = vmatprep.subr.mxu0 0.0
  %12382 = vmatpush1.msra.mxu0 %v12358
  %12383 = vmatprep.subr.mxu0 0.0
  %12384 = vmatpush1.msra.mxu0 %v12359
  %12385 = vmatprep.subr.mxu0 0.0
  %12386 = vmatpush1.msra.mxu0 %v12360
  %12387 = vmatprep.subr.mxu0 0.0
  %12388 = vmatpush1.msra.mxu0 %v12361
  %12389 = vmatprep.subr.mxu0 0.0
  %12390 = vmatpush1.msra.mxu0 %v12362
  %12391 = vmatprep.subr.mxu0 0.0
  %12392 = vmatpush1.msra.mxu0 %v12363
  %12393 = vmatprep.subr.mxu0 0.0
  %12394 = vmatpush1.msra.mxu0 %v12364
  %12395 = vmatprep.subr.mxu0 0.0
  %12396 = vmatpush1.msra.mxu0 %v12365
  %12397 = vmatprep.subr.mxu0 0.0
  %12398 = vmatpush1.msra.mxu0 %v12366
  %12399 = vmatprep.subr.mxu0 0.0
  %12400 = vmatpush1.msra.mxu0 %v12367
  %12401 = vmatprep.subr.mxu0 0.0
  %12402 = vmatpush1.msra.mxu0 %v12368
  %12403 = vmatprep.subr.mxu0 0.0
  %12404 = vmatpush1.msra.mxu0 %v12369
  %12405 = vmatprep.subr.mxu0 0.0
  %12406 = vmatpush1.msra.mxu0 %v12370
  %12407 = vmatprep.subr.mxu0 0.0
  %12408 = vmatpush1.msra.mxu0 %v12371
  %12409 = vmatprep.subr.mxu0 0.0
  %12410 = vmatpush1.msra.mxu0 %v12372
  %12411 = vmatprep.subr.mxu0 0.0
  %12412 = vmatpush1.msra.mxu0 %v12373
  %12413 = vmatprep.subr.mxu0 0.0
  %12414 = vmatpush1.msra.mxu0 0.0
  %12415 = vmatprep.subr.mxu0 0.0
  %12416 = vmatpush1.msra.mxu0 0.0
  %12417 = vmatprep.subr.mxu0 0.0
  %12418 = vmatpush1.msra.mxu0 0.0
  %12419 = vmatprep.subr.mxu0 0.0
  %12420 = vmatpush1.msra.mxu0 0.0
  %12421 = vmatprep.subr.mxu0 0.0
  %12422 = vmatpush1.msra.mxu0 0.0
  %12423 = vmatprep.subr.mxu0 0.0
  %12424 = vmatpush1.msra.mxu0 0.0
  %12425 = vmatprep.subr.mxu0 0.0
  %12426 = vmatpush1.msra.mxu0 0.0
  %12427 = vmatprep.subr.mxu0 0.0
  %12428 = vmatpush1.msra.mxu0 0.0
  %12429 = vmatprep.subr.mxu0 0.0
  %12430 = vmatpush1.msra.mxu0 0.0
  %12431 = vmatprep.subr.mxu0 0.0
  %12432 = vmatpush1.msra.mxu0 0.0
  %12433 = vmatprep.subr.mxu0 0.0
  %12434 = vmatpush1.msra.mxu0 0.0
  %12435 = vmatprep.subr.mxu0 0.0
  %12436 = vmatpush1.msra.mxu0 0.0
  %12437 = vmatprep.subr.mxu0 0.0
  %12438 = vmatpush1.msra.mxu0 0.0
  %12439 = vmatprep.subr.mxu0 0.0
  %12440 = vmatpush1.msra.mxu0 0.0
  %12441 = vmatprep.subr.mxu0 0.0
  %12442 = vmatpush1.msra.mxu0 0.0
  %12443 = vmatprep.subr.mxu0 0.0
  %12444 = vmatpush1.msra.mxu0 0.0
  %12445 = vmatprep.mubr.f32.mxu0 0.0
  %12446 = vmatmul.mubr.f32.gmra.mrb[0].mxu0 %v12357
  %v12447 = vpop.f32.mrb[0].mxu0
  %v12448 = vadd.f32 %v12379, %v12447
  %v12449 = vpop.f32.mrb[0].mxu0
  %12450 = vdwg.mxu0
  %v12451 = vmax.f32 %v12448, 0.0
  %v12452 = vld [vmem:[%s7] sm:$0xff]
  %v12453 = vld [vmem:[%s7 + $0x8] sm:$0xff]
  %v12454 = vld [vmem:[%s7 + $0x10] sm:$0xff]
  %v12455 = vld [vmem:[%s7 + $0x18] sm:$0xff]
  %v12456 = vld [vmem:[%s7 + $0x20] sm:$0xff]
  %v12457 = vld [vmem:[%s7 + $0x28] sm:$0xff]
  %v12458 = vld [vmem:[%s7 + $0x30] sm:$0xff]
  %v12459 = vld [vmem:[%s7 + $0x38] sm:$0xff]
  %v12460 = vld [vmem:[%s7 + $0x40] sm:$0xff]
  %v12461 = vld [vmem:[%s7 + $0x48] sm:$0xff]
  %v12462 = vld [vmem:[%s7 + $0x50] sm:$0xff]
  %v12463 = vld [vmem:[%s7 + $0x58] sm:$0xff]
  %v12464 = vld [vmem:[%s7 + $0x60] sm:$0xff]
  %v12465 = vld [vmem:[%s7 + $0x68] sm:$0xff]
  %v12466 = vld [vmem:[%s7 + $0x70] sm:$0xff]
  %v12467 = vld [vmem:[%s8] sm:$0x1]
  %v12469 = vlaneseq
  %v12470 = vshrl.u32 %v12469, 7
  %v12471 = vsub.s32 0, %v12470
  %v12472 = vrot.slane %v12467, %v12471
  %vm12474 = vcmask 982016
  %v12476 = vsel %vm12474, %v12451, 0
  %12478 = vmatprep.subr.mxu0 0.0
  %12479 = vmatpush1.msra.mxu0 %v12452
  %12480 = vmatprep.subr.mxu0 0.0
  %12481 = vmatpush1.msra.mxu0 %v12453
  %12482 = vmatprep.subr.mxu0 0.0
  %12483 = vmatpush1.msra.mxu0 %v12454
  %12484 = vmatprep.subr.mxu0 0.0
  %12485 = vmatpush1.msra.mxu0 %v12455
  %12486 = vmatprep.subr.mxu0 0.0
  %12487 = vmatpush1.msra.mxu0 %v12456
  %12488 = vmatprep.subr.mxu0 0.0
  %12489 = vmatpush1.msra.mxu0 %v12457
  %12490 = vmatprep.subr.mxu0 0.0
  %12491 = vmatpush1.msra.mxu0 %v12458
  %12492 = vmatprep.subr.mxu0 0.0
  %12493 = vmatpush1.msra.mxu0 %v12459
  %12494 = vmatprep.subr.mxu0 0.0
  %12495 = vmatpush1.msra.mxu0 %v12460
  %12496 = vmatprep.subr.mxu0 0.0
  %12497 = vmatpush1.msra.mxu0 %v12461
  %12498 = vmatprep.subr.mxu0 0.0
  %12499 = vmatpush1.msra.mxu0 %v12462
  %12500 = vmatprep.subr.mxu0 0.0
  %12501 = vmatpush1.msra.mxu0 %v12463
  %12502 = vmatprep.subr.mxu0 0.0
  %12503 = vmatpush1.msra.mxu0 %v12464
  %12504 = vmatprep.subr.mxu0 0.0
  %12505 = vmatpush1.msra.mxu0 %v12465
  %12506 = vmatprep.subr.mxu0 0.0
  %12507 = vmatpush1.msra.mxu0 %v12466
  %12508 = vmatprep.subr.mxu0 0.0
  %12509 = vmatpush1.msra.mxu0 0.0
  %12510 = vmatprep.subr.mxu0 0.0
  %12511 = vmatpush1.msra.mxu0 0.0
  %12512 = vmatprep.subr.mxu0 0.0
  %12513 = vmatpush1.msra.mxu0 0.0
  %12514 = vmatprep.subr.mxu0 0.0
  %12515 = vmatpush1.msra.mxu0 0.0
  %12516 = vmatprep.subr.mxu0 0.0
  %12517 = vmatpush1.msra.mxu0 0.0
  %12518 = vmatprep.subr.mxu0 0.0
  %12519 = vmatpush1.msra.mxu0 0.0
  %12520 = vmatprep.subr.mxu0 0.0
  %12521 = vmatpush1.msra.mxu0 0.0
  %12522 = vmatprep.subr.mxu0 0.0
  %12523 = vmatpush1.msra.mxu0 0.0
  %12524 = vmatprep.subr.mxu0 0.0
  %12525 = vmatpush1.msra.mxu0 0.0
  %12526 = vmatprep.subr.mxu0 0.0
  %12527 = vmatpush1.msra.mxu0 0.0
  %12528 = vmatprep.subr.mxu0 0.0
  %12529 = vmatpush1.msra.mxu0 0.0
  %12530 = vmatprep.subr.mxu0 0.0
  %12531 = vmatpush1.msra.mxu0 0.0
  %12532 = vmatprep.subr.mxu0 0.0
  %12533 = vmatpush1.msra.mxu0 0.0
  %12534 = vmatprep.subr.mxu0 0.0
  %12535 = vmatpush1.msra.mxu0 0.0
  %12536 = vmatprep.subr.mxu0 0.0
  %12537 = vmatpush1.msra.mxu0 0.0
  %12538 = vmatprep.subr.mxu0 0.0
  %12539 = vmatpush1.msra.mxu0 0.0
  %12540 = vmatprep.subr.mxu0 0.0
  %12541 = vmatpush1.msra.mxu0 0.0
  %12542 = vmatprep.mubr.f32.mxu0 0.0
  %12543 = vmatmul.mubr.f32.gmra.mrb[0].mxu0 %v12476
  %v12544 = vpop.f32.mrb[0].mxu0
  %v12545 = vadd.f32 %v12472, %v12544
  %v12546 = vpop.f32.mrb[0].mxu0
  %12547 = vdwg.mxu0
  %v12548 = vmax.f32 %v12545, 0.0
  %vm12549 = vcmask 683008
  %v12550 = vsel %vm12549, %v12548, 0.0
  %v12551 = vrot.slane %v12550, 4
  %v12552 = vadd.f32 %v12550, %v12551
  %v12553 = vrot.slane %v12552, 2
  %v12554 = vadd.f32 %v12552, %v12553
  %v12555 = vrot.slane %v12554, 1
  %v12556 = vadd.f32 %v12554, %v12555
  %v12557 = vrcp.pop 4.0
  %v12558 = vmul.f32 %v12556, %v12557
  %v12559 = vsub.f32 %v12548, %v12558
  %v12560 = vmul.f32 %v12559, %v12559
  %v12561 = vsel %vm12549, %v12560, 0.0
  %v12562 = vrot.slane %v12561, 4
  %v12563 = vadd.f32 %v12561, %v12562
  %v12564 = vrot.slane %v12563, 2
  %v12565 = vadd.f32 %v12563, %v12564
  %v12566 = vrot.slane %v12565, 1
  %v12567 = vadd.f32 %v12565, %v12566
  %v12568 = vmul.f32 %v12567, %v12557
  %v12569 = vadd.f32 %v12568, 1e-05
  %v12570 = vrsqrt.pop %v12569
  %v12571 = vmul.f32 %v12559, %v12570
  %v12572 = vld [vmem:[%s9] sm:$0x1]
  %v12574 = vlaneseq
  %v12575 = vshrl.u32 %v12574, 7
  %v12576 = vsub.s32 0, %v12575
  %v12577 = vrot.slane %v12572, %v12576
  %v12579 = vmul.f32 %v12571, %v12577
  %v12580 = vld [vmem:[%s10] sm:$0x1]
  %v12582 = vlaneseq
  %v12583 = vshrl.u32 %v12582, 7
  %v12584 = vsub.s32 0, %v12583
  %v12585 = vrot.slane %v12580, %v12584
  %v12587 = vadd.f32 %v12579, %v12585
  %v12588 = vld [vmem:[%s11] sm:$0x1]
  %v12590 = vlaneseq
  %v12591 = vshrl.u32 %v12590, 7
  %v12592 = vsub.s32 0, %v12591
  %v12593 = vrot.slane %v12588, %v12592
  %v12595 = vmul.f32 %v12587, %v12593
  %v12596 = vsel %vm12549, %v12595, 0.0
  %12597 = vadd.xlane.f32.xlu0 %v12596
  %v12598 = vpop.xlane.xlu0 %12597
  %v12599 = vld [vmem:[#allocation6] sm:$0x1]
  %v12601 = vlaneseq
  %v12602 = vshrl.u32 %v12601, 7
  %v12603 = vsub.s32 0, %v12602
  %v12604 = vrot.slane %v12599, %v12603
  %v12606 = vadd.f32 %v12598, %v12604
  %v12607 = vsub.f32 0.0, %v12606
  %v12608 = vmul.f32 %v12607, 1.442695
  %v12609 = vpow.pop %v12608
  %v12610 = vadd.f32 %v12609, 1.0
  %v12611 = vrcp.pop %v12610
  %v12612 = vmul.f32 1.0, %v12611
  %vm12613 = vcmask 3072
  %12614 = vst.msk [vmem:[%s13] sm:$0xf] %vm12613, %v12612
  // Predicated region
  $region54: #{lenet5_forward.1} parent=0 // pred_check
    _
  $region55: #{lenet5_forward.1} parent=0 // pred_check_branch
    %12616 = sbr.rel (0) target = $region57
  $region56: #{lenet5_forward.1} parent=0 // pred_region
    _
  $region57: #{lenet5_forward.1} parent=0 // pred_fallthru
    _
  // Predicated region
  $region58: #{lenet5_forward.1} parent=0 // pred_check
    _
  $region59: #{lenet5_forward.1} parent=0 // pred_check_branch
    %12618 = sbr.rel (0) target = $region61
  $region60: #{lenet5_forward.1} parent=0 // pred_region
    _
  $region61: #{lenet5_forward.1} parent=0 // pred_fallthru
    _

</llo_original>
